<compile_context>
chip_gen: v6e
topology: v6e:2x2x1
jax: 0.10.0
libtpu: 0.0.40
codegen_flags: <defaults>
</compile_context>

<pallas_src>
import functools

import numpy as np

import jax
import jax.numpy as jnp
from jax import lax
from jax.experimental import pallas as pl
from jax.experimental.pallas import tpu as pltpu


# ----------------------------------------------------------------------------
# The single fused UNet kernel: 8 matmuls + elementwise epilogues, all in VMEM.
# ----------------------------------------------------------------------------
def _unet_kernel(x_ref,
                 w0_ref, b0_ref, w1_ref, b1_ref, w2_ref, b2_ref,
                 w3_ref, b3_ref, w4a_ref, w4b_ref, b4_ref,
                 w5a_ref, w5b_ref, b5_ref, o_ref):
    bf16, f32 = jnp.bfloat16, jnp.float32

    def mm(a, w_ref):  # bf16 MXU inputs, f32 accumulation
        return jnp.dot(a.astype(bf16), w_ref[...], preferred_element_type=f32)

    def lrelu(v):      # LeakyReLU(0.2), f32 VPU
        return jnp.where(v > 0, v, 0.2 * v)

    def relu(v):
        return jnp.maximum(v, 0.0)

    x = x_ref[...]                                               # (M, Cin*H*W) f32

    # ---- encoder (BN already folded into w/b) -------------------------------
    h0 = mm(x, w0_ref) + b0_ref[...]                             # down0: (M, 8*8*8)
    h1 = mm(lrelu(h0), w1_ref) + b1_ref[...]                     # down1: (M, 16*4*4)
    h2 = mm(lrelu(h1), w2_ref) + b2_ref[...]                     # down2: (M, 32*2*2)

    # ---- decoder (skip concats realized as exact split-weight sums) ---------
    h3 = mm(relu(h2), w3_ref) + b3_ref[...]                      # up2:   (M, 16*4*4)
    h4 = (mm(relu(h1), w4a_ref)                                  # skip: d1
          + mm(relu(h3), w4b_ref)                                # sub:  u2
          + b4_ref[...])                                         # up1:   (M, 8*8*8)
    h5 = (mm(relu(h0), w5a_ref)                                  # skip: d0
          + mm(relu(h4), w5b_ref)                                # sub:  u1
          + b5_ref[...])                                         # up0:   (M, out_c*16*16)

    o_ref[...] = jnp.tanh(h5)                                    # final Tanh, lane-dense


# ----------------------------------------------------------------------------
# Forward wrapper: NCHW in -> flatten -> one pallas_call -> NCHW out.
# ----------------------------------------------------------------------------
def basic_weather_generator_forward(fused, inx):
    """inx: (n, c, h, w) NCHW (PyTorch convention) -> (n, out_c, h, w)."""
    n, c, h, w = inx.shape
    x2d = inx.astype(jnp.float32).reshape(n, c * h * w)          # NCHW flattening
    m_pad = max(8, -(-n // 8) * 8)                               # round batch up to a sublane tile
    if m_pad != n:
        x2d = jnp.pad(x2d, ((0, m_pad - n), (0, 0)))

    args = (x2d,
            fused["w0"], fused["b0"], fused["w1"], fused["b1"],
            fused["w2"], fused["b2"], fused["w3"], fused["b3"],
            fused["w4a"], fused["w4b"], fused["b4"],
            fused["w5a"], fused["w5b"], fused["b5"])
    vmem = pl.BlockSpec(memory_space=pltpu.MemorySpace.VMEM)
    out_cols = fused["b5"].shape[-1]                             # out_c * h * w

    out = pl.pallas_call(
        _unet_kernel,
        out_shape=jax.ShapeDtypeStruct((m_pad, out_cols), jnp.float32),
        in_specs=[vmem] * len(args),
        out_specs=vmem,
    )(*args)

    out_c = out_cols // (h * w)
    return out[:n].reshape(n, out_c, h, w)                       # NCHW, no transpose needed


# ----------------------------------------------------------------------------
# Host-side (one-time) lowering of conv / conv-transpose to Toeplitz matrices.
# Row index = NCHW-flattened input (ci, hi, wi); col index = (co, ho, wo).
# ----------------------------------------------------------------------------
def _conv_toeplitz(w, H, W, stride=2, pad=1):
    """w: (Cout, Cin, kh, kw) — PyTorch Conv2d layout (cross-correlation)."""
    Cout, Cin, kh, kw = w.shape
    Ho = (H + 2 * pad - kh) // stride + 1
    Wo = (W + 2 * pad - kw) // stride + 1
    T = np.zeros((Cin * H * W, Cout * Ho * Wo), np.float32)
    ci, co = np.arange(Cin), np.arange(Cout)
    for ho in range(Ho):
        for wo in range(Wo):
            for di in range(kh):
                for dj in range(kw):
                    hi = ho * stride + di - pad
                    wi = wo * stride + dj - pad
                    if 0 <= hi < H and 0 <= wi < W:
                        rows = (ci * H + hi) * W + wi
                        cols = (co * Ho + ho) * Wo + wo
                        T[np.ix_(rows, cols)] += w[:, :, di, dj].T   # (Cin, Cout)
    return T, Ho, Wo


def _convT_toeplitz(w, H, W, stride=2, pad=1):
    """w: (Cin, Cout, kh, kw) — true PyTorch ConvTranspose2d semantics
    (ho = hi*stride - pad + di); no kernel-flip / channel-swap shortcut."""
    Cin, Cout, kh, kw = w.shape
    Ho = (H - 1) * stride - 2 * pad + kh
    Wo = (W - 1) * stride - 2 * pad + kw
    T = np.zeros((Cin * H * W, Cout * Ho * Wo), np.float32)
    ci, co = np.arange(Cin), np.arange(Cout)
    for hi in range(H):
        for wi in range(W):
            for di in range(kh):
                for dj in range(kw):
                    ho = hi * stride + di - pad
                    wo = wi * stride + dj - pad
                    if 0 <= ho < Ho and 0 <= wo < Wo:
                        rows = (ci * H + hi) * W + wi
                        cols = (co * Ho + ho) * Wo + wo
                        T[np.ix_(rows, cols)] += w[:, :, di, dj]     # (Cin, Cout)
    return T, Ho, Wo


def _bn_scale_shift(p, cout):
    """Eval-mode BatchNorm2d fold (running_mean=0, running_var=1, eps=1e-5)."""
    if "gamma" in p:
        scale = np.asarray(p["gamma"], np.float32) / np.sqrt(1.0 + 1e-5)
        shift = np.asarray(p["beta"], np.float32)
    else:
        scale = np.ones((cout,), np.float32)
        shift = np.zeros((cout,), np.float32)
    return scale, shift


def _fold(T, b, scale, shift, Ho, Wo):
    """Fold per-output-channel bias + BN into the Toeplitz matrix / full bias vector."""
    b = np.asarray(b, np.float32)
    T = T * np.repeat(scale, Ho * Wo)[None, :]
    b_full = np.repeat(b * scale + shift, Ho * Wo)
    return T.astype(np.float32), b_full.astype(np.float32)


# ----------------------------------------------------------------------------
# Synthetic (deterministic) raw parameters in PyTorch layouts.
# ----------------------------------------------------------------------------
def _raw_layer(key, shape_w, cout, with_bn):
    kw, kb, kg, kbt = jax.random.split(key, 4)
    p = dict(w=0.02 * jax.random.normal(kw, shape_w, jnp.float32),
             b=0.01 * jax.random.normal(kb, (cout,), jnp.float32))
    if with_bn:
        p["gamma"] = 1.0 + 0.1 * jax.random.normal(kg, (cout,), jnp.float32)
        p["beta"] = 0.1 * jax.random.normal(kbt, (cout,), jnp.float32)
    return p


def init_basic_weather_generator(key, in_channels, out_channels, ngf=8):
    ks = jax.random.split(key, 6)
    return {
        # encoder: Conv2d(k=4, s=2, p=1) weights in (Cout, Cin, kh, kw)
        "down0": _raw_layer(ks[0], (ngf, in_channels, 4, 4), ngf, with_bn=False),
        "down1": _raw_layer(ks[1], (2 * ngf, ngf, 4, 4), 2 * ngf, with_bn=True),
        "down2": _raw_layer(ks[2], (4 * ngf, 2 * ngf, 4, 4), 4 * ngf, with_bn=False),
        # decoder: ConvTranspose2d(k=4, s=2, p=1) weights in (Cin, Cout, kh, kw)
        "up2": _raw_layer(ks[3], (4 * ngf, 2 * ngf, 4, 4), 2 * ngf, with_bn=True),
        "up1": _raw_layer(ks[4], (4 * ngf, ngf, 4, 4), ngf, with_bn=True),
        "up0": _raw_layer(ks[5], (2 * ngf, out_channels, 4, 4), out_channels, with_bn=False),
    }


def build_fused_params(raw, in_channels, out_channels, ngf, H, W, weight_dtype=jnp.bfloat16):
    """Lower every layer to a BN-folded Toeplitz matrix + full bias, skip-concats split."""
    fused = {}

    def add(name, T, b_full):
        fused["w" + name] = jnp.asarray(T, weight_dtype)
        fused["b" + name] = jnp.asarray(b_full[None, :], jnp.float32)

    # encoder -----------------------------------------------------------------
    T0, H0, W0 = _conv_toeplitz(np.asarray(raw["down0"]["w"]), H, W)
    add("0", *_fold(T0, raw["down0"]["b"], *_bn_scale_shift(raw["down0"], ngf), H0, W0))

    T1, H1, W1 = _conv_toeplitz(np.asarray(raw["down1"]["w"]), H0, W0)
    add("1", *_fold(T1, raw["down1"]["b"], *_bn_scale_shift(raw["down1"], 2 * ngf), H1, W1))

    T2, H2, W2 = _conv_toeplitz(np.asarray(raw["down2"]["w"]), H1, W1)
    add("2", *_fold(T2, raw["down2"]["b"], *_bn_scale_shift(raw["down2"], 4 * ngf), H2, W2))

    # decoder -----------------------------------------------------------------
    T3, H3, W3 = _convT_toeplitz(np.asarray(raw["up2"]["w"]), H2, W2)
    add("3", *_fold(T3, raw["up2"]["b"], *_bn_scale_shift(raw["up2"], 2 * ngf), H3, W3))

    # up1 consumes cat([d1, u2], ch): split the ConvTranspose weight along Cin.
    w4 = np.asarray(raw["up1"]["w"])                                  # (4*ngf, ngf, 4, 4)
    T4a, H4, W4 = _convT_toeplitz(w4[:2 * ngf], H3, W3)               # d1 (skip) part
    T4b, _, _ = _convT_toeplitz(w4[2 * ngf:], H3, W3)                 # u2 (submodule) part
    s4, sh4 = _bn_scale_shift(raw["up1"], ngf)
    T4a, b4 = _fold(T4a, raw["up1"]["b"], s4, sh4, H4, W4)            # bias/shift added once
    T4b, _ = _fold(T4b, np.zeros((ngf,), np.float32), s4, np.zeros((ngf,), np.float32), H4, W4)
    fused["w4a"], fused["w4b"] = jnp.asarray(T4a, weight_dtype), jnp.asarray(T4b, weight_dtype)
    fused["b4"] = jnp.asarray(b4[None, :], jnp.float32)

    # up0 consumes cat([d0, u1], ch).
    w5 = np.asarray(raw["up0"]["w"])                                  # (2*ngf, out_c, 4, 4)
    T5a, H5, W5 = _convT_toeplitz(w5[:ngf], H4, W4)                   # d0 (skip) part
    T5b, _, _ = _convT_toeplitz(w5[ngf:], H4, W4)                     # u1 (submodule) part
    s5, sh5 = _bn_scale_shift(raw["up0"], out_channels)               # identity (no BN)
    T5a, b5 = _fold(T5a, raw["up0"]["b"], s5, sh5, H5, W5)
    T5b, _ = _fold(T5b, np.zeros((out_channels,), np.float32), s5,
                   np.zeros((out_channels,), np.float32), H5, W5)
    fused["w5a"], fused["w5b"] = jnp.asarray(T5a, weight_dtype), jnp.asarray(T5b, weight_dtype)
    fused["b5"] = jnp.asarray(b5[None, :], jnp.float32)

    return fused


# ----------------------------------------------------------------------------
# Pure-JAX reference (same 3-level UNet, NCHW) for correctness checking.
# ----------------------------------------------------------------------------
def _conv_ref(x, w, stride=2, pad=1):
    return lax.conv_general_dilated(x, w, (stride, stride), [(pad, pad), (pad, pad)],
                                    dimension_numbers=("NCHW", "OIHW", "NCHW"))


def _convT_ref(x, w, stride=2, pad=1):
    kh = w.shape[2]
    w_flip = jnp.transpose(jnp.flip(w, axis=(2, 3)), (1, 0, 2, 3))    # -> (Cout, Cin, kh, kw)
    return lax.conv_general_dilated(x, w_flip, (1, 1),
                                    [(kh - 1 - pad, kh - 1 - pad)] * 2,
                                    lhs_dilation=(stride, stride),
                                    dimension_numbers=("NCHW", "OIHW", "NCHW"))


def reference_forward(raw, inx):
    def bias(v, p):
        return v + p["b"][None, :, None, None]

    def bn(v, p):
        if "gamma" not in p:
            return v
        scale = p["gamma"] / jnp.sqrt(1.0 + 1e-5)
        return v * scale[None, :, None, None] + p["beta"][None, :, None, None]

    lrelu = lambda v: jnp.where(v > 0, v, 0.2 * v)
    relu = lambda v: jnp.maximum(v, 0.0)

    d0 = bias(_conv_ref(inx, raw["down0"]["w"]), raw["down0"])
    d1 = bn(bias(_conv_ref(lrelu(d0), raw["down1"]["w"]), raw["down1"]), raw["down1"])
    d2 = bias(_conv_ref(lrelu(d1), raw["down2"]["w"]), raw["down2"])
    u2 = bn(bias(_convT_ref(relu(d2), raw["up2"]["w"]), raw["up2"]), raw["up2"])
    u1 = bn(bias(_convT_ref(relu(jnp.concatenate([d1, u2], axis=1)), raw["up1"]["w"]),
                 raw["up1"]), raw["up1"])
    u0 = bias(_convT_ref(relu(jnp.concatenate([d0, u1], axis=1)), raw["up0"]["w"]), raw["up0"])
    return jnp.tanh(u0)


# ----------------------------------------------------------------------------
if __name__ == "__main__":
    key = jax.random.PRNGKey(0)
    k_param, k_input = jax.random.split(key)

    batch, in_channels, out_channels, H, W, ngf = 2, 4, 4, 16, 16, 8
    raw = init_basic_weather_generator(k_param, in_channels, out_channels, ngf=ngf)
    fused = build_fused_params(raw, in_channels, out_channels, ngf, H, W)

    inx = jax.random.normal(k_input, (batch, in_channels, H, W), jnp.float32)

    fwd = jax.jit(basic_weather_generator_forward)
    out = jax.block_until_ready(fwd(fused, inx))

    assert out.shape == (batch, out_channels, H, W), out.shape
    assert out.dtype == jnp.float32
    assert bool(jnp.all(jnp.isfinite(out)))

    # Correctness vs. pure-JAX reference (bf16 weights -> loose-but-meaningful tolerance).
    ref = jax.block_until_ready(jax.jit(reference_forward)(raw, inx))
    np.testing.assert_allclose(np.asarray(out), np.asarray(ref), rtol=2e-2, atol=1e-3)

    print("KERNEL_OK")
</pallas_src>

<mosaic_0001>
module attributes {stable_mosaic.version = 11 : i64} {
  func.func @_unet_kernel(%arg0: memref<8x1024xf32, #tpu.memory_space<vmem>>, %arg1: memref<1024x512xbf16, #tpu.memory_space<vmem>>, %arg2: memref<1x512xf32, #tpu.memory_space<vmem>>, %arg3: memref<512x256xbf16, #tpu.memory_space<vmem>>, %arg4: memref<1x256xf32, #tpu.memory_space<vmem>>, %arg5: memref<256x128xbf16, #tpu.memory_space<vmem>>, %arg6: memref<1x128xf32, #tpu.memory_space<vmem>>, %arg7: memref<128x256xbf16, #tpu.memory_space<vmem>>, %arg8: memref<1x256xf32, #tpu.memory_space<vmem>>, %arg9: memref<256x512xbf16, #tpu.memory_space<vmem>>, %arg10: memref<256x512xbf16, #tpu.memory_space<vmem>>, %arg11: memref<1x512xf32, #tpu.memory_space<vmem>>, %arg12: memref<512x1024xbf16, #tpu.memory_space<vmem>>, %arg13: memref<512x1024xbf16, #tpu.memory_space<vmem>>, %arg14: memref<1x1024xf32, #tpu.memory_space<vmem>>, %arg15: memref<8x1024xf32, #tpu.memory_space<vmem>>) attributes {dimension_semantics = [], scalar_prefetch = 0 : i64, scratch_operands = 0 : i64, tpu.core_type = #tpu.core_type<tc>} {
    %c0 = arith.constant 0 : index
    %c0_0 = arith.constant 0 : index
    %0 = vector.load %arg0[%c0, %c0_0] : memref<8x1024xf32, #tpu.memory_space<vmem>>, vector<8x1024xf32>
    %1 = arith.truncf %0 : vector<8x1024xf32> to vector<8x1024xbf16>
    %c0_1 = arith.constant 0 : index
    %c0_2 = arith.constant 0 : index
    %2 = vector.load %arg1[%c0_1, %c0_2] : memref<1024x512xbf16, #tpu.memory_space<vmem>>, vector<1024x512xbf16>
    %cst = arith.constant dense<0.000000e+00> : vector<8x512xf32>
    %3 = tpu.matmul %1, %2, %cst {dimension_numbers = #tpu.dot_dimension_numbers<[1], [0], [0], [1], [0, 0, 1, 1], [], []>} : vector<8x1024xbf16>, vector<1024x512xbf16>, vector<8x512xf32> -> vector<8x512xf32>
    %c0_3 = arith.constant 0 : index
    %c0_4 = arith.constant 0 : index
    %4 = vector.load %arg2[%c0_3, %c0_4] : memref<1x512xf32, #tpu.memory_space<vmem>>, vector<1x512xf32>
    %5 = vector.broadcast %4 : vector<1x512xf32> to vector<8x512xf32>
    %6 = arith.addf %3, %5 : vector<8x512xf32>
    %cst_5 = arith.constant 0.000000e+00 : f32
    %7 = vector.broadcast %cst_5 : f32 to vector<8x512xf32>
    %8 = arith.cmpf ogt, %6, %7 : vector<8x512xf32>
    %cst_6 = arith.constant 2.000000e-01 : f32
    %9 = vector.broadcast %cst_6 : f32 to vector<8x512xf32>
    %10 = arith.mulf %9, %6 : vector<8x512xf32>
    %11 = arith.select %8, %6, %10 : vector<8x512xi1>, vector<8x512xf32>
    %12 = arith.truncf %11 : vector<8x512xf32> to vector<8x512xbf16>
    %c0_7 = arith.constant 0 : index
    %c0_8 = arith.constant 0 : index
    %13 = vector.load %arg3[%c0_7, %c0_8] : memref<512x256xbf16, #tpu.memory_space<vmem>>, vector<512x256xbf16>
    %cst_9 = arith.constant dense<0.000000e+00> : vector<8x256xf32>
    %14 = tpu.matmul %12, %13, %cst_9 {dimension_numbers = #tpu.dot_dimension_numbers<[1], [0], [0], [1], [0, 0, 1, 1], [], []>} : vector<8x512xbf16>, vector<512x256xbf16>, vector<8x256xf32> -> vector<8x256xf32>
    %c0_10 = arith.constant 0 : index
    %c0_11 = arith.constant 0 : index
    %15 = vector.load %arg4[%c0_10, %c0_11] : memref<1x256xf32, #tpu.memory_space<vmem>>, vector<1x256xf32>
    %16 = vector.broadcast %15 : vector<1x256xf32> to vector<8x256xf32>
    %17 = arith.addf %14, %16 : vector<8x256xf32>
    %cst_12 = arith.constant 0.000000e+00 : f32
    %18 = vector.broadcast %cst_12 : f32 to vector<8x256xf32>
    %19 = arith.cmpf ogt, %17, %18 : vector<8x256xf32>
    %cst_13 = arith.constant 2.000000e-01 : f32
    %20 = vector.broadcast %cst_13 : f32 to vector<8x256xf32>
    %21 = arith.mulf %20, %17 : vector<8x256xf32>
    %22 = arith.select %19, %17, %21 : vector<8x256xi1>, vector<8x256xf32>
    %23 = arith.truncf %22 : vector<8x256xf32> to vector<8x256xbf16>
    %c0_14 = arith.constant 0 : index
    %c0_15 = arith.constant 0 : index
    %24 = vector.load %arg5[%c0_14, %c0_15] : memref<256x128xbf16, #tpu.memory_space<vmem>>, vector<256x128xbf16>
    %cst_16 = arith.constant dense<0.000000e+00> : vector<8x128xf32>
    %25 = tpu.matmul %23, %24, %cst_16 {dimension_numbers = #tpu.dot_dimension_numbers<[1], [0], [0], [1], [0, 0, 1, 1], [], []>} : vector<8x256xbf16>, vector<256x128xbf16>, vector<8x128xf32> -> vector<8x128xf32>
    %c0_17 = arith.constant 0 : index
    %c0_18 = arith.constant 0 : index
    %26 = vector.load %arg6[%c0_17, %c0_18] : memref<1x128xf32, #tpu.memory_space<vmem>>, vector<1x128xf32>
    %27 = vector.broadcast %26 : vector<1x128xf32> to vector<8x128xf32>
    %28 = arith.addf %25, %27 : vector<8x128xf32>
    %cst_19 = arith.constant 0.000000e+00 : f32
    %29 = vector.broadcast %cst_19 : f32 to vector<8x128xf32>
    %30 = arith.maximumf %28, %29 : vector<8x128xf32>
    %31 = arith.truncf %30 : vector<8x128xf32> to vector<8x128xbf16>
    %c0_20 = arith.constant 0 : index
    %c0_21 = arith.constant 0 : index
    %32 = vector.load %arg7[%c0_20, %c0_21] : memref<128x256xbf16, #tpu.memory_space<vmem>>, vector<128x256xbf16>
    %cst_22 = arith.constant dense<0.000000e+00> : vector<8x256xf32>
    %33 = tpu.matmul %31, %32, %cst_22 {dimension_numbers = #tpu.dot_dimension_numbers<[1], [0], [0], [1], [0, 0, 1, 1], [], []>} : vector<8x128xbf16>, vector<128x256xbf16>, vector<8x256xf32> -> vector<8x256xf32>
    %c0_23 = arith.constant 0 : index
    %c0_24 = arith.constant 0 : index
    %34 = vector.load %arg8[%c0_23, %c0_24] : memref<1x256xf32, #tpu.memory_space<vmem>>, vector<1x256xf32>
    %35 = vector.broadcast %34 : vector<1x256xf32> to vector<8x256xf32>
    %36 = arith.addf %33, %35 : vector<8x256xf32>
    %cst_25 = arith.constant 0.000000e+00 : f32
    %37 = vector.broadcast %cst_25 : f32 to vector<8x256xf32>
    %38 = arith.maximumf %17, %37 : vector<8x256xf32>
    %39 = arith.truncf %38 : vector<8x256xf32> to vector<8x256xbf16>
    %c0_26 = arith.constant 0 : index
    %c0_27 = arith.constant 0 : index
    %40 = vector.load %arg9[%c0_26, %c0_27] : memref<256x512xbf16, #tpu.memory_space<vmem>>, vector<256x512xbf16>
    %cst_28 = arith.constant dense<0.000000e+00> : vector<8x512xf32>
    %41 = tpu.matmul %39, %40, %cst_28 {dimension_numbers = #tpu.dot_dimension_numbers<[1], [0], [0], [1], [0, 0, 1, 1], [], []>} : vector<8x256xbf16>, vector<256x512xbf16>, vector<8x512xf32> -> vector<8x512xf32>
    %cst_29 = arith.constant 0.000000e+00 : f32
    %42 = vector.broadcast %cst_29 : f32 to vector<8x256xf32>
    %43 = arith.maximumf %36, %42 : vector<8x256xf32>
    %44 = arith.truncf %43 : vector<8x256xf32> to vector<8x256xbf16>
    %c0_30 = arith.constant 0 : index
    %c0_31 = arith.constant 0 : index
    %45 = vector.load %arg10[%c0_30, %c0_31] : memref<256x512xbf16, #tpu.memory_space<vmem>>, vector<256x512xbf16>
    %cst_32 = arith.constant dense<0.000000e+00> : vector<8x512xf32>
    %46 = tpu.matmul %44, %45, %cst_32 {dimension_numbers = #tpu.dot_dimension_numbers<[1], [0], [0], [1], [0, 0, 1, 1], [], []>} : vector<8x256xbf16>, vector<256x512xbf16>, vector<8x512xf32> -> vector<8x512xf32>
    %47 = arith.addf %41, %46 : vector<8x512xf32>
    %c0_33 = arith.constant 0 : index
    %c0_34 = arith.constant 0 : index
    %48 = vector.load %arg11[%c0_33, %c0_34] : memref<1x512xf32, #tpu.memory_space<vmem>>, vector<1x512xf32>
    %49 = vector.broadcast %48 : vector<1x512xf32> to vector<8x512xf32>
    %50 = arith.addf %47, %49 : vector<8x512xf32>
    %cst_35 = arith.constant 0.000000e+00 : f32
    %51 = vector.broadcast %cst_35 : f32 to vector<8x512xf32>
    %52 = arith.maximumf %6, %51 : vector<8x512xf32>
    %53 = arith.truncf %52 : vector<8x512xf32> to vector<8x512xbf16>
    %c0_36 = arith.constant 0 : index
    %c0_37 = arith.constant 0 : index
    %54 = vector.load %arg12[%c0_36, %c0_37] : memref<512x1024xbf16, #tpu.memory_space<vmem>>, vector<512x1024xbf16>
    %cst_38 = arith.constant dense<0.000000e+00> : vector<8x1024xf32>
    %55 = tpu.matmul %53, %54, %cst_38 {dimension_numbers = #tpu.dot_dimension_numbers<[1], [0], [0], [1], [0, 0, 1, 1], [], []>} : vector<8x512xbf16>, vector<512x1024xbf16>, vector<8x1024xf32> -> vector<8x1024xf32>
    %cst_39 = arith.constant 0.000000e+00 : f32
    %56 = vector.broadcast %cst_39 : f32 to vector<8x512xf32>
    %57 = arith.maximumf %50, %56 : vector<8x512xf32>
    %58 = arith.truncf %57 : vector<8x512xf32> to vector<8x512xbf16>
    %c0_40 = arith.constant 0 : index
    %c0_41 = arith.constant 0 : index
    %59 = vector.load %arg13[%c0_40, %c0_41] : memref<512x1024xbf16, #tpu.memory_space<vmem>>, vector<512x1024xbf16>
    %cst_42 = arith.constant dense<0.000000e+00> : vector<8x1024xf32>
    %60 = tpu.matmul %58, %59, %cst_42 {dimension_numbers = #tpu.dot_dimension_numbers<[1], [0], [0], [1], [0, 0, 1, 1], [], []>} : vector<8x512xbf16>, vector<512x1024xbf16>, vector<8x1024xf32> -> vector<8x1024xf32>
    %61 = arith.addf %55, %60 : vector<8x1024xf32>
    %c0_43 = arith.constant 0 : index
    %c0_44 = arith.constant 0 : index
    %62 = vector.load %arg14[%c0_43, %c0_44] : memref<1x1024xf32, #tpu.memory_space<vmem>>, vector<1x1024xf32>
    %63 = vector.broadcast %62 : vector<1x1024xf32> to vector<8x1024xf32>
    %64 = arith.addf %61, %63 : vector<8x1024xf32>
    %65 = math.tanh %64 : vector<8x1024xf32>
    %c0_45 = arith.constant 0 : index
    %c0_46 = arith.constant 0 : index
    %66 = vector.load %arg15[%c0_45, %c0_46] : memref<8x1024xf32, #tpu.memory_space<vmem>>, vector<8x1024xf32>
    tpu.vector_store %arg15[%c0_45, %c0_46], %65 {strides = array<i32>} : memref<8x1024xf32, #tpu.memory_space<vmem>>, vector<8x1024xf32>,
    return
  }
}

</mosaic_0001>

<llo_original>
// kernel: basic_weather_generator_forward.1
$region0: #{basic_weather_generator_forward.1}
  #allocation0 [shape = 'u32[]', space=smem, size = 0x4, offset = 0x4, fixed_abs, tag = 'smem constant byte address 0x4 - core index']
  #allocation1 [shape = 'u32[144,128]{1,0:T(1,128)}', space=vmem, size = 0x12000, scoped, tag = 'internal scratch']
  %s0 = inlined_call_operand.vmem [shape: f32[8,1024], index: 0, kind: input, shape index: {}]
  %s1 = inlined_call_operand.hbm [shape: bf16[1024,512], index: 1, kind: input, shape index: {}]
  %s2 = inlined_call_operand.vmem [shape: f32[1,512], index: 2, kind: input, shape index: {}]
  %s3 = inlined_call_operand.hbm [shape: bf16[512,256], index: 3, kind: input, shape index: {}]
  %s4 = inlined_call_operand.vmem [shape: f32[1,256], index: 4, kind: input, shape index: {}]
  %s5 = inlined_call_operand.vmem [shape: bf16[256,128], index: 5, kind: input, shape index: {}]
  %s6 = inlined_call_operand.vmem [shape: f32[1,128], index: 6, kind: input, shape index: {}]
  %s7 = inlined_call_operand.hbm [shape: bf16[128,256], index: 7, kind: input, shape index: {}]
  %s8 = inlined_call_operand.vmem [shape: f32[1,256], index: 8, kind: input, shape index: {}]
  %s9 = inlined_call_operand.hbm [shape: bf16[256,512], index: 9, kind: input, shape index: {}]
  %s10 = inlined_call_operand.hbm [shape: bf16[256,512], index: 10, kind: input, shape index: {}]
  %s11 = inlined_call_operand.vmem [shape: f32[1,512], index: 11, kind: input, shape index: {}]
  %s12 = inlined_call_operand.hbm [shape: bf16[512,1024], index: 12, kind: input, shape index: {}]
  %s13 = inlined_call_operand.hbm [shape: bf16[512,1024], index: 13, kind: input, shape index: {}]
  %s14 = inlined_call_operand.vmem [shape: f32[1,1024], index: 14, kind: input, shape index: {}]
  %s15 = inlined_call_operand.vmem [shape: f32[8,1024], index: 15, kind: output, shape index: {}]
  %s16 = sld [smem:[#allocation0]]
  $region98: #{basic_weather_generator_forward.1} parent=0
    _
  %s18 = ssub.s32 1, %s16
  %s19 = scalar_select 0, %s18, %s16
  $region1: #{basic_weather_generator_forward.1} parent=0
    #allocation2 [shape = 'u8[1048576]{0}', space=vmem, size = 0x100000, scoped, tag = 'input window, operand 1, single buffered']
    #allocation3 [shape = 's32[1]{0}', space=sflag, size = 0x4, scoped, tag = 'scoped memory for basic_weather_generator_forward.1']
    #allocation4 [shape = 'u8[262144]{0}', space=vmem, size = 0x40000, scoped, tag = 'input window, operand 3, single buffered']
    #allocation5 [shape = 's32[1]{0}', space=sflag, size = 0x4, scoped, tag = 'scoped memory for basic_weather_generator_forward.1']
    #allocation6 [shape = 'u8[65536]{0}', space=vmem, size = 0x10000, scoped, tag = 'input window, operand 7, single buffered']
    #allocation7 [shape = 'u8[262144]{0}', space=vmem, size = 0x40000, scoped, tag = 'input window, operand 9, single buffered']
    #allocation8 [shape = 's32[1]{0}', space=sflag, size = 0x4, scoped, tag = 'scoped memory for basic_weather_generator_forward.1']
    #allocation9 [shape = 'u8[262144]{0}', space=vmem, size = 0x40000, scoped, tag = 'input window, operand 10, single buffered']
    #allocation10 [shape = 'u8[1048576]{0}', space=vmem, size = 0x100000, scoped, tag = 'input window, operand 12, single buffered']
    #allocation11 [shape = 's32[1]{0}', space=sflag, size = 0x4, scoped, tag = 'scoped memory for basic_weather_generator_forward.1']
    #allocation12 [shape = 'u8[1048576]{0}', space=vmem, size = 0x100000, scoped, tag = 'input window, operand 13, single buffered']
    %20 = vsyncpa [#allocation3], 0
    %21 = vsyncpa [#allocation5], 0
    %22 = vsyncpa [#allocation8], 0
    %23 = vsyncpa [#allocation11], 0
    // Predicated region
    $region2: #{basic_weather_generator_forward.1} parent=1 // pred_check
      _
    $region3: #{basic_weather_generator_forward.1} parent=1 // pred_check_branch
      %25 = sbr.rel (0) target = $region5
    $region4: #{basic_weather_generator_forward.1} parent=1 // pred_region
      _
    $region5: #{basic_weather_generator_forward.1} parent=1 // pred_fallthru
      _
    // Predicated region
    $region6: #{basic_weather_generator_forward.1} parent=1 // pred_check
      _
    $region7: #{basic_weather_generator_forward.1} parent=1 // pred_check_branch
      %27 = sbr.rel (0) target = $region9
    $region8: #{basic_weather_generator_forward.1} parent=1 // pred_region
      %s29 = ssub.s32 32768, 32768
      %30 = vsyncadd [#allocation3], %s29
      %s31 = sshll.u32 [#allocation2], 4
      %s32 = int_to_ptr.vmem [resolvable:$true] %s31
      %37 = dma.hbm_to_vmem [thread:$0]  %s1, 32768, %s32, [#allocation3], 256, 256, 16
    $region9: #{basic_weather_generator_forward.1} parent=1 // pred_fallthru
      _
    // Predicated region
    $region10: #{basic_weather_generator_forward.1} parent=1 // pred_check
      _
    $region11: #{basic_weather_generator_forward.1} parent=1 // pred_check_branch
      %39 = sbr.rel (0) target = $region13
    $region12: #{basic_weather_generator_forward.1} parent=1 // pred_region
      _
    $region13: #{basic_weather_generator_forward.1} parent=1 // pred_fallthru
      _
    // Predicated region
    $region14: #{basic_weather_generator_forward.1} parent=1 // pred_check
      _
    $region15: #{basic_weather_generator_forward.1} parent=1 // pred_check_branch
      %41 = sbr.rel (0) target = $region17
    $region16: #{basic_weather_generator_forward.1} parent=1 // pred_region
      %s43 = ssub.s32 8192, 8192
      %44 = vsyncadd [#allocation5], %s43
      %s45 = sshll.u32 [#allocation4], 4
      %s46 = int_to_ptr.vmem [resolvable:$true] %s45
      %51 = dma.hbm_to_vmem [thread:$0]  %s3, 8192, %s46, [#allocation5], 128, 128, 8
    $region17: #{basic_weather_generator_forward.1} parent=1 // pred_fallthru
      _
    // Predicated region
    $region18: #{basic_weather_generator_forward.1} parent=1 // pred_check
      _
    $region19: #{basic_weather_generator_forward.1} parent=1 // pred_check_branch
      %53 = sbr.rel (0) target = $region21
    $region20: #{basic_weather_generator_forward.1} parent=1 // pred_region
      _
    $region21: #{basic_weather_generator_forward.1} parent=1 // pred_fallthru
      _
    // Predicated region
    $region22: #{basic_weather_generator_forward.1} parent=1 // pred_check
      _
    $region23: #{basic_weather_generator_forward.1} parent=1 // pred_check_branch
      %55 = sbr.rel (0) target = $region25
    $region24: #{basic_weather_generator_forward.1} parent=1 // pred_region
      _
    $region25: #{basic_weather_generator_forward.1} parent=1 // pred_fallthru
      _
    // Predicated region
    $region26: #{basic_weather_generator_forward.1} parent=1 // pred_check
      _
    $region27: #{basic_weather_generator_forward.1} parent=1 // pred_check_branch
      %57 = sbr.rel (0) target = $region29
    $region28: #{basic_weather_generator_forward.1} parent=1 // pred_region
      _
    $region29: #{basic_weather_generator_forward.1} parent=1 // pred_fallthru
      _
    // Predicated region
    $region30: #{basic_weather_generator_forward.1} parent=1 // pred_check
      _
    $region31: #{basic_weather_generator_forward.1} parent=1 // pred_check_branch
      %59 = sbr.rel (0) target = $region33
    $region32: #{basic_weather_generator_forward.1} parent=1 // pred_region
      %s61 = ssub.s32 2048, 2048
      %62 = vsyncadd [#allocation5], %s61
      %s63 = sshll.u32 [#allocation6], 4
      %s64 = int_to_ptr.vmem [resolvable:$true] %s63
      %69 = dma.hbm_to_vmem [thread:$0]  %s7, 2048, %s64, [#allocation5], 128, 128, 8
    $region33: #{basic_weather_generator_forward.1} parent=1 // pred_fallthru
      _
    // Predicated region
    $region34: #{basic_weather_generator_forward.1} parent=1 // pred_check
      _
    $region35: #{basic_weather_generator_forward.1} parent=1 // pred_check_branch
      %71 = sbr.rel (0) target = $region37
    $region36: #{basic_weather_generator_forward.1} parent=1 // pred_region
      _
    $region37: #{basic_weather_generator_forward.1} parent=1 // pred_fallthru
      _
    // Predicated region
    $region38: #{basic_weather_generator_forward.1} parent=1 // pred_check
      _
    $region39: #{basic_weather_generator_forward.1} parent=1 // pred_check_branch
      %73 = sbr.rel (0) target = $region41
    $region40: #{basic_weather_generator_forward.1} parent=1 // pred_region
      %s75 = ssub.s32 8192, 8192
      %76 = vsyncadd [#allocation8], %s75
      %s77 = sshll.u32 [#allocation7], 4
      %s78 = int_to_ptr.vmem [resolvable:$true] %s77
      %83 = dma.hbm_to_vmem [thread:$0]  %s9, 8192, %s78, [#allocation8], 256, 256, 16
    $region41: #{basic_weather_generator_forward.1} parent=1 // pred_fallthru
      _
    // Predicated region
    $region42: #{basic_weather_generator_forward.1} parent=1 // pred_check
      _
    $region43: #{basic_weather_generator_forward.1} parent=1 // pred_check_branch
      %85 = sbr.rel (0) target = $region45
    $region44: #{basic_weather_generator_forward.1} parent=1 // pred_region
      %s87 = ssub.s32 8192, 8192
      %88 = vsyncadd [#allocation8], %s87
      %s89 = sshll.u32 [#allocation9], 4
      %s90 = int_to_ptr.vmem [resolvable:$true] %s89
      %95 = dma.hbm_to_vmem [thread:$0]  %s10, 8192, %s90, [#allocation8], 256, 256, 16
    $region45: #{basic_weather_generator_forward.1} parent=1 // pred_fallthru
      _
    // Predicated region
    $region46: #{basic_weather_generator_forward.1} parent=1 // pred_check
      _
    $region47: #{basic_weather_generator_forward.1} parent=1 // pred_check_branch
      %97 = sbr.rel (0) target = $region49
    $region48: #{basic_weather_generator_forward.1} parent=1 // pred_region
      _
    $region49: #{basic_weather_generator_forward.1} parent=1 // pred_fallthru
      _
    // Predicated region
    $region50: #{basic_weather_generator_forward.1} parent=1 // pred_check
      _
    $region51: #{basic_weather_generator_forward.1} parent=1 // pred_check_branch
      %99 = sbr.rel (0) target = $region53
    $region52: #{basic_weather_generator_forward.1} parent=1 // pred_region
      %s101 = ssub.s32 32768, 32768
      %102 = vsyncadd [#allocation11], %s101
      %s103 = sshll.u32 [#allocation10], 4
      %s104 = int_to_ptr.vmem [resolvable:$true] %s103
      %109 = dma.hbm_to_vmem [thread:$0]  %s12, 32768, %s104, [#allocation11], 512, 512, 32
    $region53: #{basic_weather_generator_forward.1} parent=1 // pred_fallthru
      _
    // Predicated region
    $region54: #{basic_weather_generator_forward.1} parent=1 // pred_check
      _
    $region55: #{basic_weather_generator_forward.1} parent=1 // pred_check_branch
      %111 = sbr.rel (0) target = $region57
    $region56: #{basic_weather_generator_forward.1} parent=1 // pred_region
      %s113 = ssub.s32 32768, 32768
      %114 = vsyncadd [#allocation11], %s113
      %s115 = sshll.u32 [#allocation12], 4
      %s116 = int_to_ptr.vmem [resolvable:$true] %s115
      %121 = dma.hbm_to_vmem [thread:$0]  %s13, 32768, %s116, [#allocation11], 512, 512, 32
    $region57: #{basic_weather_generator_forward.1} parent=1 // pred_fallthru
      _
    // Predicated region
    $region58: #{basic_weather_generator_forward.1} parent=1 // pred_check
      _
    $region59: #{basic_weather_generator_forward.1} parent=1 // pred_check_branch
      %123 = sbr.rel (0) target = $region61
    $region60: #{basic_weather_generator_forward.1} parent=1 // pred_region
      _
    $region61: #{basic_weather_generator_forward.1} parent=1 // pred_fallthru
      _
    // Predicated region
    $region62: #{basic_weather_generator_forward.1} parent=1 // pred_check
      _
    $region63: #{basic_weather_generator_forward.1} parent=1 // pred_check_branch
      %125 = sbr.rel (0) target = $region65
    $region64: #{basic_weather_generator_forward.1} parent=1 // pred_region
      %126 = dma.done [#allocation3], 32768
    $region65: #{basic_weather_generator_forward.1} parent=1 // pred_fallthru
      _
    // Predicated region
    $region66: #{basic_weather_generator_forward.1} parent=1 // pred_check
      _
    $region67: #{basic_weather_generator_forward.1} parent=1 // pred_check_branch
      %128 = sbr.rel (0) target = $region69
    $region68: #{basic_weather_generator_forward.1} parent=1 // pred_region
      %129 = dma.done [#allocation5], 8192
    $region69: #{basic_weather_generator_forward.1} parent=1 // pred_fallthru
      _
    // Predicated region
    $region70: #{basic_weather_generator_forward.1} parent=1 // pred_check
      _
    $region71: #{basic_weather_generator_forward.1} parent=1 // pred_check_branch
      %131 = sbr.rel (0) target = $region73
    $region72: #{basic_weather_generator_forward.1} parent=1 // pred_region
      %132 = dma.done [#allocation5], 2048
    $region73: #{basic_weather_generator_forward.1} parent=1 // pred_fallthru
      _
    // Predicated region
    $region74: #{basic_weather_generator_forward.1} parent=1 // pred_check
      _
    $region75: #{basic_weather_generator_forward.1} parent=1 // pred_check_branch
      %134 = sbr.rel (0) target = $region77
    $region76: #{basic_weather_generator_forward.1} parent=1 // pred_region
      %135 = dma.done [#allocation8], 8192
    $region77: #{basic_weather_generator_forward.1} parent=1 // pred_fallthru
      _
    // Predicated region
    $region78: #{basic_weather_generator_forward.1} parent=1 // pred_check
      _
    $region79: #{basic_weather_generator_forward.1} parent=1 // pred_check_branch
      %137 = sbr.rel (0) target = $region81
    $region80: #{basic_weather_generator_forward.1} parent=1 // pred_region
      %138 = dma.done [#allocation8], 8192
    $region81: #{basic_weather_generator_forward.1} parent=1 // pred_fallthru
      _
    // Predicated region
    $region82: #{basic_weather_generator_forward.1} parent=1 // pred_check
      _
    $region83: #{basic_weather_generator_forward.1} parent=1 // pred_check_branch
      %140 = sbr.rel (0) target = $region85
    $region84: #{basic_weather_generator_forward.1} parent=1 // pred_region
      %141 = dma.done [#allocation11], 32768
    $region85: #{basic_weather_generator_forward.1} parent=1 // pred_fallthru
      _
    // Predicated region
    $region86: #{basic_weather_generator_forward.1} parent=1 // pred_check
      _
    $region87: #{basic_weather_generator_forward.1} parent=1 // pred_check_branch
      %143 = sbr.rel (0) target = $region89
    $region88: #{basic_weather_generator_forward.1} parent=1 // pred_region
      %144 = dma.done [#allocation11], 32768
    $region89: #{basic_weather_generator_forward.1} parent=1 // pred_fallthru
      _
    %v146 = vld [vmem:[%s0] sm:$0xff]
    %v147 = vld [vmem:[%s0 + $0x8] sm:$0xff]
    %v148 = vld [vmem:[%s0 + $0x10] sm:$0xff]
    %v149 = vld [vmem:[%s0 + $0x18] sm:$0xff]
    %v150 = vld [vmem:[%s0 + $0x20] sm:$0xff]
    %v151 = vld [vmem:[%s0 + $0x28] sm:$0xff]
    %v152 = vld [vmem:[%s0 + $0x30] sm:$0xff]
    %v153 = vld [vmem:[%s0 + $0x38] sm:$0xff]
    %v154 = vpack.c.bf16 %v146, %v146
    %v155 = vpack.c.bf16 %v147, %v147
    %v156 = vpack.c.bf16 %v148, %v148
    %v157 = vpack.c.bf16 %v149, %v149
    %v158 = vpack.c.bf16 %v150, %v150
    %v159 = vpack.c.bf16 %v151, %v151
    %v160 = vpack.c.bf16 %v152, %v152
    %v161 = vpack.c.bf16 %v153, %v153
    %v162 = vld [vmem:[#allocation2] sm:$0xff]
    %v163 = vld [vmem:[#allocation2 + $0x8] sm:$0xff]
    %v164 = vld [vmem:[#allocation2 + $0x10] sm:$0xff]
    %v165 = vld [vmem:[#allocation2 + $0x18] sm:$0xff]
    %v166 = vld [vmem:[#allocation2 + $0x20] sm:$0xff]
    %v167 = vld [vmem:[#allocation2 + $0x28] sm:$0xff]
    %v168 = vld [vmem:[#allocation2 + $0x30] sm:$0xff]
    %v169 = vld [vmem:[#allocation2 + $0x38] sm:$0xff]
    %v170 = vld [vmem:[#allocation2 + $0x40] sm:$0xff]
    %v171 = vld [vmem:[#allocation2 + $0x48] sm:$0xff]
    %v172 = vld [vmem:[#allocation2 + $0x50] sm:$0xff]
    %v173 = vld [vmem:[#allocation2 + $0x58] sm:$0xff]
    %v174 = vld [vmem:[#allocation2 + $0x60] sm:$0xff]
    %v175 = vld [vmem:[#allocation2 + $0x68] sm:$0xff]
    %v176 = vld [vmem:[#allocation2 + $0x70] sm:$0xff]
    %v177 = vld [vmem:[#allocation2 + $0x78] sm:$0xff]
    %v178 = vld [vmem:[#allocation2 + $0x80] sm:$0xff]
    %v179 = vld [vmem:[#allocation2 + $0x88] sm:$0xff]
    %v180 = vld [vmem:[#allocation2 + $0x90] sm:$0xff]
    %v181 = vld [vmem:[#allocation2 + $0x98] sm:$0xff]
    %v182 = vld [vmem:[#allocation2 + $0xa0] sm:$0xff]
    %v183 = vld [vmem:[#allocation2 + $0xa8] sm:$0xff]
    %v184 = vld [vmem:[#allocation2 + $0xb0] sm:$0xff]
    %v185 = vld [vmem:[#allocation2 + $0xb8] sm:$0xff]
    %v186 = vld [vmem:[#allocation2 + $0xc0] sm:$0xff]
    %v187 = vld [vmem:[#allocation2 + $0xc8] sm:$0xff]
    %v188 = vld [vmem:[#allocation2 + $0xd0] sm:$0xff]
    %v189 = vld [vmem:[#allocation2 + $0xd8] sm:$0xff]
    %v190 = vld [vmem:[#allocation2 + $0xe0] sm:$0xff]
    %v191 = vld [vmem:[#allocation2 + $0xe8] sm:$0xff]
    %v192 = vld [vmem:[#allocation2 + $0xf0] sm:$0xff]
    %v193 = vld [vmem:[#allocation2 + $0xf8] sm:$0xff]
    %v194 = vld [vmem:[#allocation2 + $0x100] sm:$0xff]
    %v195 = vld [vmem:[#allocation2 + $0x108] sm:$0xff]
    %v196 = vld [vmem:[#allocation2 + $0x110] sm:$0xff]
    %v197 = vld [vmem:[#allocation2 + $0x118] sm:$0xff]
    %v198 = vld [vmem:[#allocation2 + $0x120] sm:$0xff]
    %v199 = vld [vmem:[#allocation2 + $0x128] sm:$0xff]
    %v200 = vld [vmem:[#allocation2 + $0x130] sm:$0xff]
    %v201 = vld [vmem:[#allocation2 + $0x138] sm:$0xff]
    %v202 = vld [vmem:[#allocation2 + $0x140] sm:$0xff]
    %v203 = vld [vmem:[#allocation2 + $0x148] sm:$0xff]
    %v204 = vld [vmem:[#allocation2 + $0x150] sm:$0xff]
    %v205 = vld [vmem:[#allocation2 + $0x158] sm:$0xff]
    %v206 = vld [vmem:[#allocation2 + $0x160] sm:$0xff]
    %v207 = vld [vmem:[#allocation2 + $0x168] sm:$0xff]
    %v208 = vld [vmem:[#allocation2 + $0x170] sm:$0xff]
    %v209 = vld [vmem:[#allocation2 + $0x178] sm:$0xff]
    %v210 = vld [vmem:[#allocation2 + $0x180] sm:$0xff]
    %v211 = vld [vmem:[#allocation2 + $0x188] sm:$0xff]
    %v212 = vld [vmem:[#allocation2 + $0x190] sm:$0xff]
    %v213 = vld [vmem:[#allocation2 + $0x198] sm:$0xff]
    %v214 = vld [vmem:[#allocation2 + $0x1a0] sm:$0xff]
    %v215 = vld [vmem:[#allocation2 + $0x1a8] sm:$0xff]
    %v216 = vld [vmem:[#allocation2 + $0x1b0] sm:$0xff]
    %v217 = vld [vmem:[#allocation2 + $0x1b8] sm:$0xff]
    %v218 = vld [vmem:[#allocation2 + $0x1c0] sm:$0xff]
    %v219 = vld [vmem:[#allocation2 + $0x1c8] sm:$0xff]
    %v220 = vld [vmem:[#allocation2 + $0x1d0] sm:$0xff]
    %v221 = vld [vmem:[#allocation2 + $0x1d8] sm:$0xff]
    %v222 = vld [vmem:[#allocation2 + $0x1e0] sm:$0xff]
    %v223 = vld [vmem:[#allocation2 + $0x1e8] sm:$0xff]
    %v224 = vld [vmem:[#allocation2 + $0x1f0] sm:$0xff]
    %v225 = vld [vmem:[#allocation2 + $0x1f8] sm:$0xff]
    %v226 = vld [vmem:[#allocation2 + $0x200] sm:$0xff]
    %v227 = vld [vmem:[#allocation2 + $0x208] sm:$0xff]
    %v228 = vld [vmem:[#allocation2 + $0x210] sm:$0xff]
    %v229 = vld [vmem:[#allocation2 + $0x218] sm:$0xff]
    %v230 = vld [vmem:[#allocation2 + $0x220] sm:$0xff]
    %v231 = vld [vmem:[#allocation2 + $0x228] sm:$0xff]
    %v232 = vld [vmem:[#allocation2 + $0x230] sm:$0xff]
    %v233 = vld [vmem:[#allocation2 + $0x238] sm:$0xff]
    %v234 = vld [vmem:[#allocation2 + $0x240] sm:$0xff]
    %v235 = vld [vmem:[#allocation2 + $0x248] sm:$0xff]
    %v236 = vld [vmem:[#allocation2 + $0x250] sm:$0xff]
    %v237 = vld [vmem:[#allocation2 + $0x258] sm:$0xff]
    %v238 = vld [vmem:[#allocation2 + $0x260] sm:$0xff]
    %v239 = vld [vmem:[#allocation2 + $0x268] sm:$0xff]
    %v240 = vld [vmem:[#allocation2 + $0x270] sm:$0xff]
    %v241 = vld [vmem:[#allocation2 + $0x278] sm:$0xff]
    %v242 = vld [vmem:[#allocation2 + $0x280] sm:$0xff]
    %v243 = vld [vmem:[#allocation2 + $0x288] sm:$0xff]
    %v244 = vld [vmem:[#allocation2 + $0x290] sm:$0xff]
    %v245 = vld [vmem:[#allocation2 + $0x298] sm:$0xff]
    %v246 = vld [vmem:[#allocation2 + $0x2a0] sm:$0xff]
    %v247 = vld [vmem:[#allocation2 + $0x2a8] sm:$0xff]
    %v248 = vld [vmem:[#allocation2 + $0x2b0] sm:$0xff]
    %v249 = vld [vmem:[#allocation2 + $0x2b8] sm:$0xff]
    %v250 = vld [vmem:[#allocation2 + $0x2c0] sm:$0xff]
    %v251 = vld [vmem:[#allocation2 + $0x2c8] sm:$0xff]
    %v252 = vld [vmem:[#allocation2 + $0x2d0] sm:$0xff]
    %v253 = vld [vmem:[#allocation2 + $0x2d8] sm:$0xff]
    %v254 = vld [vmem:[#allocation2 + $0x2e0] sm:$0xff]
    %v255 = vld [vmem:[#allocation2 + $0x2e8] sm:$0xff]
    %v256 = vld [vmem:[#allocation2 + $0x2f0] sm:$0xff]
    %v257 = vld [vmem:[#allocation2 + $0x2f8] sm:$0xff]
    %v258 = vld [vmem:[#allocation2 + $0x300] sm:$0xff]
    %v259 = vld [vmem:[#allocation2 + $0x308] sm:$0xff]
    %v260 = vld [vmem:[#allocation2 + $0x310] sm:$0xff]
    %v261 = vld [vmem:[#allocation2 + $0x318] sm:$0xff]
    %v262 = vld [vmem:[#allocation2 + $0x320] sm:$0xff]
    %v263 = vld [vmem:[#allocation2 + $0x328] sm:$0xff]
    %v264 = vld [vmem:[#allocation2 + $0x330] sm:$0xff]
    %v265 = vld [vmem:[#allocation2 + $0x338] sm:$0xff]
    %v266 = vld [vmem:[#allocation2 + $0x340] sm:$0xff]
    %v267 = vld [vmem:[#allocation2 + $0x348] sm:$0xff]
    %v268 = vld [vmem:[#allocation2 + $0x350] sm:$0xff]
    %v269 = vld [vmem:[#allocation2 + $0x358] sm:$0xff]
    %v270 = vld [vmem:[#allocation2 + $0x360] sm:$0xff]
    %v271 = vld [vmem:[#allocation2 + $0x368] sm:$0xff]
    %v272 = vld [vmem:[#allocation2 + $0x370] sm:$0xff]
    %v273 = vld [vmem:[#allocation2 + $0x378] sm:$0xff]
    %v274 = vld [vmem:[#allocation2 + $0x380] sm:$0xff]
    %v275 = vld [vmem:[#allocation2 + $0x388] sm:$0xff]
    %v276 = vld [vmem:[#allocation2 + $0x390] sm:$0xff]
    %v277 = vld [vmem:[#allocation2 + $0x398] sm:$0xff]
    %v278 = vld [vmem:[#allocation2 + $0x3a0] sm:$0xff]
    %v279 = vld [vmem:[#allocation2 + $0x3a8] sm:$0xff]
    %v280 = vld [vmem:[#allocation2 + $0x3b0] sm:$0xff]
    %v281 = vld [vmem:[#allocation2 + $0x3b8] sm:$0xff]
    %v282 = vld [vmem:[#allocation2 + $0x3c0] sm:$0xff]
    %v283 = vld [vmem:[#allocation2 + $0x3c8] sm:$0xff]
    %v284 = vld [vmem:[#allocation2 + $0x3d0] sm:$0xff]
    %v285 = vld [vmem:[#allocation2 + $0x3d8] sm:$0xff]
    %v286 = vld [vmem:[#allocation2 + $0x3e0] sm:$0xff]
    %v287 = vld [vmem:[#allocation2 + $0x3e8] sm:$0xff]
    %v288 = vld [vmem:[#allocation2 + $0x3f0] sm:$0xff]
    %v289 = vld [vmem:[#allocation2 + $0x3f8] sm:$0xff]
    %v290 = vld [vmem:[#allocation2 + $0x400] sm:$0xff]
    %v291 = vld [vmem:[#allocation2 + $0x408] sm:$0xff]
    %v292 = vld [vmem:[#allocation2 + $0x410] sm:$0xff]
    %v293 = vld [vmem:[#allocation2 + $0x418] sm:$0xff]
    %v294 = vld [vmem:[#allocation2 + $0x420] sm:$0xff]
    %v295 = vld [vmem:[#allocation2 + $0x428] sm:$0xff]
    %v296 = vld [vmem:[#allocation2 + $0x430] sm:$0xff]
    %v297 = vld [vmem:[#allocation2 + $0x438] sm:$0xff]
    %v298 = vld [vmem:[#allocation2 + $0x440] sm:$0xff]
    %v299 = vld [vmem:[#allocation2 + $0x448] sm:$0xff]
    %v300 = vld [vmem:[#allocation2 + $0x450] sm:$0xff]
    %v301 = vld [vmem:[#allocation2 + $0x458] sm:$0xff]
    %v302 = vld [vmem:[#allocation2 + $0x460] sm:$0xff]
    %v303 = vld [vmem:[#allocation2 + $0x468] sm:$0xff]
    %v304 = vld [vmem:[#allocation2 + $0x470] sm:$0xff]
    %v305 = vld [vmem:[#allocation2 + $0x478] sm:$0xff]
    %v306 = vld [vmem:[#allocation2 + $0x480] sm:$0xff]
    %v307 = vld [vmem:[#allocation2 + $0x488] sm:$0xff]
    %v308 = vld [vmem:[#allocation2 + $0x490] sm:$0xff]
    %v309 = vld [vmem:[#allocation2 + $0x498] sm:$0xff]
    %v310 = vld [vmem:[#allocation2 + $0x4a0] sm:$0xff]
    %v311 = vld [vmem:[#allocation2 + $0x4a8] sm:$0xff]
    %v312 = vld [vmem:[#allocation2 + $0x4b0] sm:$0xff]
    %v313 = vld [vmem:[#allocation2 + $0x4b8] sm:$0xff]
    %v314 = vld [vmem:[#allocation2 + $0x4c0] sm:$0xff]
    %v315 = vld [vmem:[#allocation2 + $0x4c8] sm:$0xff]
    %v316 = vld [vmem:[#allocation2 + $0x4d0] sm:$0xff]
    %v317 = vld [vmem:[#allocation2 + $0x4d8] sm:$0xff]
    %v318 = vld [vmem:[#allocation2 + $0x4e0] sm:$0xff]
    %v319 = vld [vmem:[#allocation2 + $0x4e8] sm:$0xff]
    %v320 = vld [vmem:[#allocation2 + $0x4f0] sm:$0xff]
    %v321 = vld [vmem:[#allocation2 + $0x4f8] sm:$0xff]
    %v322 = vld [vmem:[#allocation2 + $0x500] sm:$0xff]
    %v323 = vld [vmem:[#allocation2 + $0x508] sm:$0xff]
    %v324 = vld [vmem:[#allocation2 + $0x510] sm:$0xff]
    %v325 = vld [vmem:[#allocation2 + $0x518] sm:$0xff]
    %v326 = vld [vmem:[#allocation2 + $0x520] sm:$0xff]
    %v327 = vld [vmem:[#allocation2 + $0x528] sm:$0xff]
    %v328 = vld [vmem:[#allocation2 + $0x530] sm:$0xff]
    %v329 = vld [vmem:[#allocation2 + $0x538] sm:$0xff]
    %v330 = vld [vmem:[#allocation2 + $0x540] sm:$0xff]
    %v331 = vld [vmem:[#allocation2 + $0x548] sm:$0xff]
    %v332 = vld [vmem:[#allocation2 + $0x550] sm:$0xff]
    %v333 = vld [vmem:[#allocation2 + $0x558] sm:$0xff]
    %v334 = vld [vmem:[#allocation2 + $0x560] sm:$0xff]
    %v335 = vld [vmem:[#allocation2 + $0x568] sm:$0xff]
    %v336 = vld [vmem:[#allocation2 + $0x570] sm:$0xff]
    %v337 = vld [vmem:[#allocation2 + $0x578] sm:$0xff]
    %v338 = vld [vmem:[#allocation2 + $0x580] sm:$0xff]
    %v339 = vld [vmem:[#allocation2 + $0x588] sm:$0xff]
    %v340 = vld [vmem:[#allocation2 + $0x590] sm:$0xff]
    %v341 = vld [vmem:[#allocation2 + $0x598] sm:$0xff]
    %v342 = vld [vmem:[#allocation2 + $0x5a0] sm:$0xff]
    %v343 = vld [vmem:[#allocation2 + $0x5a8] sm:$0xff]
    %v344 = vld [vmem:[#allocation2 + $0x5b0] sm:$0xff]
    %v345 = vld [vmem:[#allocation2 + $0x5b8] sm:$0xff]
    %v346 = vld [vmem:[#allocation2 + $0x5c0] sm:$0xff]
    %v347 = vld [vmem:[#allocation2 + $0x5c8] sm:$0xff]
    %v348 = vld [vmem:[#allocation2 + $0x5d0] sm:$0xff]
    %v349 = vld [vmem:[#allocation2 + $0x5d8] sm:$0xff]
    %v350 = vld [vmem:[#allocation2 + $0x5e0] sm:$0xff]
    %v351 = vld [vmem:[#allocation2 + $0x5e8] sm:$0xff]
    %v352 = vld [vmem:[#allocation2 + $0x5f0] sm:$0xff]
    %v353 = vld [vmem:[#allocation2 + $0x5f8] sm:$0xff]
    %v354 = vld [vmem:[#allocation2 + $0x600] sm:$0xff]
    %v355 = vld [vmem:[#allocation2 + $0x608] sm:$0xff]
    %v356 = vld [vmem:[#allocation2 + $0x610] sm:$0xff]
    %v357 = vld [vmem:[#allocation2 + $0x618] sm:$0xff]
    %v358 = vld [vmem:[#allocation2 + $0x620] sm:$0xff]
    %v359 = vld [vmem:[#allocation2 + $0x628] sm:$0xff]
    %v360 = vld [vmem:[#allocation2 + $0x630] sm:$0xff]
    %v361 = vld [vmem:[#allocation2 + $0x638] sm:$0xff]
    %v362 = vld [vmem:[#allocation2 + $0x640] sm:$0xff]
    %v363 = vld [vmem:[#allocation2 + $0x648] sm:$0xff]
    %v364 = vld [vmem:[#allocation2 + $0x650] sm:$0xff]
    %v365 = vld [vmem:[#allocation2 + $0x658] sm:$0xff]
    %v366 = vld [vmem:[#allocation2 + $0x660] sm:$0xff]
    %v367 = vld [vmem:[#allocation2 + $0x668] sm:$0xff]
    %v368 = vld [vmem:[#allocation2 + $0x670] sm:$0xff]
    %v369 = vld [vmem:[#allocation2 + $0x678] sm:$0xff]
    %v370 = vld [vmem:[#allocation2 + $0x680] sm:$0xff]
    %v371 = vld [vmem:[#allocation2 + $0x688] sm:$0xff]
    %v372 = vld [vmem:[#allocation2 + $0x690] sm:$0xff]
    %v373 = vld [vmem:[#allocation2 + $0x698] sm:$0xff]
    %v374 = vld [vmem:[#allocation2 + $0x6a0] sm:$0xff]
    %v375 = vld [vmem:[#allocation2 + $0x6a8] sm:$0xff]
    %v376 = vld [vmem:[#allocation2 + $0x6b0] sm:$0xff]
    %v377 = vld [vmem:[#allocation2 + $0x6b8] sm:$0xff]
    %v378 = vld [vmem:[#allocation2 + $0x6c0] sm:$0xff]
    %v379 = vld [vmem:[#allocation2 + $0x6c8] sm:$0xff]
    %v380 = vld [vmem:[#allocation2 + $0x6d0] sm:$0xff]
    %v381 = vld [vmem:[#allocation2 + $0x6d8] sm:$0xff]
    %v382 = vld [vmem:[#allocation2 + $0x6e0] sm:$0xff]
    %v383 = vld [vmem:[#allocation2 + $0x6e8] sm:$0xff]
    %v384 = vld [vmem:[#allocation2 + $0x6f0] sm:$0xff]
    %v385 = vld [vmem:[#allocation2 + $0x6f8] sm:$0xff]
    %v386 = vld [vmem:[#allocation2 + $0x700] sm:$0xff]
    %v387 = vld [vmem:[#allocation2 + $0x708] sm:$0xff]
    %v388 = vld [vmem:[#allocation2 + $0x710] sm:$0xff]
    %v389 = vld [vmem:[#allocation2 + $0x718] sm:$0xff]
    %v390 = vld [vmem:[#allocation2 + $0x720] sm:$0xff]
    %v391 = vld [vmem:[#allocation2 + $0x728] sm:$0xff]
    %v392 = vld [vmem:[#allocation2 + $0x730] sm:$0xff]
    %v393 = vld [vmem:[#allocation2 + $0x738] sm:$0xff]
    %v394 = vld [vmem:[#allocation2 + $0x740] sm:$0xff]
    %v395 = vld [vmem:[#allocation2 + $0x748] sm:$0xff]
    %v396 = vld [vmem:[#allocation2 + $0x750] sm:$0xff]
    %v397 = vld [vmem:[#allocation2 + $0x758] sm:$0xff]
    %v398 = vld [vmem:[#allocation2 + $0x760] sm:$0xff]
    %v399 = vld [vmem:[#allocation2 + $0x768] sm:$0xff]
    %v400 = vld [vmem:[#allocation2 + $0x770] sm:$0xff]
    %v401 = vld [vmem:[#allocation2 + $0x778] sm:$0xff]
    %v402 = vld [vmem:[#allocation2 + $0x780] sm:$0xff]
    %v403 = vld [vmem:[#allocation2 + $0x788] sm:$0xff]
    %v404 = vld [vmem:[#allocation2 + $0x790] sm:$0xff]
    %v405 = vld [vmem:[#allocation2 + $0x798] sm:$0xff]
    %v406 = vld [vmem:[#allocation2 + $0x7a0] sm:$0xff]
    %v407 = vld [vmem:[#allocation2 + $0x7a8] sm:$0xff]
    %v408 = vld [vmem:[#allocation2 + $0x7b0] sm:$0xff]
    %v409 = vld [vmem:[#allocation2 + $0x7b8] sm:$0xff]
    %v410 = vld [vmem:[#allocation2 + $0x7c0] sm:$0xff]
    %v411 = vld [vmem:[#allocation2 + $0x7c8] sm:$0xff]
    %v412 = vld [vmem:[#allocation2 + $0x7d0] sm:$0xff]
    %v413 = vld [vmem:[#allocation2 + $0x7d8] sm:$0xff]
    %v414 = vld [vmem:[#allocation2 + $0x7e0] sm:$0xff]
    %v415 = vld [vmem:[#allocation2 + $0x7e8] sm:$0xff]
    %v416 = vld [vmem:[#allocation2 + $0x7f0] sm:$0xff]
    %v417 = vld [vmem:[#allocation2 + $0x7f8] sm:$0xff]
    %v418 = vld [vmem:[%s2] sm:$0xf]
    %v420 = vlaneseq
    %v421 = vshrl.u32 %v420, 7
    %v422 = vsub.s32 0, %v421
    %v423 = vrot.slane %v418, %v422
    %v424 = vlaneseq
    %v425 = vshrl.u32 %v424, 7
    %v426 = vsub.s32 1, %v425
    %v427 = vrot.slane %v418, %v426
    %v428 = vlaneseq
    %v429 = vshrl.u32 %v428, 7
    %v430 = vsub.s32 2, %v429
    %v431 = vrot.slane %v418, %v430
    %v432 = vlaneseq
    %v433 = vshrl.u32 %v432, 7
    %v434 = vsub.s32 3, %v433
    %v435 = vrot.slane %v418, %v434
    %v696 = vunpack.c.l.b16 %v162
    %v697 = vunpack.c.h.b16 %v162
    %v698 = vunpack.c.l.b16 %v163
    %v699 = vunpack.c.h.b16 %v163
    %v700 = vunpack.c.l.b16 %v164
    %v701 = vunpack.c.h.b16 %v164
    %v702 = vunpack.c.l.b16 %v165
    %v703 = vunpack.c.h.b16 %v165
    %v704 = vunpack.c.l.b16 %v166
    %v705 = vunpack.c.h.b16 %v166
    %v706 = vunpack.c.l.b16 %v167
    %v707 = vunpack.c.h.b16 %v167
    %v708 = vunpack.c.l.b16 %v168
    %v709 = vunpack.c.h.b16 %v168
    %v710 = vunpack.c.l.b16 %v169
    %v711 = vunpack.c.h.b16 %v169
    %v712 = vunpack.c.l.b16 %v170
    %v713 = vunpack.c.h.b16 %v170
    %v714 = vunpack.c.l.b16 %v171
    %v715 = vunpack.c.h.b16 %v171
    %v716 = vunpack.c.l.b16 %v172
    %v717 = vunpack.c.h.b16 %v172
    %v718 = vunpack.c.l.b16 %v173
    %v719 = vunpack.c.h.b16 %v173
    %v720 = vunpack.c.l.b16 %v174
    %v721 = vunpack.c.h.b16 %v174
    %v722 = vunpack.c.l.b16 %v175
    %v723 = vunpack.c.h.b16 %v175
    %v724 = vunpack.c.l.b16 %v176
    %v725 = vunpack.c.h.b16 %v176
    %v726 = vunpack.c.l.b16 %v177
    %v727 = vunpack.c.h.b16 %v177
    %v728 = vunpack.c.l.b16 %v178
    %v729 = vunpack.c.h.b16 %v178
    %v730 = vunpack.c.l.b16 %v179
    %v731 = vunpack.c.h.b16 %v179
    %v732 = vunpack.c.l.b16 %v180
    %v733 = vunpack.c.h.b16 %v180
    %v734 = vunpack.c.l.b16 %v181
    %v735 = vunpack.c.h.b16 %v181
    %v736 = vunpack.c.l.b16 %v182
    %v737 = vunpack.c.h.b16 %v182
    %v738 = vunpack.c.l.b16 %v183
    %v739 = vunpack.c.h.b16 %v183
    %v740 = vunpack.c.l.b16 %v184
    %v741 = vunpack.c.h.b16 %v184
    %v742 = vunpack.c.l.b16 %v185
    %v743 = vunpack.c.h.b16 %v185
    %v744 = vunpack.c.l.b16 %v186
    %v745 = vunpack.c.h.b16 %v186
    %v746 = vunpack.c.l.b16 %v187
    %v747 = vunpack.c.h.b16 %v187
    %v748 = vunpack.c.l.b16 %v188
    %v749 = vunpack.c.h.b16 %v188
    %v750 = vunpack.c.l.b16 %v189
    %v751 = vunpack.c.h.b16 %v189
    %v752 = vunpack.c.l.b16 %v190
    %v753 = vunpack.c.h.b16 %v190
    %v754 = vunpack.c.l.b16 %v191
    %v755 = vunpack.c.h.b16 %v191
    %v756 = vunpack.c.l.b16 %v192
    %v757 = vunpack.c.h.b16 %v192
    %v758 = vunpack.c.l.b16 %v193
    %v759 = vunpack.c.h.b16 %v193
    %v760 = vunpack.c.l.b16 %v194
    %v761 = vunpack.c.h.b16 %v194
    %v762 = vunpack.c.l.b16 %v195
    %v763 = vunpack.c.h.b16 %v195
    %v764 = vunpack.c.l.b16 %v196
    %v765 = vunpack.c.h.b16 %v196
    %v766 = vunpack.c.l.b16 %v197
    %v767 = vunpack.c.h.b16 %v197
    %v768 = vunpack.c.l.b16 %v198
    %v769 = vunpack.c.h.b16 %v198
    %v770 = vunpack.c.l.b16 %v199
    %v771 = vunpack.c.h.b16 %v199
    %v772 = vunpack.c.l.b16 %v200
    %v773 = vunpack.c.h.b16 %v200
    %v774 = vunpack.c.l.b16 %v201
    %v775 = vunpack.c.h.b16 %v201
    %v776 = vunpack.c.l.b16 %v202
    %v777 = vunpack.c.h.b16 %v202
    %v778 = vunpack.c.l.b16 %v203
    %v779 = vunpack.c.h.b16 %v203
    %v780 = vunpack.c.l.b16 %v204
    %v781 = vunpack.c.h.b16 %v204
    %v782 = vunpack.c.l.b16 %v205
    %v783 = vunpack.c.h.b16 %v205
    %v784 = vunpack.c.l.b16 %v206
    %v785 = vunpack.c.h.b16 %v206
    %v786 = vunpack.c.l.b16 %v207
    %v787 = vunpack.c.h.b16 %v207
    %v788 = vunpack.c.l.b16 %v208
    %v789 = vunpack.c.h.b16 %v208
    %v790 = vunpack.c.l.b16 %v209
    %v791 = vunpack.c.h.b16 %v209
    %v792 = vunpack.c.l.b16 %v210
    %v793 = vunpack.c.h.b16 %v210
    %v794 = vunpack.c.l.b16 %v211
    %v795 = vunpack.c.h.b16 %v211
    %v796 = vunpack.c.l.b16 %v212
    %v797 = vunpack.c.h.b16 %v212
    %v798 = vunpack.c.l.b16 %v213
    %v799 = vunpack.c.h.b16 %v213
    %v800 = vunpack.c.l.b16 %v214
    %v801 = vunpack.c.h.b16 %v214
    %v802 = vunpack.c.l.b16 %v215
    %v803 = vunpack.c.h.b16 %v215
    %v804 = vunpack.c.l.b16 %v216
    %v805 = vunpack.c.h.b16 %v216
    %v806 = vunpack.c.l.b16 %v217
    %v807 = vunpack.c.h.b16 %v217
    %v808 = vunpack.c.l.b16 %v218
    %v809 = vunpack.c.h.b16 %v218
    %v810 = vunpack.c.l.b16 %v219
    %v811 = vunpack.c.h.b16 %v219
    %v812 = vunpack.c.l.b16 %v220
    %v813 = vunpack.c.h.b16 %v220
    %v814 = vunpack.c.l.b16 %v221
    %v815 = vunpack.c.h.b16 %v221
    %v816 = vunpack.c.l.b16 %v222
    %v817 = vunpack.c.h.b16 %v222
    %v818 = vunpack.c.l.b16 %v223
    %v819 = vunpack.c.h.b16 %v223
    %v820 = vunpack.c.l.b16 %v224
    %v821 = vunpack.c.h.b16 %v224
    %v822 = vunpack.c.l.b16 %v225
    %v823 = vunpack.c.h.b16 %v225
    %v824 = vunpack.c.l.b16 %v226
    %v825 = vunpack.c.h.b16 %v226
    %v826 = vunpack.c.l.b16 %v227
    %v827 = vunpack.c.h.b16 %v227
    %v828 = vunpack.c.l.b16 %v228
    %v829 = vunpack.c.h.b16 %v228
    %v830 = vunpack.c.l.b16 %v229
    %v831 = vunpack.c.h.b16 %v229
    %v832 = vunpack.c.l.b16 %v230
    %v833 = vunpack.c.h.b16 %v230
    %v834 = vunpack.c.l.b16 %v231
    %v835 = vunpack.c.h.b16 %v231
    %v836 = vunpack.c.l.b16 %v232
    %v837 = vunpack.c.h.b16 %v232
    %v838 = vunpack.c.l.b16 %v233
    %v839 = vunpack.c.h.b16 %v233
    %v840 = vunpack.c.l.b16 %v234
    %v841 = vunpack.c.h.b16 %v234
    %v842 = vunpack.c.l.b16 %v235
    %v843 = vunpack.c.h.b16 %v235
    %v844 = vunpack.c.l.b16 %v236
    %v845 = vunpack.c.h.b16 %v236
    %v846 = vunpack.c.l.b16 %v237
    %v847 = vunpack.c.h.b16 %v237
    %v848 = vunpack.c.l.b16 %v238
    %v849 = vunpack.c.h.b16 %v238
    %v850 = vunpack.c.l.b16 %v239
    %v851 = vunpack.c.h.b16 %v239
    %v852 = vunpack.c.l.b16 %v240
    %v853 = vunpack.c.h.b16 %v240
    %v854 = vunpack.c.l.b16 %v241
    %v855 = vunpack.c.h.b16 %v241
    %v856 = vunpack.c.l.b16 %v242
    %v857 = vunpack.c.h.b16 %v242
    %v858 = vunpack.c.l.b16 %v243
    %v859 = vunpack.c.h.b16 %v243
    %v860 = vunpack.c.l.b16 %v244
    %v861 = vunpack.c.h.b16 %v244
    %v862 = vunpack.c.l.b16 %v245
    %v863 = vunpack.c.h.b16 %v245
    %v864 = vunpack.c.l.b16 %v246
    %v865 = vunpack.c.h.b16 %v246
    %v866 = vunpack.c.l.b16 %v247
    %v867 = vunpack.c.h.b16 %v247
    %v868 = vunpack.c.l.b16 %v248
    %v869 = vunpack.c.h.b16 %v248
    %v870 = vunpack.c.l.b16 %v249
    %v871 = vunpack.c.h.b16 %v249
    %v872 = vunpack.c.l.b16 %v250
    %v873 = vunpack.c.h.b16 %v250
    %v874 = vunpack.c.l.b16 %v251
    %v875 = vunpack.c.h.b16 %v251
    %v876 = vunpack.c.l.b16 %v252
    %v877 = vunpack.c.h.b16 %v252
    %v878 = vunpack.c.l.b16 %v253
    %v879 = vunpack.c.h.b16 %v253
    %v880 = vunpack.c.l.b16 %v254
    %v881 = vunpack.c.h.b16 %v254
    %v882 = vunpack.c.l.b16 %v255
    %v883 = vunpack.c.h.b16 %v255
    %v884 = vunpack.c.l.b16 %v256
    %v885 = vunpack.c.h.b16 %v256
    %v886 = vunpack.c.l.b16 %v257
    %v887 = vunpack.c.h.b16 %v257
    %v888 = vunpack.c.l.b16 %v258
    %v889 = vunpack.c.h.b16 %v258
    %v890 = vunpack.c.l.b16 %v259
    %v891 = vunpack.c.h.b16 %v259
    %v892 = vunpack.c.l.b16 %v260
    %v893 = vunpack.c.h.b16 %v260
    %v894 = vunpack.c.l.b16 %v261
    %v895 = vunpack.c.h.b16 %v261
    %v896 = vunpack.c.l.b16 %v262
    %v897 = vunpack.c.h.b16 %v262
    %v898 = vunpack.c.l.b16 %v263
    %v899 = vunpack.c.h.b16 %v263
    %v900 = vunpack.c.l.b16 %v264
    %v901 = vunpack.c.h.b16 %v264
    %v902 = vunpack.c.l.b16 %v265
    %v903 = vunpack.c.h.b16 %v265
    %v904 = vunpack.c.l.b16 %v266
    %v905 = vunpack.c.h.b16 %v266
    %v906 = vunpack.c.l.b16 %v267
    %v907 = vunpack.c.h.b16 %v267
    %v908 = vunpack.c.l.b16 %v268
    %v909 = vunpack.c.h.b16 %v268
    %v910 = vunpack.c.l.b16 %v269
    %v911 = vunpack.c.h.b16 %v269
    %v912 = vunpack.c.l.b16 %v270
    %v913 = vunpack.c.h.b16 %v270
    %v914 = vunpack.c.l.b16 %v271
    %v915 = vunpack.c.h.b16 %v271
    %v916 = vunpack.c.l.b16 %v272
    %v917 = vunpack.c.h.b16 %v272
    %v918 = vunpack.c.l.b16 %v273
    %v919 = vunpack.c.h.b16 %v273
    %v920 = vunpack.c.l.b16 %v274
    %v921 = vunpack.c.h.b16 %v274
    %v922 = vunpack.c.l.b16 %v275
    %v923 = vunpack.c.h.b16 %v275
    %v924 = vunpack.c.l.b16 %v276
    %v925 = vunpack.c.h.b16 %v276
    %v926 = vunpack.c.l.b16 %v277
    %v927 = vunpack.c.h.b16 %v277
    %v928 = vunpack.c.l.b16 %v278
    %v929 = vunpack.c.h.b16 %v278
    %v930 = vunpack.c.l.b16 %v279
    %v931 = vunpack.c.h.b16 %v279
    %v932 = vunpack.c.l.b16 %v280
    %v933 = vunpack.c.h.b16 %v280
    %v934 = vunpack.c.l.b16 %v281
    %v935 = vunpack.c.h.b16 %v281
    %v936 = vunpack.c.l.b16 %v282
    %v937 = vunpack.c.h.b16 %v282
    %v938 = vunpack.c.l.b16 %v283
    %v939 = vunpack.c.h.b16 %v283
    %v940 = vunpack.c.l.b16 %v284
    %v941 = vunpack.c.h.b16 %v284
    %v942 = vunpack.c.l.b16 %v285
    %v943 = vunpack.c.h.b16 %v285
    %v944 = vunpack.c.l.b16 %v286
    %v945 = vunpack.c.h.b16 %v286
    %v946 = vunpack.c.l.b16 %v287
    %v947 = vunpack.c.h.b16 %v287
    %v948 = vunpack.c.l.b16 %v288
    %v949 = vunpack.c.h.b16 %v288
    %v950 = vunpack.c.l.b16 %v289
    %v951 = vunpack.c.h.b16 %v289
    %v952 = vunpack.c.l.b16 %v290
    %v953 = vunpack.c.h.b16 %v290
    %v954 = vunpack.c.l.b16 %v291
    %v955 = vunpack.c.h.b16 %v291
    %v956 = vunpack.c.l.b16 %v292
    %v957 = vunpack.c.h.b16 %v292
    %v958 = vunpack.c.l.b16 %v293
    %v959 = vunpack.c.h.b16 %v293
    %v960 = vunpack.c.l.b16 %v294
    %v961 = vunpack.c.h.b16 %v294
    %v962 = vunpack.c.l.b16 %v295
    %v963 = vunpack.c.h.b16 %v295
    %v964 = vunpack.c.l.b16 %v296
    %v965 = vunpack.c.h.b16 %v296
    %v966 = vunpack.c.l.b16 %v297
    %v967 = vunpack.c.h.b16 %v297
    %v968 = vunpack.c.l.b16 %v298
    %v969 = vunpack.c.h.b16 %v298
    %v970 = vunpack.c.l.b16 %v299
    %v971 = vunpack.c.h.b16 %v299
    %v972 = vunpack.c.l.b16 %v300
    %v973 = vunpack.c.h.b16 %v300
    %v974 = vunpack.c.l.b16 %v301
    %v975 = vunpack.c.h.b16 %v301
    %v976 = vunpack.c.l.b16 %v302
    %v977 = vunpack.c.h.b16 %v302
    %v978 = vunpack.c.l.b16 %v303
    %v979 = vunpack.c.h.b16 %v303
    %v980 = vunpack.c.l.b16 %v304
    %v981 = vunpack.c.h.b16 %v304
    %v982 = vunpack.c.l.b16 %v305
    %v983 = vunpack.c.h.b16 %v305
    %v984 = vunpack.c.l.b16 %v306
    %v985 = vunpack.c.h.b16 %v306
    %v986 = vunpack.c.l.b16 %v307
    %v987 = vunpack.c.h.b16 %v307
    %v988 = vunpack.c.l.b16 %v308
    %v989 = vunpack.c.h.b16 %v308
    %v990 = vunpack.c.l.b16 %v309
    %v991 = vunpack.c.h.b16 %v309
    %v992 = vunpack.c.l.b16 %v310
    %v993 = vunpack.c.h.b16 %v310
    %v994 = vunpack.c.l.b16 %v311
    %v995 = vunpack.c.h.b16 %v311
    %v996 = vunpack.c.l.b16 %v312
    %v997 = vunpack.c.h.b16 %v312
    %v998 = vunpack.c.l.b16 %v313
    %v999 = vunpack.c.h.b16 %v313
    %v1000 = vunpack.c.l.b16 %v314
    %v1001 = vunpack.c.h.b16 %v314
    %v1002 = vunpack.c.l.b16 %v315
    %v1003 = vunpack.c.h.b16 %v315
    %v1004 = vunpack.c.l.b16 %v316
    %v1005 = vunpack.c.h.b16 %v316
    %v1006 = vunpack.c.l.b16 %v317
    %v1007 = vunpack.c.h.b16 %v317
    %v1008 = vunpack.c.l.b16 %v318
    %v1009 = vunpack.c.h.b16 %v318
    %v1010 = vunpack.c.l.b16 %v319
    %v1011 = vunpack.c.h.b16 %v319
    %v1012 = vunpack.c.l.b16 %v320
    %v1013 = vunpack.c.h.b16 %v320
    %v1014 = vunpack.c.l.b16 %v321
    %v1015 = vunpack.c.h.b16 %v321
    %v1016 = vunpack.c.l.b16 %v322
    %v1017 = vunpack.c.h.b16 %v322
    %v1018 = vunpack.c.l.b16 %v323
    %v1019 = vunpack.c.h.b16 %v323
    %v1020 = vunpack.c.l.b16 %v324
    %v1021 = vunpack.c.h.b16 %v324
    %v1022 = vunpack.c.l.b16 %v325
    %v1023 = vunpack.c.h.b16 %v325
    %v1024 = vunpack.c.l.b16 %v326
    %v1025 = vunpack.c.h.b16 %v326
    %v1026 = vunpack.c.l.b16 %v327
    %v1027 = vunpack.c.h.b16 %v327
    %v1028 = vunpack.c.l.b16 %v328
    %v1029 = vunpack.c.h.b16 %v328
    %v1030 = vunpack.c.l.b16 %v329
    %v1031 = vunpack.c.h.b16 %v329
    %v1032 = vunpack.c.l.b16 %v330
    %v1033 = vunpack.c.h.b16 %v330
    %v1034 = vunpack.c.l.b16 %v331
    %v1035 = vunpack.c.h.b16 %v331
    %v1036 = vunpack.c.l.b16 %v332
    %v1037 = vunpack.c.h.b16 %v332
    %v1038 = vunpack.c.l.b16 %v333
    %v1039 = vunpack.c.h.b16 %v333
    %v1040 = vunpack.c.l.b16 %v334
    %v1041 = vunpack.c.h.b16 %v334
    %v1042 = vunpack.c.l.b16 %v335
    %v1043 = vunpack.c.h.b16 %v335
    %v1044 = vunpack.c.l.b16 %v336
    %v1045 = vunpack.c.h.b16 %v336
    %v1046 = vunpack.c.l.b16 %v337
    %v1047 = vunpack.c.h.b16 %v337
    %v1048 = vunpack.c.l.b16 %v338
    %v1049 = vunpack.c.h.b16 %v338
    %v1050 = vunpack.c.l.b16 %v339
    %v1051 = vunpack.c.h.b16 %v339
    %v1052 = vunpack.c.l.b16 %v340
    %v1053 = vunpack.c.h.b16 %v340
    %v1054 = vunpack.c.l.b16 %v341
    %v1055 = vunpack.c.h.b16 %v341
    %v1056 = vunpack.c.l.b16 %v342
    %v1057 = vunpack.c.h.b16 %v342
    %v1058 = vunpack.c.l.b16 %v343
    %v1059 = vunpack.c.h.b16 %v343
    %v1060 = vunpack.c.l.b16 %v344
    %v1061 = vunpack.c.h.b16 %v344
    %v1062 = vunpack.c.l.b16 %v345
    %v1063 = vunpack.c.h.b16 %v345
    %v1064 = vunpack.c.l.b16 %v346
    %v1065 = vunpack.c.h.b16 %v346
    %v1066 = vunpack.c.l.b16 %v347
    %v1067 = vunpack.c.h.b16 %v347
    %v1068 = vunpack.c.l.b16 %v348
    %v1069 = vunpack.c.h.b16 %v348
    %v1070 = vunpack.c.l.b16 %v349
    %v1071 = vunpack.c.h.b16 %v349
    %v1072 = vunpack.c.l.b16 %v350
    %v1073 = vunpack.c.h.b16 %v350
    %v1074 = vunpack.c.l.b16 %v351
    %v1075 = vunpack.c.h.b16 %v351
    %v1076 = vunpack.c.l.b16 %v352
    %v1077 = vunpack.c.h.b16 %v352
    %v1078 = vunpack.c.l.b16 %v353
    %v1079 = vunpack.c.h.b16 %v353
    %v1080 = vunpack.c.l.b16 %v354
    %v1081 = vunpack.c.h.b16 %v354
    %v1082 = vunpack.c.l.b16 %v355
    %v1083 = vunpack.c.h.b16 %v355
    %v1084 = vunpack.c.l.b16 %v356
    %v1085 = vunpack.c.h.b16 %v356
    %v1086 = vunpack.c.l.b16 %v357
    %v1087 = vunpack.c.h.b16 %v357
    %v1088 = vunpack.c.l.b16 %v358
    %v1089 = vunpack.c.h.b16 %v358
    %v1090 = vunpack.c.l.b16 %v359
    %v1091 = vunpack.c.h.b16 %v359
    %v1092 = vunpack.c.l.b16 %v360
    %v1093 = vunpack.c.h.b16 %v360
    %v1094 = vunpack.c.l.b16 %v361
    %v1095 = vunpack.c.h.b16 %v361
    %v1096 = vunpack.c.l.b16 %v362
    %v1097 = vunpack.c.h.b16 %v362
    %v1098 = vunpack.c.l.b16 %v363
    %v1099 = vunpack.c.h.b16 %v363
    %v1100 = vunpack.c.l.b16 %v364
    %v1101 = vunpack.c.h.b16 %v364
    %v1102 = vunpack.c.l.b16 %v365
    %v1103 = vunpack.c.h.b16 %v365
    %v1104 = vunpack.c.l.b16 %v366
    %v1105 = vunpack.c.h.b16 %v366
    %v1106 = vunpack.c.l.b16 %v367
    %v1107 = vunpack.c.h.b16 %v367
    %v1108 = vunpack.c.l.b16 %v368
    %v1109 = vunpack.c.h.b16 %v368
    %v1110 = vunpack.c.l.b16 %v369
    %v1111 = vunpack.c.h.b16 %v369
    %v1112 = vunpack.c.l.b16 %v370
    %v1113 = vunpack.c.h.b16 %v370
    %v1114 = vunpack.c.l.b16 %v371
    %v1115 = vunpack.c.h.b16 %v371
    %v1116 = vunpack.c.l.b16 %v372
    %v1117 = vunpack.c.h.b16 %v372
    %v1118 = vunpack.c.l.b16 %v373
    %v1119 = vunpack.c.h.b16 %v373
    %v1120 = vunpack.c.l.b16 %v374
    %v1121 = vunpack.c.h.b16 %v374
    %v1122 = vunpack.c.l.b16 %v375
    %v1123 = vunpack.c.h.b16 %v375
    %v1124 = vunpack.c.l.b16 %v376
    %v1125 = vunpack.c.h.b16 %v376
    %v1126 = vunpack.c.l.b16 %v377
    %v1127 = vunpack.c.h.b16 %v377
    %v1128 = vunpack.c.l.b16 %v378
    %v1129 = vunpack.c.h.b16 %v378
    %v1130 = vunpack.c.l.b16 %v379
    %v1131 = vunpack.c.h.b16 %v379
    %v1132 = vunpack.c.l.b16 %v380
    %v1133 = vunpack.c.h.b16 %v380
    %v1134 = vunpack.c.l.b16 %v381
    %v1135 = vunpack.c.h.b16 %v381
    %v1136 = vunpack.c.l.b16 %v382
    %v1137 = vunpack.c.h.b16 %v382
    %v1138 = vunpack.c.l.b16 %v383
    %v1139 = vunpack.c.h.b16 %v383
    %v1140 = vunpack.c.l.b16 %v384
    %v1141 = vunpack.c.h.b16 %v384
    %v1142 = vunpack.c.l.b16 %v385
    %v1143 = vunpack.c.h.b16 %v385
    %v1144 = vunpack.c.l.b16 %v386
    %v1145 = vunpack.c.h.b16 %v386
    %v1146 = vunpack.c.l.b16 %v387
    %v1147 = vunpack.c.h.b16 %v387
    %v1148 = vunpack.c.l.b16 %v388
    %v1149 = vunpack.c.h.b16 %v388
    %v1150 = vunpack.c.l.b16 %v389
    %v1151 = vunpack.c.h.b16 %v389
    %v1152 = vunpack.c.l.b16 %v390
    %v1153 = vunpack.c.h.b16 %v390
    %v1154 = vunpack.c.l.b16 %v391
    %v1155 = vunpack.c.h.b16 %v391
    %v1156 = vunpack.c.l.b16 %v392
    %v1157 = vunpack.c.h.b16 %v392
    %v1158 = vunpack.c.l.b16 %v393
    %v1159 = vunpack.c.h.b16 %v393
    %v1160 = vunpack.c.l.b16 %v394
    %v1161 = vunpack.c.h.b16 %v394
    %v1162 = vunpack.c.l.b16 %v395
    %v1163 = vunpack.c.h.b16 %v395
    %v1164 = vunpack.c.l.b16 %v396
    %v1165 = vunpack.c.h.b16 %v396
    %v1166 = vunpack.c.l.b16 %v397
    %v1167 = vunpack.c.h.b16 %v397
    %v1168 = vunpack.c.l.b16 %v398
    %v1169 = vunpack.c.h.b16 %v398
    %v1170 = vunpack.c.l.b16 %v399
    %v1171 = vunpack.c.h.b16 %v399
    %v1172 = vunpack.c.l.b16 %v400
    %v1173 = vunpack.c.h.b16 %v400
    %v1174 = vunpack.c.l.b16 %v401
    %v1175 = vunpack.c.h.b16 %v401
    %v1176 = vunpack.c.l.b16 %v402
    %v1177 = vunpack.c.h.b16 %v402
    %v1178 = vunpack.c.l.b16 %v403
    %v1179 = vunpack.c.h.b16 %v403
    %v1180 = vunpack.c.l.b16 %v404
    %v1181 = vunpack.c.h.b16 %v404
    %v1182 = vunpack.c.l.b16 %v405
    %v1183 = vunpack.c.h.b16 %v405
    %v1184 = vunpack.c.l.b16 %v406
    %v1185 = vunpack.c.h.b16 %v406
    %v1186 = vunpack.c.l.b16 %v407
    %v1187 = vunpack.c.h.b16 %v407
    %v1188 = vunpack.c.l.b16 %v408
    %v1189 = vunpack.c.h.b16 %v408
    %v1190 = vunpack.c.l.b16 %v409
    %v1191 = vunpack.c.h.b16 %v409
    %v1192 = vunpack.c.l.b16 %v410
    %v1193 = vunpack.c.h.b16 %v410
    %v1194 = vunpack.c.l.b16 %v411
    %v1195 = vunpack.c.h.b16 %v411
    %v1196 = vunpack.c.l.b16 %v412
    %v1197 = vunpack.c.h.b16 %v412
    %v1198 = vunpack.c.l.b16 %v413
    %v1199 = vunpack.c.h.b16 %v413
    %v1200 = vunpack.c.l.b16 %v414
    %v1201 = vunpack.c.h.b16 %v414
    %v1202 = vunpack.c.l.b16 %v415
    %v1203 = vunpack.c.h.b16 %v415
    %v1204 = vunpack.c.l.b16 %v416
    %v1205 = vunpack.c.h.b16 %v416
    %v1206 = vunpack.c.l.b16 %v417
    %v1207 = vunpack.c.h.b16 %v417
    %v1208 = vpack.c.b16 %v700, %v696
    %v1209 = vpack.c.b16 %v701, %v697
    %v1210 = vpack.c.b16 %v702, %v698
    %v1211 = vpack.c.b16 %v703, %v699
    %v1212 = vpack.c.b16 %v708, %v704
    %v1213 = vpack.c.b16 %v709, %v705
    %v1214 = vpack.c.b16 %v710, %v706
    %v1215 = vpack.c.b16 %v711, %v707
    %v1216 = vpack.c.b16 %v716, %v712
    %v1217 = vpack.c.b16 %v717, %v713
    %v1218 = vpack.c.b16 %v718, %v714
    %v1219 = vpack.c.b16 %v719, %v715
    %v1220 = vpack.c.b16 %v724, %v720
    %v1221 = vpack.c.b16 %v725, %v721
    %v1222 = vpack.c.b16 %v726, %v722
    %v1223 = vpack.c.b16 %v727, %v723
    %v1224 = vpack.c.b16 %v732, %v728
    %v1225 = vpack.c.b16 %v733, %v729
    %v1226 = vpack.c.b16 %v734, %v730
    %v1227 = vpack.c.b16 %v735, %v731
    %v1228 = vpack.c.b16 %v740, %v736
    %v1229 = vpack.c.b16 %v741, %v737
    %v1230 = vpack.c.b16 %v742, %v738
    %v1231 = vpack.c.b16 %v743, %v739
    %v1232 = vpack.c.b16 %v748, %v744
    %v1233 = vpack.c.b16 %v749, %v745
    %v1234 = vpack.c.b16 %v750, %v746
    %v1235 = vpack.c.b16 %v751, %v747
    %v1236 = vpack.c.b16 %v756, %v752
    %v1237 = vpack.c.b16 %v757, %v753
    %v1238 = vpack.c.b16 %v758, %v754
    %v1239 = vpack.c.b16 %v759, %v755
    %v1240 = vpack.c.b16 %v764, %v760
    %v1241 = vpack.c.b16 %v765, %v761
    %v1242 = vpack.c.b16 %v766, %v762
    %v1243 = vpack.c.b16 %v767, %v763
    %v1244 = vpack.c.b16 %v772, %v768
    %v1245 = vpack.c.b16 %v773, %v769
    %v1246 = vpack.c.b16 %v774, %v770
    %v1247 = vpack.c.b16 %v775, %v771
    %v1248 = vpack.c.b16 %v780, %v776
    %v1249 = vpack.c.b16 %v781, %v777
    %v1250 = vpack.c.b16 %v782, %v778
    %v1251 = vpack.c.b16 %v783, %v779
    %v1252 = vpack.c.b16 %v788, %v784
    %v1253 = vpack.c.b16 %v789, %v785
    %v1254 = vpack.c.b16 %v790, %v786
    %v1255 = vpack.c.b16 %v791, %v787
    %v1256 = vpack.c.b16 %v796, %v792
    %v1257 = vpack.c.b16 %v797, %v793
    %v1258 = vpack.c.b16 %v798, %v794
    %v1259 = vpack.c.b16 %v799, %v795
    %v1260 = vpack.c.b16 %v804, %v800
    %v1261 = vpack.c.b16 %v805, %v801
    %v1262 = vpack.c.b16 %v806, %v802
    %v1263 = vpack.c.b16 %v807, %v803
    %v1264 = vpack.c.b16 %v812, %v808
    %v1265 = vpack.c.b16 %v813, %v809
    %v1266 = vpack.c.b16 %v814, %v810
    %v1267 = vpack.c.b16 %v815, %v811
    %v1268 = vpack.c.b16 %v820, %v816
    %v1269 = vpack.c.b16 %v821, %v817
    %v1270 = vpack.c.b16 %v822, %v818
    %v1271 = vpack.c.b16 %v823, %v819
    %v1272 = vpack.c.b16 %v828, %v824
    %v1273 = vpack.c.b16 %v829, %v825
    %v1274 = vpack.c.b16 %v830, %v826
    %v1275 = vpack.c.b16 %v831, %v827
    %v1276 = vpack.c.b16 %v836, %v832
    %v1277 = vpack.c.b16 %v837, %v833
    %v1278 = vpack.c.b16 %v838, %v834
    %v1279 = vpack.c.b16 %v839, %v835
    %v1280 = vpack.c.b16 %v844, %v840
    %v1281 = vpack.c.b16 %v845, %v841
    %v1282 = vpack.c.b16 %v846, %v842
    %v1283 = vpack.c.b16 %v847, %v843
    %v1284 = vpack.c.b16 %v852, %v848
    %v1285 = vpack.c.b16 %v853, %v849
    %v1286 = vpack.c.b16 %v854, %v850
    %v1287 = vpack.c.b16 %v855, %v851
    %v1288 = vpack.c.b16 %v860, %v856
    %v1289 = vpack.c.b16 %v861, %v857
    %v1290 = vpack.c.b16 %v862, %v858
    %v1291 = vpack.c.b16 %v863, %v859
    %v1292 = vpack.c.b16 %v868, %v864
    %v1293 = vpack.c.b16 %v869, %v865
    %v1294 = vpack.c.b16 %v870, %v866
    %v1295 = vpack.c.b16 %v871, %v867
    %v1296 = vpack.c.b16 %v876, %v872
    %v1297 = vpack.c.b16 %v877, %v873
    %v1298 = vpack.c.b16 %v878, %v874
    %v1299 = vpack.c.b16 %v879, %v875
    %v1300 = vpack.c.b16 %v884, %v880
    %v1301 = vpack.c.b16 %v885, %v881
    %v1302 = vpack.c.b16 %v886, %v882
    %v1303 = vpack.c.b16 %v887, %v883
    %v1304 = vpack.c.b16 %v892, %v888
    %v1305 = vpack.c.b16 %v893, %v889
    %v1306 = vpack.c.b16 %v894, %v890
    %v1307 = vpack.c.b16 %v895, %v891
    %v1308 = vpack.c.b16 %v900, %v896
    %v1309 = vpack.c.b16 %v901, %v897
    %v1310 = vpack.c.b16 %v902, %v898
    %v1311 = vpack.c.b16 %v903, %v899
    %v1312 = vpack.c.b16 %v908, %v904
    %v1313 = vpack.c.b16 %v909, %v905
    %v1314 = vpack.c.b16 %v910, %v906
    %v1315 = vpack.c.b16 %v911, %v907
    %v1316 = vpack.c.b16 %v916, %v912
    %v1317 = vpack.c.b16 %v917, %v913
    %v1318 = vpack.c.b16 %v918, %v914
    %v1319 = vpack.c.b16 %v919, %v915
    %v1320 = vpack.c.b16 %v924, %v920
    %v1321 = vpack.c.b16 %v925, %v921
    %v1322 = vpack.c.b16 %v926, %v922
    %v1323 = vpack.c.b16 %v927, %v923
    %v1324 = vpack.c.b16 %v932, %v928
    %v1325 = vpack.c.b16 %v933, %v929
    %v1326 = vpack.c.b16 %v934, %v930
    %v1327 = vpack.c.b16 %v935, %v931
    %v1328 = vpack.c.b16 %v940, %v936
    %v1329 = vpack.c.b16 %v941, %v937
    %v1330 = vpack.c.b16 %v942, %v938
    %v1331 = vpack.c.b16 %v943, %v939
    %v1332 = vpack.c.b16 %v948, %v944
    %v1333 = vpack.c.b16 %v949, %v945
    %v1334 = vpack.c.b16 %v950, %v946
    %v1335 = vpack.c.b16 %v951, %v947
    %v1336 = vpack.c.b16 %v956, %v952
    %v1337 = vpack.c.b16 %v957, %v953
    %v1338 = vpack.c.b16 %v958, %v954
    %v1339 = vpack.c.b16 %v959, %v955
    %v1340 = vpack.c.b16 %v964, %v960
    %v1341 = vpack.c.b16 %v965, %v961
    %v1342 = vpack.c.b16 %v966, %v962
    %v1343 = vpack.c.b16 %v967, %v963
    %v1344 = vpack.c.b16 %v972, %v968
    %v1345 = vpack.c.b16 %v973, %v969
    %v1346 = vpack.c.b16 %v974, %v970
    %v1347 = vpack.c.b16 %v975, %v971
    %v1348 = vpack.c.b16 %v980, %v976
    %v1349 = vpack.c.b16 %v981, %v977
    %v1350 = vpack.c.b16 %v982, %v978
    %v1351 = vpack.c.b16 %v983, %v979
    %v1352 = vpack.c.b16 %v988, %v984
    %v1353 = vpack.c.b16 %v989, %v985
    %v1354 = vpack.c.b16 %v990, %v986
    %v1355 = vpack.c.b16 %v991, %v987
    %v1356 = vpack.c.b16 %v996, %v992
    %v1357 = vpack.c.b16 %v997, %v993
    %v1358 = vpack.c.b16 %v998, %v994
    %v1359 = vpack.c.b16 %v999, %v995
    %v1360 = vpack.c.b16 %v1004, %v1000
    %v1361 = vpack.c.b16 %v1005, %v1001
    %v1362 = vpack.c.b16 %v1006, %v1002
    %v1363 = vpack.c.b16 %v1007, %v1003
    %v1364 = vpack.c.b16 %v1012, %v1008
    %v1365 = vpack.c.b16 %v1013, %v1009
    %v1366 = vpack.c.b16 %v1014, %v1010
    %v1367 = vpack.c.b16 %v1015, %v1011
    %v1368 = vpack.c.b16 %v1020, %v1016
    %v1369 = vpack.c.b16 %v1021, %v1017
    %v1370 = vpack.c.b16 %v1022, %v1018
    %v1371 = vpack.c.b16 %v1023, %v1019
    %v1372 = vpack.c.b16 %v1028, %v1024
    %v1373 = vpack.c.b16 %v1029, %v1025
    %v1374 = vpack.c.b16 %v1030, %v1026
    %v1375 = vpack.c.b16 %v1031, %v1027
    %v1376 = vpack.c.b16 %v1036, %v1032
    %v1377 = vpack.c.b16 %v1037, %v1033
    %v1378 = vpack.c.b16 %v1038, %v1034
    %v1379 = vpack.c.b16 %v1039, %v1035
    %v1380 = vpack.c.b16 %v1044, %v1040
    %v1381 = vpack.c.b16 %v1045, %v1041
    %v1382 = vpack.c.b16 %v1046, %v1042
    %v1383 = vpack.c.b16 %v1047, %v1043
    %v1384 = vpack.c.b16 %v1052, %v1048
    %v1385 = vpack.c.b16 %v1053, %v1049
    %v1386 = vpack.c.b16 %v1054, %v1050
    %v1387 = vpack.c.b16 %v1055, %v1051
    %v1388 = vpack.c.b16 %v1060, %v1056
    %v1389 = vpack.c.b16 %v1061, %v1057
    %v1390 = vpack.c.b16 %v1062, %v1058
    %v1391 = vpack.c.b16 %v1063, %v1059
    %v1392 = vpack.c.b16 %v1068, %v1064
    %v1393 = vpack.c.b16 %v1069, %v1065
    %v1394 = vpack.c.b16 %v1070, %v1066
    %v1395 = vpack.c.b16 %v1071, %v1067
    %v1396 = vpack.c.b16 %v1076, %v1072
    %v1397 = vpack.c.b16 %v1077, %v1073
    %v1398 = vpack.c.b16 %v1078, %v1074
    %v1399 = vpack.c.b16 %v1079, %v1075
    %v1400 = vpack.c.b16 %v1084, %v1080
    %v1401 = vpack.c.b16 %v1085, %v1081
    %v1402 = vpack.c.b16 %v1086, %v1082
    %v1403 = vpack.c.b16 %v1087, %v1083
    %v1404 = vpack.c.b16 %v1092, %v1088
    %v1405 = vpack.c.b16 %v1093, %v1089
    %v1406 = vpack.c.b16 %v1094, %v1090
    %v1407 = vpack.c.b16 %v1095, %v1091
    %v1408 = vpack.c.b16 %v1100, %v1096
    %v1409 = vpack.c.b16 %v1101, %v1097
    %v1410 = vpack.c.b16 %v1102, %v1098
    %v1411 = vpack.c.b16 %v1103, %v1099
    %v1412 = vpack.c.b16 %v1108, %v1104
    %v1413 = vpack.c.b16 %v1109, %v1105
    %v1414 = vpack.c.b16 %v1110, %v1106
    %v1415 = vpack.c.b16 %v1111, %v1107
    %v1416 = vpack.c.b16 %v1116, %v1112
    %v1417 = vpack.c.b16 %v1117, %v1113
    %v1418 = vpack.c.b16 %v1118, %v1114
    %v1419 = vpack.c.b16 %v1119, %v1115
    %v1420 = vpack.c.b16 %v1124, %v1120
    %v1421 = vpack.c.b16 %v1125, %v1121
    %v1422 = vpack.c.b16 %v1126, %v1122
    %v1423 = vpack.c.b16 %v1127, %v1123
    %v1424 = vpack.c.b16 %v1132, %v1128
    %v1425 = vpack.c.b16 %v1133, %v1129
    %v1426 = vpack.c.b16 %v1134, %v1130
    %v1427 = vpack.c.b16 %v1135, %v1131
    %v1428 = vpack.c.b16 %v1140, %v1136
    %v1429 = vpack.c.b16 %v1141, %v1137
    %v1430 = vpack.c.b16 %v1142, %v1138
    %v1431 = vpack.c.b16 %v1143, %v1139
    %v1432 = vpack.c.b16 %v1148, %v1144
    %v1433 = vpack.c.b16 %v1149, %v1145
    %v1434 = vpack.c.b16 %v1150, %v1146
    %v1435 = vpack.c.b16 %v1151, %v1147
    %v1436 = vpack.c.b16 %v1156, %v1152
    %v1437 = vpack.c.b16 %v1157, %v1153
    %v1438 = vpack.c.b16 %v1158, %v1154
    %v1439 = vpack.c.b16 %v1159, %v1155
    %v1440 = vpack.c.b16 %v1164, %v1160
    %v1441 = vpack.c.b16 %v1165, %v1161
    %v1442 = vpack.c.b16 %v1166, %v1162
    %v1443 = vpack.c.b16 %v1167, %v1163
    %v1444 = vpack.c.b16 %v1172, %v1168
    %v1445 = vpack.c.b16 %v1173, %v1169
    %v1446 = vpack.c.b16 %v1174, %v1170
    %v1447 = vpack.c.b16 %v1175, %v1171
    %v1448 = vpack.c.b16 %v1180, %v1176
    %v1449 = vpack.c.b16 %v1181, %v1177
    %v1450 = vpack.c.b16 %v1182, %v1178
    %v1451 = vpack.c.b16 %v1183, %v1179
    %v1452 = vpack.c.b16 %v1188, %v1184
    %v1453 = vpack.c.b16 %v1189, %v1185
    %v1454 = vpack.c.b16 %v1190, %v1186
    %v1455 = vpack.c.b16 %v1191, %v1187
    %v1456 = vpack.c.b16 %v1196, %v1192
    %v1457 = vpack.c.b16 %v1197, %v1193
    %v1458 = vpack.c.b16 %v1198, %v1194
    %v1459 = vpack.c.b16 %v1199, %v1195
    %v1460 = vpack.c.b16 %v1204, %v1200
    %v1461 = vpack.c.b16 %v1205, %v1201
    %v1462 = vpack.c.b16 %v1206, %v1202
    %v1463 = vpack.c.b16 %v1207, %v1203
    %1720 = vmatprep.subr.bf16.mxu0 %v1237
    %1721 = vmatpush1.bf16.msra.mxu0 %v1236
    %1722 = vmatprep.subr.bf16.mxu0 %v1233
    %1723 = vmatpush1.bf16.msra.mxu0 %v1232
    %1724 = vmatprep.subr.bf16.mxu0 %v1229
    %1725 = vmatpush1.bf16.msra.mxu0 %v1228
    %1726 = vmatprep.subr.bf16.mxu0 %v1225
    %1727 = vmatpush1.bf16.msra.mxu0 %v1224
    %1728 = vmatprep.subr.bf16.mxu0 %v1221
    %1729 = vmatpush1.bf16.msra.mxu0 %v1220
    %1730 = vmatprep.subr.bf16.mxu0 %v1217
    %1731 = vmatpush1.bf16.msra.mxu0 %v1216
    %1732 = vmatprep.subr.bf16.mxu0 %v1213
    %1733 = vmatpush1.bf16.msra.mxu0 %v1212
    %1734 = vmatprep.subr.bf16.mxu0 %v1209
    %1735 = vmatpush1.bf16.msra.mxu0 %v1208
    %1736 = vmatprep.subr.bf16.mxu0 %v1269
    %1737 = vmatpush2.bf16.msra.mxu0 %v1268
    %1738 = vmatprep.subr.bf16.mxu0 %v1265
    %1739 = vmatpush2.bf16.msra.mxu0 %v1264
    %1740 = vmatprep.subr.bf16.mxu0 %v1261
    %1741 = vmatpush2.bf16.msra.mxu0 %v1260
    %1742 = vmatprep.subr.bf16.mxu0 %v1257
    %1743 = vmatpush2.bf16.msra.mxu0 %v1256
    %1744 = vmatprep.subr.bf16.mxu0 %v1253
    %1745 = vmatpush2.bf16.msra.mxu0 %v1252
    %1746 = vmatprep.subr.bf16.mxu0 %v1249
    %1747 = vmatpush2.bf16.msra.mxu0 %v1248
    %1748 = vmatprep.subr.bf16.mxu0 %v1245
    %1749 = vmatpush2.bf16.msra.mxu0 %v1244
    %1750 = vmatprep.subr.bf16.mxu0 %v1241
    %1751 = vmatpush2.bf16.msra.mxu0 %v1240
    %1752 = vmatprep.mubr.bf16.mxu0 %v155
    %1753 = vmatmul.mubr.bf16.gmra.mxu0 %v154
    %v1754 = vpop.f32.mrf.mxu0
    %v1755 = vadd.f32 %v423, %v1754
    %v1756 = vpop.f32.mrf.mxu0
    %v1757 = vadd.f32 %v427, %v1756
    %v1758 = vpop.f32.mrf.mxu0
    %v1759 = vpop.f32.mrf.mxu0
    %1760 = vdwg.mxu0
    %1761 = vmatprep.subr.bf16.mxu0 %v1301
    %1762 = vmatpush1.bf16.msra.mxu0 %v1300
    %1763 = vmatprep.subr.bf16.mxu0 %v1297
    %1764 = vmatpush1.bf16.msra.mxu0 %v1296
    %1765 = vmatprep.subr.bf16.mxu0 %v1293
    %1766 = vmatpush1.bf16.msra.mxu0 %v1292
    %1767 = vmatprep.subr.bf16.mxu0 %v1289
    %1768 = vmatpush1.bf16.msra.mxu0 %v1288
    %1769 = vmatprep.subr.bf16.mxu0 %v1285
    %1770 = vmatpush1.bf16.msra.mxu0 %v1284
    %1771 = vmatprep.subr.bf16.mxu0 %v1281
    %1772 = vmatpush1.bf16.msra.mxu0 %v1280
    %1773 = vmatprep.subr.bf16.mxu0 %v1277
    %1774 = vmatpush1.bf16.msra.mxu0 %v1276
    %1775 = vmatprep.subr.bf16.mxu0 %v1273
    %1776 = vmatpush1.bf16.msra.mxu0 %v1272
    %1777 = vmatprep.subr.bf16.mxu0 %v1333
    %1778 = vmatpush2.bf16.msra.mxu0 %v1332
    %1779 = vmatprep.subr.bf16.mxu0 %v1329
    %1780 = vmatpush2.bf16.msra.mxu0 %v1328
    %1781 = vmatprep.subr.bf16.mxu0 %v1325
    %1782 = vmatpush2.bf16.msra.mxu0 %v1324
    %1783 = vmatprep.subr.bf16.mxu0 %v1321
    %1784 = vmatpush2.bf16.msra.mxu0 %v1320
    %1785 = vmatprep.subr.bf16.mxu0 %v1317
    %1786 = vmatpush2.bf16.msra.mxu0 %v1316
    %1787 = vmatprep.subr.bf16.mxu0 %v1313
    %1788 = vmatpush2.bf16.msra.mxu0 %v1312
    %1789 = vmatprep.subr.bf16.mxu0 %v1309
    %1790 = vmatpush2.bf16.msra.mxu0 %v1308
    %1791 = vmatprep.subr.bf16.mxu0 %v1305
    %1792 = vmatpush2.bf16.msra.mxu0 %v1304
    %1793 = vmatprep.mubr.bf16.mxu0 %v157
    %1794 = vmatmul.mubr.bf16.gmra.mxu0 %v156
    %v1795 = vpop.f32.mrf.mxu0
    %v1796 = vadd.f32 %v1755, %v1795
    %v1797 = vpop.f32.mrf.mxu0
    %v1798 = vadd.f32 %v1757, %v1797
    %v1799 = vpop.f32.mrf.mxu0
    %v1800 = vpop.f32.mrf.mxu0
    %1801 = vdwg.mxu0
    %1802 = vmatprep.subr.bf16.mxu0 %v1365
    %1803 = vmatpush1.bf16.msra.mxu0 %v1364
    %1804 = vmatprep.subr.bf16.mxu0 %v1361
    %1805 = vmatpush1.bf16.msra.mxu0 %v1360
    %1806 = vmatprep.subr.bf16.mxu0 %v1357
    %1807 = vmatpush1.bf16.msra.mxu0 %v1356
    %1808 = vmatprep.subr.bf16.mxu0 %v1353
    %1809 = vmatpush1.bf16.msra.mxu0 %v1352
    %1810 = vmatprep.subr.bf16.mxu0 %v1349
    %1811 = vmatpush1.bf16.msra.mxu0 %v1348
    %1812 = vmatprep.subr.bf16.mxu0 %v1345
    %1813 = vmatpush1.bf16.msra.mxu0 %v1344
    %1814 = vmatprep.subr.bf16.mxu0 %v1341
    %1815 = vmatpush1.bf16.msra.mxu0 %v1340
    %1816 = vmatprep.subr.bf16.mxu0 %v1337
    %1817 = vmatpush1.bf16.msra.mxu0 %v1336
    %1818 = vmatprep.subr.bf16.mxu0 %v1397
    %1819 = vmatpush2.bf16.msra.mxu0 %v1396
    %1820 = vmatprep.subr.bf16.mxu0 %v1393
    %1821 = vmatpush2.bf16.msra.mxu0 %v1392
    %1822 = vmatprep.subr.bf16.mxu0 %v1389
    %1823 = vmatpush2.bf16.msra.mxu0 %v1388
    %1824 = vmatprep.subr.bf16.mxu0 %v1385
    %1825 = vmatpush2.bf16.msra.mxu0 %v1384
    %1826 = vmatprep.subr.bf16.mxu0 %v1381
    %1827 = vmatpush2.bf16.msra.mxu0 %v1380
    %1828 = vmatprep.subr.bf16.mxu0 %v1377
    %1829 = vmatpush2.bf16.msra.mxu0 %v1376
    %1830 = vmatprep.subr.bf16.mxu0 %v1373
    %1831 = vmatpush2.bf16.msra.mxu0 %v1372
    %1832 = vmatprep.subr.bf16.mxu0 %v1369
    %1833 = vmatpush2.bf16.msra.mxu0 %v1368
    %1834 = vmatprep.mubr.bf16.mxu0 %v159
    %1835 = vmatmul.mubr.bf16.gmra.mxu0 %v158
    %v1836 = vpop.f32.mrf.mxu0
    %v1837 = vadd.f32 %v1796, %v1836
    %v1838 = vpop.f32.mrf.mxu0
    %v1839 = vadd.f32 %v1798, %v1838
    %v1840 = vpop.f32.mrf.mxu0
    %v1841 = vpop.f32.mrf.mxu0
    %1842 = vdwg.mxu0
    %1843 = vmatprep.subr.bf16.mxu0 %v1429
    %1844 = vmatpush1.bf16.msra.mxu0 %v1428
    %1845 = vmatprep.subr.bf16.mxu0 %v1425
    %1846 = vmatpush1.bf16.msra.mxu0 %v1424
    %1847 = vmatprep.subr.bf16.mxu0 %v1421
    %1848 = vmatpush1.bf16.msra.mxu0 %v1420
    %1849 = vmatprep.subr.bf16.mxu0 %v1417
    %1850 = vmatpush1.bf16.msra.mxu0 %v1416
    %1851 = vmatprep.subr.bf16.mxu0 %v1413
    %1852 = vmatpush1.bf16.msra.mxu0 %v1412
    %1853 = vmatprep.subr.bf16.mxu0 %v1409
    %1854 = vmatpush1.bf16.msra.mxu0 %v1408
    %1855 = vmatprep.subr.bf16.mxu0 %v1405
    %1856 = vmatpush1.bf16.msra.mxu0 %v1404
    %1857 = vmatprep.subr.bf16.mxu0 %v1401
    %1858 = vmatpush1.bf16.msra.mxu0 %v1400
    %1859 = vmatprep.subr.bf16.mxu0 %v1461
    %1860 = vmatpush2.bf16.msra.mxu0 %v1460
    %1861 = vmatprep.subr.bf16.mxu0 %v1457
    %1862 = vmatpush2.bf16.msra.mxu0 %v1456
    %1863 = vmatprep.subr.bf16.mxu0 %v1453
    %1864 = vmatpush2.bf16.msra.mxu0 %v1452
    %1865 = vmatprep.subr.bf16.mxu0 %v1449
    %1866 = vmatpush2.bf16.msra.mxu0 %v1448
    %1867 = vmatprep.subr.bf16.mxu0 %v1445
    %1868 = vmatpush2.bf16.msra.mxu0 %v1444
    %1869 = vmatprep.subr.bf16.mxu0 %v1441
    %1870 = vmatpush2.bf16.msra.mxu0 %v1440
    %1871 = vmatprep.subr.bf16.mxu0 %v1437
    %1872 = vmatpush2.bf16.msra.mxu0 %v1436
    %1873 = vmatprep.subr.bf16.mxu0 %v1433
    %1874 = vmatpush2.bf16.msra.mxu0 %v1432
    %1875 = vmatprep.mubr.bf16.mxu0 %v161
    %1876 = vmatmul.mubr.bf16.gmra.mxu0 %v160
    %v1877 = vpop.f32.mrf.mxu0
    %v1878 = vadd.f32 %v1837, %v1877
    %v1879 = vpop.f32.mrf.mxu0
    %v1880 = vadd.f32 %v1839, %v1879
    %v1881 = vpop.f32.mrf.mxu0
    %v1882 = vpop.f32.mrf.mxu0
    %1883 = vdwg.mxu0
    %1884 = vmatprep.subr.bf16.mxu0 %v1239
    %1885 = vmatpush1.bf16.msra.mxu0 %v1238
    %1886 = vmatprep.subr.bf16.mxu0 %v1235
    %1887 = vmatpush1.bf16.msra.mxu0 %v1234
    %1888 = vmatprep.subr.bf16.mxu0 %v1231
    %1889 = vmatpush1.bf16.msra.mxu0 %v1230
    %1890 = vmatprep.subr.bf16.mxu0 %v1227
    %1891 = vmatpush1.bf16.msra.mxu0 %v1226
    %1892 = vmatprep.subr.bf16.mxu0 %v1223
    %1893 = vmatpush1.bf16.msra.mxu0 %v1222
    %1894 = vmatprep.subr.bf16.mxu0 %v1219
    %1895 = vmatpush1.bf16.msra.mxu0 %v1218
    %1896 = vmatprep.subr.bf16.mxu0 %v1215
    %1897 = vmatpush1.bf16.msra.mxu0 %v1214
    %1898 = vmatprep.subr.bf16.mxu0 %v1211
    %1899 = vmatpush1.bf16.msra.mxu0 %v1210
    %1900 = vmatprep.subr.bf16.mxu0 %v1271
    %1901 = vmatpush2.bf16.msra.mxu0 %v1270
    %1902 = vmatprep.subr.bf16.mxu0 %v1267
    %1903 = vmatpush2.bf16.msra.mxu0 %v1266
    %1904 = vmatprep.subr.bf16.mxu0 %v1263
    %1905 = vmatpush2.bf16.msra.mxu0 %v1262
    %1906 = vmatprep.subr.bf16.mxu0 %v1259
    %1907 = vmatpush2.bf16.msra.mxu0 %v1258
    %1908 = vmatprep.subr.bf16.mxu0 %v1255
    %1909 = vmatpush2.bf16.msra.mxu0 %v1254
    %1910 = vmatprep.subr.bf16.mxu0 %v1251
    %1911 = vmatpush2.bf16.msra.mxu0 %v1250
    %1912 = vmatprep.subr.bf16.mxu0 %v1247
    %1913 = vmatpush2.bf16.msra.mxu0 %v1246
    %1914 = vmatprep.subr.bf16.mxu0 %v1243
    %1915 = vmatpush2.bf16.msra.mxu0 %v1242
    %1916 = vmatprep.mubr.bf16.mxu0 %v155
    %1917 = vmatmul.mubr.bf16.gmra.mxu0 %v154
    %v1918 = vpop.f32.mrf.mxu0
    %v1919 = vadd.f32 %v431, %v1918
    %v1920 = vpop.f32.mrf.mxu0
    %v1921 = vadd.f32 %v435, %v1920
    %v1922 = vpop.f32.mrf.mxu0
    %v1923 = vpop.f32.mrf.mxu0
    %1924 = vdwg.mxu0
    %1925 = vmatprep.subr.bf16.mxu0 %v1303
    %1926 = vmatpush1.bf16.msra.mxu0 %v1302
    %1927 = vmatprep.subr.bf16.mxu0 %v1299
    %1928 = vmatpush1.bf16.msra.mxu0 %v1298
    %1929 = vmatprep.subr.bf16.mxu0 %v1295
    %1930 = vmatpush1.bf16.msra.mxu0 %v1294
    %1931 = vmatprep.subr.bf16.mxu0 %v1291
    %1932 = vmatpush1.bf16.msra.mxu0 %v1290
    %1933 = vmatprep.subr.bf16.mxu0 %v1287
    %1934 = vmatpush1.bf16.msra.mxu0 %v1286
    %1935 = vmatprep.subr.bf16.mxu0 %v1283
    %1936 = vmatpush1.bf16.msra.mxu0 %v1282
    %1937 = vmatprep.subr.bf16.mxu0 %v1279
    %1938 = vmatpush1.bf16.msra.mxu0 %v1278
    %1939 = vmatprep.subr.bf16.mxu0 %v1275
    %1940 = vmatpush1.bf16.msra.mxu0 %v1274
    %1941 = vmatprep.subr.bf16.mxu0 %v1335
    %1942 = vmatpush2.bf16.msra.mxu0 %v1334
    %1943 = vmatprep.subr.bf16.mxu0 %v1331
    %1944 = vmatpush2.bf16.msra.mxu0 %v1330
    %1945 = vmatprep.subr.bf16.mxu0 %v1327
    %1946 = vmatpush2.bf16.msra.mxu0 %v1326
    %1947 = vmatprep.subr.bf16.mxu0 %v1323
    %1948 = vmatpush2.bf16.msra.mxu0 %v1322
    %1949 = vmatprep.subr.bf16.mxu0 %v1319
    %1950 = vmatpush2.bf16.msra.mxu0 %v1318
    %1951 = vmatprep.subr.bf16.mxu0 %v1315
    %1952 = vmatpush2.bf16.msra.mxu0 %v1314
    %1953 = vmatprep.subr.bf16.mxu0 %v1311
    %1954 = vmatpush2.bf16.msra.mxu0 %v1310
    %1955 = vmatprep.subr.bf16.mxu0 %v1307
    %1956 = vmatpush2.bf16.msra.mxu0 %v1306
    %1957 = vmatprep.mubr.bf16.mxu0 %v157
    %1958 = vmatmul.mubr.bf16.gmra.mxu0 %v156
    %v1959 = vpop.f32.mrf.mxu0
    %v1960 = vadd.f32 %v1919, %v1959
    %v1961 = vpop.f32.mrf.mxu0
    %v1962 = vadd.f32 %v1921, %v1961
    %v1963 = vpop.f32.mrf.mxu0
    %v1964 = vpop.f32.mrf.mxu0
    %1965 = vdwg.mxu0
    %1966 = vmatprep.subr.bf16.mxu0 %v1367
    %1967 = vmatpush1.bf16.msra.mxu0 %v1366
    %1968 = vmatprep.subr.bf16.mxu0 %v1363
    %1969 = vmatpush1.bf16.msra.mxu0 %v1362
    %1970 = vmatprep.subr.bf16.mxu0 %v1359
    %1971 = vmatpush1.bf16.msra.mxu0 %v1358
    %1972 = vmatprep.subr.bf16.mxu0 %v1355
    %1973 = vmatpush1.bf16.msra.mxu0 %v1354
    %1974 = vmatprep.subr.bf16.mxu0 %v1351
    %1975 = vmatpush1.bf16.msra.mxu0 %v1350
    %1976 = vmatprep.subr.bf16.mxu0 %v1347
    %1977 = vmatpush1.bf16.msra.mxu0 %v1346
    %1978 = vmatprep.subr.bf16.mxu0 %v1343
    %1979 = vmatpush1.bf16.msra.mxu0 %v1342
    %1980 = vmatprep.subr.bf16.mxu0 %v1339
    %1981 = vmatpush1.bf16.msra.mxu0 %v1338
    %1982 = vmatprep.subr.bf16.mxu0 %v1399
    %1983 = vmatpush2.bf16.msra.mxu0 %v1398
    %1984 = vmatprep.subr.bf16.mxu0 %v1395
    %1985 = vmatpush2.bf16.msra.mxu0 %v1394
    %1986 = vmatprep.subr.bf16.mxu0 %v1391
    %1987 = vmatpush2.bf16.msra.mxu0 %v1390
    %1988 = vmatprep.subr.bf16.mxu0 %v1387
    %1989 = vmatpush2.bf16.msra.mxu0 %v1386
    %1990 = vmatprep.subr.bf16.mxu0 %v1383
    %1991 = vmatpush2.bf16.msra.mxu0 %v1382
    %1992 = vmatprep.subr.bf16.mxu0 %v1379
    %1993 = vmatpush2.bf16.msra.mxu0 %v1378
    %1994 = vmatprep.subr.bf16.mxu0 %v1375
    %1995 = vmatpush2.bf16.msra.mxu0 %v1374
    %1996 = vmatprep.subr.bf16.mxu0 %v1371
    %1997 = vmatpush2.bf16.msra.mxu0 %v1370
    %1998 = vmatprep.mubr.bf16.mxu0 %v159
    %1999 = vmatmul.mubr.bf16.gmra.mxu0 %v158
    %v2000 = vpop.f32.mrf.mxu0
    %v2001 = vadd.f32 %v1960, %v2000
    %v2002 = vpop.f32.mrf.mxu0
    %v2003 = vadd.f32 %v1962, %v2002
    %v2004 = vpop.f32.mrf.mxu0
    %v2005 = vpop.f32.mrf.mxu0
    %2006 = vdwg.mxu0
    %2007 = vmatprep.subr.bf16.mxu0 %v1431
    %2008 = vmatpush1.bf16.msra.mxu0 %v1430
    %2009 = vmatprep.subr.bf16.mxu0 %v1427
    %2010 = vmatpush1.bf16.msra.mxu0 %v1426
    %2011 = vmatprep.subr.bf16.mxu0 %v1423
    %2012 = vmatpush1.bf16.msra.mxu0 %v1422
    %2013 = vmatprep.subr.bf16.mxu0 %v1419
    %2014 = vmatpush1.bf16.msra.mxu0 %v1418
    %2015 = vmatprep.subr.bf16.mxu0 %v1415
    %2016 = vmatpush1.bf16.msra.mxu0 %v1414
    %2017 = vmatprep.subr.bf16.mxu0 %v1411
    %2018 = vmatpush1.bf16.msra.mxu0 %v1410
    %2019 = vmatprep.subr.bf16.mxu0 %v1407
    %2020 = vmatpush1.bf16.msra.mxu0 %v1406
    %2021 = vmatprep.subr.bf16.mxu0 %v1403
    %2022 = vmatpush1.bf16.msra.mxu0 %v1402
    %2023 = vmatprep.subr.bf16.mxu0 %v1463
    %2024 = vmatpush2.bf16.msra.mxu0 %v1462
    %2025 = vmatprep.subr.bf16.mxu0 %v1459
    %2026 = vmatpush2.bf16.msra.mxu0 %v1458
    %2027 = vmatprep.subr.bf16.mxu0 %v1455
    %2028 = vmatpush2.bf16.msra.mxu0 %v1454
    %2029 = vmatprep.subr.bf16.mxu0 %v1451
    %2030 = vmatpush2.bf16.msra.mxu0 %v1450
    %2031 = vmatprep.subr.bf16.mxu0 %v1447
    %2032 = vmatpush2.bf16.msra.mxu0 %v1446
    %2033 = vmatprep.subr.bf16.mxu0 %v1443
    %2034 = vmatpush2.bf16.msra.mxu0 %v1442
    %2035 = vmatprep.subr.bf16.mxu0 %v1439
    %2036 = vmatpush2.bf16.msra.mxu0 %v1438
    %2037 = vmatprep.subr.bf16.mxu0 %v1435
    %2038 = vmatpush2.bf16.msra.mxu0 %v1434
    %2039 = vmatprep.mubr.bf16.mxu0 %v161
    %2040 = vmatmul.mubr.bf16.gmra.mxu0 %v160
    %v2041 = vpop.f32.mrf.mxu0
    %v2042 = vadd.f32 %v2001, %v2041
    %v2043 = vpop.f32.mrf.mxu0
    %v2044 = vadd.f32 %v2003, %v2043
    %v2045 = vpop.f32.mrf.mxu0
    %v2046 = vpop.f32.mrf.mxu0
    %2047 = vdwg.mxu0
    %vm2048 = vcmp.gt.f32.partialorder %v1878, 0.0
    %vm2049 = vcmp.gt.f32.partialorder %v1880, 0.0
    %vm2050 = vcmp.gt.f32.partialorder %v2042, 0.0
    %vm2051 = vcmp.gt.f32.partialorder %v2044, 0.0
    %v2052 = vmul.f32 %v1878, 0.2
    %v2053 = vmul.f32 %v1880, 0.2
    %v2054 = vmul.f32 %v2042, 0.2
    %v2055 = vmul.f32 %v2044, 0.2
    %v2056 = vsel %vm2048, %v1878, %v2052
    %v2057 = vsel %vm2049, %v1880, %v2053
    %v2058 = vsel %vm2050, %v2042, %v2054
    %v2059 = vsel %vm2051, %v2044, %v2055
    %v2060 = vpack.c.bf16 %v2056, %v2056
    %v2061 = vpack.c.bf16 %v2057, %v2057
    %v2062 = vpack.c.bf16 %v2058, %v2058
    %v2063 = vpack.c.bf16 %v2059, %v2059
    %v2064 = vld [vmem:[#allocation4] sm:$0xff]
    %v2065 = vld [vmem:[#allocation4 + $0x8] sm:$0xff]
    %v2066 = vld [vmem:[#allocation4 + $0x10] sm:$0xff]
    %v2067 = vld [vmem:[#allocation4 + $0x18] sm:$0xff]
    %v2068 = vld [vmem:[#allocation4 + $0x20] sm:$0xff]
    %v2069 = vld [vmem:[#allocation4 + $0x28] sm:$0xff]
    %v2070 = vld [vmem:[#allocation4 + $0x30] sm:$0xff]
    %v2071 = vld [vmem:[#allocation4 + $0x38] sm:$0xff]
    %v2072 = vld [vmem:[#allocation4 + $0x40] sm:$0xff]
    %v2073 = vld [vmem:[#allocation4 + $0x48] sm:$0xff]
    %v2074 = vld [vmem:[#allocation4 + $0x50] sm:$0xff]
    %v2075 = vld [vmem:[#allocation4 + $0x58] sm:$0xff]
    %v2076 = vld [vmem:[#allocation4 + $0x60] sm:$0xff]
    %v2077 = vld [vmem:[#allocation4 + $0x68] sm:$0xff]
    %v2078 = vld [vmem:[#allocation4 + $0x70] sm:$0xff]
    %v2079 = vld [vmem:[#allocation4 + $0x78] sm:$0xff]
    %v2080 = vld [vmem:[#allocation4 + $0x80] sm:$0xff]
    %v2081 = vld [vmem:[#allocation4 + $0x88] sm:$0xff]
    %v2082 = vld [vmem:[#allocation4 + $0x90] sm:$0xff]
    %v2083 = vld [vmem:[#allocation4 + $0x98] sm:$0xff]
    %v2084 = vld [vmem:[#allocation4 + $0xa0] sm:$0xff]
    %v2085 = vld [vmem:[#allocation4 + $0xa8] sm:$0xff]
    %v2086 = vld [vmem:[#allocation4 + $0xb0] sm:$0xff]
    %v2087 = vld [vmem:[#allocation4 + $0xb8] sm:$0xff]
    %v2088 = vld [vmem:[#allocation4 + $0xc0] sm:$0xff]
    %v2089 = vld [vmem:[#allocation4 + $0xc8] sm:$0xff]
    %v2090 = vld [vmem:[#allocation4 + $0xd0] sm:$0xff]
    %v2091 = vld [vmem:[#allocation4 + $0xd8] sm:$0xff]
    %v2092 = vld [vmem:[#allocation4 + $0xe0] sm:$0xff]
    %v2093 = vld [vmem:[#allocation4 + $0xe8] sm:$0xff]
    %v2094 = vld [vmem:[#allocation4 + $0xf0] sm:$0xff]
    %v2095 = vld [vmem:[#allocation4 + $0xf8] sm:$0xff]
    %v2096 = vld [vmem:[#allocation4 + $0x100] sm:$0xff]
    %v2097 = vld [vmem:[#allocation4 + $0x108] sm:$0xff]
    %v2098 = vld [vmem:[#allocation4 + $0x110] sm:$0xff]
    %v2099 = vld [vmem:[#allocation4 + $0x118] sm:$0xff]
    %v2100 = vld [vmem:[#allocation4 + $0x120] sm:$0xff]
    %v2101 = vld [vmem:[#allocation4 + $0x128] sm:$0xff]
    %v2102 = vld [vmem:[#allocation4 + $0x130] sm:$0xff]
    %v2103 = vld [vmem:[#allocation4 + $0x138] sm:$0xff]
    %v2104 = vld [vmem:[#allocation4 + $0x140] sm:$0xff]
    %v2105 = vld [vmem:[#allocation4 + $0x148] sm:$0xff]
    %v2106 = vld [vmem:[#allocation4 + $0x150] sm:$0xff]
    %v2107 = vld [vmem:[#allocation4 + $0x158] sm:$0xff]
    %v2108 = vld [vmem:[#allocation4 + $0x160] sm:$0xff]
    %v2109 = vld [vmem:[#allocation4 + $0x168] sm:$0xff]
    %v2110 = vld [vmem:[#allocation4 + $0x170] sm:$0xff]
    %v2111 = vld [vmem:[#allocation4 + $0x178] sm:$0xff]
    %v2112 = vld [vmem:[#allocation4 + $0x180] sm:$0xff]
    %v2113 = vld [vmem:[#allocation4 + $0x188] sm:$0xff]
    %v2114 = vld [vmem:[#allocation4 + $0x190] sm:$0xff]
    %v2115 = vld [vmem:[#allocation4 + $0x198] sm:$0xff]
    %v2116 = vld [vmem:[#allocation4 + $0x1a0] sm:$0xff]
    %v2117 = vld [vmem:[#allocation4 + $0x1a8] sm:$0xff]
    %v2118 = vld [vmem:[#allocation4 + $0x1b0] sm:$0xff]
    %v2119 = vld [vmem:[#allocation4 + $0x1b8] sm:$0xff]
    %v2120 = vld [vmem:[#allocation4 + $0x1c0] sm:$0xff]
    %v2121 = vld [vmem:[#allocation4 + $0x1c8] sm:$0xff]
    %v2122 = vld [vmem:[#allocation4 + $0x1d0] sm:$0xff]
    %v2123 = vld [vmem:[#allocation4 + $0x1d8] sm:$0xff]
    %v2124 = vld [vmem:[#allocation4 + $0x1e0] sm:$0xff]
    %v2125 = vld [vmem:[#allocation4 + $0x1e8] sm:$0xff]
    %v2126 = vld [vmem:[#allocation4 + $0x1f0] sm:$0xff]
    %v2127 = vld [vmem:[#allocation4 + $0x1f8] sm:$0xff]
    %v2128 = vld [vmem:[%s4] sm:$0x3]
    %v2130 = vlaneseq
    %v2131 = vshrl.u32 %v2130, 7
    %v2132 = vsub.s32 0, %v2131
    %v2133 = vrot.slane %v2128, %v2132
    %v2134 = vlaneseq
    %v2135 = vshrl.u32 %v2134, 7
    %v2136 = vsub.s32 1, %v2135
    %v2137 = vrot.slane %v2128, %v2136
    %v2204 = vunpack.c.l.b16 %v2064
    %v2205 = vunpack.c.h.b16 %v2064
    %v2206 = vunpack.c.l.b16 %v2065
    %v2207 = vunpack.c.h.b16 %v2065
    %v2208 = vunpack.c.l.b16 %v2066
    %v2209 = vunpack.c.h.b16 %v2066
    %v2210 = vunpack.c.l.b16 %v2067
    %v2211 = vunpack.c.h.b16 %v2067
    %v2212 = vunpack.c.l.b16 %v2068
    %v2213 = vunpack.c.h.b16 %v2068
    %v2214 = vunpack.c.l.b16 %v2069
    %v2215 = vunpack.c.h.b16 %v2069
    %v2216 = vunpack.c.l.b16 %v2070
    %v2217 = vunpack.c.h.b16 %v2070
    %v2218 = vunpack.c.l.b16 %v2071
    %v2219 = vunpack.c.h.b16 %v2071
    %v2220 = vunpack.c.l.b16 %v2072
    %v2221 = vunpack.c.h.b16 %v2072
    %v2222 = vunpack.c.l.b16 %v2073
    %v2223 = vunpack.c.h.b16 %v2073
    %v2224 = vunpack.c.l.b16 %v2074
    %v2225 = vunpack.c.h.b16 %v2074
    %v2226 = vunpack.c.l.b16 %v2075
    %v2227 = vunpack.c.h.b16 %v2075
    %v2228 = vunpack.c.l.b16 %v2076
    %v2229 = vunpack.c.h.b16 %v2076
    %v2230 = vunpack.c.l.b16 %v2077
    %v2231 = vunpack.c.h.b16 %v2077
    %v2232 = vunpack.c.l.b16 %v2078
    %v2233 = vunpack.c.h.b16 %v2078
    %v2234 = vunpack.c.l.b16 %v2079
    %v2235 = vunpack.c.h.b16 %v2079
    %v2236 = vunpack.c.l.b16 %v2080
    %v2237 = vunpack.c.h.b16 %v2080
    %v2238 = vunpack.c.l.b16 %v2081
    %v2239 = vunpack.c.h.b16 %v2081
    %v2240 = vunpack.c.l.b16 %v2082
    %v2241 = vunpack.c.h.b16 %v2082
    %v2242 = vunpack.c.l.b16 %v2083
    %v2243 = vunpack.c.h.b16 %v2083
    %v2244 = vunpack.c.l.b16 %v2084
    %v2245 = vunpack.c.h.b16 %v2084
    %v2246 = vunpack.c.l.b16 %v2085
    %v2247 = vunpack.c.h.b16 %v2085
    %v2248 = vunpack.c.l.b16 %v2086
    %v2249 = vunpack.c.h.b16 %v2086
    %v2250 = vunpack.c.l.b16 %v2087
    %v2251 = vunpack.c.h.b16 %v2087
    %v2252 = vunpack.c.l.b16 %v2088
    %v2253 = vunpack.c.h.b16 %v2088
    %v2254 = vunpack.c.l.b16 %v2089
    %v2255 = vunpack.c.h.b16 %v2089
    %v2256 = vunpack.c.l.b16 %v2090
    %v2257 = vunpack.c.h.b16 %v2090
    %v2258 = vunpack.c.l.b16 %v2091
    %v2259 = vunpack.c.h.b16 %v2091
    %v2260 = vunpack.c.l.b16 %v2092
    %v2261 = vunpack.c.h.b16 %v2092
    %v2262 = vunpack.c.l.b16 %v2093
    %v2263 = vunpack.c.h.b16 %v2093
    %v2264 = vunpack.c.l.b16 %v2094
    %v2265 = vunpack.c.h.b16 %v2094
    %v2266 = vunpack.c.l.b16 %v2095
    %v2267 = vunpack.c.h.b16 %v2095
    %v2268 = vunpack.c.l.b16 %v2096
    %v2269 = vunpack.c.h.b16 %v2096
    %v2270 = vunpack.c.l.b16 %v2097
    %v2271 = vunpack.c.h.b16 %v2097
    %v2272 = vunpack.c.l.b16 %v2098
    %v2273 = vunpack.c.h.b16 %v2098
    %v2274 = vunpack.c.l.b16 %v2099
    %v2275 = vunpack.c.h.b16 %v2099
    %v2276 = vunpack.c.l.b16 %v2100
    %v2277 = vunpack.c.h.b16 %v2100
    %v2278 = vunpack.c.l.b16 %v2101
    %v2279 = vunpack.c.h.b16 %v2101
    %v2280 = vunpack.c.l.b16 %v2102
    %v2281 = vunpack.c.h.b16 %v2102
    %v2282 = vunpack.c.l.b16 %v2103
    %v2283 = vunpack.c.h.b16 %v2103
    %v2284 = vunpack.c.l.b16 %v2104
    %v2285 = vunpack.c.h.b16 %v2104
    %v2286 = vunpack.c.l.b16 %v2105
    %v2287 = vunpack.c.h.b16 %v2105
    %v2288 = vunpack.c.l.b16 %v2106
    %v2289 = vunpack.c.h.b16 %v2106
    %v2290 = vunpack.c.l.b16 %v2107
    %v2291 = vunpack.c.h.b16 %v2107
    %v2292 = vunpack.c.l.b16 %v2108
    %v2293 = vunpack.c.h.b16 %v2108
    %v2294 = vunpack.c.l.b16 %v2109
    %v2295 = vunpack.c.h.b16 %v2109
    %v2296 = vunpack.c.l.b16 %v2110
    %v2297 = vunpack.c.h.b16 %v2110
    %v2298 = vunpack.c.l.b16 %v2111
    %v2299 = vunpack.c.h.b16 %v2111
    %v2300 = vunpack.c.l.b16 %v2112
    %v2301 = vunpack.c.h.b16 %v2112
    %v2302 = vunpack.c.l.b16 %v2113
    %v2303 = vunpack.c.h.b16 %v2113
    %v2304 = vunpack.c.l.b16 %v2114
    %v2305 = vunpack.c.h.b16 %v2114
    %v2306 = vunpack.c.l.b16 %v2115
    %v2307 = vunpack.c.h.b16 %v2115
    %v2308 = vunpack.c.l.b16 %v2116
    %v2309 = vunpack.c.h.b16 %v2116
    %v2310 = vunpack.c.l.b16 %v2117
    %v2311 = vunpack.c.h.b16 %v2117
    %v2312 = vunpack.c.l.b16 %v2118
    %v2313 = vunpack.c.h.b16 %v2118
    %v2314 = vunpack.c.l.b16 %v2119
    %v2315 = vunpack.c.h.b16 %v2119
    %v2316 = vunpack.c.l.b16 %v2120
    %v2317 = vunpack.c.h.b16 %v2120
    %v2318 = vunpack.c.l.b16 %v2121
    %v2319 = vunpack.c.h.b16 %v2121
    %v2320 = vunpack.c.l.b16 %v2122
    %v2321 = vunpack.c.h.b16 %v2122
    %v2322 = vunpack.c.l.b16 %v2123
    %v2323 = vunpack.c.h.b16 %v2123
    %v2324 = vunpack.c.l.b16 %v2124
    %v2325 = vunpack.c.h.b16 %v2124
    %v2326 = vunpack.c.l.b16 %v2125
    %v2327 = vunpack.c.h.b16 %v2125
    %v2328 = vunpack.c.l.b16 %v2126
    %v2329 = vunpack.c.h.b16 %v2126
    %v2330 = vunpack.c.l.b16 %v2127
    %v2331 = vunpack.c.h.b16 %v2127
    %v2332 = vpack.c.b16 %v2206, %v2204
    %v2333 = vpack.c.b16 %v2207, %v2205
    %v2334 = vpack.c.b16 %v2210, %v2208
    %v2335 = vpack.c.b16 %v2211, %v2209
    %v2336 = vpack.c.b16 %v2214, %v2212
    %v2337 = vpack.c.b16 %v2215, %v2213
    %v2338 = vpack.c.b16 %v2218, %v2216
    %v2339 = vpack.c.b16 %v2219, %v2217
    %v2340 = vpack.c.b16 %v2222, %v2220
    %v2341 = vpack.c.b16 %v2223, %v2221
    %v2342 = vpack.c.b16 %v2226, %v2224
    %v2343 = vpack.c.b16 %v2227, %v2225
    %v2344 = vpack.c.b16 %v2230, %v2228
    %v2345 = vpack.c.b16 %v2231, %v2229
    %v2346 = vpack.c.b16 %v2234, %v2232
    %v2347 = vpack.c.b16 %v2235, %v2233
    %v2348 = vpack.c.b16 %v2238, %v2236
    %v2349 = vpack.c.b16 %v2239, %v2237
    %v2350 = vpack.c.b16 %v2242, %v2240
    %v2351 = vpack.c.b16 %v2243, %v2241
    %v2352 = vpack.c.b16 %v2246, %v2244
    %v2353 = vpack.c.b16 %v2247, %v2245
    %v2354 = vpack.c.b16 %v2250, %v2248
    %v2355 = vpack.c.b16 %v2251, %v2249
    %v2356 = vpack.c.b16 %v2254, %v2252
    %v2357 = vpack.c.b16 %v2255, %v2253
    %v2358 = vpack.c.b16 %v2258, %v2256
    %v2359 = vpack.c.b16 %v2259, %v2257
    %v2360 = vpack.c.b16 %v2262, %v2260
    %v2361 = vpack.c.b16 %v2263, %v2261
    %v2362 = vpack.c.b16 %v2266, %v2264
    %v2363 = vpack.c.b16 %v2267, %v2265
    %v2364 = vpack.c.b16 %v2270, %v2268
    %v2365 = vpack.c.b16 %v2271, %v2269
    %v2366 = vpack.c.b16 %v2274, %v2272
    %v2367 = vpack.c.b16 %v2275, %v2273
    %v2368 = vpack.c.b16 %v2278, %v2276
    %v2369 = vpack.c.b16 %v2279, %v2277
    %v2370 = vpack.c.b16 %v2282, %v2280
    %v2371 = vpack.c.b16 %v2283, %v2281
    %v2372 = vpack.c.b16 %v2286, %v2284
    %v2373 = vpack.c.b16 %v2287, %v2285
    %v2374 = vpack.c.b16 %v2290, %v2288
    %v2375 = vpack.c.b16 %v2291, %v2289
    %v2376 = vpack.c.b16 %v2294, %v2292
    %v2377 = vpack.c.b16 %v2295, %v2293
    %v2378 = vpack.c.b16 %v2298, %v2296
    %v2379 = vpack.c.b16 %v2299, %v2297
    %v2380 = vpack.c.b16 %v2302, %v2300
    %v2381 = vpack.c.b16 %v2303, %v2301
    %v2382 = vpack.c.b16 %v2306, %v2304
    %v2383 = vpack.c.b16 %v2307, %v2305
    %v2384 = vpack.c.b16 %v2310, %v2308
    %v2385 = vpack.c.b16 %v2311, %v2309
    %v2386 = vpack.c.b16 %v2314, %v2312
    %v2387 = vpack.c.b16 %v2315, %v2313
    %v2388 = vpack.c.b16 %v2318, %v2316
    %v2389 = vpack.c.b16 %v2319, %v2317
    %v2390 = vpack.c.b16 %v2322, %v2320
    %v2391 = vpack.c.b16 %v2323, %v2321
    %v2392 = vpack.c.b16 %v2326, %v2324
    %v2393 = vpack.c.b16 %v2327, %v2325
    %v2394 = vpack.c.b16 %v2330, %v2328
    %v2395 = vpack.c.b16 %v2331, %v2329
    %2460 = vmatprep.subr.bf16.mxu0 %v2347
    %2461 = vmatpush1.bf16.msra.mxu0 %v2346
    %2462 = vmatprep.subr.bf16.mxu0 %v2345
    %2463 = vmatpush1.bf16.msra.mxu0 %v2344
    %2464 = vmatprep.subr.bf16.mxu0 %v2343
    %2465 = vmatpush1.bf16.msra.mxu0 %v2342
    %2466 = vmatprep.subr.bf16.mxu0 %v2341
    %2467 = vmatpush1.bf16.msra.mxu0 %v2340
    %2468 = vmatprep.subr.bf16.mxu0 %v2339
    %2469 = vmatpush1.bf16.msra.mxu0 %v2338
    %2470 = vmatprep.subr.bf16.mxu0 %v2337
    %2471 = vmatpush1.bf16.msra.mxu0 %v2336
    %2472 = vmatprep.subr.bf16.mxu0 %v2335
    %2473 = vmatpush1.bf16.msra.mxu0 %v2334
    %2474 = vmatprep.subr.bf16.mxu0 %v2333
    %2475 = vmatpush1.bf16.msra.mxu0 %v2332
    %2476 = vmatprep.subr.bf16.mxu0 %v2363
    %2477 = vmatpush2.bf16.msra.mxu0 %v2362
    %2478 = vmatprep.subr.bf16.mxu0 %v2361
    %2479 = vmatpush2.bf16.msra.mxu0 %v2360
    %2480 = vmatprep.subr.bf16.mxu0 %v2359
    %2481 = vmatpush2.bf16.msra.mxu0 %v2358
    %2482 = vmatprep.subr.bf16.mxu0 %v2357
    %2483 = vmatpush2.bf16.msra.mxu0 %v2356
    %2484 = vmatprep.subr.bf16.mxu0 %v2355
    %2485 = vmatpush2.bf16.msra.mxu0 %v2354
    %2486 = vmatprep.subr.bf16.mxu0 %v2353
    %2487 = vmatpush2.bf16.msra.mxu0 %v2352
    %2488 = vmatprep.subr.bf16.mxu0 %v2351
    %2489 = vmatpush2.bf16.msra.mxu0 %v2350
    %2490 = vmatprep.subr.bf16.mxu0 %v2349
    %2491 = vmatpush2.bf16.msra.mxu0 %v2348
    %2492 = vmatprep.mubr.bf16.mxu0 %v2061
    %2493 = vmatmul.mubr.bf16.gmra.mxu0 %v2060
    %v2494 = vpop.f32.mrf.mxu0
    %v2495 = vadd.f32 %v2133, %v2494
    %v2496 = vpop.f32.mrf.mxu0
    %v2497 = vadd.f32 %v2137, %v2496
    %v2498 = vpop.f32.mrf.mxu0
    %v2499 = vpop.f32.mrf.mxu0
    %2500 = vdwg.mxu0
    %2501 = vmatprep.subr.bf16.mxu0 %v2379
    %2502 = vmatpush1.bf16.msra.mxu0 %v2378
    %2503 = vmatprep.subr.bf16.mxu0 %v2377
    %2504 = vmatpush1.bf16.msra.mxu0 %v2376
    %2505 = vmatprep.subr.bf16.mxu0 %v2375
    %2506 = vmatpush1.bf16.msra.mxu0 %v2374
    %2507 = vmatprep.subr.bf16.mxu0 %v2373
    %2508 = vmatpush1.bf16.msra.mxu0 %v2372
    %2509 = vmatprep.subr.bf16.mxu0 %v2371
    %2510 = vmatpush1.bf16.msra.mxu0 %v2370
    %2511 = vmatprep.subr.bf16.mxu0 %v2369
    %2512 = vmatpush1.bf16.msra.mxu0 %v2368
    %2513 = vmatprep.subr.bf16.mxu0 %v2367
    %2514 = vmatpush1.bf16.msra.mxu0 %v2366
    %2515 = vmatprep.subr.bf16.mxu0 %v2365
    %2516 = vmatpush1.bf16.msra.mxu0 %v2364
    %2517 = vmatprep.subr.bf16.mxu0 %v2395
    %2518 = vmatpush2.bf16.msra.mxu0 %v2394
    %2519 = vmatprep.subr.bf16.mxu0 %v2393
    %2520 = vmatpush2.bf16.msra.mxu0 %v2392
    %2521 = vmatprep.subr.bf16.mxu0 %v2391
    %2522 = vmatpush2.bf16.msra.mxu0 %v2390
    %2523 = vmatprep.subr.bf16.mxu0 %v2389
    %2524 = vmatpush2.bf16.msra.mxu0 %v2388
    %2525 = vmatprep.subr.bf16.mxu0 %v2387
    %2526 = vmatpush2.bf16.msra.mxu0 %v2386
    %2527 = vmatprep.subr.bf16.mxu0 %v2385
    %2528 = vmatpush2.bf16.msra.mxu0 %v2384
    %2529 = vmatprep.subr.bf16.mxu0 %v2383
    %2530 = vmatpush2.bf16.msra.mxu0 %v2382
    %2531 = vmatprep.subr.bf16.mxu0 %v2381
    %2532 = vmatpush2.bf16.msra.mxu0 %v2380
    %2533 = vmatprep.mubr.bf16.mxu0 %v2063
    %2534 = vmatmul.mubr.bf16.gmra.mxu0 %v2062
    %v2535 = vpop.f32.mrf.mxu0
    %v2536 = vadd.f32 %v2495, %v2535
    %v2537 = vpop.f32.mrf.mxu0
    %v2538 = vadd.f32 %v2497, %v2537
    %v2539 = vpop.f32.mrf.mxu0
    %v2540 = vpop.f32.mrf.mxu0
    %2541 = vdwg.mxu0
    %vm2542 = vcmp.gt.f32.partialorder %v2536, 0.0
    %vm2543 = vcmp.gt.f32.partialorder %v2538, 0.0
    %v2544 = vmul.f32 %v2536, 0.2
    %v2545 = vmul.f32 %v2538, 0.2
    %v2546 = vsel %vm2542, %v2536, %v2544
    %v2547 = vsel %vm2543, %v2538, %v2545
    %v2548 = vpack.c.bf16 %v2546, %v2546
    %v2549 = vpack.c.bf16 %v2547, %v2547
    %v2550 = vld [vmem:[%s5] sm:$0xf]
    %v2551 = vld [vmem:[%s5 + $0x4] sm:$0xf]
    %v2552 = vld [vmem:[%s5 + $0x8] sm:$0xf]
    %v2553 = vld [vmem:[%s5 + $0xc] sm:$0xf]
    %v2554 = vld [vmem:[%s5 + $0x10] sm:$0xf]
    %v2555 = vld [vmem:[%s5 + $0x14] sm:$0xf]
    %v2556 = vld [vmem:[%s5 + $0x18] sm:$0xf]
    %v2557 = vld [vmem:[%s5 + $0x1c] sm:$0xf]
    %v2558 = vld [vmem:[%s5 + $0x20] sm:$0xf]
    %v2559 = vld [vmem:[%s5 + $0x24] sm:$0xf]
    %v2560 = vld [vmem:[%s5 + $0x28] sm:$0xf]
    %v2561 = vld [vmem:[%s5 + $0x2c] sm:$0xf]
    %v2562 = vld [vmem:[%s5 + $0x30] sm:$0xf]
    %v2563 = vld [vmem:[%s5 + $0x34] sm:$0xf]
    %v2564 = vld [vmem:[%s5 + $0x38] sm:$0xf]
    %v2565 = vld [vmem:[%s5 + $0x3c] sm:$0xf]
    %v2566 = vld [vmem:[%s5 + $0x40] sm:$0xf]
    %v2567 = vld [vmem:[%s5 + $0x44] sm:$0xf]
    %v2568 = vld [vmem:[%s5 + $0x48] sm:$0xf]
    %v2569 = vld [vmem:[%s5 + $0x4c] sm:$0xf]
    %v2570 = vld [vmem:[%s5 + $0x50] sm:$0xf]
    %v2571 = vld [vmem:[%s5 + $0x54] sm:$0xf]
    %v2572 = vld [vmem:[%s5 + $0x58] sm:$0xf]
    %v2573 = vld [vmem:[%s5 + $0x5c] sm:$0xf]
    %v2574 = vld [vmem:[%s5 + $0x60] sm:$0xf]
    %v2575 = vld [vmem:[%s5 + $0x64] sm:$0xf]
    %v2576 = vld [vmem:[%s5 + $0x68] sm:$0xf]
    %v2577 = vld [vmem:[%s5 + $0x6c] sm:$0xf]
    %v2578 = vld [vmem:[%s5 + $0x70] sm:$0xf]
    %v2579 = vld [vmem:[%s5 + $0x74] sm:$0xf]
    %v2580 = vld [vmem:[%s5 + $0x78] sm:$0xf]
    %v2581 = vld [vmem:[%s5 + $0x7c] sm:$0xf]
    %v2582 = vld [vmem:[%s6] sm:$0x1]
    %v2584 = vlaneseq
    %v2585 = vshrl.u32 %v2584, 7
    %v2586 = vsub.s32 0, %v2585
    %v2587 = vrot.slane %v2582, %v2586
    %v2621 = vunpack.c.l.b16 %v2550
    %v2622 = vunpack.c.l.b16 %v2551
    %v2623 = vunpack.c.l.b16 %v2552
    %v2624 = vunpack.c.l.b16 %v2553
    %v2625 = vunpack.c.l.b16 %v2554
    %v2626 = vunpack.c.l.b16 %v2555
    %v2627 = vunpack.c.l.b16 %v2556
    %v2628 = vunpack.c.l.b16 %v2557
    %v2629 = vunpack.c.l.b16 %v2558
    %v2630 = vunpack.c.l.b16 %v2559
    %v2631 = vunpack.c.l.b16 %v2560
    %v2632 = vunpack.c.l.b16 %v2561
    %v2633 = vunpack.c.l.b16 %v2562
    %v2634 = vunpack.c.l.b16 %v2563
    %v2635 = vunpack.c.l.b16 %v2564
    %v2636 = vunpack.c.l.b16 %v2565
    %v2637 = vunpack.c.l.b16 %v2566
    %v2638 = vunpack.c.l.b16 %v2567
    %v2639 = vunpack.c.l.b16 %v2568
    %v2640 = vunpack.c.l.b16 %v2569
    %v2641 = vunpack.c.l.b16 %v2570
    %v2642 = vunpack.c.l.b16 %v2571
    %v2643 = vunpack.c.l.b16 %v2572
    %v2644 = vunpack.c.l.b16 %v2573
    %v2645 = vunpack.c.l.b16 %v2574
    %v2646 = vunpack.c.l.b16 %v2575
    %v2647 = vunpack.c.l.b16 %v2576
    %v2648 = vunpack.c.l.b16 %v2577
    %v2649 = vunpack.c.l.b16 %v2578
    %v2650 = vunpack.c.l.b16 %v2579
    %v2651 = vunpack.c.l.b16 %v2580
    %v2652 = vunpack.c.l.b16 %v2581
    %v2653 = vpack.c.b16 %v2622, %v2621
    %v2654 = vpack.c.b16 %v2624, %v2623
    %v2655 = vpack.c.b16 %v2626, %v2625
    %v2656 = vpack.c.b16 %v2628, %v2627
    %v2657 = vpack.c.b16 %v2630, %v2629
    %v2658 = vpack.c.b16 %v2632, %v2631
    %v2659 = vpack.c.b16 %v2634, %v2633
    %v2660 = vpack.c.b16 %v2636, %v2635
    %v2661 = vpack.c.b16 %v2638, %v2637
    %v2662 = vpack.c.b16 %v2640, %v2639
    %v2663 = vpack.c.b16 %v2642, %v2641
    %v2664 = vpack.c.b16 %v2644, %v2643
    %v2665 = vpack.c.b16 %v2646, %v2645
    %v2666 = vpack.c.b16 %v2648, %v2647
    %v2667 = vpack.c.b16 %v2650, %v2649
    %v2668 = vpack.c.b16 %v2652, %v2651
    %2685 = vmatprep.subr.bf16.mxu0 0
    %2686 = vmatpush1.bf16.msra.mxu0 %v2660
    %2687 = vmatprep.subr.bf16.mxu0 0
    %2688 = vmatpush1.bf16.msra.mxu0 %v2659
    %2689 = vmatprep.subr.bf16.mxu0 0
    %2690 = vmatpush1.bf16.msra.mxu0 %v2658
    %2691 = vmatprep.subr.bf16.mxu0 0
    %2692 = vmatpush1.bf16.msra.mxu0 %v2657
    %2693 = vmatprep.subr.bf16.mxu0 0
    %2694 = vmatpush1.bf16.msra.mxu0 %v2656
    %2695 = vmatprep.subr.bf16.mxu0 0
    %2696 = vmatpush1.bf16.msra.mxu0 %v2655
    %2697 = vmatprep.subr.bf16.mxu0 0
    %2698 = vmatpush1.bf16.msra.mxu0 %v2654
    %2699 = vmatprep.subr.bf16.mxu0 0
    %2700 = vmatpush1.bf16.msra.mxu0 %v2653
    %2701 = vmatprep.subr.bf16.mxu0 0
    %2702 = vmatpush2.bf16.msra.mxu0 %v2668
    %2703 = vmatprep.subr.bf16.mxu0 0
    %2704 = vmatpush2.bf16.msra.mxu0 %v2667
    %2705 = vmatprep.subr.bf16.mxu0 0
    %2706 = vmatpush2.bf16.msra.mxu0 %v2666
    %2707 = vmatprep.subr.bf16.mxu0 0
    %2708 = vmatpush2.bf16.msra.mxu0 %v2665
    %2709 = vmatprep.subr.bf16.mxu0 0
    %2710 = vmatpush2.bf16.msra.mxu0 %v2664
    %2711 = vmatprep.subr.bf16.mxu0 0
    %2712 = vmatpush2.bf16.msra.mxu0 %v2663
    %2713 = vmatprep.subr.bf16.mxu0 0
    %2714 = vmatpush2.bf16.msra.mxu0 %v2662
    %2715 = vmatprep.subr.bf16.mxu0 0
    %2716 = vmatpush2.bf16.msra.mxu0 %v2661
    %2717 = vmatprep.mubr.bf16.mxu0 %v2549
    %2718 = vmatmul.mubr.bf16.gmra.mxu0 %v2548
    %v2719 = vpop.f32.mrf.mxu0
    %v2720 = vadd.f32 %v2587, %v2719
    %v2721 = vpop.f32.mrf.mxu0
    %v2722 = vpop.f32.mrf.mxu0
    %v2723 = vpop.f32.mrf.mxu0
    %2724 = vdwg.mxu0
    %v2725 = vmax.f32 %v2720, 0.0
    %v2726 = vpack.c.bf16 %v2725, %v2725
    %v2727 = vld [vmem:[#allocation6] sm:$0xff]
    %v2728 = vld [vmem:[#allocation6 + $0x8] sm:$0xff]
    %v2729 = vld [vmem:[#allocation6 + $0x10] sm:$0xff]
    %v2730 = vld [vmem:[#allocation6 + $0x18] sm:$0xff]
    %v2731 = vld [vmem:[#allocation6 + $0x20] sm:$0xff]
    %v2732 = vld [vmem:[#allocation6 + $0x28] sm:$0xff]
    %v2733 = vld [vmem:[#allocation6 + $0x30] sm:$0xff]
    %v2734 = vld [vmem:[#allocation6 + $0x38] sm:$0xff]
    %v2735 = vld [vmem:[#allocation6 + $0x40] sm:$0xff]
    %v2736 = vld [vmem:[#allocation6 + $0x48] sm:$0xff]
    %v2737 = vld [vmem:[#allocation6 + $0x50] sm:$0xff]
    %v2738 = vld [vmem:[#allocation6 + $0x58] sm:$0xff]
    %v2739 = vld [vmem:[#allocation6 + $0x60] sm:$0xff]
    %v2740 = vld [vmem:[#allocation6 + $0x68] sm:$0xff]
    %v2741 = vld [vmem:[#allocation6 + $0x70] sm:$0xff]
    %v2742 = vld [vmem:[#allocation6 + $0x78] sm:$0xff]
    %v2743 = vld [vmem:[%s8] sm:$0x3]
    %v2745 = vlaneseq
    %v2746 = vshrl.u32 %v2745, 7
    %v2747 = vsub.s32 0, %v2746
    %v2748 = vrot.slane %v2743, %v2747
    %v2749 = vlaneseq
    %v2750 = vshrl.u32 %v2749, 7
    %v2751 = vsub.s32 1, %v2750
    %v2752 = vrot.slane %v2743, %v2751
    %v2771 = vunpack.c.l.b16 %v2727
    %v2772 = vunpack.c.h.b16 %v2727
    %v2773 = vunpack.c.l.b16 %v2728
    %v2774 = vunpack.c.h.b16 %v2728
    %v2775 = vunpack.c.l.b16 %v2729
    %v2776 = vunpack.c.h.b16 %v2729
    %v2777 = vunpack.c.l.b16 %v2730
    %v2778 = vunpack.c.h.b16 %v2730
    %v2779 = vunpack.c.l.b16 %v2731
    %v2780 = vunpack.c.h.b16 %v2731
    %v2781 = vunpack.c.l.b16 %v2732
    %v2782 = vunpack.c.h.b16 %v2732
    %v2783 = vunpack.c.l.b16 %v2733
    %v2784 = vunpack.c.h.b16 %v2733
    %v2785 = vunpack.c.l.b16 %v2734
    %v2786 = vunpack.c.h.b16 %v2734
    %v2787 = vunpack.c.l.b16 %v2735
    %v2788 = vunpack.c.h.b16 %v2735
    %v2789 = vunpack.c.l.b16 %v2736
    %v2790 = vunpack.c.h.b16 %v2736
    %v2791 = vunpack.c.l.b16 %v2737
    %v2792 = vunpack.c.h.b16 %v2737
    %v2793 = vunpack.c.l.b16 %v2738
    %v2794 = vunpack.c.h.b16 %v2738
    %v2795 = vunpack.c.l.b16 %v2739
    %v2796 = vunpack.c.h.b16 %v2739
    %v2797 = vunpack.c.l.b16 %v2740
    %v2798 = vunpack.c.h.b16 %v2740
    %v2799 = vunpack.c.l.b16 %v2741
    %v2800 = vunpack.c.h.b16 %v2741
    %v2801 = vunpack.c.l.b16 %v2742
    %v2802 = vunpack.c.h.b16 %v2742
    %v2803 = vpack.c.b16 %v2773, %v2771
    %v2804 = vpack.c.b16 %v2774, %v2772
    %v2805 = vpack.c.b16 %v2777, %v2775
    %v2806 = vpack.c.b16 %v2778, %v2776
    %v2807 = vpack.c.b16 %v2781, %v2779
    %v2808 = vpack.c.b16 %v2782, %v2780
    %v2809 = vpack.c.b16 %v2785, %v2783
    %v2810 = vpack.c.b16 %v2786, %v2784
    %v2811 = vpack.c.b16 %v2789, %v2787
    %v2812 = vpack.c.b16 %v2790, %v2788
    %v2813 = vpack.c.b16 %v2793, %v2791
    %v2814 = vpack.c.b16 %v2794, %v2792
    %v2815 = vpack.c.b16 %v2797, %v2795
    %v2816 = vpack.c.b16 %v2798, %v2796
    %v2817 = vpack.c.b16 %v2801, %v2799
    %v2818 = vpack.c.b16 %v2802, %v2800
    %2835 = vmatprep.subr.bf16.mxu0 %v2818
    %2836 = vmatpush1.bf16.msra.mxu0 %v2817
    %2837 = vmatprep.subr.bf16.mxu0 %v2816
    %2838 = vmatpush1.bf16.msra.mxu0 %v2815
    %2839 = vmatprep.subr.bf16.mxu0 %v2814
    %2840 = vmatpush1.bf16.msra.mxu0 %v2813
    %2841 = vmatprep.subr.bf16.mxu0 %v2812
    %2842 = vmatpush1.bf16.msra.mxu0 %v2811
    %2843 = vmatprep.subr.bf16.mxu0 %v2810
    %2844 = vmatpush1.bf16.msra.mxu0 %v2809
    %2845 = vmatprep.subr.bf16.mxu0 %v2808
    %2846 = vmatpush1.bf16.msra.mxu0 %v2807
    %2847 = vmatprep.subr.bf16.mxu0 %v2806
    %2848 = vmatpush1.bf16.msra.mxu0 %v2805
    %2849 = vmatprep.subr.bf16.mxu0 %v2804
    %2850 = vmatpush1.bf16.msra.mxu0 %v2803
    %2851 = vmatprep.subr.bf16.mxu0 0
    %2852 = vmatpush2.bf16.msra.mxu0 0
    %2853 = vmatprep.subr.bf16.mxu0 0
    %2854 = vmatpush2.bf16.msra.mxu0 0
    %2855 = vmatprep.subr.bf16.mxu0 0
    %2856 = vmatpush2.bf16.msra.mxu0 0
    %2857 = vmatprep.subr.bf16.mxu0 0
    %2858 = vmatpush2.bf16.msra.mxu0 0
    %2859 = vmatprep.subr.bf16.mxu0 0
    %2860 = vmatpush2.bf16.msra.mxu0 0
    %2861 = vmatprep.subr.bf16.mxu0 0
    %2862 = vmatpush2.bf16.msra.mxu0 0
    %2863 = vmatprep.subr.bf16.mxu0 0
    %2864 = vmatpush2.bf16.msra.mxu0 0
    %2865 = vmatprep.subr.bf16.mxu0 0
    %2866 = vmatpush2.bf16.msra.mxu0 0
    %2867 = vmatprep.mubr.bf16.mxu0 0
    %2868 = vmatmul.mubr.bf16.gmra.mxu0 %v2726
    %v2869 = vpop.f32.mrf.mxu0
    %v2870 = vadd.f32 %v2748, %v2869
    %v2871 = vpop.f32.mrf.mxu0
    %v2872 = vadd.f32 %v2752, %v2871
    %v2873 = vpop.f32.mrf.mxu0
    %v2874 = vpop.f32.mrf.mxu0
    %2875 = vdwg.mxu0
    %v2876 = vmax.f32 %v2536, 0.0
    %v2877 = vmax.f32 %v2538, 0.0
    %v2878 = vpack.c.bf16 %v2876, %v2876
    %v2879 = vpack.c.bf16 %v2877, %v2877
    %v2880 = vld [vmem:[#allocation7] sm:$0xff]
    %v2881 = vld [vmem:[#allocation7 + $0x8] sm:$0xff]
    %v2882 = vld [vmem:[#allocation7 + $0x10] sm:$0xff]
    %v2883 = vld [vmem:[#allocation7 + $0x18] sm:$0xff]
    %v2884 = vld [vmem:[#allocation7 + $0x20] sm:$0xff]
    %v2885 = vld [vmem:[#allocation7 + $0x28] sm:$0xff]
    %v2886 = vld [vmem:[#allocation7 + $0x30] sm:$0xff]
    %v2887 = vld [vmem:[#allocation7 + $0x38] sm:$0xff]
    %v2888 = vld [vmem:[#allocation7 + $0x40] sm:$0xff]
    %v2889 = vld [vmem:[#allocation7 + $0x48] sm:$0xff]
    %v2890 = vld [vmem:[#allocation7 + $0x50] sm:$0xff]
    %v2891 = vld [vmem:[#allocation7 + $0x58] sm:$0xff]
    %v2892 = vld [vmem:[#allocation7 + $0x60] sm:$0xff]
    %v2893 = vld [vmem:[#allocation7 + $0x68] sm:$0xff]
    %v2894 = vld [vmem:[#allocation7 + $0x70] sm:$0xff]
    %v2895 = vld [vmem:[#allocation7 + $0x78] sm:$0xff]
    %v2896 = vld [vmem:[#allocation7 + $0x80] sm:$0xff]
    %v2897 = vld [vmem:[#allocation7 + $0x88] sm:$0xff]
    %v2898 = vld [vmem:[#allocation7 + $0x90] sm:$0xff]
    %v2899 = vld [vmem:[#allocation7 + $0x98] sm:$0xff]
    %v2900 = vld [vmem:[#allocation7 + $0xa0] sm:$0xff]
    %v2901 = vld [vmem:[#allocation7 + $0xa8] sm:$0xff]
    %v2902 = vld [vmem:[#allocation7 + $0xb0] sm:$0xff]
    %v2903 = vld [vmem:[#allocation7 + $0xb8] sm:$0xff]
    %v2904 = vld [vmem:[#allocation7 + $0xc0] sm:$0xff]
    %v2905 = vld [vmem:[#allocation7 + $0xc8] sm:$0xff]
    %v2906 = vld [vmem:[#allocation7 + $0xd0] sm:$0xff]
    %v2907 = vld [vmem:[#allocation7 + $0xd8] sm:$0xff]
    %v2908 = vld [vmem:[#allocation7 + $0xe0] sm:$0xff]
    %v2909 = vld [vmem:[#allocation7 + $0xe8] sm:$0xff]
    %v2910 = vld [vmem:[#allocation7 + $0xf0] sm:$0xff]
    %v2911 = vld [vmem:[#allocation7 + $0xf8] sm:$0xff]
    %v2912 = vld [vmem:[#allocation7 + $0x100] sm:$0xff]
    %v2913 = vld [vmem:[#allocation7 + $0x108] sm:$0xff]
    %v2914 = vld [vmem:[#allocation7 + $0x110] sm:$0xff]
    %v2915 = vld [vmem:[#allocation7 + $0x118] sm:$0xff]
    %v2916 = vld [vmem:[#allocation7 + $0x120] sm:$0xff]
    %v2917 = vld [vmem:[#allocation7 + $0x128] sm:$0xff]
    %v2918 = vld [vmem:[#allocation7 + $0x130] sm:$0xff]
    %v2919 = vld [vmem:[#allocation7 + $0x138] sm:$0xff]
    %v2920 = vld [vmem:[#allocation7 + $0x140] sm:$0xff]
    %v2921 = vld [vmem:[#allocation7 + $0x148] sm:$0xff]
    %v2922 = vld [vmem:[#allocation7 + $0x150] sm:$0xff]
    %v2923 = vld [vmem:[#allocation7 + $0x158] sm:$0xff]
    %v2924 = vld [vmem:[#allocation7 + $0x160] sm:$0xff]
    %v2925 = vld [vmem:[#allocation7 + $0x168] sm:$0xff]
    %v2926 = vld [vmem:[#allocation7 + $0x170] sm:$0xff]
    %v2927 = vld [vmem:[#allocation7 + $0x178] sm:$0xff]
    %v2928 = vld [vmem:[#allocation7 + $0x180] sm:$0xff]
    %v2929 = vld [vmem:[#allocation7 + $0x188] sm:$0xff]
    %v2930 = vld [vmem:[#allocation7 + $0x190] sm:$0xff]
    %v2931 = vld [vmem:[#allocation7 + $0x198] sm:$0xff]
    %v2932 = vld [vmem:[#allocation7 + $0x1a0] sm:$0xff]
    %v2933 = vld [vmem:[#allocation7 + $0x1a8] sm:$0xff]
    %v2934 = vld [vmem:[#allocation7 + $0x1b0] sm:$0xff]
    %v2935 = vld [vmem:[#allocation7 + $0x1b8] sm:$0xff]
    %v2936 = vld [vmem:[#allocation7 + $0x1c0] sm:$0xff]
    %v2937 = vld [vmem:[#allocation7 + $0x1c8] sm:$0xff]
    %v2938 = vld [vmem:[#allocation7 + $0x1d0] sm:$0xff]
    %v2939 = vld [vmem:[#allocation7 + $0x1d8] sm:$0xff]
    %v2940 = vld [vmem:[#allocation7 + $0x1e0] sm:$0xff]
    %v2941 = vld [vmem:[#allocation7 + $0x1e8] sm:$0xff]
    %v2942 = vld [vmem:[#allocation7 + $0x1f0] sm:$0xff]
    %v2943 = vld [vmem:[#allocation7 + $0x1f8] sm:$0xff]
    %v2944 = vmax.f32 %v2870, 0.0
    %v2945 = vmax.f32 %v2872, 0.0
    %v2946 = vpack.c.bf16 %v2944, %v2944
    %v2947 = vpack.c.bf16 %v2945, %v2945
    %v2948 = vld [vmem:[#allocation9] sm:$0xff]
    %v2949 = vld [vmem:[#allocation9 + $0x8] sm:$0xff]
    %v2950 = vld [vmem:[#allocation9 + $0x10] sm:$0xff]
    %v2951 = vld [vmem:[#allocation9 + $0x18] sm:$0xff]
    %v2952 = vld [vmem:[#allocation9 + $0x20] sm:$0xff]
    %v2953 = vld [vmem:[#allocation9 + $0x28] sm:$0xff]
    %v2954 = vld [vmem:[#allocation9 + $0x30] sm:$0xff]
    %v2955 = vld [vmem:[#allocation9 + $0x38] sm:$0xff]
    %v2956 = vld [vmem:[#allocation9 + $0x40] sm:$0xff]
    %v2957 = vld [vmem:[#allocation9 + $0x48] sm:$0xff]
    %v2958 = vld [vmem:[#allocation9 + $0x50] sm:$0xff]
    %v2959 = vld [vmem:[#allocation9 + $0x58] sm:$0xff]
    %v2960 = vld [vmem:[#allocation9 + $0x60] sm:$0xff]
    %v2961 = vld [vmem:[#allocation9 + $0x68] sm:$0xff]
    %v2962 = vld [vmem:[#allocation9 + $0x70] sm:$0xff]
    %v2963 = vld [vmem:[#allocation9 + $0x78] sm:$0xff]
    %v2964 = vld [vmem:[#allocation9 + $0x80] sm:$0xff]
    %v2965 = vld [vmem:[#allocation9 + $0x88] sm:$0xff]
    %v2966 = vld [vmem:[#allocation9 + $0x90] sm:$0xff]
    %v2967 = vld [vmem:[#allocation9 + $0x98] sm:$0xff]
    %v2968 = vld [vmem:[#allocation9 + $0xa0] sm:$0xff]
    %v2969 = vld [vmem:[#allocation9 + $0xa8] sm:$0xff]
    %v2970 = vld [vmem:[#allocation9 + $0xb0] sm:$0xff]
    %v2971 = vld [vmem:[#allocation9 + $0xb8] sm:$0xff]
    %v2972 = vld [vmem:[#allocation9 + $0xc0] sm:$0xff]
    %v2973 = vld [vmem:[#allocation9 + $0xc8] sm:$0xff]
    %v2974 = vld [vmem:[#allocation9 + $0xd0] sm:$0xff]
    %v2975 = vld [vmem:[#allocation9 + $0xd8] sm:$0xff]
    %v2976 = vld [vmem:[#allocation9 + $0xe0] sm:$0xff]
    %v2977 = vld [vmem:[#allocation9 + $0xe8] sm:$0xff]
    %v2978 = vld [vmem:[#allocation9 + $0xf0] sm:$0xff]
    %v2979 = vld [vmem:[#allocation9 + $0xf8] sm:$0xff]
    %v2980 = vld [vmem:[#allocation9 + $0x100] sm:$0xff]
    %v2981 = vld [vmem:[#allocation9 + $0x108] sm:$0xff]
    %v2982 = vld [vmem:[#allocation9 + $0x110] sm:$0xff]
    %v2983 = vld [vmem:[#allocation9 + $0x118] sm:$0xff]
    %v2984 = vld [vmem:[#allocation9 + $0x120] sm:$0xff]
    %v2985 = vld [vmem:[#allocation9 + $0x128] sm:$0xff]
    %v2986 = vld [vmem:[#allocation9 + $0x130] sm:$0xff]
    %v2987 = vld [vmem:[#allocation9 + $0x138] sm:$0xff]
    %v2988 = vld [vmem:[#allocation9 + $0x140] sm:$0xff]
    %v2989 = vld [vmem:[#allocation9 + $0x148] sm:$0xff]
    %v2990 = vld [vmem:[#allocation9 + $0x150] sm:$0xff]
    %v2991 = vld [vmem:[#allocation9 + $0x158] sm:$0xff]
    %v2992 = vld [vmem:[#allocation9 + $0x160] sm:$0xff]
    %v2993 = vld [vmem:[#allocation9 + $0x168] sm:$0xff]
    %v2994 = vld [vmem:[#allocation9 + $0x170] sm:$0xff]
    %v2995 = vld [vmem:[#allocation9 + $0x178] sm:$0xff]
    %v2996 = vld [vmem:[#allocation9 + $0x180] sm:$0xff]
    %v2997 = vld [vmem:[#allocation9 + $0x188] sm:$0xff]
    %v2998 = vld [vmem:[#allocation9 + $0x190] sm:$0xff]
    %v2999 = vld [vmem:[#allocation9 + $0x198] sm:$0xff]
    %v3000 = vld [vmem:[#allocation9 + $0x1a0] sm:$0xff]
    %v3001 = vld [vmem:[#allocation9 + $0x1a8] sm:$0xff]
    %v3002 = vld [vmem:[#allocation9 + $0x1b0] sm:$0xff]
    %v3003 = vld [vmem:[#allocation9 + $0x1b8] sm:$0xff]
    %v3004 = vld [vmem:[#allocation9 + $0x1c0] sm:$0xff]
    %v3005 = vld [vmem:[#allocation9 + $0x1c8] sm:$0xff]
    %v3006 = vld [vmem:[#allocation9 + $0x1d0] sm:$0xff]
    %v3007 = vld [vmem:[#allocation9 + $0x1d8] sm:$0xff]
    %v3008 = vld [vmem:[#allocation9 + $0x1e0] sm:$0xff]
    %v3009 = vld [vmem:[#allocation9 + $0x1e8] sm:$0xff]
    %v3010 = vld [vmem:[#allocation9 + $0x1f0] sm:$0xff]
    %v3011 = vld [vmem:[#allocation9 + $0x1f8] sm:$0xff]
    %v3076 = vunpack.c.l.b16 %v2948
    %v3077 = vunpack.c.h.b16 %v2948
    %v3078 = vunpack.c.l.b16 %v2949
    %v3079 = vunpack.c.h.b16 %v2949
    %v3080 = vunpack.c.l.b16 %v2950
    %v3081 = vunpack.c.h.b16 %v2950
    %v3082 = vunpack.c.l.b16 %v2951
    %v3083 = vunpack.c.h.b16 %v2951
    %v3084 = vunpack.c.l.b16 %v2952
    %v3085 = vunpack.c.h.b16 %v2952
    %v3086 = vunpack.c.l.b16 %v2953
    %v3087 = vunpack.c.h.b16 %v2953
    %v3088 = vunpack.c.l.b16 %v2954
    %v3089 = vunpack.c.h.b16 %v2954
    %v3090 = vunpack.c.l.b16 %v2955
    %v3091 = vunpack.c.h.b16 %v2955
    %v3092 = vunpack.c.l.b16 %v2956
    %v3093 = vunpack.c.h.b16 %v2956
    %v3094 = vunpack.c.l.b16 %v2957
    %v3095 = vunpack.c.h.b16 %v2957
    %v3096 = vunpack.c.l.b16 %v2958
    %v3097 = vunpack.c.h.b16 %v2958
    %v3098 = vunpack.c.l.b16 %v2959
    %v3099 = vunpack.c.h.b16 %v2959
    %v3100 = vunpack.c.l.b16 %v2960
    %v3101 = vunpack.c.h.b16 %v2960
    %v3102 = vunpack.c.l.b16 %v2961
    %v3103 = vunpack.c.h.b16 %v2961
    %v3104 = vunpack.c.l.b16 %v2962
    %v3105 = vunpack.c.h.b16 %v2962
    %v3106 = vunpack.c.l.b16 %v2963
    %v3107 = vunpack.c.h.b16 %v2963
    %v3108 = vunpack.c.l.b16 %v2964
    %v3109 = vunpack.c.h.b16 %v2964
    %v3110 = vunpack.c.l.b16 %v2965
    %v3111 = vunpack.c.h.b16 %v2965
    %v3112 = vunpack.c.l.b16 %v2966
    %v3113 = vunpack.c.h.b16 %v2966
    %v3114 = vunpack.c.l.b16 %v2967
    %v3115 = vunpack.c.h.b16 %v2967
    %v3116 = vunpack.c.l.b16 %v2968
    %v3117 = vunpack.c.h.b16 %v2968
    %v3118 = vunpack.c.l.b16 %v2969
    %v3119 = vunpack.c.h.b16 %v2969
    %v3120 = vunpack.c.l.b16 %v2970
    %v3121 = vunpack.c.h.b16 %v2970
    %v3122 = vunpack.c.l.b16 %v2971
    %v3123 = vunpack.c.h.b16 %v2971
    %v3124 = vunpack.c.l.b16 %v2972
    %v3125 = vunpack.c.h.b16 %v2972
    %v3126 = vunpack.c.l.b16 %v2973
    %v3127 = vunpack.c.h.b16 %v2973
    %v3128 = vunpack.c.l.b16 %v2974
    %v3129 = vunpack.c.h.b16 %v2974
    %v3130 = vunpack.c.l.b16 %v2975
    %v3131 = vunpack.c.h.b16 %v2975
    %v3132 = vunpack.c.l.b16 %v2976
    %v3133 = vunpack.c.h.b16 %v2976
    %v3134 = vunpack.c.l.b16 %v2977
    %v3135 = vunpack.c.h.b16 %v2977
    %v3136 = vunpack.c.l.b16 %v2978
    %v3137 = vunpack.c.h.b16 %v2978
    %v3138 = vunpack.c.l.b16 %v2979
    %v3139 = vunpack.c.h.b16 %v2979
    %v3140 = vunpack.c.l.b16 %v2980
    %v3141 = vunpack.c.h.b16 %v2980
    %v3142 = vunpack.c.l.b16 %v2981
    %v3143 = vunpack.c.h.b16 %v2981
    %v3144 = vunpack.c.l.b16 %v2982
    %v3145 = vunpack.c.h.b16 %v2982
    %v3146 = vunpack.c.l.b16 %v2983
    %v3147 = vunpack.c.h.b16 %v2983
    %v3148 = vunpack.c.l.b16 %v2984
    %v3149 = vunpack.c.h.b16 %v2984
    %v3150 = vunpack.c.l.b16 %v2985
    %v3151 = vunpack.c.h.b16 %v2985
    %v3152 = vunpack.c.l.b16 %v2986
    %v3153 = vunpack.c.h.b16 %v2986
    %v3154 = vunpack.c.l.b16 %v2987
    %v3155 = vunpack.c.h.b16 %v2987
    %v3156 = vunpack.c.l.b16 %v2988
    %v3157 = vunpack.c.h.b16 %v2988
    %v3158 = vunpack.c.l.b16 %v2989
    %v3159 = vunpack.c.h.b16 %v2989
    %v3160 = vunpack.c.l.b16 %v2990
    %v3161 = vunpack.c.h.b16 %v2990
    %v3162 = vunpack.c.l.b16 %v2991
    %v3163 = vunpack.c.h.b16 %v2991
    %v3164 = vunpack.c.l.b16 %v2992
    %v3165 = vunpack.c.h.b16 %v2992
    %v3166 = vunpack.c.l.b16 %v2993
    %v3167 = vunpack.c.h.b16 %v2993
    %v3168 = vunpack.c.l.b16 %v2994
    %v3169 = vunpack.c.h.b16 %v2994
    %v3170 = vunpack.c.l.b16 %v2995
    %v3171 = vunpack.c.h.b16 %v2995
    %v3172 = vunpack.c.l.b16 %v2996
    %v3173 = vunpack.c.h.b16 %v2996
    %v3174 = vunpack.c.l.b16 %v2997
    %v3175 = vunpack.c.h.b16 %v2997
    %v3176 = vunpack.c.l.b16 %v2998
    %v3177 = vunpack.c.h.b16 %v2998
    %v3178 = vunpack.c.l.b16 %v2999
    %v3179 = vunpack.c.h.b16 %v2999
    %v3180 = vunpack.c.l.b16 %v3000
    %v3181 = vunpack.c.h.b16 %v3000
    %v3182 = vunpack.c.l.b16 %v3001
    %v3183 = vunpack.c.h.b16 %v3001
    %v3184 = vunpack.c.l.b16 %v3002
    %v3185 = vunpack.c.h.b16 %v3002
    %v3186 = vunpack.c.l.b16 %v3003
    %v3187 = vunpack.c.h.b16 %v3003
    %v3188 = vunpack.c.l.b16 %v3004
    %v3189 = vunpack.c.h.b16 %v3004
    %v3190 = vunpack.c.l.b16 %v3005
    %v3191 = vunpack.c.h.b16 %v3005
    %v3192 = vunpack.c.l.b16 %v3006
    %v3193 = vunpack.c.h.b16 %v3006
    %v3194 = vunpack.c.l.b16 %v3007
    %v3195 = vunpack.c.h.b16 %v3007
    %v3196 = vunpack.c.l.b16 %v3008
    %v3197 = vunpack.c.h.b16 %v3008
    %v3198 = vunpack.c.l.b16 %v3009
    %v3199 = vunpack.c.h.b16 %v3009
    %v3200 = vunpack.c.l.b16 %v3010
    %v3201 = vunpack.c.h.b16 %v3010
    %v3202 = vunpack.c.l.b16 %v3011
    %v3203 = vunpack.c.h.b16 %v3011
    %v3204 = vpack.c.b16 %v3080, %v3076
    %v3205 = vpack.c.b16 %v3081, %v3077
    %v3206 = vpack.c.b16 %v3082, %v3078
    %v3207 = vpack.c.b16 %v3083, %v3079
    %v3208 = vpack.c.b16 %v3088, %v3084
    %v3209 = vpack.c.b16 %v3089, %v3085
    %v3210 = vpack.c.b16 %v3090, %v3086
    %v3211 = vpack.c.b16 %v3091, %v3087
    %v3212 = vpack.c.b16 %v3096, %v3092
    %v3213 = vpack.c.b16 %v3097, %v3093
    %v3214 = vpack.c.b16 %v3098, %v3094
    %v3215 = vpack.c.b16 %v3099, %v3095
    %v3216 = vpack.c.b16 %v3104, %v3100
    %v3217 = vpack.c.b16 %v3105, %v3101
    %v3218 = vpack.c.b16 %v3106, %v3102
    %v3219 = vpack.c.b16 %v3107, %v3103
    %v3220 = vpack.c.b16 %v3112, %v3108
    %v3221 = vpack.c.b16 %v3113, %v3109
    %v3222 = vpack.c.b16 %v3114, %v3110
    %v3223 = vpack.c.b16 %v3115, %v3111
    %v3224 = vpack.c.b16 %v3120, %v3116
    %v3225 = vpack.c.b16 %v3121, %v3117
    %v3226 = vpack.c.b16 %v3122, %v3118
    %v3227 = vpack.c.b16 %v3123, %v3119
    %v3228 = vpack.c.b16 %v3128, %v3124
    %v3229 = vpack.c.b16 %v3129, %v3125
    %v3230 = vpack.c.b16 %v3130, %v3126
    %v3231 = vpack.c.b16 %v3131, %v3127
    %v3232 = vpack.c.b16 %v3136, %v3132
    %v3233 = vpack.c.b16 %v3137, %v3133
    %v3234 = vpack.c.b16 %v3138, %v3134
    %v3235 = vpack.c.b16 %v3139, %v3135
    %v3236 = vpack.c.b16 %v3144, %v3140
    %v3237 = vpack.c.b16 %v3145, %v3141
    %v3238 = vpack.c.b16 %v3146, %v3142
    %v3239 = vpack.c.b16 %v3147, %v3143
    %v3240 = vpack.c.b16 %v3152, %v3148
    %v3241 = vpack.c.b16 %v3153, %v3149
    %v3242 = vpack.c.b16 %v3154, %v3150
    %v3243 = vpack.c.b16 %v3155, %v3151
    %v3244 = vpack.c.b16 %v3160, %v3156
    %v3245 = vpack.c.b16 %v3161, %v3157
    %v3246 = vpack.c.b16 %v3162, %v3158
    %v3247 = vpack.c.b16 %v3163, %v3159
    %v3248 = vpack.c.b16 %v3168, %v3164
    %v3249 = vpack.c.b16 %v3169, %v3165
    %v3250 = vpack.c.b16 %v3170, %v3166
    %v3251 = vpack.c.b16 %v3171, %v3167
    %v3252 = vpack.c.b16 %v3176, %v3172
    %v3253 = vpack.c.b16 %v3177, %v3173
    %v3254 = vpack.c.b16 %v3178, %v3174
    %v3255 = vpack.c.b16 %v3179, %v3175
    %v3256 = vpack.c.b16 %v3184, %v3180
    %v3257 = vpack.c.b16 %v3185, %v3181
    %v3258 = vpack.c.b16 %v3186, %v3182
    %v3259 = vpack.c.b16 %v3187, %v3183
    %v3260 = vpack.c.b16 %v3192, %v3188
    %v3261 = vpack.c.b16 %v3193, %v3189
    %v3262 = vpack.c.b16 %v3194, %v3190
    %v3263 = vpack.c.b16 %v3195, %v3191
    %v3264 = vpack.c.b16 %v3200, %v3196
    %v3265 = vpack.c.b16 %v3201, %v3197
    %v3266 = vpack.c.b16 %v3202, %v3198
    %v3267 = vpack.c.b16 %v3203, %v3199
    %3332 = vmatprep.subr.bf16.mxu0 %v3233
    %3333 = vmatpush1.bf16.msra.mxu0 %v3232
    %3334 = vmatprep.subr.bf16.mxu0 %v3229
    %3335 = vmatpush1.bf16.msra.mxu0 %v3228
    %3336 = vmatprep.subr.bf16.mxu0 %v3225
    %3337 = vmatpush1.bf16.msra.mxu0 %v3224
    %3338 = vmatprep.subr.bf16.mxu0 %v3221
    %3339 = vmatpush1.bf16.msra.mxu0 %v3220
    %3340 = vmatprep.subr.bf16.mxu0 %v3217
    %3341 = vmatpush1.bf16.msra.mxu0 %v3216
    %3342 = vmatprep.subr.bf16.mxu0 %v3213
    %3343 = vmatpush1.bf16.msra.mxu0 %v3212
    %3344 = vmatprep.subr.bf16.mxu0 %v3209
    %3345 = vmatpush1.bf16.msra.mxu0 %v3208
    %3346 = vmatprep.subr.bf16.mxu0 %v3205
    %3347 = vmatpush1.bf16.msra.mxu0 %v3204
    %3348 = vmatprep.subr.bf16.mxu0 %v3265
    %3349 = vmatpush2.bf16.msra.mxu0 %v3264
    %3350 = vmatprep.subr.bf16.mxu0 %v3261
    %3351 = vmatpush2.bf16.msra.mxu0 %v3260
    %3352 = vmatprep.subr.bf16.mxu0 %v3257
    %3353 = vmatpush2.bf16.msra.mxu0 %v3256
    %3354 = vmatprep.subr.bf16.mxu0 %v3253
    %3355 = vmatpush2.bf16.msra.mxu0 %v3252
    %3356 = vmatprep.subr.bf16.mxu0 %v3249
    %3357 = vmatpush2.bf16.msra.mxu0 %v3248
    %3358 = vmatprep.subr.bf16.mxu0 %v3245
    %3359 = vmatpush2.bf16.msra.mxu0 %v3244
    %3360 = vmatprep.subr.bf16.mxu0 %v3241
    %3361 = vmatpush2.bf16.msra.mxu0 %v3240
    %3362 = vmatprep.subr.bf16.mxu0 %v3237
    %3363 = vmatpush2.bf16.msra.mxu0 %v3236
    %3364 = vmatprep.mubr.bf16.mxu0 %v2947
    %3365 = vmatmul.mubr.bf16.gmra.mxu0 %v2946
    %v3366 = vpop.f32.mrf.mxu0
    %v3367 = vadd.f32 0.0, %v3366
    %v3368 = vpop.f32.mrf.mxu0
    %v3369 = vadd.f32 0.0, %v3368
    %v3370 = vpop.f32.mrf.mxu0
    %v3371 = vpop.f32.mrf.mxu0
    %3372 = vdwg.mxu0
    %3373 = vmatprep.subr.bf16.mxu0 %v3235
    %3374 = vmatpush1.bf16.msra.mxu0 %v3234
    %3375 = vmatprep.subr.bf16.mxu0 %v3231
    %3376 = vmatpush1.bf16.msra.mxu0 %v3230
    %3377 = vmatprep.subr.bf16.mxu0 %v3227
    %3378 = vmatpush1.bf16.msra.mxu0 %v3226
    %3379 = vmatprep.subr.bf16.mxu0 %v3223
    %3380 = vmatpush1.bf16.msra.mxu0 %v3222
    %3381 = vmatprep.subr.bf16.mxu0 %v3219
    %3382 = vmatpush1.bf16.msra.mxu0 %v3218
    %3383 = vmatprep.subr.bf16.mxu0 %v3215
    %3384 = vmatpush1.bf16.msra.mxu0 %v3214
    %3385 = vmatprep.subr.bf16.mxu0 %v3211
    %3386 = vmatpush1.bf16.msra.mxu0 %v3210
    %3387 = vmatprep.subr.bf16.mxu0 %v3207
    %3388 = vmatpush1.bf16.msra.mxu0 %v3206
    %3389 = vmatprep.subr.bf16.mxu0 %v3267
    %3390 = vmatpush2.bf16.msra.mxu0 %v3266
    %3391 = vmatprep.subr.bf16.mxu0 %v3263
    %3392 = vmatpush2.bf16.msra.mxu0 %v3262
    %3393 = vmatprep.subr.bf16.mxu0 %v3259
    %3394 = vmatpush2.bf16.msra.mxu0 %v3258
    %3395 = vmatprep.subr.bf16.mxu0 %v3255
    %3396 = vmatpush2.bf16.msra.mxu0 %v3254
    %3397 = vmatprep.subr.bf16.mxu0 %v3251
    %3398 = vmatpush2.bf16.msra.mxu0 %v3250
    %3399 = vmatprep.subr.bf16.mxu0 %v3247
    %3400 = vmatpush2.bf16.msra.mxu0 %v3246
    %3401 = vmatprep.subr.bf16.mxu0 %v3243
    %3402 = vmatpush2.bf16.msra.mxu0 %v3242
    %3403 = vmatprep.subr.bf16.mxu0 %v3239
    %3404 = vmatpush2.bf16.msra.mxu0 %v3238
    %3405 = vmatprep.mubr.bf16.mxu0 %v2947
    %3406 = vmatmul.mubr.bf16.gmra.mxu0 %v2946
    %v3407 = vpop.f32.mrf.mxu0
    %v3408 = vadd.f32 0.0, %v3407
    %v3409 = vpop.f32.mrf.mxu0
    %v3410 = vadd.f32 0.0, %v3409
    %v3411 = vpop.f32.mrf.mxu0
    %v3412 = vpop.f32.mrf.mxu0
    %3413 = vdwg.mxu0
    %v3478 = vunpack.c.l.b16 %v2880
    %v3479 = vunpack.c.h.b16 %v2880
    %v3480 = vunpack.c.l.b16 %v2881
    %v3481 = vunpack.c.h.b16 %v2881
    %v3482 = vunpack.c.l.b16 %v2882
    %v3483 = vunpack.c.h.b16 %v2882
    %v3484 = vunpack.c.l.b16 %v2883
    %v3485 = vunpack.c.h.b16 %v2883
    %v3486 = vunpack.c.l.b16 %v2884
    %v3487 = vunpack.c.h.b16 %v2884
    %v3488 = vunpack.c.l.b16 %v2885
    %v3489 = vunpack.c.h.b16 %v2885
    %v3490 = vunpack.c.l.b16 %v2886
    %v3491 = vunpack.c.h.b16 %v2886
    %v3492 = vunpack.c.l.b16 %v2887
    %v3493 = vunpack.c.h.b16 %v2887
    %v3494 = vunpack.c.l.b16 %v2888
    %v3495 = vunpack.c.h.b16 %v2888
    %v3496 = vunpack.c.l.b16 %v2889
    %v3497 = vunpack.c.h.b16 %v2889
    %v3498 = vunpack.c.l.b16 %v2890
    %v3499 = vunpack.c.h.b16 %v2890
    %v3500 = vunpack.c.l.b16 %v2891
    %v3501 = vunpack.c.h.b16 %v2891
    %v3502 = vunpack.c.l.b16 %v2892
    %v3503 = vunpack.c.h.b16 %v2892
    %v3504 = vunpack.c.l.b16 %v2893
    %v3505 = vunpack.c.h.b16 %v2893
    %v3506 = vunpack.c.l.b16 %v2894
    %v3507 = vunpack.c.h.b16 %v2894
    %v3508 = vunpack.c.l.b16 %v2895
    %v3509 = vunpack.c.h.b16 %v2895
    %v3510 = vunpack.c.l.b16 %v2896
    %v3511 = vunpack.c.h.b16 %v2896
    %v3512 = vunpack.c.l.b16 %v2897
    %v3513 = vunpack.c.h.b16 %v2897
    %v3514 = vunpack.c.l.b16 %v2898
    %v3515 = vunpack.c.h.b16 %v2898
    %v3516 = vunpack.c.l.b16 %v2899
    %v3517 = vunpack.c.h.b16 %v2899
    %v3518 = vunpack.c.l.b16 %v2900
    %v3519 = vunpack.c.h.b16 %v2900
    %v3520 = vunpack.c.l.b16 %v2901
    %v3521 = vunpack.c.h.b16 %v2901
    %v3522 = vunpack.c.l.b16 %v2902
    %v3523 = vunpack.c.h.b16 %v2902
    %v3524 = vunpack.c.l.b16 %v2903
    %v3525 = vunpack.c.h.b16 %v2903
    %v3526 = vunpack.c.l.b16 %v2904
    %v3527 = vunpack.c.h.b16 %v2904
    %v3528 = vunpack.c.l.b16 %v2905
    %v3529 = vunpack.c.h.b16 %v2905
    %v3530 = vunpack.c.l.b16 %v2906
    %v3531 = vunpack.c.h.b16 %v2906
    %v3532 = vunpack.c.l.b16 %v2907
    %v3533 = vunpack.c.h.b16 %v2907
    %v3534 = vunpack.c.l.b16 %v2908
    %v3535 = vunpack.c.h.b16 %v2908
    %v3536 = vunpack.c.l.b16 %v2909
    %v3537 = vunpack.c.h.b16 %v2909
    %v3538 = vunpack.c.l.b16 %v2910
    %v3539 = vunpack.c.h.b16 %v2910
    %v3540 = vunpack.c.l.b16 %v2911
    %v3541 = vunpack.c.h.b16 %v2911
    %v3542 = vunpack.c.l.b16 %v2912
    %v3543 = vunpack.c.h.b16 %v2912
    %v3544 = vunpack.c.l.b16 %v2913
    %v3545 = vunpack.c.h.b16 %v2913
    %v3546 = vunpack.c.l.b16 %v2914
    %v3547 = vunpack.c.h.b16 %v2914
    %v3548 = vunpack.c.l.b16 %v2915
    %v3549 = vunpack.c.h.b16 %v2915
    %v3550 = vunpack.c.l.b16 %v2916
    %v3551 = vunpack.c.h.b16 %v2916
    %v3552 = vunpack.c.l.b16 %v2917
    %v3553 = vunpack.c.h.b16 %v2917
    %v3554 = vunpack.c.l.b16 %v2918
    %v3555 = vunpack.c.h.b16 %v2918
    %v3556 = vunpack.c.l.b16 %v2919
    %v3557 = vunpack.c.h.b16 %v2919
    %v3558 = vunpack.c.l.b16 %v2920
    %v3559 = vunpack.c.h.b16 %v2920
    %v3560 = vunpack.c.l.b16 %v2921
    %v3561 = vunpack.c.h.b16 %v2921
    %v3562 = vunpack.c.l.b16 %v2922
    %v3563 = vunpack.c.h.b16 %v2922
    %v3564 = vunpack.c.l.b16 %v2923
    %v3565 = vunpack.c.h.b16 %v2923
    %v3566 = vunpack.c.l.b16 %v2924
    %v3567 = vunpack.c.h.b16 %v2924
    %v3568 = vunpack.c.l.b16 %v2925
    %v3569 = vunpack.c.h.b16 %v2925
    %v3570 = vunpack.c.l.b16 %v2926
    %v3571 = vunpack.c.h.b16 %v2926
    %v3572 = vunpack.c.l.b16 %v2927
    %v3573 = vunpack.c.h.b16 %v2927
    %v3574 = vunpack.c.l.b16 %v2928
    %v3575 = vunpack.c.h.b16 %v2928
    %v3576 = vunpack.c.l.b16 %v2929
    %v3577 = vunpack.c.h.b16 %v2929
    %v3578 = vunpack.c.l.b16 %v2930
    %v3579 = vunpack.c.h.b16 %v2930
    %v3580 = vunpack.c.l.b16 %v2931
    %v3581 = vunpack.c.h.b16 %v2931
    %v3582 = vunpack.c.l.b16 %v2932
    %v3583 = vunpack.c.h.b16 %v2932
    %v3584 = vunpack.c.l.b16 %v2933
    %v3585 = vunpack.c.h.b16 %v2933
    %v3586 = vunpack.c.l.b16 %v2934
    %v3587 = vunpack.c.h.b16 %v2934
    %v3588 = vunpack.c.l.b16 %v2935
    %v3589 = vunpack.c.h.b16 %v2935
    %v3590 = vunpack.c.l.b16 %v2936
    %v3591 = vunpack.c.h.b16 %v2936
    %v3592 = vunpack.c.l.b16 %v2937
    %v3593 = vunpack.c.h.b16 %v2937
    %v3594 = vunpack.c.l.b16 %v2938
    %v3595 = vunpack.c.h.b16 %v2938
    %v3596 = vunpack.c.l.b16 %v2939
    %v3597 = vunpack.c.h.b16 %v2939
    %v3598 = vunpack.c.l.b16 %v2940
    %v3599 = vunpack.c.h.b16 %v2940
    %v3600 = vunpack.c.l.b16 %v2941
    %v3601 = vunpack.c.h.b16 %v2941
    %v3602 = vunpack.c.l.b16 %v2942
    %v3603 = vunpack.c.h.b16 %v2942
    %v3604 = vunpack.c.l.b16 %v2943
    %v3605 = vunpack.c.h.b16 %v2943
    %v3606 = vpack.c.b16 %v3482, %v3478
    %v3607 = vpack.c.b16 %v3483, %v3479
    %v3608 = vpack.c.b16 %v3484, %v3480
    %v3609 = vpack.c.b16 %v3485, %v3481
    %v3610 = vpack.c.b16 %v3490, %v3486
    %v3611 = vpack.c.b16 %v3491, %v3487
    %v3612 = vpack.c.b16 %v3492, %v3488
    %v3613 = vpack.c.b16 %v3493, %v3489
    %v3614 = vpack.c.b16 %v3498, %v3494
    %v3615 = vpack.c.b16 %v3499, %v3495
    %v3616 = vpack.c.b16 %v3500, %v3496
    %v3617 = vpack.c.b16 %v3501, %v3497
    %v3618 = vpack.c.b16 %v3506, %v3502
    %v3619 = vpack.c.b16 %v3507, %v3503
    %v3620 = vpack.c.b16 %v3508, %v3504
    %v3621 = vpack.c.b16 %v3509, %v3505
    %v3622 = vpack.c.b16 %v3514, %v3510
    %v3623 = vpack.c.b16 %v3515, %v3511
    %v3624 = vpack.c.b16 %v3516, %v3512
    %v3625 = vpack.c.b16 %v3517, %v3513
    %v3626 = vpack.c.b16 %v3522, %v3518
    %v3627 = vpack.c.b16 %v3523, %v3519
    %v3628 = vpack.c.b16 %v3524, %v3520
    %v3629 = vpack.c.b16 %v3525, %v3521
    %v3630 = vpack.c.b16 %v3530, %v3526
    %v3631 = vpack.c.b16 %v3531, %v3527
    %v3632 = vpack.c.b16 %v3532, %v3528
    %v3633 = vpack.c.b16 %v3533, %v3529
    %v3634 = vpack.c.b16 %v3538, %v3534
    %v3635 = vpack.c.b16 %v3539, %v3535
    %v3636 = vpack.c.b16 %v3540, %v3536
    %v3637 = vpack.c.b16 %v3541, %v3537
    %v3638 = vpack.c.b16 %v3546, %v3542
    %v3639 = vpack.c.b16 %v3547, %v3543
    %v3640 = vpack.c.b16 %v3548, %v3544
    %v3641 = vpack.c.b16 %v3549, %v3545
    %v3642 = vpack.c.b16 %v3554, %v3550
    %v3643 = vpack.c.b16 %v3555, %v3551
    %v3644 = vpack.c.b16 %v3556, %v3552
    %v3645 = vpack.c.b16 %v3557, %v3553
    %v3646 = vpack.c.b16 %v3562, %v3558
    %v3647 = vpack.c.b16 %v3563, %v3559
    %v3648 = vpack.c.b16 %v3564, %v3560
    %v3649 = vpack.c.b16 %v3565, %v3561
    %v3650 = vpack.c.b16 %v3570, %v3566
    %v3651 = vpack.c.b16 %v3571, %v3567
    %v3652 = vpack.c.b16 %v3572, %v3568
    %v3653 = vpack.c.b16 %v3573, %v3569
    %v3654 = vpack.c.b16 %v3578, %v3574
    %v3655 = vpack.c.b16 %v3579, %v3575
    %v3656 = vpack.c.b16 %v3580, %v3576
    %v3657 = vpack.c.b16 %v3581, %v3577
    %v3658 = vpack.c.b16 %v3586, %v3582
    %v3659 = vpack.c.b16 %v3587, %v3583
    %v3660 = vpack.c.b16 %v3588, %v3584
    %v3661 = vpack.c.b16 %v3589, %v3585
    %v3662 = vpack.c.b16 %v3594, %v3590
    %v3663 = vpack.c.b16 %v3595, %v3591
    %v3664 = vpack.c.b16 %v3596, %v3592
    %v3665 = vpack.c.b16 %v3597, %v3593
    %v3666 = vpack.c.b16 %v3602, %v3598
    %v3667 = vpack.c.b16 %v3603, %v3599
    %v3668 = vpack.c.b16 %v3604, %v3600
    %v3669 = vpack.c.b16 %v3605, %v3601
    %3734 = vmatprep.subr.bf16.mxu0 %v3635
    %3735 = vmatpush1.bf16.msra.mxu0 %v3634
    %3736 = vmatprep.subr.bf16.mxu0 %v3631
    %3737 = vmatpush1.bf16.msra.mxu0 %v3630
    %3738 = vmatprep.subr.bf16.mxu0 %v3627
    %3739 = vmatpush1.bf16.msra.mxu0 %v3626
    %3740 = vmatprep.subr.bf16.mxu0 %v3623
    %3741 = vmatpush1.bf16.msra.mxu0 %v3622
    %3742 = vmatprep.subr.bf16.mxu0 %v3619
    %3743 = vmatpush1.bf16.msra.mxu0 %v3618
    %3744 = vmatprep.subr.bf16.mxu0 %v3615
    %3745 = vmatpush1.bf16.msra.mxu0 %v3614
    %3746 = vmatprep.subr.bf16.mxu0 %v3611
    %3747 = vmatpush1.bf16.msra.mxu0 %v3610
    %3748 = vmatprep.subr.bf16.mxu0 %v3607
    %3749 = vmatpush1.bf16.msra.mxu0 %v3606
    %3750 = vmatprep.subr.bf16.mxu0 %v3667
    %3751 = vmatpush2.bf16.msra.mxu0 %v3666
    %3752 = vmatprep.subr.bf16.mxu0 %v3663
    %3753 = vmatpush2.bf16.msra.mxu0 %v3662
    %3754 = vmatprep.subr.bf16.mxu0 %v3659
    %3755 = vmatpush2.bf16.msra.mxu0 %v3658
    %3756 = vmatprep.subr.bf16.mxu0 %v3655
    %3757 = vmatpush2.bf16.msra.mxu0 %v3654
    %3758 = vmatprep.subr.bf16.mxu0 %v3651
    %3759 = vmatpush2.bf16.msra.mxu0 %v3650
    %3760 = vmatprep.subr.bf16.mxu0 %v3647
    %3761 = vmatpush2.bf16.msra.mxu0 %v3646
    %3762 = vmatprep.subr.bf16.mxu0 %v3643
    %3763 = vmatpush2.bf16.msra.mxu0 %v3642
    %3764 = vmatprep.subr.bf16.mxu0 %v3639
    %3765 = vmatpush2.bf16.msra.mxu0 %v3638
    %3766 = vmatprep.mubr.bf16.mxu0 %v2879
    %3767 = vmatmul.mubr.bf16.gmra.mxu0 %v2878
    %v3768 = vpop.f32.mrf.mxu0
    %v3769 = vadd.f32 %v3367, %v3768
    %v3770 = vpop.f32.mrf.mxu0
    %v3771 = vadd.f32 %v3369, %v3770
    %v3772 = vpop.f32.mrf.mxu0
    %v3773 = vpop.f32.mrf.mxu0
    %3774 = vdwg.mxu0
    %3775 = vmatprep.subr.bf16.mxu0 %v3637
    %3776 = vmatpush1.bf16.msra.mxu0 %v3636
    %3777 = vmatprep.subr.bf16.mxu0 %v3633
    %3778 = vmatpush1.bf16.msra.mxu0 %v3632
    %3779 = vmatprep.subr.bf16.mxu0 %v3629
    %3780 = vmatpush1.bf16.msra.mxu0 %v3628
    %3781 = vmatprep.subr.bf16.mxu0 %v3625
    %3782 = vmatpush1.bf16.msra.mxu0 %v3624
    %3783 = vmatprep.subr.bf16.mxu0 %v3621
    %3784 = vmatpush1.bf16.msra.mxu0 %v3620
    %3785 = vmatprep.subr.bf16.mxu0 %v3617
    %3786 = vmatpush1.bf16.msra.mxu0 %v3616
    %3787 = vmatprep.subr.bf16.mxu0 %v3613
    %3788 = vmatpush1.bf16.msra.mxu0 %v3612
    %3789 = vmatprep.subr.bf16.mxu0 %v3609
    %3790 = vmatpush1.bf16.msra.mxu0 %v3608
    %3791 = vmatprep.subr.bf16.mxu0 %v3669
    %3792 = vmatpush2.bf16.msra.mxu0 %v3668
    %3793 = vmatprep.subr.bf16.mxu0 %v3665
    %3794 = vmatpush2.bf16.msra.mxu0 %v3664
    %3795 = vmatprep.subr.bf16.mxu0 %v3661
    %3796 = vmatpush2.bf16.msra.mxu0 %v3660
    %3797 = vmatprep.subr.bf16.mxu0 %v3657
    %3798 = vmatpush2.bf16.msra.mxu0 %v3656
    %3799 = vmatprep.subr.bf16.mxu0 %v3653
    %3800 = vmatpush2.bf16.msra.mxu0 %v3652
    %3801 = vmatprep.subr.bf16.mxu0 %v3649
    %3802 = vmatpush2.bf16.msra.mxu0 %v3648
    %3803 = vmatprep.subr.bf16.mxu0 %v3645
    %3804 = vmatpush2.bf16.msra.mxu0 %v3644
    %3805 = vmatprep.subr.bf16.mxu0 %v3641
    %3806 = vmatpush2.bf16.msra.mxu0 %v3640
    %3807 = vmatprep.mubr.bf16.mxu0 %v2879
    %3808 = vmatmul.mubr.bf16.gmra.mxu0 %v2878
    %v3809 = vpop.f32.mrf.mxu0
    %v3810 = vadd.f32 %v3408, %v3809
    %v3811 = vpop.f32.mrf.mxu0
    %v3812 = vadd.f32 %v3410, %v3811
    %v3813 = vpop.f32.mrf.mxu0
    %v3814 = vpop.f32.mrf.mxu0
    %3815 = vdwg.mxu0
    %v3816 = vld [vmem:[%s11] sm:$0xf]
    %v3818 = vlaneseq
    %v3819 = vshrl.u32 %v3818, 7
    %v3820 = vsub.s32 0, %v3819
    %v3821 = vrot.slane %v3816, %v3820
    %v3822 = vlaneseq
    %v3823 = vshrl.u32 %v3822, 7
    %v3824 = vsub.s32 1, %v3823
    %v3825 = vrot.slane %v3816, %v3824
    %v3826 = vlaneseq
    %v3827 = vshrl.u32 %v3826, 7
    %v3828 = vsub.s32 2, %v3827
    %v3829 = vrot.slane %v3816, %v3828
    %v3830 = vlaneseq
    %v3831 = vshrl.u32 %v3830, 7
    %v3832 = vsub.s32 3, %v3831
    %v3833 = vrot.slane %v3816, %v3832
    %v3838 = vadd.f32 %v3769, %v3821
    %v3839 = vadd.f32 %v3771, %v3825
    %v3840 = vadd.f32 %v3810, %v3829
    %v3841 = vadd.f32 %v3812, %v3833
    %v3842 = vmax.f32 %v1878, 0.0
    %v3843 = vmax.f32 %v1880, 0.0
    %v3844 = vmax.f32 %v2042, 0.0
    %v3845 = vmax.f32 %v2044, 0.0
    %v3846 = vpack.c.bf16 %v3842, %v3842
    %v3847 = vpack.c.bf16 %v3843, %v3843
    %v3848 = vpack.c.bf16 %v3844, %v3844
    %v3849 = vpack.c.bf16 %v3845, %v3845
    %v3850 = vld [vmem:[#allocation10] sm:$0xff]
    %v3851 = vld [vmem:[#allocation10 + $0x8] sm:$0xff]
    %v3852 = vld [vmem:[#allocation10 + $0x10] sm:$0xff]
    %v3853 = vld [vmem:[#allocation10 + $0x18] sm:$0xff]
    %v3854 = vld [vmem:[#allocation10 + $0x20] sm:$0xff]
    %v3855 = vld [vmem:[#allocation10 + $0x28] sm:$0xff]
    %v3856 = vld [vmem:[#allocation10 + $0x30] sm:$0xff]
    %v3857 = vld [vmem:[#allocation10 + $0x38] sm:$0xff]
    %v3858 = vld [vmem:[#allocation10 + $0x40] sm:$0xff]
    %v3859 = vld [vmem:[#allocation10 + $0x48] sm:$0xff]
    %v3860 = vld [vmem:[#allocation10 + $0x50] sm:$0xff]
    %v3861 = vld [vmem:[#allocation10 + $0x58] sm:$0xff]
    %v3862 = vld [vmem:[#allocation10 + $0x60] sm:$0xff]
    %v3863 = vld [vmem:[#allocation10 + $0x68] sm:$0xff]
    %v3864 = vld [vmem:[#allocation10 + $0x70] sm:$0xff]
    %v3865 = vld [vmem:[#allocation10 + $0x78] sm:$0xff]
    %v3866 = vld [vmem:[#allocation10 + $0x80] sm:$0xff]
    %v3867 = vld [vmem:[#allocation10 + $0x88] sm:$0xff]
    %v3868 = vld [vmem:[#allocation10 + $0x90] sm:$0xff]
    %v3869 = vld [vmem:[#allocation10 + $0x98] sm:$0xff]
    %v3870 = vld [vmem:[#allocation10 + $0xa0] sm:$0xff]
    %v3871 = vld [vmem:[#allocation10 + $0xa8] sm:$0xff]
    %v3872 = vld [vmem:[#allocation10 + $0xb0] sm:$0xff]
    %v3873 = vld [vmem:[#allocation10 + $0xb8] sm:$0xff]
    %v3874 = vld [vmem:[#allocation10 + $0xc0] sm:$0xff]
    %v3875 = vld [vmem:[#allocation10 + $0xc8] sm:$0xff]
    %v3876 = vld [vmem:[#allocation10 + $0xd0] sm:$0xff]
    %v3877 = vld [vmem:[#allocation10 + $0xd8] sm:$0xff]
    %v3878 = vld [vmem:[#allocation10 + $0xe0] sm:$0xff]
    %v3879 = vld [vmem:[#allocation10 + $0xe8] sm:$0xff]
    %v3880 = vld [vmem:[#allocation10 + $0xf0] sm:$0xff]
    %v3881 = vld [vmem:[#allocation10 + $0xf8] sm:$0xff]
    %v3882 = vld [vmem:[#allocation10 + $0x100] sm:$0xff]
    %v3883 = vld [vmem:[#allocation10 + $0x108] sm:$0xff]
    %v3884 = vld [vmem:[#allocation10 + $0x110] sm:$0xff]
    %v3885 = vld [vmem:[#allocation10 + $0x118] sm:$0xff]
    %v3886 = vld [vmem:[#allocation10 + $0x120] sm:$0xff]
    %v3887 = vld [vmem:[#allocation10 + $0x128] sm:$0xff]
    %v3888 = vld [vmem:[#allocation10 + $0x130] sm:$0xff]
    %v3889 = vld [vmem:[#allocation10 + $0x138] sm:$0xff]
    %v3890 = vld [vmem:[#allocation10 + $0x140] sm:$0xff]
    %v3891 = vld [vmem:[#allocation10 + $0x148] sm:$0xff]
    %v3892 = vld [vmem:[#allocation10 + $0x150] sm:$0xff]
    %v3893 = vld [vmem:[#allocation10 + $0x158] sm:$0xff]
    %v3894 = vld [vmem:[#allocation10 + $0x160] sm:$0xff]
    %v3895 = vld [vmem:[#allocation10 + $0x168] sm:$0xff]
    %v3896 = vld [vmem:[#allocation10 + $0x170] sm:$0xff]
    %v3897 = vld [vmem:[#allocation10 + $0x178] sm:$0xff]
    %v3898 = vld [vmem:[#allocation10 + $0x180] sm:$0xff]
    %v3899 = vld [vmem:[#allocation10 + $0x188] sm:$0xff]
    %v3900 = vld [vmem:[#allocation10 + $0x190] sm:$0xff]
    %v3901 = vld [vmem:[#allocation10 + $0x198] sm:$0xff]
    %v3902 = vld [vmem:[#allocation10 + $0x1a0] sm:$0xff]
    %v3903 = vld [vmem:[#allocation10 + $0x1a8] sm:$0xff]
    %v3904 = vld [vmem:[#allocation10 + $0x1b0] sm:$0xff]
    %v3905 = vld [vmem:[#allocation10 + $0x1b8] sm:$0xff]
    %v3906 = vld [vmem:[#allocation10 + $0x1c0] sm:$0xff]
    %v3907 = vld [vmem:[#allocation10 + $0x1c8] sm:$0xff]
    %v3908 = vld [vmem:[#allocation10 + $0x1d0] sm:$0xff]
    %v3909 = vld [vmem:[#allocation10 + $0x1d8] sm:$0xff]
    %v3910 = vld [vmem:[#allocation10 + $0x1e0] sm:$0xff]
    %v3911 = vld [vmem:[#allocation10 + $0x1e8] sm:$0xff]
    %v3912 = vld [vmem:[#allocation10 + $0x1f0] sm:$0xff]
    %v3913 = vld [vmem:[#allocation10 + $0x1f8] sm:$0xff]
    %v3914 = vld [vmem:[#allocation10 + $0x200] sm:$0xff]
    %v3915 = vld [vmem:[#allocation10 + $0x208] sm:$0xff]
    %v3916 = vld [vmem:[#allocation10 + $0x210] sm:$0xff]
    %v3917 = vld [vmem:[#allocation10 + $0x218] sm:$0xff]
    %v3918 = vld [vmem:[#allocation10 + $0x220] sm:$0xff]
    %v3919 = vld [vmem:[#allocation10 + $0x228] sm:$0xff]
    %v3920 = vld [vmem:[#allocation10 + $0x230] sm:$0xff]
    %v3921 = vld [vmem:[#allocation10 + $0x238] sm:$0xff]
    %v3922 = vld [vmem:[#allocation10 + $0x240] sm:$0xff]
    %v3923 = vld [vmem:[#allocation10 + $0x248] sm:$0xff]
    %v3924 = vld [vmem:[#allocation10 + $0x250] sm:$0xff]
    %v3925 = vld [vmem:[#allocation10 + $0x258] sm:$0xff]
    %v3926 = vld [vmem:[#allocation10 + $0x260] sm:$0xff]
    %v3927 = vld [vmem:[#allocation10 + $0x268] sm:$0xff]
    %v3928 = vld [vmem:[#allocation10 + $0x270] sm:$0xff]
    %v3929 = vld [vmem:[#allocation10 + $0x278] sm:$0xff]
    %v3930 = vld [vmem:[#allocation10 + $0x280] sm:$0xff]
    %v3931 = vld [vmem:[#allocation10 + $0x288] sm:$0xff]
    %v3932 = vld [vmem:[#allocation10 + $0x290] sm:$0xff]
    %v3933 = vld [vmem:[#allocation10 + $0x298] sm:$0xff]
    %v3934 = vld [vmem:[#allocation10 + $0x2a0] sm:$0xff]
    %v3935 = vld [vmem:[#allocation10 + $0x2a8] sm:$0xff]
    %v3936 = vld [vmem:[#allocation10 + $0x2b0] sm:$0xff]
    %v3937 = vld [vmem:[#allocation10 + $0x2b8] sm:$0xff]
    %v3938 = vld [vmem:[#allocation10 + $0x2c0] sm:$0xff]
    %v3939 = vld [vmem:[#allocation10 + $0x2c8] sm:$0xff]
    %v3940 = vld [vmem:[#allocation10 + $0x2d0] sm:$0xff]
    %v3941 = vld [vmem:[#allocation10 + $0x2d8] sm:$0xff]
    %v3942 = vld [vmem:[#allocation10 + $0x2e0] sm:$0xff]
    %v3943 = vld [vmem:[#allocation10 + $0x2e8] sm:$0xff]
    %v3944 = vld [vmem:[#allocation10 + $0x2f0] sm:$0xff]
    %v3945 = vld [vmem:[#allocation10 + $0x2f8] sm:$0xff]
    %v3946 = vld [vmem:[#allocation10 + $0x300] sm:$0xff]
    %v3947 = vld [vmem:[#allocation10 + $0x308] sm:$0xff]
    %v3948 = vld [vmem:[#allocation10 + $0x310] sm:$0xff]
    %v3949 = vld [vmem:[#allocation10 + $0x318] sm:$0xff]
    %v3950 = vld [vmem:[#allocation10 + $0x320] sm:$0xff]
    %v3951 = vld [vmem:[#allocation10 + $0x328] sm:$0xff]
    %v3952 = vld [vmem:[#allocation10 + $0x330] sm:$0xff]
    %v3953 = vld [vmem:[#allocation10 + $0x338] sm:$0xff]
    %v3954 = vld [vmem:[#allocation10 + $0x340] sm:$0xff]
    %v3955 = vld [vmem:[#allocation10 + $0x348] sm:$0xff]
    %v3956 = vld [vmem:[#allocation10 + $0x350] sm:$0xff]
    %v3957 = vld [vmem:[#allocation10 + $0x358] sm:$0xff]
    %v3958 = vld [vmem:[#allocation10 + $0x360] sm:$0xff]
    %v3959 = vld [vmem:[#allocation10 + $0x368] sm:$0xff]
    %v3960 = vld [vmem:[#allocation10 + $0x370] sm:$0xff]
    %v3961 = vld [vmem:[#allocation10 + $0x378] sm:$0xff]
    %v3962 = vld [vmem:[#allocation10 + $0x380] sm:$0xff]
    %v3963 = vld [vmem:[#allocation10 + $0x388] sm:$0xff]
    %v3964 = vld [vmem:[#allocation10 + $0x390] sm:$0xff]
    %v3965 = vld [vmem:[#allocation10 + $0x398] sm:$0xff]
    %v3966 = vld [vmem:[#allocation10 + $0x3a0] sm:$0xff]
    %v3967 = vld [vmem:[#allocation10 + $0x3a8] sm:$0xff]
    %v3968 = vld [vmem:[#allocation10 + $0x3b0] sm:$0xff]
    %v3969 = vld [vmem:[#allocation10 + $0x3b8] sm:$0xff]
    %v3970 = vld [vmem:[#allocation10 + $0x3c0] sm:$0xff]
    %v3971 = vld [vmem:[#allocation10 + $0x3c8] sm:$0xff]
    %v3972 = vld [vmem:[#allocation10 + $0x3d0] sm:$0xff]
    %v3973 = vld [vmem:[#allocation10 + $0x3d8] sm:$0xff]
    %v3974 = vld [vmem:[#allocation10 + $0x3e0] sm:$0xff]
    %v3975 = vld [vmem:[#allocation10 + $0x3e8] sm:$0xff]
    %v3976 = vld [vmem:[#allocation10 + $0x3f0] sm:$0xff]
    %v3977 = vld [vmem:[#allocation10 + $0x3f8] sm:$0xff]
    %v3978 = vld [vmem:[#allocation10 + $0x400] sm:$0xff]
    %v3979 = vld [vmem:[#allocation10 + $0x408] sm:$0xff]
    %v3980 = vld [vmem:[#allocation10 + $0x410] sm:$0xff]
    %v3981 = vld [vmem:[#allocation10 + $0x418] sm:$0xff]
    %v3982 = vld [vmem:[#allocation10 + $0x420] sm:$0xff]
    %v3983 = vld [vmem:[#allocation10 + $0x428] sm:$0xff]
    %v3984 = vld [vmem:[#allocation10 + $0x430] sm:$0xff]
    %v3985 = vld [vmem:[#allocation10 + $0x438] sm:$0xff]
    %v3986 = vld [vmem:[#allocation10 + $0x440] sm:$0xff]
    %v3987 = vld [vmem:[#allocation10 + $0x448] sm:$0xff]
    %v3988 = vld [vmem:[#allocation10 + $0x450] sm:$0xff]
    %v3989 = vld [vmem:[#allocation10 + $0x458] sm:$0xff]
    %v3990 = vld [vmem:[#allocation10 + $0x460] sm:$0xff]
    %v3991 = vld [vmem:[#allocation10 + $0x468] sm:$0xff]
    %v3992 = vld [vmem:[#allocation10 + $0x470] sm:$0xff]
    %v3993 = vld [vmem:[#allocation10 + $0x478] sm:$0xff]
    %v3994 = vld [vmem:[#allocation10 + $0x480] sm:$0xff]
    %v3995 = vld [vmem:[#allocation10 + $0x488] sm:$0xff]
    %v3996 = vld [vmem:[#allocation10 + $0x490] sm:$0xff]
    %v3997 = vld [vmem:[#allocation10 + $0x498] sm:$0xff]
    %v3998 = vld [vmem:[#allocation10 + $0x4a0] sm:$0xff]
    %v3999 = vld [vmem:[#allocation10 + $0x4a8] sm:$0xff]
    %v4000 = vld [vmem:[#allocation10 + $0x4b0] sm:$0xff]
    %v4001 = vld [vmem:[#allocation10 + $0x4b8] sm:$0xff]
    %v4002 = vld [vmem:[#allocation10 + $0x4c0] sm:$0xff]
    %v4003 = vld [vmem:[#allocation10 + $0x4c8] sm:$0xff]
    %v4004 = vld [vmem:[#allocation10 + $0x4d0] sm:$0xff]
    %v4005 = vld [vmem:[#allocation10 + $0x4d8] sm:$0xff]
    %v4006 = vld [vmem:[#allocation10 + $0x4e0] sm:$0xff]
    %v4007 = vld [vmem:[#allocation10 + $0x4e8] sm:$0xff]
    %v4008 = vld [vmem:[#allocation10 + $0x4f0] sm:$0xff]
    %v4009 = vld [vmem:[#allocation10 + $0x4f8] sm:$0xff]
    %v4010 = vld [vmem:[#allocation10 + $0x500] sm:$0xff]
    %v4011 = vld [vmem:[#allocation10 + $0x508] sm:$0xff]
    %v4012 = vld [vmem:[#allocation10 + $0x510] sm:$0xff]
    %v4013 = vld [vmem:[#allocation10 + $0x518] sm:$0xff]
    %v4014 = vld [vmem:[#allocation10 + $0x520] sm:$0xff]
    %v4015 = vld [vmem:[#allocation10 + $0x528] sm:$0xff]
    %v4016 = vld [vmem:[#allocation10 + $0x530] sm:$0xff]
    %v4017 = vld [vmem:[#allocation10 + $0x538] sm:$0xff]
    %v4018 = vld [vmem:[#allocation10 + $0x540] sm:$0xff]
    %v4019 = vld [vmem:[#allocation10 + $0x548] sm:$0xff]
    %v4020 = vld [vmem:[#allocation10 + $0x550] sm:$0xff]
    %v4021 = vld [vmem:[#allocation10 + $0x558] sm:$0xff]
    %v4022 = vld [vmem:[#allocation10 + $0x560] sm:$0xff]
    %v4023 = vld [vmem:[#allocation10 + $0x568] sm:$0xff]
    %v4024 = vld [vmem:[#allocation10 + $0x570] sm:$0xff]
    %v4025 = vld [vmem:[#allocation10 + $0x578] sm:$0xff]
    %v4026 = vld [vmem:[#allocation10 + $0x580] sm:$0xff]
    %v4027 = vld [vmem:[#allocation10 + $0x588] sm:$0xff]
    %v4028 = vld [vmem:[#allocation10 + $0x590] sm:$0xff]
    %v4029 = vld [vmem:[#allocation10 + $0x598] sm:$0xff]
    %v4030 = vld [vmem:[#allocation10 + $0x5a0] sm:$0xff]
    %v4031 = vld [vmem:[#allocation10 + $0x5a8] sm:$0xff]
    %v4032 = vld [vmem:[#allocation10 + $0x5b0] sm:$0xff]
    %v4033 = vld [vmem:[#allocation10 + $0x5b8] sm:$0xff]
    %v4034 = vld [vmem:[#allocation10 + $0x5c0] sm:$0xff]
    %v4035 = vld [vmem:[#allocation10 + $0x5c8] sm:$0xff]
    %v4036 = vld [vmem:[#allocation10 + $0x5d0] sm:$0xff]
    %v4037 = vld [vmem:[#allocation10 + $0x5d8] sm:$0xff]
    %v4038 = vld [vmem:[#allocation10 + $0x5e0] sm:$0xff]
    %v4039 = vld [vmem:[#allocation10 + $0x5e8] sm:$0xff]
    %v4040 = vld [vmem:[#allocation10 + $0x5f0] sm:$0xff]
    %v4041 = vld [vmem:[#allocation10 + $0x5f8] sm:$0xff]
    %v4042 = vld [vmem:[#allocation10 + $0x600] sm:$0xff]
    %v4043 = vld [vmem:[#allocation10 + $0x608] sm:$0xff]
    %v4044 = vld [vmem:[#allocation10 + $0x610] sm:$0xff]
    %v4045 = vld [vmem:[#allocation10 + $0x618] sm:$0xff]
    %v4046 = vld [vmem:[#allocation10 + $0x620] sm:$0xff]
    %v4047 = vld [vmem:[#allocation10 + $0x628] sm:$0xff]
    %v4048 = vld [vmem:[#allocation10 + $0x630] sm:$0xff]
    %v4049 = vld [vmem:[#allocation10 + $0x638] sm:$0xff]
    %v4050 = vld [vmem:[#allocation10 + $0x640] sm:$0xff]
    %v4051 = vld [vmem:[#allocation10 + $0x648] sm:$0xff]
    %v4052 = vld [vmem:[#allocation10 + $0x650] sm:$0xff]
    %v4053 = vld [vmem:[#allocation10 + $0x658] sm:$0xff]
    %v4054 = vld [vmem:[#allocation10 + $0x660] sm:$0xff]
    %v4055 = vld [vmem:[#allocation10 + $0x668] sm:$0xff]
    %v4056 = vld [vmem:[#allocation10 + $0x670] sm:$0xff]
    %v4057 = vld [vmem:[#allocation10 + $0x678] sm:$0xff]
    %v4058 = vld [vmem:[#allocation10 + $0x680] sm:$0xff]
    %v4059 = vld [vmem:[#allocation10 + $0x688] sm:$0xff]
    %v4060 = vld [vmem:[#allocation10 + $0x690] sm:$0xff]
    %v4061 = vld [vmem:[#allocation10 + $0x698] sm:$0xff]
    %v4062 = vld [vmem:[#allocation10 + $0x6a0] sm:$0xff]
    %v4063 = vld [vmem:[#allocation10 + $0x6a8] sm:$0xff]
    %v4064 = vld [vmem:[#allocation10 + $0x6b0] sm:$0xff]
    %v4065 = vld [vmem:[#allocation10 + $0x6b8] sm:$0xff]
    %v4066 = vld [vmem:[#allocation10 + $0x6c0] sm:$0xff]
    %v4067 = vld [vmem:[#allocation10 + $0x6c8] sm:$0xff]
    %v4068 = vld [vmem:[#allocation10 + $0x6d0] sm:$0xff]
    %v4069 = vld [vmem:[#allocation10 + $0x6d8] sm:$0xff]
    %v4070 = vld [vmem:[#allocation10 + $0x6e0] sm:$0xff]
    %v4071 = vld [vmem:[#allocation10 + $0x6e8] sm:$0xff]
    %v4072 = vld [vmem:[#allocation10 + $0x6f0] sm:$0xff]
    %v4073 = vld [vmem:[#allocation10 + $0x6f8] sm:$0xff]
    %v4074 = vld [vmem:[#allocation10 + $0x700] sm:$0xff]
    %v4075 = vld [vmem:[#allocation10 + $0x708] sm:$0xff]
    %v4076 = vld [vmem:[#allocation10 + $0x710] sm:$0xff]
    %v4077 = vld [vmem:[#allocation10 + $0x718] sm:$0xff]
    %v4078 = vld [vmem:[#allocation10 + $0x720] sm:$0xff]
    %v4079 = vld [vmem:[#allocation10 + $0x728] sm:$0xff]
    %v4080 = vld [vmem:[#allocation10 + $0x730] sm:$0xff]
    %v4081 = vld [vmem:[#allocation10 + $0x738] sm:$0xff]
    %v4082 = vld [vmem:[#allocation10 + $0x740] sm:$0xff]
    %v4083 = vld [vmem:[#allocation10 + $0x748] sm:$0xff]
    %v4084 = vld [vmem:[#allocation10 + $0x750] sm:$0xff]
    %v4085 = vld [vmem:[#allocation10 + $0x758] sm:$0xff]
    %v4086 = vld [vmem:[#allocation10 + $0x760] sm:$0xff]
    %v4087 = vld [vmem:[#allocation10 + $0x768] sm:$0xff]
    %v4088 = vld [vmem:[#allocation10 + $0x770] sm:$0xff]
    %v4089 = vld [vmem:[#allocation10 + $0x778] sm:$0xff]
    %v4090 = vld [vmem:[#allocation10 + $0x780] sm:$0xff]
    %v4091 = vld [vmem:[#allocation10 + $0x788] sm:$0xff]
    %v4092 = vld [vmem:[#allocation10 + $0x790] sm:$0xff]
    %v4093 = vld [vmem:[#allocation10 + $0x798] sm:$0xff]
    %v4094 = vld [vmem:[#allocation10 + $0x7a0] sm:$0xff]
    %v4095 = vld [vmem:[#allocation10 + $0x7a8] sm:$0xff]
    %v4096 = vld [vmem:[#allocation10 + $0x7b0] sm:$0xff]
    %v4097 = vld [vmem:[#allocation10 + $0x7b8] sm:$0xff]
    %v4098 = vld [vmem:[#allocation10 + $0x7c0] sm:$0xff]
    %v4099 = vld [vmem:[#allocation10 + $0x7c8] sm:$0xff]
    %v4100 = vld [vmem:[#allocation10 + $0x7d0] sm:$0xff]
    %v4101 = vld [vmem:[#allocation10 + $0x7d8] sm:$0xff]
    %v4102 = vld [vmem:[#allocation10 + $0x7e0] sm:$0xff]
    %v4103 = vld [vmem:[#allocation10 + $0x7e8] sm:$0xff]
    %v4104 = vld [vmem:[#allocation10 + $0x7f0] sm:$0xff]
    %v4105 = vld [vmem:[#allocation10 + $0x7f8] sm:$0xff]
    %v4106 = vmax.f32 %v3838, 0.0
    %v4107 = vmax.f32 %v3839, 0.0
    %v4108 = vmax.f32 %v3840, 0.0
    %v4109 = vmax.f32 %v3841, 0.0
    %v4110 = vpack.c.bf16 %v4106, %v4106
    %v4111 = vpack.c.bf16 %v4107, %v4107
    %v4112 = vpack.c.bf16 %v4108, %v4108
    %v4113 = vpack.c.bf16 %v4109, %v4109
    %v4114 = vld [vmem:[#allocation12] sm:$0xff]
    %v4115 = vld [vmem:[#allocation12 + $0x8] sm:$0xff]
    %v4116 = vld [vmem:[#allocation12 + $0x10] sm:$0xff]
    %v4117 = vld [vmem:[#allocation12 + $0x18] sm:$0xff]
    %v4118 = vld [vmem:[#allocation12 + $0x20] sm:$0xff]
    %v4119 = vld [vmem:[#allocation12 + $0x28] sm:$0xff]
    %v4120 = vld [vmem:[#allocation12 + $0x30] sm:$0xff]
    %v4121 = vld [vmem:[#allocation12 + $0x38] sm:$0xff]
    %v4122 = vld [vmem:[#allocation12 + $0x40] sm:$0xff]
    %v4123 = vld [vmem:[#allocation12 + $0x48] sm:$0xff]
    %v4124 = vld [vmem:[#allocation12 + $0x50] sm:$0xff]
    %v4125 = vld [vmem:[#allocation12 + $0x58] sm:$0xff]
    %v4126 = vld [vmem:[#allocation12 + $0x60] sm:$0xff]
    %v4127 = vld [vmem:[#allocation12 + $0x68] sm:$0xff]
    %v4128 = vld [vmem:[#allocation12 + $0x70] sm:$0xff]
    %v4129 = vld [vmem:[#allocation12 + $0x78] sm:$0xff]
    %v4130 = vld [vmem:[#allocation12 + $0x80] sm:$0xff]
    %v4131 = vld [vmem:[#allocation12 + $0x88] sm:$0xff]
    %v4132 = vld [vmem:[#allocation12 + $0x90] sm:$0xff]
    %v4133 = vld [vmem:[#allocation12 + $0x98] sm:$0xff]
    %v4134 = vld [vmem:[#allocation12 + $0xa0] sm:$0xff]
    %v4135 = vld [vmem:[#allocation12 + $0xa8] sm:$0xff]
    %v4136 = vld [vmem:[#allocation12 + $0xb0] sm:$0xff]
    %v4137 = vld [vmem:[#allocation12 + $0xb8] sm:$0xff]
    %v4138 = vld [vmem:[#allocation12 + $0xc0] sm:$0xff]
    %v4139 = vld [vmem:[#allocation12 + $0xc8] sm:$0xff]
    %v4140 = vld [vmem:[#allocation12 + $0xd0] sm:$0xff]
    %v4141 = vld [vmem:[#allocation12 + $0xd8] sm:$0xff]
    %v4142 = vld [vmem:[#allocation12 + $0xe0] sm:$0xff]
    %v4143 = vld [vmem:[#allocation12 + $0xe8] sm:$0xff]
    %v4144 = vld [vmem:[#allocation12 + $0xf0] sm:$0xff]
    %v4145 = vld [vmem:[#allocation12 + $0xf8] sm:$0xff]
    %v4146 = vld [vmem:[#allocation12 + $0x100] sm:$0xff]
    %v4147 = vld [vmem:[#allocation12 + $0x108] sm:$0xff]
    %v4148 = vld [vmem:[#allocation12 + $0x110] sm:$0xff]
    %v4149 = vld [vmem:[#allocation12 + $0x118] sm:$0xff]
    %v4150 = vld [vmem:[#allocation12 + $0x120] sm:$0xff]
    %v4151 = vld [vmem:[#allocation12 + $0x128] sm:$0xff]
    %v4152 = vld [vmem:[#allocation12 + $0x130] sm:$0xff]
    %v4153 = vld [vmem:[#allocation12 + $0x138] sm:$0xff]
    %v4154 = vld [vmem:[#allocation12 + $0x140] sm:$0xff]
    %v4155 = vld [vmem:[#allocation12 + $0x148] sm:$0xff]
    %v4156 = vld [vmem:[#allocation12 + $0x150] sm:$0xff]
    %v4157 = vld [vmem:[#allocation12 + $0x158] sm:$0xff]
    %v4158 = vld [vmem:[#allocation12 + $0x160] sm:$0xff]
    %v4159 = vld [vmem:[#allocation12 + $0x168] sm:$0xff]
    %v4160 = vld [vmem:[#allocation12 + $0x170] sm:$0xff]
    %v4161 = vld [vmem:[#allocation12 + $0x178] sm:$0xff]
    %v4162 = vld [vmem:[#allocation12 + $0x180] sm:$0xff]
    %v4163 = vld [vmem:[#allocation12 + $0x188] sm:$0xff]
    %v4164 = vld [vmem:[#allocation12 + $0x190] sm:$0xff]
    %v4165 = vld [vmem:[#allocation12 + $0x198] sm:$0xff]
    %v4166 = vld [vmem:[#allocation12 + $0x1a0] sm:$0xff]
    %v4167 = vld [vmem:[#allocation12 + $0x1a8] sm:$0xff]
    %v4168 = vld [vmem:[#allocation12 + $0x1b0] sm:$0xff]
    %v4169 = vld [vmem:[#allocation12 + $0x1b8] sm:$0xff]
    %v4170 = vld [vmem:[#allocation12 + $0x1c0] sm:$0xff]
    %v4171 = vld [vmem:[#allocation12 + $0x1c8] sm:$0xff]
    %v4172 = vld [vmem:[#allocation12 + $0x1d0] sm:$0xff]
    %v4173 = vld [vmem:[#allocation12 + $0x1d8] sm:$0xff]
    %v4174 = vld [vmem:[#allocation12 + $0x1e0] sm:$0xff]
    %v4175 = vld [vmem:[#allocation12 + $0x1e8] sm:$0xff]
    %v4176 = vld [vmem:[#allocation12 + $0x1f0] sm:$0xff]
    %v4177 = vld [vmem:[#allocation12 + $0x1f8] sm:$0xff]
    %v4178 = vld [vmem:[#allocation12 + $0x200] sm:$0xff]
    %v4179 = vld [vmem:[#allocation12 + $0x208] sm:$0xff]
    %v4180 = vld [vmem:[#allocation12 + $0x210] sm:$0xff]
    %v4181 = vld [vmem:[#allocation12 + $0x218] sm:$0xff]
    %v4182 = vld [vmem:[#allocation12 + $0x220] sm:$0xff]
    %v4183 = vld [vmem:[#allocation12 + $0x228] sm:$0xff]
    %v4184 = vld [vmem:[#allocation12 + $0x230] sm:$0xff]
    %v4185 = vld [vmem:[#allocation12 + $0x238] sm:$0xff]
    %v4186 = vld [vmem:[#allocation12 + $0x240] sm:$0xff]
    %v4187 = vld [vmem:[#allocation12 + $0x248] sm:$0xff]
    %v4188 = vld [vmem:[#allocation12 + $0x250] sm:$0xff]
    %v4189 = vld [vmem:[#allocation12 + $0x258] sm:$0xff]
    %v4190 = vld [vmem:[#allocation12 + $0x260] sm:$0xff]
    %v4191 = vld [vmem:[#allocation12 + $0x268] sm:$0xff]
    %v4192 = vld [vmem:[#allocation12 + $0x270] sm:$0xff]
    %v4193 = vld [vmem:[#allocation12 + $0x278] sm:$0xff]
    %v4194 = vld [vmem:[#allocation12 + $0x280] sm:$0xff]
    %v4195 = vld [vmem:[#allocation12 + $0x288] sm:$0xff]
    %v4196 = vld [vmem:[#allocation12 + $0x290] sm:$0xff]
    %v4197 = vld [vmem:[#allocation12 + $0x298] sm:$0xff]
    %v4198 = vld [vmem:[#allocation12 + $0x2a0] sm:$0xff]
    %v4199 = vld [vmem:[#allocation12 + $0x2a8] sm:$0xff]
    %v4200 = vld [vmem:[#allocation12 + $0x2b0] sm:$0xff]
    %v4201 = vld [vmem:[#allocation12 + $0x2b8] sm:$0xff]
    %v4202 = vld [vmem:[#allocation12 + $0x2c0] sm:$0xff]
    %v4203 = vld [vmem:[#allocation12 + $0x2c8] sm:$0xff]
    %v4204 = vld [vmem:[#allocation12 + $0x2d0] sm:$0xff]
    %v4205 = vld [vmem:[#allocation12 + $0x2d8] sm:$0xff]
    %v4206 = vld [vmem:[#allocation12 + $0x2e0] sm:$0xff]
    %v4207 = vld [vmem:[#allocation12 + $0x2e8] sm:$0xff]
    %v4208 = vld [vmem:[#allocation12 + $0x2f0] sm:$0xff]
    %v4209 = vld [vmem:[#allocation12 + $0x2f8] sm:$0xff]
    %v4210 = vld [vmem:[#allocation12 + $0x300] sm:$0xff]
    %v4211 = vld [vmem:[#allocation12 + $0x308] sm:$0xff]
    %v4212 = vld [vmem:[#allocation12 + $0x310] sm:$0xff]
    %v4213 = vld [vmem:[#allocation12 + $0x318] sm:$0xff]
    %v4214 = vld [vmem:[#allocation12 + $0x320] sm:$0xff]
    %v4215 = vld [vmem:[#allocation12 + $0x328] sm:$0xff]
    %v4216 = vld [vmem:[#allocation12 + $0x330] sm:$0xff]
    %v4217 = vld [vmem:[#allocation12 + $0x338] sm:$0xff]
    %v4218 = vld [vmem:[#allocation12 + $0x340] sm:$0xff]
    %v4219 = vld [vmem:[#allocation12 + $0x348] sm:$0xff]
    %v4220 = vld [vmem:[#allocation12 + $0x350] sm:$0xff]
    %v4221 = vld [vmem:[#allocation12 + $0x358] sm:$0xff]
    %v4222 = vld [vmem:[#allocation12 + $0x360] sm:$0xff]
    %v4223 = vld [vmem:[#allocation12 + $0x368] sm:$0xff]
    %v4224 = vld [vmem:[#allocation12 + $0x370] sm:$0xff]
    %v4225 = vld [vmem:[#allocation12 + $0x378] sm:$0xff]
    %v4226 = vld [vmem:[#allocation12 + $0x380] sm:$0xff]
    %v4227 = vld [vmem:[#allocation12 + $0x388] sm:$0xff]
    %v4228 = vld [vmem:[#allocation12 + $0x390] sm:$0xff]
    %v4229 = vld [vmem:[#allocation12 + $0x398] sm:$0xff]
    %v4230 = vld [vmem:[#allocation12 + $0x3a0] sm:$0xff]
    %v4231 = vld [vmem:[#allocation12 + $0x3a8] sm:$0xff]
    %v4232 = vld [vmem:[#allocation12 + $0x3b0] sm:$0xff]
    %v4233 = vld [vmem:[#allocation12 + $0x3b8] sm:$0xff]
    %v4234 = vld [vmem:[#allocation12 + $0x3c0] sm:$0xff]
    %v4235 = vld [vmem:[#allocation12 + $0x3c8] sm:$0xff]
    %v4236 = vld [vmem:[#allocation12 + $0x3d0] sm:$0xff]
    %v4237 = vld [vmem:[#allocation12 + $0x3d8] sm:$0xff]
    %v4238 = vld [vmem:[#allocation12 + $0x3e0] sm:$0xff]
    %v4239 = vld [vmem:[#allocation12 + $0x3e8] sm:$0xff]
    %v4240 = vld [vmem:[#allocation12 + $0x3f0] sm:$0xff]
    %v4241 = vld [vmem:[#allocation12 + $0x3f8] sm:$0xff]
    %v4242 = vld [vmem:[#allocation12 + $0x400] sm:$0xff]
    %v4243 = vld [vmem:[#allocation12 + $0x408] sm:$0xff]
    %v4244 = vld [vmem:[#allocation12 + $0x410] sm:$0xff]
    %v4245 = vld [vmem:[#allocation12 + $0x418] sm:$0xff]
    %v4246 = vld [vmem:[#allocation12 + $0x420] sm:$0xff]
    %v4247 = vld [vmem:[#allocation12 + $0x428] sm:$0xff]
    %v4248 = vld [vmem:[#allocation12 + $0x430] sm:$0xff]
    %v4249 = vld [vmem:[#allocation12 + $0x438] sm:$0xff]
    %v4250 = vld [vmem:[#allocation12 + $0x440] sm:$0xff]
    %v4251 = vld [vmem:[#allocation12 + $0x448] sm:$0xff]
    %v4252 = vld [vmem:[#allocation12 + $0x450] sm:$0xff]
    %v4253 = vld [vmem:[#allocation12 + $0x458] sm:$0xff]
    %v4254 = vld [vmem:[#allocation12 + $0x460] sm:$0xff]
    %v4255 = vld [vmem:[#allocation12 + $0x468] sm:$0xff]
    %v4256 = vld [vmem:[#allocation12 + $0x470] sm:$0xff]
    %v4257 = vld [vmem:[#allocation12 + $0x478] sm:$0xff]
    %v4258 = vld [vmem:[#allocation12 + $0x480] sm:$0xff]
    %v4259 = vld [vmem:[#allocation12 + $0x488] sm:$0xff]
    %v4260 = vld [vmem:[#allocation12 + $0x490] sm:$0xff]
    %v4261 = vld [vmem:[#allocation12 + $0x498] sm:$0xff]
    %v4262 = vld [vmem:[#allocation12 + $0x4a0] sm:$0xff]
    %v4263 = vld [vmem:[#allocation12 + $0x4a8] sm:$0xff]
    %v4264 = vld [vmem:[#allocation12 + $0x4b0] sm:$0xff]
    %v4265 = vld [vmem:[#allocation12 + $0x4b8] sm:$0xff]
    %v4266 = vld [vmem:[#allocation12 + $0x4c0] sm:$0xff]
    %v4267 = vld [vmem:[#allocation12 + $0x4c8] sm:$0xff]
    %v4268 = vld [vmem:[#allocation12 + $0x4d0] sm:$0xff]
    %v4269 = vld [vmem:[#allocation12 + $0x4d8] sm:$0xff]
    %v4270 = vld [vmem:[#allocation12 + $0x4e0] sm:$0xff]
    %v4271 = vld [vmem:[#allocation12 + $0x4e8] sm:$0xff]
    %v4272 = vld [vmem:[#allocation12 + $0x4f0] sm:$0xff]
    %v4273 = vld [vmem:[#allocation12 + $0x4f8] sm:$0xff]
    %v4274 = vld [vmem:[#allocation12 + $0x500] sm:$0xff]
    %v4275 = vld [vmem:[#allocation12 + $0x508] sm:$0xff]
    %v4276 = vld [vmem:[#allocation12 + $0x510] sm:$0xff]
    %v4277 = vld [vmem:[#allocation12 + $0x518] sm:$0xff]
    %v4278 = vld [vmem:[#allocation12 + $0x520] sm:$0xff]
    %v4279 = vld [vmem:[#allocation12 + $0x528] sm:$0xff]
    %v4280 = vld [vmem:[#allocation12 + $0x530] sm:$0xff]
    %v4281 = vld [vmem:[#allocation12 + $0x538] sm:$0xff]
    %v4282 = vld [vmem:[#allocation12 + $0x540] sm:$0xff]
    %v4283 = vld [vmem:[#allocation12 + $0x548] sm:$0xff]
    %v4284 = vld [vmem:[#allocation12 + $0x550] sm:$0xff]
    %v4285 = vld [vmem:[#allocation12 + $0x558] sm:$0xff]
    %v4286 = vld [vmem:[#allocation12 + $0x560] sm:$0xff]
    %v4287 = vld [vmem:[#allocation12 + $0x568] sm:$0xff]
    %v4288 = vld [vmem:[#allocation12 + $0x570] sm:$0xff]
    %v4289 = vld [vmem:[#allocation12 + $0x578] sm:$0xff]
    %v4290 = vld [vmem:[#allocation12 + $0x580] sm:$0xff]
    %v4291 = vld [vmem:[#allocation12 + $0x588] sm:$0xff]
    %v4292 = vld [vmem:[#allocation12 + $0x590] sm:$0xff]
    %v4293 = vld [vmem:[#allocation12 + $0x598] sm:$0xff]
    %v4294 = vld [vmem:[#allocation12 + $0x5a0] sm:$0xff]
    %v4295 = vld [vmem:[#allocation12 + $0x5a8] sm:$0xff]
    %v4296 = vld [vmem:[#allocation12 + $0x5b0] sm:$0xff]
    %v4297 = vld [vmem:[#allocation12 + $0x5b8] sm:$0xff]
    %v4298 = vld [vmem:[#allocation12 + $0x5c0] sm:$0xff]
    %v4299 = vld [vmem:[#allocation12 + $0x5c8] sm:$0xff]
    %v4300 = vld [vmem:[#allocation12 + $0x5d0] sm:$0xff]
    %v4301 = vld [vmem:[#allocation12 + $0x5d8] sm:$0xff]
    %v4302 = vld [vmem:[#allocation12 + $0x5e0] sm:$0xff]
    %v4303 = vld [vmem:[#allocation12 + $0x5e8] sm:$0xff]
    %v4304 = vld [vmem:[#allocation12 + $0x5f0] sm:$0xff]
    %v4305 = vld [vmem:[#allocation12 + $0x5f8] sm:$0xff]
    %v4306 = vld [vmem:[#allocation12 + $0x600] sm:$0xff]
    %v4307 = vld [vmem:[#allocation12 + $0x608] sm:$0xff]
    %v4308 = vld [vmem:[#allocation12 + $0x610] sm:$0xff]
    %v4309 = vld [vmem:[#allocation12 + $0x618] sm:$0xff]
    %v4310 = vld [vmem:[#allocation12 + $0x620] sm:$0xff]
    %v4311 = vld [vmem:[#allocation12 + $0x628] sm:$0xff]
    %v4312 = vld [vmem:[#allocation12 + $0x630] sm:$0xff]
    %v4313 = vld [vmem:[#allocation12 + $0x638] sm:$0xff]
    %v4314 = vld [vmem:[#allocation12 + $0x640] sm:$0xff]
    %v4315 = vld [vmem:[#allocation12 + $0x648] sm:$0xff]
    %v4316 = vld [vmem:[#allocation12 + $0x650] sm:$0xff]
    %v4317 = vld [vmem:[#allocation12 + $0x658] sm:$0xff]
    %v4318 = vld [vmem:[#allocation12 + $0x660] sm:$0xff]
    %v4319 = vld [vmem:[#allocation12 + $0x668] sm:$0xff]
    %v4320 = vld [vmem:[#allocation12 + $0x670] sm:$0xff]
    %v4321 = vld [vmem:[#allocation12 + $0x678] sm:$0xff]
    %v4322 = vld [vmem:[#allocation12 + $0x680] sm:$0xff]
    %v4323 = vld [vmem:[#allocation12 + $0x688] sm:$0xff]
    %v4324 = vld [vmem:[#allocation12 + $0x690] sm:$0xff]
    %v4325 = vld [vmem:[#allocation12 + $0x698] sm:$0xff]
    %v4326 = vld [vmem:[#allocation12 + $0x6a0] sm:$0xff]
    %v4327 = vld [vmem:[#allocation12 + $0x6a8] sm:$0xff]
    %v4328 = vld [vmem:[#allocation12 + $0x6b0] sm:$0xff]
    %v4329 = vld [vmem:[#allocation12 + $0x6b8] sm:$0xff]
    %v4330 = vld [vmem:[#allocation12 + $0x6c0] sm:$0xff]
    %v4331 = vld [vmem:[#allocation12 + $0x6c8] sm:$0xff]
    %v4332 = vld [vmem:[#allocation12 + $0x6d0] sm:$0xff]
    %v4333 = vld [vmem:[#allocation12 + $0x6d8] sm:$0xff]
    %v4334 = vld [vmem:[#allocation12 + $0x6e0] sm:$0xff]
    %v4335 = vld [vmem:[#allocation12 + $0x6e8] sm:$0xff]
    %v4336 = vld [vmem:[#allocation12 + $0x6f0] sm:$0xff]
    %v4337 = vld [vmem:[#allocation12 + $0x6f8] sm:$0xff]
    %v4338 = vld [vmem:[#allocation12 + $0x700] sm:$0xff]
    %v4339 = vld [vmem:[#allocation12 + $0x708] sm:$0xff]
    %v4340 = vld [vmem:[#allocation12 + $0x710] sm:$0xff]
    %v4341 = vld [vmem:[#allocation12 + $0x718] sm:$0xff]
    %v4342 = vld [vmem:[#allocation12 + $0x720] sm:$0xff]
    %v4343 = vld [vmem:[#allocation12 + $0x728] sm:$0xff]
    %v4344 = vld [vmem:[#allocation12 + $0x730] sm:$0xff]
    %v4345 = vld [vmem:[#allocation12 + $0x738] sm:$0xff]
    %v4346 = vld [vmem:[#allocation12 + $0x740] sm:$0xff]
    %v4347 = vld [vmem:[#allocation12 + $0x748] sm:$0xff]
    %v4348 = vld [vmem:[#allocation12 + $0x750] sm:$0xff]
    %v4349 = vld [vmem:[#allocation12 + $0x758] sm:$0xff]
    %v4350 = vld [vmem:[#allocation12 + $0x760] sm:$0xff]
    %v4351 = vld [vmem:[#allocation12 + $0x768] sm:$0xff]
    %v4352 = vld [vmem:[#allocation12 + $0x770] sm:$0xff]
    %v4353 = vld [vmem:[#allocation12 + $0x778] sm:$0xff]
    %v4354 = vld [vmem:[#allocation12 + $0x780] sm:$0xff]
    %v4355 = vld [vmem:[#allocation12 + $0x788] sm:$0xff]
    %v4356 = vld [vmem:[#allocation12 + $0x790] sm:$0xff]
    %v4357 = vld [vmem:[#allocation12 + $0x798] sm:$0xff]
    %v4358 = vld [vmem:[#allocation12 + $0x7a0] sm:$0xff]
    %v4359 = vld [vmem:[#allocation12 + $0x7a8] sm:$0xff]
    %v4360 = vld [vmem:[#allocation12 + $0x7b0] sm:$0xff]
    %v4361 = vld [vmem:[#allocation12 + $0x7b8] sm:$0xff]
    %v4362 = vld [vmem:[#allocation12 + $0x7c0] sm:$0xff]
    %v4363 = vld [vmem:[#allocation12 + $0x7c8] sm:$0xff]
    %v4364 = vld [vmem:[#allocation12 + $0x7d0] sm:$0xff]
    %v4365 = vld [vmem:[#allocation12 + $0x7d8] sm:$0xff]
    %v4366 = vld [vmem:[#allocation12 + $0x7e0] sm:$0xff]
    %v4367 = vld [vmem:[#allocation12 + $0x7e8] sm:$0xff]
    %v4368 = vld [vmem:[#allocation12 + $0x7f0] sm:$0xff]
    %v4369 = vld [vmem:[#allocation12 + $0x7f8] sm:$0xff]
    %v4626 = vunpack.c.l.b16 %v4114
    %v4627 = vunpack.c.h.b16 %v4114
    %v4628 = vunpack.c.l.b16 %v4115
    %v4629 = vunpack.c.h.b16 %v4115
    %v4630 = vunpack.c.l.b16 %v4116
    %v4631 = vunpack.c.h.b16 %v4116
    %v4632 = vunpack.c.l.b16 %v4117
    %v4633 = vunpack.c.h.b16 %v4117
    %v4634 = vunpack.c.l.b16 %v4118
    %v4635 = vunpack.c.h.b16 %v4118
    %v4636 = vunpack.c.l.b16 %v4119
    %v4637 = vunpack.c.h.b16 %v4119
    %v4638 = vunpack.c.l.b16 %v4120
    %v4639 = vunpack.c.h.b16 %v4120
    %v4640 = vunpack.c.l.b16 %v4121
    %v4641 = vunpack.c.h.b16 %v4121
    %v4642 = vunpack.c.l.b16 %v4122
    %v4643 = vunpack.c.h.b16 %v4122
    %v4644 = vunpack.c.l.b16 %v4123
    %v4645 = vunpack.c.h.b16 %v4123
    %v4646 = vunpack.c.l.b16 %v4124
    %v4647 = vunpack.c.h.b16 %v4124
    %v4648 = vunpack.c.l.b16 %v4125
    %v4649 = vunpack.c.h.b16 %v4125
    %v4650 = vunpack.c.l.b16 %v4126
    %v4651 = vunpack.c.h.b16 %v4126
    %v4652 = vunpack.c.l.b16 %v4127
    %v4653 = vunpack.c.h.b16 %v4127
    %v4654 = vunpack.c.l.b16 %v4128
    %v4655 = vunpack.c.h.b16 %v4128
    %v4656 = vunpack.c.l.b16 %v4129
    %v4657 = vunpack.c.h.b16 %v4129
    %v4658 = vunpack.c.l.b16 %v4130
    %v4659 = vunpack.c.h.b16 %v4130
    %v4660 = vunpack.c.l.b16 %v4131
    %v4661 = vunpack.c.h.b16 %v4131
    %v4662 = vunpack.c.l.b16 %v4132
    %v4663 = vunpack.c.h.b16 %v4132
    %v4664 = vunpack.c.l.b16 %v4133
    %v4665 = vunpack.c.h.b16 %v4133
    %v4666 = vunpack.c.l.b16 %v4134
    %v4667 = vunpack.c.h.b16 %v4134
    %v4668 = vunpack.c.l.b16 %v4135
    %v4669 = vunpack.c.h.b16 %v4135
    %v4670 = vunpack.c.l.b16 %v4136
    %v4671 = vunpack.c.h.b16 %v4136
    %v4672 = vunpack.c.l.b16 %v4137
    %v4673 = vunpack.c.h.b16 %v4137
    %v4674 = vunpack.c.l.b16 %v4138
    %v4675 = vunpack.c.h.b16 %v4138
    %v4676 = vunpack.c.l.b16 %v4139
    %v4677 = vunpack.c.h.b16 %v4139
    %v4678 = vunpack.c.l.b16 %v4140
    %v4679 = vunpack.c.h.b16 %v4140
    %v4680 = vunpack.c.l.b16 %v4141
    %v4681 = vunpack.c.h.b16 %v4141
    %v4682 = vunpack.c.l.b16 %v4142
    %v4683 = vunpack.c.h.b16 %v4142
    %v4684 = vunpack.c.l.b16 %v4143
    %v4685 = vunpack.c.h.b16 %v4143
    %v4686 = vunpack.c.l.b16 %v4144
    %v4687 = vunpack.c.h.b16 %v4144
    %v4688 = vunpack.c.l.b16 %v4145
    %v4689 = vunpack.c.h.b16 %v4145
    %v4690 = vunpack.c.l.b16 %v4146
    %v4691 = vunpack.c.h.b16 %v4146
    %v4692 = vunpack.c.l.b16 %v4147
    %v4693 = vunpack.c.h.b16 %v4147
    %v4694 = vunpack.c.l.b16 %v4148
    %v4695 = vunpack.c.h.b16 %v4148
    %v4696 = vunpack.c.l.b16 %v4149
    %v4697 = vunpack.c.h.b16 %v4149
    %v4698 = vunpack.c.l.b16 %v4150
    %v4699 = vunpack.c.h.b16 %v4150
    %v4700 = vunpack.c.l.b16 %v4151
    %v4701 = vunpack.c.h.b16 %v4151
    %v4702 = vunpack.c.l.b16 %v4152
    %v4703 = vunpack.c.h.b16 %v4152
    %v4704 = vunpack.c.l.b16 %v4153
    %v4705 = vunpack.c.h.b16 %v4153
    %v4706 = vunpack.c.l.b16 %v4154
    %v4707 = vunpack.c.h.b16 %v4154
    %v4708 = vunpack.c.l.b16 %v4155
    %v4709 = vunpack.c.h.b16 %v4155
    %v4710 = vunpack.c.l.b16 %v4156
    %v4711 = vunpack.c.h.b16 %v4156
    %v4712 = vunpack.c.l.b16 %v4157
    %v4713 = vunpack.c.h.b16 %v4157
    %v4714 = vunpack.c.l.b16 %v4158
    %v4715 = vunpack.c.h.b16 %v4158
    %v4716 = vunpack.c.l.b16 %v4159
    %v4717 = vunpack.c.h.b16 %v4159
    %v4718 = vunpack.c.l.b16 %v4160
    %v4719 = vunpack.c.h.b16 %v4160
    %v4720 = vunpack.c.l.b16 %v4161
    %v4721 = vunpack.c.h.b16 %v4161
    %v4722 = vunpack.c.l.b16 %v4162
    %v4723 = vunpack.c.h.b16 %v4162
    %v4724 = vunpack.c.l.b16 %v4163
    %v4725 = vunpack.c.h.b16 %v4163
    %v4726 = vunpack.c.l.b16 %v4164
    %v4727 = vunpack.c.h.b16 %v4164
    %v4728 = vunpack.c.l.b16 %v4165
    %v4729 = vunpack.c.h.b16 %v4165
    %v4730 = vunpack.c.l.b16 %v4166
    %v4731 = vunpack.c.h.b16 %v4166
    %v4732 = vunpack.c.l.b16 %v4167
    %v4733 = vunpack.c.h.b16 %v4167
    %v4734 = vunpack.c.l.b16 %v4168
    %v4735 = vunpack.c.h.b16 %v4168
    %v4736 = vunpack.c.l.b16 %v4169
    %v4737 = vunpack.c.h.b16 %v4169
    %v4738 = vunpack.c.l.b16 %v4170
    %v4739 = vunpack.c.h.b16 %v4170
    %v4740 = vunpack.c.l.b16 %v4171
    %v4741 = vunpack.c.h.b16 %v4171
    %v4742 = vunpack.c.l.b16 %v4172
    %v4743 = vunpack.c.h.b16 %v4172
    %v4744 = vunpack.c.l.b16 %v4173
    %v4745 = vunpack.c.h.b16 %v4173
    %v4746 = vunpack.c.l.b16 %v4174
    %v4747 = vunpack.c.h.b16 %v4174
    %v4748 = vunpack.c.l.b16 %v4175
    %v4749 = vunpack.c.h.b16 %v4175
    %v4750 = vunpack.c.l.b16 %v4176
    %v4751 = vunpack.c.h.b16 %v4176
    %v4752 = vunpack.c.l.b16 %v4177
    %v4753 = vunpack.c.h.b16 %v4177
    %v4754 = vunpack.c.l.b16 %v4178
    %v4755 = vunpack.c.h.b16 %v4178
    %v4756 = vunpack.c.l.b16 %v4179
    %v4757 = vunpack.c.h.b16 %v4179
    %v4758 = vunpack.c.l.b16 %v4180
    %v4759 = vunpack.c.h.b16 %v4180
    %v4760 = vunpack.c.l.b16 %v4181
    %v4761 = vunpack.c.h.b16 %v4181
    %v4762 = vunpack.c.l.b16 %v4182
    %v4763 = vunpack.c.h.b16 %v4182
    %v4764 = vunpack.c.l.b16 %v4183
    %v4765 = vunpack.c.h.b16 %v4183
    %v4766 = vunpack.c.l.b16 %v4184
    %v4767 = vunpack.c.h.b16 %v4184
    %v4768 = vunpack.c.l.b16 %v4185
    %v4769 = vunpack.c.h.b16 %v4185
    %v4770 = vunpack.c.l.b16 %v4186
    %v4771 = vunpack.c.h.b16 %v4186
    %v4772 = vunpack.c.l.b16 %v4187
    %v4773 = vunpack.c.h.b16 %v4187
    %v4774 = vunpack.c.l.b16 %v4188
    %v4775 = vunpack.c.h.b16 %v4188
    %v4776 = vunpack.c.l.b16 %v4189
    %v4777 = vunpack.c.h.b16 %v4189
    %v4778 = vunpack.c.l.b16 %v4190
    %v4779 = vunpack.c.h.b16 %v4190
    %v4780 = vunpack.c.l.b16 %v4191
    %v4781 = vunpack.c.h.b16 %v4191
    %v4782 = vunpack.c.l.b16 %v4192
    %v4783 = vunpack.c.h.b16 %v4192
    %v4784 = vunpack.c.l.b16 %v4193
    %v4785 = vunpack.c.h.b16 %v4193
    %v4786 = vunpack.c.l.b16 %v4194
    %v4787 = vunpack.c.h.b16 %v4194
    %v4788 = vunpack.c.l.b16 %v4195
    %v4789 = vunpack.c.h.b16 %v4195
    %v4790 = vunpack.c.l.b16 %v4196
    %v4791 = vunpack.c.h.b16 %v4196
    %v4792 = vunpack.c.l.b16 %v4197
    %v4793 = vunpack.c.h.b16 %v4197
    %v4794 = vunpack.c.l.b16 %v4198
    %v4795 = vunpack.c.h.b16 %v4198
    %v4796 = vunpack.c.l.b16 %v4199
    %v4797 = vunpack.c.h.b16 %v4199
    %v4798 = vunpack.c.l.b16 %v4200
    %v4799 = vunpack.c.h.b16 %v4200
    %v4800 = vunpack.c.l.b16 %v4201
    %v4801 = vunpack.c.h.b16 %v4201
    %v4802 = vunpack.c.l.b16 %v4202
    %v4803 = vunpack.c.h.b16 %v4202
    %v4804 = vunpack.c.l.b16 %v4203
    %v4805 = vunpack.c.h.b16 %v4203
    %v4806 = vunpack.c.l.b16 %v4204
    %v4807 = vunpack.c.h.b16 %v4204
    %v4808 = vunpack.c.l.b16 %v4205
    %v4809 = vunpack.c.h.b16 %v4205
    %v4810 = vunpack.c.l.b16 %v4206
    %v4811 = vunpack.c.h.b16 %v4206
    %v4812 = vunpack.c.l.b16 %v4207
    %v4813 = vunpack.c.h.b16 %v4207
    %v4814 = vunpack.c.l.b16 %v4208
    %v4815 = vunpack.c.h.b16 %v4208
    %v4816 = vunpack.c.l.b16 %v4209
    %v4817 = vunpack.c.h.b16 %v4209
    %v4818 = vunpack.c.l.b16 %v4210
    %v4819 = vunpack.c.h.b16 %v4210
    %v4820 = vunpack.c.l.b16 %v4211
    %v4821 = vunpack.c.h.b16 %v4211
    %v4822 = vunpack.c.l.b16 %v4212
    %v4823 = vunpack.c.h.b16 %v4212
    %v4824 = vunpack.c.l.b16 %v4213
    %v4825 = vunpack.c.h.b16 %v4213
    %v4826 = vunpack.c.l.b16 %v4214
    %v4827 = vunpack.c.h.b16 %v4214
    %v4828 = vunpack.c.l.b16 %v4215
    %v4829 = vunpack.c.h.b16 %v4215
    %v4830 = vunpack.c.l.b16 %v4216
    %v4831 = vunpack.c.h.b16 %v4216
    %v4832 = vunpack.c.l.b16 %v4217
    %v4833 = vunpack.c.h.b16 %v4217
    %v4834 = vunpack.c.l.b16 %v4218
    %v4835 = vunpack.c.h.b16 %v4218
    %v4836 = vunpack.c.l.b16 %v4219
    %v4837 = vunpack.c.h.b16 %v4219
    %v4838 = vunpack.c.l.b16 %v4220
    %v4839 = vunpack.c.h.b16 %v4220
    %v4840 = vunpack.c.l.b16 %v4221
    %v4841 = vunpack.c.h.b16 %v4221
    %v4842 = vunpack.c.l.b16 %v4222
    %v4843 = vunpack.c.h.b16 %v4222
    %v4844 = vunpack.c.l.b16 %v4223
    %v4845 = vunpack.c.h.b16 %v4223
    %v4846 = vunpack.c.l.b16 %v4224
    %v4847 = vunpack.c.h.b16 %v4224
    %v4848 = vunpack.c.l.b16 %v4225
    %v4849 = vunpack.c.h.b16 %v4225
    %v4850 = vunpack.c.l.b16 %v4226
    %v4851 = vunpack.c.h.b16 %v4226
    %v4852 = vunpack.c.l.b16 %v4227
    %v4853 = vunpack.c.h.b16 %v4227
    %v4854 = vunpack.c.l.b16 %v4228
    %v4855 = vunpack.c.h.b16 %v4228
    %v4856 = vunpack.c.l.b16 %v4229
    %v4857 = vunpack.c.h.b16 %v4229
    %v4858 = vunpack.c.l.b16 %v4230
    %v4859 = vunpack.c.h.b16 %v4230
    %v4860 = vunpack.c.l.b16 %v4231
    %v4861 = vunpack.c.h.b16 %v4231
    %v4862 = vunpack.c.l.b16 %v4232
    %v4863 = vunpack.c.h.b16 %v4232
    %v4864 = vunpack.c.l.b16 %v4233
    %v4865 = vunpack.c.h.b16 %v4233
    %v4866 = vunpack.c.l.b16 %v4234
    %v4867 = vunpack.c.h.b16 %v4234
    %v4868 = vunpack.c.l.b16 %v4235
    %v4869 = vunpack.c.h.b16 %v4235
    %v4870 = vunpack.c.l.b16 %v4236
    %v4871 = vunpack.c.h.b16 %v4236
    %v4872 = vunpack.c.l.b16 %v4237
    %v4873 = vunpack.c.h.b16 %v4237
    %v4874 = vunpack.c.l.b16 %v4238
    %v4875 = vunpack.c.h.b16 %v4238
    %v4876 = vunpack.c.l.b16 %v4239
    %v4877 = vunpack.c.h.b16 %v4239
    %v4878 = vunpack.c.l.b16 %v4240
    %v4879 = vunpack.c.h.b16 %v4240
    %v4880 = vunpack.c.l.b16 %v4241
    %v4881 = vunpack.c.h.b16 %v4241
    %v4882 = vunpack.c.l.b16 %v4242
    %v4883 = vunpack.c.h.b16 %v4242
    %v4884 = vunpack.c.l.b16 %v4243
    %v4885 = vunpack.c.h.b16 %v4243
    %v4886 = vunpack.c.l.b16 %v4244
    %v4887 = vunpack.c.h.b16 %v4244
    %v4888 = vunpack.c.l.b16 %v4245
    %v4889 = vunpack.c.h.b16 %v4245
    %v4890 = vunpack.c.l.b16 %v4246
    %v4891 = vunpack.c.h.b16 %v4246
    %v4892 = vunpack.c.l.b16 %v4247
    %v4893 = vunpack.c.h.b16 %v4247
    %v4894 = vunpack.c.l.b16 %v4248
    %v4895 = vunpack.c.h.b16 %v4248
    %v4896 = vunpack.c.l.b16 %v4249
    %v4897 = vunpack.c.h.b16 %v4249
    %v4898 = vunpack.c.l.b16 %v4250
    %v4899 = vunpack.c.h.b16 %v4250
    %v4900 = vunpack.c.l.b16 %v4251
    %v4901 = vunpack.c.h.b16 %v4251
    %v4902 = vunpack.c.l.b16 %v4252
    %v4903 = vunpack.c.h.b16 %v4252
    %v4904 = vunpack.c.l.b16 %v4253
    %v4905 = vunpack.c.h.b16 %v4253
    %v4906 = vunpack.c.l.b16 %v4254
    %v4907 = vunpack.c.h.b16 %v4254
    %v4908 = vunpack.c.l.b16 %v4255
    %v4909 = vunpack.c.h.b16 %v4255
    %v4910 = vunpack.c.l.b16 %v4256
    %v4911 = vunpack.c.h.b16 %v4256
    %v4912 = vunpack.c.l.b16 %v4257
    %v4913 = vunpack.c.h.b16 %v4257
    %v4914 = vunpack.c.l.b16 %v4258
    %v4915 = vunpack.c.h.b16 %v4258
    %v4916 = vunpack.c.l.b16 %v4259
    %v4917 = vunpack.c.h.b16 %v4259
    %v4918 = vunpack.c.l.b16 %v4260
    %v4919 = vunpack.c.h.b16 %v4260
    %v4920 = vunpack.c.l.b16 %v4261
    %v4921 = vunpack.c.h.b16 %v4261
    %v4922 = vunpack.c.l.b16 %v4262
    %v4923 = vunpack.c.h.b16 %v4262
    %v4924 = vunpack.c.l.b16 %v4263
    %v4925 = vunpack.c.h.b16 %v4263
    %v4926 = vunpack.c.l.b16 %v4264
    %v4927 = vunpack.c.h.b16 %v4264
    %v4928 = vunpack.c.l.b16 %v4265
    %v4929 = vunpack.c.h.b16 %v4265
    %v4930 = vunpack.c.l.b16 %v4266
    %v4931 = vunpack.c.h.b16 %v4266
    %v4932 = vunpack.c.l.b16 %v4267
    %v4933 = vunpack.c.h.b16 %v4267
    %v4934 = vunpack.c.l.b16 %v4268
    %v4935 = vunpack.c.h.b16 %v4268
    %v4936 = vunpack.c.l.b16 %v4269
    %v4937 = vunpack.c.h.b16 %v4269
    %v4938 = vunpack.c.l.b16 %v4270
    %v4939 = vunpack.c.h.b16 %v4270
    %v4940 = vunpack.c.l.b16 %v4271
    %v4941 = vunpack.c.h.b16 %v4271
    %v4942 = vunpack.c.l.b16 %v4272
    %v4943 = vunpack.c.h.b16 %v4272
    %v4944 = vunpack.c.l.b16 %v4273
    %v4945 = vunpack.c.h.b16 %v4273
    %v4946 = vunpack.c.l.b16 %v4274
    %v4947 = vunpack.c.h.b16 %v4274
    %v4948 = vunpack.c.l.b16 %v4275
    %v4949 = vunpack.c.h.b16 %v4275
    %v4950 = vunpack.c.l.b16 %v4276
    %v4951 = vunpack.c.h.b16 %v4276
    %v4952 = vunpack.c.l.b16 %v4277
    %v4953 = vunpack.c.h.b16 %v4277
    %v4954 = vunpack.c.l.b16 %v4278
    %v4955 = vunpack.c.h.b16 %v4278
    %v4956 = vunpack.c.l.b16 %v4279
    %v4957 = vunpack.c.h.b16 %v4279
    %v4958 = vunpack.c.l.b16 %v4280
    %v4959 = vunpack.c.h.b16 %v4280
    %v4960 = vunpack.c.l.b16 %v4281
    %v4961 = vunpack.c.h.b16 %v4281
    %v4962 = vunpack.c.l.b16 %v4282
    %v4963 = vunpack.c.h.b16 %v4282
    %v4964 = vunpack.c.l.b16 %v4283
    %v4965 = vunpack.c.h.b16 %v4283
    %v4966 = vunpack.c.l.b16 %v4284
    %v4967 = vunpack.c.h.b16 %v4284
    %v4968 = vunpack.c.l.b16 %v4285
    %v4969 = vunpack.c.h.b16 %v4285
    %v4970 = vunpack.c.l.b16 %v4286
    %v4971 = vunpack.c.h.b16 %v4286
    %v4972 = vunpack.c.l.b16 %v4287
    %v4973 = vunpack.c.h.b16 %v4287
    %v4974 = vunpack.c.l.b16 %v4288
    %v4975 = vunpack.c.h.b16 %v4288
    %v4976 = vunpack.c.l.b16 %v4289
    %v4977 = vunpack.c.h.b16 %v4289
    %v4978 = vunpack.c.l.b16 %v4290
    %v4979 = vunpack.c.h.b16 %v4290
    %v4980 = vunpack.c.l.b16 %v4291
    %v4981 = vunpack.c.h.b16 %v4291
    %v4982 = vunpack.c.l.b16 %v4292
    %v4983 = vunpack.c.h.b16 %v4292
    %v4984 = vunpack.c.l.b16 %v4293
    %v4985 = vunpack.c.h.b16 %v4293
    %v4986 = vunpack.c.l.b16 %v4294
    %v4987 = vunpack.c.h.b16 %v4294
    %v4988 = vunpack.c.l.b16 %v4295
    %v4989 = vunpack.c.h.b16 %v4295
    %v4990 = vunpack.c.l.b16 %v4296
    %v4991 = vunpack.c.h.b16 %v4296
    %v4992 = vunpack.c.l.b16 %v4297
    %v4993 = vunpack.c.h.b16 %v4297
    %v4994 = vunpack.c.l.b16 %v4298
    %v4995 = vunpack.c.h.b16 %v4298
    %v4996 = vunpack.c.l.b16 %v4299
    %v4997 = vunpack.c.h.b16 %v4299
    %v4998 = vunpack.c.l.b16 %v4300
    %v4999 = vunpack.c.h.b16 %v4300
    %v5000 = vunpack.c.l.b16 %v4301
    %v5001 = vunpack.c.h.b16 %v4301
    %v5002 = vunpack.c.l.b16 %v4302
    %v5003 = vunpack.c.h.b16 %v4302
    %v5004 = vunpack.c.l.b16 %v4303
    %v5005 = vunpack.c.h.b16 %v4303
    %v5006 = vunpack.c.l.b16 %v4304
    %v5007 = vunpack.c.h.b16 %v4304
    %v5008 = vunpack.c.l.b16 %v4305
    %v5009 = vunpack.c.h.b16 %v4305
    %v5010 = vunpack.c.l.b16 %v4306
    %v5011 = vunpack.c.h.b16 %v4306
    %v5012 = vunpack.c.l.b16 %v4307
    %v5013 = vunpack.c.h.b16 %v4307
    %v5014 = vunpack.c.l.b16 %v4308
    %v5015 = vunpack.c.h.b16 %v4308
    %v5016 = vunpack.c.l.b16 %v4309
    %v5017 = vunpack.c.h.b16 %v4309
    %v5018 = vunpack.c.l.b16 %v4310
    %v5019 = vunpack.c.h.b16 %v4310
    %v5020 = vunpack.c.l.b16 %v4311
    %v5021 = vunpack.c.h.b16 %v4311
    %v5022 = vunpack.c.l.b16 %v4312
    %v5023 = vunpack.c.h.b16 %v4312
    %v5024 = vunpack.c.l.b16 %v4313
    %v5025 = vunpack.c.h.b16 %v4313
    %v5026 = vunpack.c.l.b16 %v4314
    %v5027 = vunpack.c.h.b16 %v4314
    %v5028 = vunpack.c.l.b16 %v4315
    %v5029 = vunpack.c.h.b16 %v4315
    %v5030 = vunpack.c.l.b16 %v4316
    %v5031 = vunpack.c.h.b16 %v4316
    %v5032 = vunpack.c.l.b16 %v4317
    %v5033 = vunpack.c.h.b16 %v4317
    %v5034 = vunpack.c.l.b16 %v4318
    %v5035 = vunpack.c.h.b16 %v4318
    %v5036 = vunpack.c.l.b16 %v4319
    %v5037 = vunpack.c.h.b16 %v4319
    %v5038 = vunpack.c.l.b16 %v4320
    %v5039 = vunpack.c.h.b16 %v4320
    %v5040 = vunpack.c.l.b16 %v4321
    %v5041 = vunpack.c.h.b16 %v4321
    %v5042 = vunpack.c.l.b16 %v4322
    %v5043 = vunpack.c.h.b16 %v4322
    %v5044 = vunpack.c.l.b16 %v4323
    %v5045 = vunpack.c.h.b16 %v4323
    %v5046 = vunpack.c.l.b16 %v4324
    %v5047 = vunpack.c.h.b16 %v4324
    %v5048 = vunpack.c.l.b16 %v4325
    %v5049 = vunpack.c.h.b16 %v4325
    %v5050 = vunpack.c.l.b16 %v4326
    %v5051 = vunpack.c.h.b16 %v4326
    %v5052 = vunpack.c.l.b16 %v4327
    %v5053 = vunpack.c.h.b16 %v4327
    %v5054 = vunpack.c.l.b16 %v4328
    %v5055 = vunpack.c.h.b16 %v4328
    %v5056 = vunpack.c.l.b16 %v4329
    %v5057 = vunpack.c.h.b16 %v4329
    %v5058 = vunpack.c.l.b16 %v4330
    %v5059 = vunpack.c.h.b16 %v4330
    %v5060 = vunpack.c.l.b16 %v4331
    %v5061 = vunpack.c.h.b16 %v4331
    %v5062 = vunpack.c.l.b16 %v4332
    %v5063 = vunpack.c.h.b16 %v4332
    %v5064 = vunpack.c.l.b16 %v4333
    %v5065 = vunpack.c.h.b16 %v4333
    %v5066 = vunpack.c.l.b16 %v4334
    %v5067 = vunpack.c.h.b16 %v4334
    %v5068 = vunpack.c.l.b16 %v4335
    %v5069 = vunpack.c.h.b16 %v4335
    %v5070 = vunpack.c.l.b16 %v4336
    %v5071 = vunpack.c.h.b16 %v4336
    %v5072 = vunpack.c.l.b16 %v4337
    %v5073 = vunpack.c.h.b16 %v4337
    %v5074 = vunpack.c.l.b16 %v4338
    %v5075 = vunpack.c.h.b16 %v4338
    %v5076 = vunpack.c.l.b16 %v4339
    %v5077 = vunpack.c.h.b16 %v4339
    %v5078 = vunpack.c.l.b16 %v4340
    %v5079 = vunpack.c.h.b16 %v4340
    %v5080 = vunpack.c.l.b16 %v4341
    %v5081 = vunpack.c.h.b16 %v4341
    %v5082 = vunpack.c.l.b16 %v4342
    %v5083 = vunpack.c.h.b16 %v4342
    %v5084 = vunpack.c.l.b16 %v4343
    %v5085 = vunpack.c.h.b16 %v4343
    %v5086 = vunpack.c.l.b16 %v4344
    %v5087 = vunpack.c.h.b16 %v4344
    %v5088 = vunpack.c.l.b16 %v4345
    %v5089 = vunpack.c.h.b16 %v4345
    %v5090 = vunpack.c.l.b16 %v4346
    %v5091 = vunpack.c.h.b16 %v4346
    %v5092 = vunpack.c.l.b16 %v4347
    %v5093 = vunpack.c.h.b16 %v4347
    %v5094 = vunpack.c.l.b16 %v4348
    %v5095 = vunpack.c.h.b16 %v4348
    %v5096 = vunpack.c.l.b16 %v4349
    %v5097 = vunpack.c.h.b16 %v4349
    %v5098 = vunpack.c.l.b16 %v4350
    %v5099 = vunpack.c.h.b16 %v4350
    %v5100 = vunpack.c.l.b16 %v4351
    %v5101 = vunpack.c.h.b16 %v4351
    %v5102 = vunpack.c.l.b16 %v4352
    %v5103 = vunpack.c.h.b16 %v4352
    %v5104 = vunpack.c.l.b16 %v4353
    %v5105 = vunpack.c.h.b16 %v4353
    %v5106 = vunpack.c.l.b16 %v4354
    %v5107 = vunpack.c.h.b16 %v4354
    %v5108 = vunpack.c.l.b16 %v4355
    %v5109 = vunpack.c.h.b16 %v4355
    %v5110 = vunpack.c.l.b16 %v4356
    %v5111 = vunpack.c.h.b16 %v4356
    %v5112 = vunpack.c.l.b16 %v4357
    %v5113 = vunpack.c.h.b16 %v4357
    %v5114 = vunpack.c.l.b16 %v4358
    %v5115 = vunpack.c.h.b16 %v4358
    %v5116 = vunpack.c.l.b16 %v4359
    %v5117 = vunpack.c.h.b16 %v4359
    %v5118 = vunpack.c.l.b16 %v4360
    %v5119 = vunpack.c.h.b16 %v4360
    %v5120 = vunpack.c.l.b16 %v4361
    %v5121 = vunpack.c.h.b16 %v4361
    %v5122 = vunpack.c.l.b16 %v4362
    %v5123 = vunpack.c.h.b16 %v4362
    %v5124 = vunpack.c.l.b16 %v4363
    %v5125 = vunpack.c.h.b16 %v4363
    %v5126 = vunpack.c.l.b16 %v4364
    %v5127 = vunpack.c.h.b16 %v4364
    %v5128 = vunpack.c.l.b16 %v4365
    %v5129 = vunpack.c.h.b16 %v4365
    %v5130 = vunpack.c.l.b16 %v4366
    %v5131 = vunpack.c.h.b16 %v4366
    %v5132 = vunpack.c.l.b16 %v4367
    %v5133 = vunpack.c.h.b16 %v4367
    %v5134 = vunpack.c.l.b16 %v4368
    %v5135 = vunpack.c.h.b16 %v4368
    %v5136 = vunpack.c.l.b16 %v4369
    %v5137 = vunpack.c.h.b16 %v4369
    %v5138 = vpack.c.b16 %v4634, %v4626
    %v5139 = vpack.c.b16 %v4635, %v4627
    %v5140 = vpack.c.b16 %v4636, %v4628
    %v5141 = vpack.c.b16 %v4637, %v4629
    %v5142 = vpack.c.b16 %v4638, %v4630
    %v5143 = vpack.c.b16 %v4639, %v4631
    %v5144 = vpack.c.b16 %v4640, %v4632
    %v5145 = vpack.c.b16 %v4641, %v4633
    %v5146 = vpack.c.b16 %v4650, %v4642
    %v5147 = vpack.c.b16 %v4651, %v4643
    %v5148 = vpack.c.b16 %v4652, %v4644
    %v5149 = vpack.c.b16 %v4653, %v4645
    %v5150 = vpack.c.b16 %v4654, %v4646
    %v5151 = vpack.c.b16 %v4655, %v4647
    %v5152 = vpack.c.b16 %v4656, %v4648
    %v5153 = vpack.c.b16 %v4657, %v4649
    %v5154 = vpack.c.b16 %v4666, %v4658
    %v5155 = vpack.c.b16 %v4667, %v4659
    %v5156 = vpack.c.b16 %v4668, %v4660
    %v5157 = vpack.c.b16 %v4669, %v4661
    %v5158 = vpack.c.b16 %v4670, %v4662
    %v5159 = vpack.c.b16 %v4671, %v4663
    %v5160 = vpack.c.b16 %v4672, %v4664
    %v5161 = vpack.c.b16 %v4673, %v4665
    %v5162 = vpack.c.b16 %v4682, %v4674
    %v5163 = vpack.c.b16 %v4683, %v4675
    %v5164 = vpack.c.b16 %v4684, %v4676
    %v5165 = vpack.c.b16 %v4685, %v4677
    %v5166 = vpack.c.b16 %v4686, %v4678
    %v5167 = vpack.c.b16 %v4687, %v4679
    %v5168 = vpack.c.b16 %v4688, %v4680
    %v5169 = vpack.c.b16 %v4689, %v4681
    %v5170 = vpack.c.b16 %v4698, %v4690
    %v5171 = vpack.c.b16 %v4699, %v4691
    %v5172 = vpack.c.b16 %v4700, %v4692
    %v5173 = vpack.c.b16 %v4701, %v4693
    %v5174 = vpack.c.b16 %v4702, %v4694
    %v5175 = vpack.c.b16 %v4703, %v4695
    %v5176 = vpack.c.b16 %v4704, %v4696
    %v5177 = vpack.c.b16 %v4705, %v4697
    %v5178 = vpack.c.b16 %v4714, %v4706
    %v5179 = vpack.c.b16 %v4715, %v4707
    %v5180 = vpack.c.b16 %v4716, %v4708
    %v5181 = vpack.c.b16 %v4717, %v4709
    %v5182 = vpack.c.b16 %v4718, %v4710
    %v5183 = vpack.c.b16 %v4719, %v4711
    %v5184 = vpack.c.b16 %v4720, %v4712
    %v5185 = vpack.c.b16 %v4721, %v4713
    %v5186 = vpack.c.b16 %v4730, %v4722
    %v5187 = vpack.c.b16 %v4731, %v4723
    %v5188 = vpack.c.b16 %v4732, %v4724
    %v5189 = vpack.c.b16 %v4733, %v4725
    %v5190 = vpack.c.b16 %v4734, %v4726
    %v5191 = vpack.c.b16 %v4735, %v4727
    %v5192 = vpack.c.b16 %v4736, %v4728
    %v5193 = vpack.c.b16 %v4737, %v4729
    %v5194 = vpack.c.b16 %v4746, %v4738
    %v5195 = vpack.c.b16 %v4747, %v4739
    %v5196 = vpack.c.b16 %v4748, %v4740
    %v5197 = vpack.c.b16 %v4749, %v4741
    %v5198 = vpack.c.b16 %v4750, %v4742
    %v5199 = vpack.c.b16 %v4751, %v4743
    %v5200 = vpack.c.b16 %v4752, %v4744
    %v5201 = vpack.c.b16 %v4753, %v4745
    %v5202 = vpack.c.b16 %v4762, %v4754
    %v5203 = vpack.c.b16 %v4763, %v4755
    %v5204 = vpack.c.b16 %v4764, %v4756
    %v5205 = vpack.c.b16 %v4765, %v4757
    %v5206 = vpack.c.b16 %v4766, %v4758
    %v5207 = vpack.c.b16 %v4767, %v4759
    %v5208 = vpack.c.b16 %v4768, %v4760
    %v5209 = vpack.c.b16 %v4769, %v4761
    %v5210 = vpack.c.b16 %v4778, %v4770
    %v5211 = vpack.c.b16 %v4779, %v4771
    %v5212 = vpack.c.b16 %v4780, %v4772
    %v5213 = vpack.c.b16 %v4781, %v4773
    %v5214 = vpack.c.b16 %v4782, %v4774
    %v5215 = vpack.c.b16 %v4783, %v4775
    %v5216 = vpack.c.b16 %v4784, %v4776
    %v5217 = vpack.c.b16 %v4785, %v4777
    %v5218 = vpack.c.b16 %v4794, %v4786
    %v5219 = vpack.c.b16 %v4795, %v4787
    %v5220 = vpack.c.b16 %v4796, %v4788
    %v5221 = vpack.c.b16 %v4797, %v4789
    %v5222 = vpack.c.b16 %v4798, %v4790
    %v5223 = vpack.c.b16 %v4799, %v4791
    %v5224 = vpack.c.b16 %v4800, %v4792
    %v5225 = vpack.c.b16 %v4801, %v4793
    %v5226 = vpack.c.b16 %v4810, %v4802
    %v5227 = vpack.c.b16 %v4811, %v4803
    %v5228 = vpack.c.b16 %v4812, %v4804
    %v5229 = vpack.c.b16 %v4813, %v4805
    %v5230 = vpack.c.b16 %v4814, %v4806
    %v5231 = vpack.c.b16 %v4815, %v4807
    %v5232 = vpack.c.b16 %v4816, %v4808
    %v5233 = vpack.c.b16 %v4817, %v4809
    %v5234 = vpack.c.b16 %v4826, %v4818
    %v5235 = vpack.c.b16 %v4827, %v4819
    %v5236 = vpack.c.b16 %v4828, %v4820
    %v5237 = vpack.c.b16 %v4829, %v4821
    %v5238 = vpack.c.b16 %v4830, %v4822
    %v5239 = vpack.c.b16 %v4831, %v4823
    %v5240 = vpack.c.b16 %v4832, %v4824
    %v5241 = vpack.c.b16 %v4833, %v4825
    %v5242 = vpack.c.b16 %v4842, %v4834
    %v5243 = vpack.c.b16 %v4843, %v4835
    %v5244 = vpack.c.b16 %v4844, %v4836
    %v5245 = vpack.c.b16 %v4845, %v4837
    %v5246 = vpack.c.b16 %v4846, %v4838
    %v5247 = vpack.c.b16 %v4847, %v4839
    %v5248 = vpack.c.b16 %v4848, %v4840
    %v5249 = vpack.c.b16 %v4849, %v4841
    %v5250 = vpack.c.b16 %v4858, %v4850
    %v5251 = vpack.c.b16 %v4859, %v4851
    %v5252 = vpack.c.b16 %v4860, %v4852
    %v5253 = vpack.c.b16 %v4861, %v4853
    %v5254 = vpack.c.b16 %v4862, %v4854
    %v5255 = vpack.c.b16 %v4863, %v4855
    %v5256 = vpack.c.b16 %v4864, %v4856
    %v5257 = vpack.c.b16 %v4865, %v4857
    %v5258 = vpack.c.b16 %v4874, %v4866
    %v5259 = vpack.c.b16 %v4875, %v4867
    %v5260 = vpack.c.b16 %v4876, %v4868
    %v5261 = vpack.c.b16 %v4877, %v4869
    %v5262 = vpack.c.b16 %v4878, %v4870
    %v5263 = vpack.c.b16 %v4879, %v4871
    %v5264 = vpack.c.b16 %v4880, %v4872
    %v5265 = vpack.c.b16 %v4881, %v4873
    %v5266 = vpack.c.b16 %v4890, %v4882
    %v5267 = vpack.c.b16 %v4891, %v4883
    %v5268 = vpack.c.b16 %v4892, %v4884
    %v5269 = vpack.c.b16 %v4893, %v4885
    %v5270 = vpack.c.b16 %v4894, %v4886
    %v5271 = vpack.c.b16 %v4895, %v4887
    %v5272 = vpack.c.b16 %v4896, %v4888
    %v5273 = vpack.c.b16 %v4897, %v4889
    %v5274 = vpack.c.b16 %v4906, %v4898
    %v5275 = vpack.c.b16 %v4907, %v4899
    %v5276 = vpack.c.b16 %v4908, %v4900
    %v5277 = vpack.c.b16 %v4909, %v4901
    %v5278 = vpack.c.b16 %v4910, %v4902
    %v5279 = vpack.c.b16 %v4911, %v4903
    %v5280 = vpack.c.b16 %v4912, %v4904
    %v5281 = vpack.c.b16 %v4913, %v4905
    %v5282 = vpack.c.b16 %v4922, %v4914
    %v5283 = vpack.c.b16 %v4923, %v4915
    %v5284 = vpack.c.b16 %v4924, %v4916
    %v5285 = vpack.c.b16 %v4925, %v4917
    %v5286 = vpack.c.b16 %v4926, %v4918
    %v5287 = vpack.c.b16 %v4927, %v4919
    %v5288 = vpack.c.b16 %v4928, %v4920
    %v5289 = vpack.c.b16 %v4929, %v4921
    %v5290 = vpack.c.b16 %v4938, %v4930
    %v5291 = vpack.c.b16 %v4939, %v4931
    %v5292 = vpack.c.b16 %v4940, %v4932
    %v5293 = vpack.c.b16 %v4941, %v4933
    %v5294 = vpack.c.b16 %v4942, %v4934
    %v5295 = vpack.c.b16 %v4943, %v4935
    %v5296 = vpack.c.b16 %v4944, %v4936
    %v5297 = vpack.c.b16 %v4945, %v4937
    %v5298 = vpack.c.b16 %v4954, %v4946
    %v5299 = vpack.c.b16 %v4955, %v4947
    %v5300 = vpack.c.b16 %v4956, %v4948
    %v5301 = vpack.c.b16 %v4957, %v4949
    %v5302 = vpack.c.b16 %v4958, %v4950
    %v5303 = vpack.c.b16 %v4959, %v4951
    %v5304 = vpack.c.b16 %v4960, %v4952
    %v5305 = vpack.c.b16 %v4961, %v4953
    %v5306 = vpack.c.b16 %v4970, %v4962
    %v5307 = vpack.c.b16 %v4971, %v4963
    %v5308 = vpack.c.b16 %v4972, %v4964
    %v5309 = vpack.c.b16 %v4973, %v4965
    %v5310 = vpack.c.b16 %v4974, %v4966
    %v5311 = vpack.c.b16 %v4975, %v4967
    %v5312 = vpack.c.b16 %v4976, %v4968
    %v5313 = vpack.c.b16 %v4977, %v4969
    %v5314 = vpack.c.b16 %v4986, %v4978
    %v5315 = vpack.c.b16 %v4987, %v4979
    %v5316 = vpack.c.b16 %v4988, %v4980
    %v5317 = vpack.c.b16 %v4989, %v4981
    %v5318 = vpack.c.b16 %v4990, %v4982
    %v5319 = vpack.c.b16 %v4991, %v4983
    %v5320 = vpack.c.b16 %v4992, %v4984
    %v5321 = vpack.c.b16 %v4993, %v4985
    %v5322 = vpack.c.b16 %v5002, %v4994
    %v5323 = vpack.c.b16 %v5003, %v4995
    %v5324 = vpack.c.b16 %v5004, %v4996
    %v5325 = vpack.c.b16 %v5005, %v4997
    %v5326 = vpack.c.b16 %v5006, %v4998
    %v5327 = vpack.c.b16 %v5007, %v4999
    %v5328 = vpack.c.b16 %v5008, %v5000
    %v5329 = vpack.c.b16 %v5009, %v5001
    %v5330 = vpack.c.b16 %v5018, %v5010
    %v5331 = vpack.c.b16 %v5019, %v5011
    %v5332 = vpack.c.b16 %v5020, %v5012
    %v5333 = vpack.c.b16 %v5021, %v5013
    %v5334 = vpack.c.b16 %v5022, %v5014
    %v5335 = vpack.c.b16 %v5023, %v5015
    %v5336 = vpack.c.b16 %v5024, %v5016
    %v5337 = vpack.c.b16 %v5025, %v5017
    %v5338 = vpack.c.b16 %v5034, %v5026
    %v5339 = vpack.c.b16 %v5035, %v5027
    %v5340 = vpack.c.b16 %v5036, %v5028
    %v5341 = vpack.c.b16 %v5037, %v5029
    %v5342 = vpack.c.b16 %v5038, %v5030
    %v5343 = vpack.c.b16 %v5039, %v5031
    %v5344 = vpack.c.b16 %v5040, %v5032
    %v5345 = vpack.c.b16 %v5041, %v5033
    %v5346 = vpack.c.b16 %v5050, %v5042
    %v5347 = vpack.c.b16 %v5051, %v5043
    %v5348 = vpack.c.b16 %v5052, %v5044
    %v5349 = vpack.c.b16 %v5053, %v5045
    %v5350 = vpack.c.b16 %v5054, %v5046
    %v5351 = vpack.c.b16 %v5055, %v5047
    %v5352 = vpack.c.b16 %v5056, %v5048
    %v5353 = vpack.c.b16 %v5057, %v5049
    %v5354 = vpack.c.b16 %v5066, %v5058
    %v5355 = vpack.c.b16 %v5067, %v5059
    %v5356 = vpack.c.b16 %v5068, %v5060
    %v5357 = vpack.c.b16 %v5069, %v5061
    %v5358 = vpack.c.b16 %v5070, %v5062
    %v5359 = vpack.c.b16 %v5071, %v5063
    %v5360 = vpack.c.b16 %v5072, %v5064
    %v5361 = vpack.c.b16 %v5073, %v5065
    %v5362 = vpack.c.b16 %v5082, %v5074
    %v5363 = vpack.c.b16 %v5083, %v5075
    %v5364 = vpack.c.b16 %v5084, %v5076
    %v5365 = vpack.c.b16 %v5085, %v5077
    %v5366 = vpack.c.b16 %v5086, %v5078
    %v5367 = vpack.c.b16 %v5087, %v5079
    %v5368 = vpack.c.b16 %v5088, %v5080
    %v5369 = vpack.c.b16 %v5089, %v5081
    %v5370 = vpack.c.b16 %v5098, %v5090
    %v5371 = vpack.c.b16 %v5099, %v5091
    %v5372 = vpack.c.b16 %v5100, %v5092
    %v5373 = vpack.c.b16 %v5101, %v5093
    %v5374 = vpack.c.b16 %v5102, %v5094
    %v5375 = vpack.c.b16 %v5103, %v5095
    %v5376 = vpack.c.b16 %v5104, %v5096
    %v5377 = vpack.c.b16 %v5105, %v5097
    %v5378 = vpack.c.b16 %v5114, %v5106
    %v5379 = vpack.c.b16 %v5115, %v5107
    %v5380 = vpack.c.b16 %v5116, %v5108
    %v5381 = vpack.c.b16 %v5117, %v5109
    %v5382 = vpack.c.b16 %v5118, %v5110
    %v5383 = vpack.c.b16 %v5119, %v5111
    %v5384 = vpack.c.b16 %v5120, %v5112
    %v5385 = vpack.c.b16 %v5121, %v5113
    %v5386 = vpack.c.b16 %v5130, %v5122
    %v5387 = vpack.c.b16 %v5131, %v5123
    %v5388 = vpack.c.b16 %v5132, %v5124
    %v5389 = vpack.c.b16 %v5133, %v5125
    %v5390 = vpack.c.b16 %v5134, %v5126
    %v5391 = vpack.c.b16 %v5135, %v5127
    %v5392 = vpack.c.b16 %v5136, %v5128
    %v5393 = vpack.c.b16 %v5137, %v5129
    %5650 = vmatprep.subr.bf16.mxu0 %v5195
    %5651 = vmatpush1.bf16.msra.mxu0 %v5194
    %5652 = vmatprep.subr.bf16.mxu0 %v5187
    %5653 = vmatpush1.bf16.msra.mxu0 %v5186
    %5654 = vmatprep.subr.bf16.mxu0 %v5179
    %5655 = vmatpush1.bf16.msra.mxu0 %v5178
    %5656 = vmatprep.subr.bf16.mxu0 %v5171
    %5657 = vmatpush1.bf16.msra.mxu0 %v5170
    %5658 = vmatprep.subr.bf16.mxu0 %v5163
    %5659 = vmatpush1.bf16.msra.mxu0 %v5162
    %5660 = vmatprep.subr.bf16.mxu0 %v5155
    %5661 = vmatpush1.bf16.msra.mxu0 %v5154
    %5662 = vmatprep.subr.bf16.mxu0 %v5147
    %5663 = vmatpush1.bf16.msra.mxu0 %v5146
    %5664 = vmatprep.subr.bf16.mxu0 %v5139
    %5665 = vmatpush1.bf16.msra.mxu0 %v5138
    %5666 = vmatprep.subr.bf16.mxu0 %v5259
    %5667 = vmatpush2.bf16.msra.mxu0 %v5258
    %5668 = vmatprep.subr.bf16.mxu0 %v5251
    %5669 = vmatpush2.bf16.msra.mxu0 %v5250
    %5670 = vmatprep.subr.bf16.mxu0 %v5243
    %5671 = vmatpush2.bf16.msra.mxu0 %v5242
    %5672 = vmatprep.subr.bf16.mxu0 %v5235
    %5673 = vmatpush2.bf16.msra.mxu0 %v5234
    %5674 = vmatprep.subr.bf16.mxu0 %v5227
    %5675 = vmatpush2.bf16.msra.mxu0 %v5226
    %5676 = vmatprep.subr.bf16.mxu0 %v5219
    %5677 = vmatpush2.bf16.msra.mxu0 %v5218
    %5678 = vmatprep.subr.bf16.mxu0 %v5211
    %5679 = vmatpush2.bf16.msra.mxu0 %v5210
    %5680 = vmatprep.subr.bf16.mxu0 %v5203
    %5681 = vmatpush2.bf16.msra.mxu0 %v5202
    %5682 = vmatprep.mubr.bf16.mxu0 %v4111
    %5683 = vmatmul.mubr.bf16.gmra.mxu0 %v4110
    %v5684 = vpop.f32.mrf.mxu0
    %v5685 = vadd.f32 0.0, %v5684
    %v5686 = vpop.f32.mrf.mxu0
    %v5687 = vadd.f32 0.0, %v5686
    %v5688 = vpop.f32.mrf.mxu0
    %v5689 = vpop.f32.mrf.mxu0
    %5690 = vdwg.mxu0
    %5691 = vmatprep.subr.bf16.mxu0 %v5323
    %5692 = vmatpush1.bf16.msra.mxu0 %v5322
    %5693 = vmatprep.subr.bf16.mxu0 %v5315
    %5694 = vmatpush1.bf16.msra.mxu0 %v5314
    %5695 = vmatprep.subr.bf16.mxu0 %v5307
    %5696 = vmatpush1.bf16.msra.mxu0 %v5306
    %5697 = vmatprep.subr.bf16.mxu0 %v5299
    %5698 = vmatpush1.bf16.msra.mxu0 %v5298
    %5699 = vmatprep.subr.bf16.mxu0 %v5291
    %5700 = vmatpush1.bf16.msra.mxu0 %v5290
    %5701 = vmatprep.subr.bf16.mxu0 %v5283
    %5702 = vmatpush1.bf16.msra.mxu0 %v5282
    %5703 = vmatprep.subr.bf16.mxu0 %v5275
    %5704 = vmatpush1.bf16.msra.mxu0 %v5274
    %5705 = vmatprep.subr.bf16.mxu0 %v5267
    %5706 = vmatpush1.bf16.msra.mxu0 %v5266
    %5707 = vmatprep.subr.bf16.mxu0 %v5387
    %5708 = vmatpush2.bf16.msra.mxu0 %v5386
    %5709 = vmatprep.subr.bf16.mxu0 %v5379
    %5710 = vmatpush2.bf16.msra.mxu0 %v5378
    %5711 = vmatprep.subr.bf16.mxu0 %v5371
    %5712 = vmatpush2.bf16.msra.mxu0 %v5370
    %5713 = vmatprep.subr.bf16.mxu0 %v5363
    %5714 = vmatpush2.bf16.msra.mxu0 %v5362
    %5715 = vmatprep.subr.bf16.mxu0 %v5355
    %5716 = vmatpush2.bf16.msra.mxu0 %v5354
    %5717 = vmatprep.subr.bf16.mxu0 %v5347
    %5718 = vmatpush2.bf16.msra.mxu0 %v5346
    %5719 = vmatprep.subr.bf16.mxu0 %v5339
    %5720 = vmatpush2.bf16.msra.mxu0 %v5338
    %5721 = vmatprep.subr.bf16.mxu0 %v5331
    %5722 = vmatpush2.bf16.msra.mxu0 %v5330
    %5723 = vmatprep.mubr.bf16.mxu0 %v4113
    %5724 = vmatmul.mubr.bf16.gmra.mxu0 %v4112
    %v5725 = vpop.f32.mrf.mxu0
    %v5726 = vadd.f32 %v5685, %v5725
    %v5727 = vpop.f32.mrf.mxu0
    %v5728 = vadd.f32 %v5687, %v5727
    %v5729 = vpop.f32.mrf.mxu0
    %v5730 = vpop.f32.mrf.mxu0
    %5731 = vdwg.mxu0
    %5732 = vmatprep.subr.bf16.mxu0 %v5197
    %5733 = vmatpush1.bf16.msra.mxu0 %v5196
    %5734 = vmatprep.subr.bf16.mxu0 %v5189
    %5735 = vmatpush1.bf16.msra.mxu0 %v5188
    %5736 = vmatprep.subr.bf16.mxu0 %v5181
    %5737 = vmatpush1.bf16.msra.mxu0 %v5180
    %5738 = vmatprep.subr.bf16.mxu0 %v5173
    %5739 = vmatpush1.bf16.msra.mxu0 %v5172
    %5740 = vmatprep.subr.bf16.mxu0 %v5165
    %5741 = vmatpush1.bf16.msra.mxu0 %v5164
    %5742 = vmatprep.subr.bf16.mxu0 %v5157
    %5743 = vmatpush1.bf16.msra.mxu0 %v5156
    %5744 = vmatprep.subr.bf16.mxu0 %v5149
    %5745 = vmatpush1.bf16.msra.mxu0 %v5148
    %5746 = vmatprep.subr.bf16.mxu0 %v5141
    %5747 = vmatpush1.bf16.msra.mxu0 %v5140
    %5748 = vmatprep.subr.bf16.mxu0 %v5261
    %5749 = vmatpush2.bf16.msra.mxu0 %v5260
    %5750 = vmatprep.subr.bf16.mxu0 %v5253
    %5751 = vmatpush2.bf16.msra.mxu0 %v5252
    %5752 = vmatprep.subr.bf16.mxu0 %v5245
    %5753 = vmatpush2.bf16.msra.mxu0 %v5244
    %5754 = vmatprep.subr.bf16.mxu0 %v5237
    %5755 = vmatpush2.bf16.msra.mxu0 %v5236
    %5756 = vmatprep.subr.bf16.mxu0 %v5229
    %5757 = vmatpush2.bf16.msra.mxu0 %v5228
    %5758 = vmatprep.subr.bf16.mxu0 %v5221
    %5759 = vmatpush2.bf16.msra.mxu0 %v5220
    %5760 = vmatprep.subr.bf16.mxu0 %v5213
    %5761 = vmatpush2.bf16.msra.mxu0 %v5212
    %5762 = vmatprep.subr.bf16.mxu0 %v5205
    %5763 = vmatpush2.bf16.msra.mxu0 %v5204
    %5764 = vmatprep.mubr.bf16.mxu0 %v4111
    %5765 = vmatmul.mubr.bf16.gmra.mxu0 %v4110
    %v5766 = vpop.f32.mrf.mxu0
    %v5767 = vadd.f32 0.0, %v5766
    %v5768 = vpop.f32.mrf.mxu0
    %v5769 = vadd.f32 0.0, %v5768
    %v5770 = vpop.f32.mrf.mxu0
    %v5771 = vpop.f32.mrf.mxu0
    %5772 = vdwg.mxu0
    %5773 = vmatprep.subr.bf16.mxu0 %v5325
    %5774 = vmatpush1.bf16.msra.mxu0 %v5324
    %5775 = vmatprep.subr.bf16.mxu0 %v5317
    %5776 = vmatpush1.bf16.msra.mxu0 %v5316
    %5777 = vmatprep.subr.bf16.mxu0 %v5309
    %5778 = vmatpush1.bf16.msra.mxu0 %v5308
    %5779 = vmatprep.subr.bf16.mxu0 %v5301
    %5780 = vmatpush1.bf16.msra.mxu0 %v5300
    %5781 = vmatprep.subr.bf16.mxu0 %v5293
    %5782 = vmatpush1.bf16.msra.mxu0 %v5292
    %5783 = vmatprep.subr.bf16.mxu0 %v5285
    %5784 = vmatpush1.bf16.msra.mxu0 %v5284
    %5785 = vmatprep.subr.bf16.mxu0 %v5277
    %5786 = vmatpush1.bf16.msra.mxu0 %v5276
    %5787 = vmatprep.subr.bf16.mxu0 %v5269
    %5788 = vmatpush1.bf16.msra.mxu0 %v5268
    %5789 = vmatprep.subr.bf16.mxu0 %v5389
    %5790 = vmatpush2.bf16.msra.mxu0 %v5388
    %5791 = vmatprep.subr.bf16.mxu0 %v5381
    %5792 = vmatpush2.bf16.msra.mxu0 %v5380
    %5793 = vmatprep.subr.bf16.mxu0 %v5373
    %5794 = vmatpush2.bf16.msra.mxu0 %v5372
    %5795 = vmatprep.subr.bf16.mxu0 %v5365
    %5796 = vmatpush2.bf16.msra.mxu0 %v5364
    %5797 = vmatprep.subr.bf16.mxu0 %v5357
    %5798 = vmatpush2.bf16.msra.mxu0 %v5356
    %5799 = vmatprep.subr.bf16.mxu0 %v5349
    %5800 = vmatpush2.bf16.msra.mxu0 %v5348
    %5801 = vmatprep.subr.bf16.mxu0 %v5341
    %5802 = vmatpush2.bf16.msra.mxu0 %v5340
    %5803 = vmatprep.subr.bf16.mxu0 %v5333
    %5804 = vmatpush2.bf16.msra.mxu0 %v5332
    %5805 = vmatprep.mubr.bf16.mxu0 %v4113
    %5806 = vmatmul.mubr.bf16.gmra.mxu0 %v4112
    %v5807 = vpop.f32.mrf.mxu0
    %v5808 = vadd.f32 %v5767, %v5807
    %v5809 = vpop.f32.mrf.mxu0
    %v5810 = vadd.f32 %v5769, %v5809
    %v5811 = vpop.f32.mrf.mxu0
    %v5812 = vpop.f32.mrf.mxu0
    %5813 = vdwg.mxu0
    %5814 = vmatprep.subr.bf16.mxu0 %v5199
    %5815 = vmatpush1.bf16.msra.mxu0 %v5198
    %5816 = vmatprep.subr.bf16.mxu0 %v5191
    %5817 = vmatpush1.bf16.msra.mxu0 %v5190
    %5818 = vmatprep.subr.bf16.mxu0 %v5183
    %5819 = vmatpush1.bf16.msra.mxu0 %v5182
    %5820 = vmatprep.subr.bf16.mxu0 %v5175
    %5821 = vmatpush1.bf16.msra.mxu0 %v5174
    %5822 = vmatprep.subr.bf16.mxu0 %v5167
    %5823 = vmatpush1.bf16.msra.mxu0 %v5166
    %5824 = vmatprep.subr.bf16.mxu0 %v5159
    %5825 = vmatpush1.bf16.msra.mxu0 %v5158
    %5826 = vmatprep.subr.bf16.mxu0 %v5151
    %5827 = vmatpush1.bf16.msra.mxu0 %v5150
    %5828 = vmatprep.subr.bf16.mxu0 %v5143
    %5829 = vmatpush1.bf16.msra.mxu0 %v5142
    %5830 = vmatprep.subr.bf16.mxu0 %v5263
    %5831 = vmatpush2.bf16.msra.mxu0 %v5262
    %5832 = vmatprep.subr.bf16.mxu0 %v5255
    %5833 = vmatpush2.bf16.msra.mxu0 %v5254
    %5834 = vmatprep.subr.bf16.mxu0 %v5247
    %5835 = vmatpush2.bf16.msra.mxu0 %v5246
    %5836 = vmatprep.subr.bf16.mxu0 %v5239
    %5837 = vmatpush2.bf16.msra.mxu0 %v5238
    %5838 = vmatprep.subr.bf16.mxu0 %v5231
    %5839 = vmatpush2.bf16.msra.mxu0 %v5230
    %5840 = vmatprep.subr.bf16.mxu0 %v5223
    %5841 = vmatpush2.bf16.msra.mxu0 %v5222
    %5842 = vmatprep.subr.bf16.mxu0 %v5215
    %5843 = vmatpush2.bf16.msra.mxu0 %v5214
    %5844 = vmatprep.subr.bf16.mxu0 %v5207
    %5845 = vmatpush2.bf16.msra.mxu0 %v5206
    %5846 = vmatprep.mubr.bf16.mxu0 %v4111
    %5847 = vmatmul.mubr.bf16.gmra.mxu0 %v4110
    %v5848 = vpop.f32.mrf.mxu0
    %v5849 = vadd.f32 0.0, %v5848
    %v5850 = vpop.f32.mrf.mxu0
    %v5851 = vadd.f32 0.0, %v5850
    %v5852 = vpop.f32.mrf.mxu0
    %v5853 = vpop.f32.mrf.mxu0
    %5854 = vdwg.mxu0
    %5855 = vmatprep.subr.bf16.mxu0 %v5327
    %5856 = vmatpush1.bf16.msra.mxu0 %v5326
    %5857 = vmatprep.subr.bf16.mxu0 %v5319
    %5858 = vmatpush1.bf16.msra.mxu0 %v5318
    %5859 = vmatprep.subr.bf16.mxu0 %v5311
    %5860 = vmatpush1.bf16.msra.mxu0 %v5310
    %5861 = vmatprep.subr.bf16.mxu0 %v5303
    %5862 = vmatpush1.bf16.msra.mxu0 %v5302
    %5863 = vmatprep.subr.bf16.mxu0 %v5295
    %5864 = vmatpush1.bf16.msra.mxu0 %v5294
    %5865 = vmatprep.subr.bf16.mxu0 %v5287
    %5866 = vmatpush1.bf16.msra.mxu0 %v5286
    %5867 = vmatprep.subr.bf16.mxu0 %v5279
    %5868 = vmatpush1.bf16.msra.mxu0 %v5278
    %5869 = vmatprep.subr.bf16.mxu0 %v5271
    %5870 = vmatpush1.bf16.msra.mxu0 %v5270
    %5871 = vmatprep.subr.bf16.mxu0 %v5391
    %5872 = vmatpush2.bf16.msra.mxu0 %v5390
    %5873 = vmatprep.subr.bf16.mxu0 %v5383
    %5874 = vmatpush2.bf16.msra.mxu0 %v5382
    %5875 = vmatprep.subr.bf16.mxu0 %v5375
    %5876 = vmatpush2.bf16.msra.mxu0 %v5374
    %5877 = vmatprep.subr.bf16.mxu0 %v5367
    %5878 = vmatpush2.bf16.msra.mxu0 %v5366
    %5879 = vmatprep.subr.bf16.mxu0 %v5359
    %5880 = vmatpush2.bf16.msra.mxu0 %v5358
    %5881 = vmatprep.subr.bf16.mxu0 %v5351
    %5882 = vmatpush2.bf16.msra.mxu0 %v5350
    %5883 = vmatprep.subr.bf16.mxu0 %v5343
    %5884 = vmatpush2.bf16.msra.mxu0 %v5342
    %5885 = vmatprep.subr.bf16.mxu0 %v5335
    %5886 = vmatpush2.bf16.msra.mxu0 %v5334
    %5887 = vmatprep.mubr.bf16.mxu0 %v4113
    %5888 = vmatmul.mubr.bf16.gmra.mxu0 %v4112
    %v5889 = vpop.f32.mrf.mxu0
    %v5890 = vadd.f32 %v5849, %v5889
    %v5891 = vpop.f32.mrf.mxu0
    %v5892 = vadd.f32 %v5851, %v5891
    %v5893 = vpop.f32.mrf.mxu0
    %v5894 = vpop.f32.mrf.mxu0
    %5895 = vdwg.mxu0
    %5896 = vmatprep.subr.bf16.mxu0 %v5201
    %5897 = vmatpush1.bf16.msra.mxu0 %v5200
    %5898 = vmatprep.subr.bf16.mxu0 %v5193
    %5899 = vmatpush1.bf16.msra.mxu0 %v5192
    %5900 = vmatprep.subr.bf16.mxu0 %v5185
    %5901 = vmatpush1.bf16.msra.mxu0 %v5184
    %5902 = vmatprep.subr.bf16.mxu0 %v5177
    %5903 = vmatpush1.bf16.msra.mxu0 %v5176
    %5904 = vmatprep.subr.bf16.mxu0 %v5169
    %5905 = vmatpush1.bf16.msra.mxu0 %v5168
    %5906 = vmatprep.subr.bf16.mxu0 %v5161
    %5907 = vmatpush1.bf16.msra.mxu0 %v5160
    %5908 = vmatprep.subr.bf16.mxu0 %v5153
    %5909 = vmatpush1.bf16.msra.mxu0 %v5152
    %5910 = vmatprep.subr.bf16.mxu0 %v5145
    %5911 = vmatpush1.bf16.msra.mxu0 %v5144
    %5912 = vmatprep.subr.bf16.mxu0 %v5265
    %5913 = vmatpush2.bf16.msra.mxu0 %v5264
    %5914 = vmatprep.subr.bf16.mxu0 %v5257
    %5915 = vmatpush2.bf16.msra.mxu0 %v5256
    %5916 = vmatprep.subr.bf16.mxu0 %v5249
    %5917 = vmatpush2.bf16.msra.mxu0 %v5248
    %5918 = vmatprep.subr.bf16.mxu0 %v5241
    %5919 = vmatpush2.bf16.msra.mxu0 %v5240
    %5920 = vmatprep.subr.bf16.mxu0 %v5233
    %5921 = vmatpush2.bf16.msra.mxu0 %v5232
    %5922 = vmatprep.subr.bf16.mxu0 %v5225
    %5923 = vmatpush2.bf16.msra.mxu0 %v5224
    %5924 = vmatprep.subr.bf16.mxu0 %v5217
    %5925 = vmatpush2.bf16.msra.mxu0 %v5216
    %5926 = vmatprep.subr.bf16.mxu0 %v5209
    %5927 = vmatpush2.bf16.msra.mxu0 %v5208
    %5928 = vmatprep.mubr.bf16.mxu0 %v4111
    %5929 = vmatmul.mubr.bf16.gmra.mxu0 %v4110
    %v5930 = vpop.f32.mrf.mxu0
    %v5931 = vadd.f32 0.0, %v5930
    %v5932 = vpop.f32.mrf.mxu0
    %v5933 = vadd.f32 0.0, %v5932
    %v5934 = vpop.f32.mrf.mxu0
    %v5935 = vpop.f32.mrf.mxu0
    %5936 = vdwg.mxu0
    %5937 = vmatprep.subr.bf16.mxu0 %v5329
    %5938 = vmatpush1.bf16.msra.mxu0 %v5328
    %5939 = vmatprep.subr.bf16.mxu0 %v5321
    %5940 = vmatpush1.bf16.msra.mxu0 %v5320
    %5941 = vmatprep.subr.bf16.mxu0 %v5313
    %5942 = vmatpush1.bf16.msra.mxu0 %v5312
    %5943 = vmatprep.subr.bf16.mxu0 %v5305
    %5944 = vmatpush1.bf16.msra.mxu0 %v5304
    %5945 = vmatprep.subr.bf16.mxu0 %v5297
    %5946 = vmatpush1.bf16.msra.mxu0 %v5296
    %5947 = vmatprep.subr.bf16.mxu0 %v5289
    %5948 = vmatpush1.bf16.msra.mxu0 %v5288
    %5949 = vmatprep.subr.bf16.mxu0 %v5281
    %5950 = vmatpush1.bf16.msra.mxu0 %v5280
    %5951 = vmatprep.subr.bf16.mxu0 %v5273
    %5952 = vmatpush1.bf16.msra.mxu0 %v5272
    %5953 = vmatprep.subr.bf16.mxu0 %v5393
    %5954 = vmatpush2.bf16.msra.mxu0 %v5392
    %5955 = vmatprep.subr.bf16.mxu0 %v5385
    %5956 = vmatpush2.bf16.msra.mxu0 %v5384
    %5957 = vmatprep.subr.bf16.mxu0 %v5377
    %5958 = vmatpush2.bf16.msra.mxu0 %v5376
    %5959 = vmatprep.subr.bf16.mxu0 %v5369
    %5960 = vmatpush2.bf16.msra.mxu0 %v5368
    %5961 = vmatprep.subr.bf16.mxu0 %v5361
    %5962 = vmatpush2.bf16.msra.mxu0 %v5360
    %5963 = vmatprep.subr.bf16.mxu0 %v5353
    %5964 = vmatpush2.bf16.msra.mxu0 %v5352
    %5965 = vmatprep.subr.bf16.mxu0 %v5345
    %5966 = vmatpush2.bf16.msra.mxu0 %v5344
    %5967 = vmatprep.subr.bf16.mxu0 %v5337
    %5968 = vmatpush2.bf16.msra.mxu0 %v5336
    %5969 = vmatprep.mubr.bf16.mxu0 %v4113
    %5970 = vmatmul.mubr.bf16.gmra.mxu0 %v4112
    %v5971 = vpop.f32.mrf.mxu0
    %v5972 = vadd.f32 %v5931, %v5971
    %v5973 = vpop.f32.mrf.mxu0
    %v5974 = vadd.f32 %v5933, %v5973
    %v5975 = vpop.f32.mrf.mxu0
    %v5976 = vpop.f32.mrf.mxu0
    %5977 = vdwg.mxu0
    %v6234 = vunpack.c.l.b16 %v3850
    %v6235 = vunpack.c.h.b16 %v3850
    %v6236 = vunpack.c.l.b16 %v3851
    %v6237 = vunpack.c.h.b16 %v3851
    %v6238 = vunpack.c.l.b16 %v3852
    %v6239 = vunpack.c.h.b16 %v3852
    %v6240 = vunpack.c.l.b16 %v3853
    %v6241 = vunpack.c.h.b16 %v3853
    %v6242 = vunpack.c.l.b16 %v3854
    %v6243 = vunpack.c.h.b16 %v3854
    %v6244 = vunpack.c.l.b16 %v3855
    %v6245 = vunpack.c.h.b16 %v3855
    %v6246 = vunpack.c.l.b16 %v3856
    %v6247 = vunpack.c.h.b16 %v3856
    %v6248 = vunpack.c.l.b16 %v3857
    %v6249 = vunpack.c.h.b16 %v3857
    %v6250 = vunpack.c.l.b16 %v3858
    %v6251 = vunpack.c.h.b16 %v3858
    %v6252 = vunpack.c.l.b16 %v3859
    %v6253 = vunpack.c.h.b16 %v3859
    %v6254 = vunpack.c.l.b16 %v3860
    %v6255 = vunpack.c.h.b16 %v3860
    %v6256 = vunpack.c.l.b16 %v3861
    %v6257 = vunpack.c.h.b16 %v3861
    %v6258 = vunpack.c.l.b16 %v3862
    %v6259 = vunpack.c.h.b16 %v3862
    %v6260 = vunpack.c.l.b16 %v3863
    %v6261 = vunpack.c.h.b16 %v3863
    %v6262 = vunpack.c.l.b16 %v3864
    %v6263 = vunpack.c.h.b16 %v3864
    %v6264 = vunpack.c.l.b16 %v3865
    %v6265 = vunpack.c.h.b16 %v3865
    %v6266 = vunpack.c.l.b16 %v3866
    %v6267 = vunpack.c.h.b16 %v3866
    %v6268 = vunpack.c.l.b16 %v3867
    %v6269 = vunpack.c.h.b16 %v3867
    %v6270 = vunpack.c.l.b16 %v3868
    %v6271 = vunpack.c.h.b16 %v3868
    %v6272 = vunpack.c.l.b16 %v3869
    %v6273 = vunpack.c.h.b16 %v3869
    %v6274 = vunpack.c.l.b16 %v3870
    %v6275 = vunpack.c.h.b16 %v3870
    %v6276 = vunpack.c.l.b16 %v3871
    %v6277 = vunpack.c.h.b16 %v3871
    %v6278 = vunpack.c.l.b16 %v3872
    %v6279 = vunpack.c.h.b16 %v3872
    %v6280 = vunpack.c.l.b16 %v3873
    %v6281 = vunpack.c.h.b16 %v3873
    %v6282 = vunpack.c.l.b16 %v3874
    %v6283 = vunpack.c.h.b16 %v3874
    %v6284 = vunpack.c.l.b16 %v3875
    %v6285 = vunpack.c.h.b16 %v3875
    %v6286 = vunpack.c.l.b16 %v3876
    %v6287 = vunpack.c.h.b16 %v3876
    %v6288 = vunpack.c.l.b16 %v3877
    %v6289 = vunpack.c.h.b16 %v3877
    %v6290 = vunpack.c.l.b16 %v3878
    %v6291 = vunpack.c.h.b16 %v3878
    %v6292 = vunpack.c.l.b16 %v3879
    %v6293 = vunpack.c.h.b16 %v3879
    %v6294 = vunpack.c.l.b16 %v3880
    %v6295 = vunpack.c.h.b16 %v3880
    %v6296 = vunpack.c.l.b16 %v3881
    %v6297 = vunpack.c.h.b16 %v3881
    %v6298 = vunpack.c.l.b16 %v3882
    %v6299 = vunpack.c.h.b16 %v3882
    %v6300 = vunpack.c.l.b16 %v3883
    %v6301 = vunpack.c.h.b16 %v3883
    %v6302 = vunpack.c.l.b16 %v3884
    %v6303 = vunpack.c.h.b16 %v3884
    %v6304 = vunpack.c.l.b16 %v3885
    %v6305 = vunpack.c.h.b16 %v3885
    %v6306 = vunpack.c.l.b16 %v3886
    %v6307 = vunpack.c.h.b16 %v3886
    %v6308 = vunpack.c.l.b16 %v3887
    %v6309 = vunpack.c.h.b16 %v3887
    %v6310 = vunpack.c.l.b16 %v3888
    %v6311 = vunpack.c.h.b16 %v3888
    %v6312 = vunpack.c.l.b16 %v3889
    %v6313 = vunpack.c.h.b16 %v3889
    %v6314 = vunpack.c.l.b16 %v3890
    %v6315 = vunpack.c.h.b16 %v3890
    %v6316 = vunpack.c.l.b16 %v3891
    %v6317 = vunpack.c.h.b16 %v3891
    %v6318 = vunpack.c.l.b16 %v3892
    %v6319 = vunpack.c.h.b16 %v3892
    %v6320 = vunpack.c.l.b16 %v3893
    %v6321 = vunpack.c.h.b16 %v3893
    %v6322 = vunpack.c.l.b16 %v3894
    %v6323 = vunpack.c.h.b16 %v3894
    %v6324 = vunpack.c.l.b16 %v3895
    %v6325 = vunpack.c.h.b16 %v3895
    %v6326 = vunpack.c.l.b16 %v3896
    %v6327 = vunpack.c.h.b16 %v3896
    %v6328 = vunpack.c.l.b16 %v3897
    %v6329 = vunpack.c.h.b16 %v3897
    %v6330 = vunpack.c.l.b16 %v3898
    %v6331 = vunpack.c.h.b16 %v3898
    %v6332 = vunpack.c.l.b16 %v3899
    %v6333 = vunpack.c.h.b16 %v3899
    %v6334 = vunpack.c.l.b16 %v3900
    %v6335 = vunpack.c.h.b16 %v3900
    %v6336 = vunpack.c.l.b16 %v3901
    %v6337 = vunpack.c.h.b16 %v3901
    %v6338 = vunpack.c.l.b16 %v3902
    %v6339 = vunpack.c.h.b16 %v3902
    %v6340 = vunpack.c.l.b16 %v3903
    %v6341 = vunpack.c.h.b16 %v3903
    %v6342 = vunpack.c.l.b16 %v3904
    %v6343 = vunpack.c.h.b16 %v3904
    %v6344 = vunpack.c.l.b16 %v3905
    %v6345 = vunpack.c.h.b16 %v3905
    %v6346 = vunpack.c.l.b16 %v3906
    %v6347 = vunpack.c.h.b16 %v3906
    %v6348 = vunpack.c.l.b16 %v3907
    %v6349 = vunpack.c.h.b16 %v3907
    %v6350 = vunpack.c.l.b16 %v3908
    %v6351 = vunpack.c.h.b16 %v3908
    %v6352 = vunpack.c.l.b16 %v3909
    %v6353 = vunpack.c.h.b16 %v3909
    %v6354 = vunpack.c.l.b16 %v3910
    %v6355 = vunpack.c.h.b16 %v3910
    %v6356 = vunpack.c.l.b16 %v3911
    %v6357 = vunpack.c.h.b16 %v3911
    %v6358 = vunpack.c.l.b16 %v3912
    %v6359 = vunpack.c.h.b16 %v3912
    %v6360 = vunpack.c.l.b16 %v3913
    %v6361 = vunpack.c.h.b16 %v3913
    %v6362 = vunpack.c.l.b16 %v3914
    %v6363 = vunpack.c.h.b16 %v3914
    %v6364 = vunpack.c.l.b16 %v3915
    %v6365 = vunpack.c.h.b16 %v3915
    %v6366 = vunpack.c.l.b16 %v3916
    %v6367 = vunpack.c.h.b16 %v3916
    %v6368 = vunpack.c.l.b16 %v3917
    %v6369 = vunpack.c.h.b16 %v3917
    %v6370 = vunpack.c.l.b16 %v3918
    %v6371 = vunpack.c.h.b16 %v3918
    %v6372 = vunpack.c.l.b16 %v3919
    %v6373 = vunpack.c.h.b16 %v3919
    %v6374 = vunpack.c.l.b16 %v3920
    %v6375 = vunpack.c.h.b16 %v3920
    %v6376 = vunpack.c.l.b16 %v3921
    %v6377 = vunpack.c.h.b16 %v3921
    %v6378 = vunpack.c.l.b16 %v3922
    %v6379 = vunpack.c.h.b16 %v3922
    %v6380 = vunpack.c.l.b16 %v3923
    %v6381 = vunpack.c.h.b16 %v3923
    %v6382 = vunpack.c.l.b16 %v3924
    %v6383 = vunpack.c.h.b16 %v3924
    %v6384 = vunpack.c.l.b16 %v3925
    %v6385 = vunpack.c.h.b16 %v3925
    %v6386 = vunpack.c.l.b16 %v3926
    %v6387 = vunpack.c.h.b16 %v3926
    %v6388 = vunpack.c.l.b16 %v3927
    %v6389 = vunpack.c.h.b16 %v3927
    %v6390 = vunpack.c.l.b16 %v3928
    %v6391 = vunpack.c.h.b16 %v3928
    %v6392 = vunpack.c.l.b16 %v3929
    %v6393 = vunpack.c.h.b16 %v3929
    %v6394 = vunpack.c.l.b16 %v3930
    %v6395 = vunpack.c.h.b16 %v3930
    %v6396 = vunpack.c.l.b16 %v3931
    %v6397 = vunpack.c.h.b16 %v3931
    %v6398 = vunpack.c.l.b16 %v3932
    %v6399 = vunpack.c.h.b16 %v3932
    %v6400 = vunpack.c.l.b16 %v3933
    %v6401 = vunpack.c.h.b16 %v3933
    %v6402 = vunpack.c.l.b16 %v3934
    %v6403 = vunpack.c.h.b16 %v3934
    %v6404 = vunpack.c.l.b16 %v3935
    %v6405 = vunpack.c.h.b16 %v3935
    %v6406 = vunpack.c.l.b16 %v3936
    %v6407 = vunpack.c.h.b16 %v3936
    %v6408 = vunpack.c.l.b16 %v3937
    %v6409 = vunpack.c.h.b16 %v3937
    %v6410 = vunpack.c.l.b16 %v3938
    %v6411 = vunpack.c.h.b16 %v3938
    %v6412 = vunpack.c.l.b16 %v3939
    %v6413 = vunpack.c.h.b16 %v3939
    %v6414 = vunpack.c.l.b16 %v3940
    %v6415 = vunpack.c.h.b16 %v3940
    %v6416 = vunpack.c.l.b16 %v3941
    %v6417 = vunpack.c.h.b16 %v3941
    %v6418 = vunpack.c.l.b16 %v3942
    %v6419 = vunpack.c.h.b16 %v3942
    %v6420 = vunpack.c.l.b16 %v3943
    %v6421 = vunpack.c.h.b16 %v3943
    %v6422 = vunpack.c.l.b16 %v3944
    %v6423 = vunpack.c.h.b16 %v3944
    %v6424 = vunpack.c.l.b16 %v3945
    %v6425 = vunpack.c.h.b16 %v3945
    %v6426 = vunpack.c.l.b16 %v3946
    %v6427 = vunpack.c.h.b16 %v3946
    %v6428 = vunpack.c.l.b16 %v3947
    %v6429 = vunpack.c.h.b16 %v3947
    %v6430 = vunpack.c.l.b16 %v3948
    %v6431 = vunpack.c.h.b16 %v3948
    %v6432 = vunpack.c.l.b16 %v3949
    %v6433 = vunpack.c.h.b16 %v3949
    %v6434 = vunpack.c.l.b16 %v3950
    %v6435 = vunpack.c.h.b16 %v3950
    %v6436 = vunpack.c.l.b16 %v3951
    %v6437 = vunpack.c.h.b16 %v3951
    %v6438 = vunpack.c.l.b16 %v3952
    %v6439 = vunpack.c.h.b16 %v3952
    %v6440 = vunpack.c.l.b16 %v3953
    %v6441 = vunpack.c.h.b16 %v3953
    %v6442 = vunpack.c.l.b16 %v3954
    %v6443 = vunpack.c.h.b16 %v3954
    %v6444 = vunpack.c.l.b16 %v3955
    %v6445 = vunpack.c.h.b16 %v3955
    %v6446 = vunpack.c.l.b16 %v3956
    %v6447 = vunpack.c.h.b16 %v3956
    %v6448 = vunpack.c.l.b16 %v3957
    %v6449 = vunpack.c.h.b16 %v3957
    %v6450 = vunpack.c.l.b16 %v3958
    %v6451 = vunpack.c.h.b16 %v3958
    %v6452 = vunpack.c.l.b16 %v3959
    %v6453 = vunpack.c.h.b16 %v3959
    %v6454 = vunpack.c.l.b16 %v3960
    %v6455 = vunpack.c.h.b16 %v3960
    %v6456 = vunpack.c.l.b16 %v3961
    %v6457 = vunpack.c.h.b16 %v3961
    %v6458 = vunpack.c.l.b16 %v3962
    %v6459 = vunpack.c.h.b16 %v3962
    %v6460 = vunpack.c.l.b16 %v3963
    %v6461 = vunpack.c.h.b16 %v3963
    %v6462 = vunpack.c.l.b16 %v3964
    %v6463 = vunpack.c.h.b16 %v3964
    %v6464 = vunpack.c.l.b16 %v3965
    %v6465 = vunpack.c.h.b16 %v3965
    %v6466 = vunpack.c.l.b16 %v3966
    %v6467 = vunpack.c.h.b16 %v3966
    %v6468 = vunpack.c.l.b16 %v3967
    %v6469 = vunpack.c.h.b16 %v3967
    %v6470 = vunpack.c.l.b16 %v3968
    %v6471 = vunpack.c.h.b16 %v3968
    %v6472 = vunpack.c.l.b16 %v3969
    %v6473 = vunpack.c.h.b16 %v3969
    %v6474 = vunpack.c.l.b16 %v3970
    %v6475 = vunpack.c.h.b16 %v3970
    %v6476 = vunpack.c.l.b16 %v3971
    %v6477 = vunpack.c.h.b16 %v3971
    %v6478 = vunpack.c.l.b16 %v3972
    %v6479 = vunpack.c.h.b16 %v3972
    %v6480 = vunpack.c.l.b16 %v3973
    %v6481 = vunpack.c.h.b16 %v3973
    %v6482 = vunpack.c.l.b16 %v3974
    %v6483 = vunpack.c.h.b16 %v3974
    %v6484 = vunpack.c.l.b16 %v3975
    %v6485 = vunpack.c.h.b16 %v3975
    %v6486 = vunpack.c.l.b16 %v3976
    %v6487 = vunpack.c.h.b16 %v3976
    %v6488 = vunpack.c.l.b16 %v3977
    %v6489 = vunpack.c.h.b16 %v3977
    %v6490 = vunpack.c.l.b16 %v3978
    %v6491 = vunpack.c.h.b16 %v3978
    %v6492 = vunpack.c.l.b16 %v3979
    %v6493 = vunpack.c.h.b16 %v3979
    %v6494 = vunpack.c.l.b16 %v3980
    %v6495 = vunpack.c.h.b16 %v3980
    %v6496 = vunpack.c.l.b16 %v3981
    %v6497 = vunpack.c.h.b16 %v3981
    %v6498 = vunpack.c.l.b16 %v3982
    %v6499 = vunpack.c.h.b16 %v3982
    %v6500 = vunpack.c.l.b16 %v3983
    %v6501 = vunpack.c.h.b16 %v3983
    %v6502 = vunpack.c.l.b16 %v3984
    %v6503 = vunpack.c.h.b16 %v3984
    %v6504 = vunpack.c.l.b16 %v3985
    %v6505 = vunpack.c.h.b16 %v3985
    %v6506 = vunpack.c.l.b16 %v3986
    %v6507 = vunpack.c.h.b16 %v3986
    %v6508 = vunpack.c.l.b16 %v3987
    %v6509 = vunpack.c.h.b16 %v3987
    %v6510 = vunpack.c.l.b16 %v3988
    %v6511 = vunpack.c.h.b16 %v3988
    %v6512 = vunpack.c.l.b16 %v3989
    %v6513 = vunpack.c.h.b16 %v3989
    %v6514 = vunpack.c.l.b16 %v3990
    %v6515 = vunpack.c.h.b16 %v3990
    %v6516 = vunpack.c.l.b16 %v3991
    %v6517 = vunpack.c.h.b16 %v3991
    %v6518 = vunpack.c.l.b16 %v3992
    %v6519 = vunpack.c.h.b16 %v3992
    %v6520 = vunpack.c.l.b16 %v3993
    %v6521 = vunpack.c.h.b16 %v3993
    %v6522 = vunpack.c.l.b16 %v3994
    %v6523 = vunpack.c.h.b16 %v3994
    %v6524 = vunpack.c.l.b16 %v3995
    %v6525 = vunpack.c.h.b16 %v3995
    %v6526 = vunpack.c.l.b16 %v3996
    %v6527 = vunpack.c.h.b16 %v3996
    %v6528 = vunpack.c.l.b16 %v3997
    %v6529 = vunpack.c.h.b16 %v3997
    %v6530 = vunpack.c.l.b16 %v3998
    %v6531 = vunpack.c.h.b16 %v3998
    %v6532 = vunpack.c.l.b16 %v3999
    %v6533 = vunpack.c.h.b16 %v3999
    %v6534 = vunpack.c.l.b16 %v4000
    %v6535 = vunpack.c.h.b16 %v4000
    %v6536 = vunpack.c.l.b16 %v4001
    %v6537 = vunpack.c.h.b16 %v4001
    %v6538 = vunpack.c.l.b16 %v4002
    %v6539 = vunpack.c.h.b16 %v4002
    %v6540 = vunpack.c.l.b16 %v4003
    %v6541 = vunpack.c.h.b16 %v4003
    %v6542 = vunpack.c.l.b16 %v4004
    %v6543 = vunpack.c.h.b16 %v4004
    %v6544 = vunpack.c.l.b16 %v4005
    %v6545 = vunpack.c.h.b16 %v4005
    %v6546 = vunpack.c.l.b16 %v4006
    %v6547 = vunpack.c.h.b16 %v4006
    %v6548 = vunpack.c.l.b16 %v4007
    %v6549 = vunpack.c.h.b16 %v4007
    %v6550 = vunpack.c.l.b16 %v4008
    %v6551 = vunpack.c.h.b16 %v4008
    %v6552 = vunpack.c.l.b16 %v4009
    %v6553 = vunpack.c.h.b16 %v4009
    %v6554 = vunpack.c.l.b16 %v4010
    %v6555 = vunpack.c.h.b16 %v4010
    %v6556 = vunpack.c.l.b16 %v4011
    %v6557 = vunpack.c.h.b16 %v4011
    %v6558 = vunpack.c.l.b16 %v4012
    %v6559 = vunpack.c.h.b16 %v4012
    %v6560 = vunpack.c.l.b16 %v4013
    %v6561 = vunpack.c.h.b16 %v4013
    %v6562 = vunpack.c.l.b16 %v4014
    %v6563 = vunpack.c.h.b16 %v4014
    %v6564 = vunpack.c.l.b16 %v4015
    %v6565 = vunpack.c.h.b16 %v4015
    %v6566 = vunpack.c.l.b16 %v4016
    %v6567 = vunpack.c.h.b16 %v4016
    %v6568 = vunpack.c.l.b16 %v4017
    %v6569 = vunpack.c.h.b16 %v4017
    %v6570 = vunpack.c.l.b16 %v4018
    %v6571 = vunpack.c.h.b16 %v4018
    %v6572 = vunpack.c.l.b16 %v4019
    %v6573 = vunpack.c.h.b16 %v4019
    %v6574 = vunpack.c.l.b16 %v4020
    %v6575 = vunpack.c.h.b16 %v4020
    %v6576 = vunpack.c.l.b16 %v4021
    %v6577 = vunpack.c.h.b16 %v4021
    %v6578 = vunpack.c.l.b16 %v4022
    %v6579 = vunpack.c.h.b16 %v4022
    %v6580 = vunpack.c.l.b16 %v4023
    %v6581 = vunpack.c.h.b16 %v4023
    %v6582 = vunpack.c.l.b16 %v4024
    %v6583 = vunpack.c.h.b16 %v4024
    %v6584 = vunpack.c.l.b16 %v4025
    %v6585 = vunpack.c.h.b16 %v4025
    %v6586 = vunpack.c.l.b16 %v4026
    %v6587 = vunpack.c.h.b16 %v4026
    %v6588 = vunpack.c.l.b16 %v4027
    %v6589 = vunpack.c.h.b16 %v4027
    %v6590 = vunpack.c.l.b16 %v4028
    %v6591 = vunpack.c.h.b16 %v4028
    %v6592 = vunpack.c.l.b16 %v4029
    %v6593 = vunpack.c.h.b16 %v4029
    %v6594 = vunpack.c.l.b16 %v4030
    %v6595 = vunpack.c.h.b16 %v4030
    %v6596 = vunpack.c.l.b16 %v4031
    %v6597 = vunpack.c.h.b16 %v4031
    %v6598 = vunpack.c.l.b16 %v4032
    %v6599 = vunpack.c.h.b16 %v4032
    %v6600 = vunpack.c.l.b16 %v4033
    %v6601 = vunpack.c.h.b16 %v4033
    %v6602 = vunpack.c.l.b16 %v4034
    %v6603 = vunpack.c.h.b16 %v4034
    %v6604 = vunpack.c.l.b16 %v4035
    %v6605 = vunpack.c.h.b16 %v4035
    %v6606 = vunpack.c.l.b16 %v4036
    %v6607 = vunpack.c.h.b16 %v4036
    %v6608 = vunpack.c.l.b16 %v4037
    %v6609 = vunpack.c.h.b16 %v4037
    %v6610 = vunpack.c.l.b16 %v4038
    %v6611 = vunpack.c.h.b16 %v4038
    %v6612 = vunpack.c.l.b16 %v4039
    %v6613 = vunpack.c.h.b16 %v4039
    %v6614 = vunpack.c.l.b16 %v4040
    %v6615 = vunpack.c.h.b16 %v4040
    %v6616 = vunpack.c.l.b16 %v4041
    %v6617 = vunpack.c.h.b16 %v4041
    %v6618 = vunpack.c.l.b16 %v4042
    %v6619 = vunpack.c.h.b16 %v4042
    %v6620 = vunpack.c.l.b16 %v4043
    %v6621 = vunpack.c.h.b16 %v4043
    %v6622 = vunpack.c.l.b16 %v4044
    %v6623 = vunpack.c.h.b16 %v4044
    %v6624 = vunpack.c.l.b16 %v4045
    %v6625 = vunpack.c.h.b16 %v4045
    %v6626 = vunpack.c.l.b16 %v4046
    %v6627 = vunpack.c.h.b16 %v4046
    %v6628 = vunpack.c.l.b16 %v4047
    %v6629 = vunpack.c.h.b16 %v4047
    %v6630 = vunpack.c.l.b16 %v4048
    %v6631 = vunpack.c.h.b16 %v4048
    %v6632 = vunpack.c.l.b16 %v4049
    %v6633 = vunpack.c.h.b16 %v4049
    %v6634 = vunpack.c.l.b16 %v4050
    %v6635 = vunpack.c.h.b16 %v4050
    %v6636 = vunpack.c.l.b16 %v4051
    %v6637 = vunpack.c.h.b16 %v4051
    %v6638 = vunpack.c.l.b16 %v4052
    %v6639 = vunpack.c.h.b16 %v4052
    %v6640 = vunpack.c.l.b16 %v4053
    %v6641 = vunpack.c.h.b16 %v4053
    %v6642 = vunpack.c.l.b16 %v4054
    %v6643 = vunpack.c.h.b16 %v4054
    %v6644 = vunpack.c.l.b16 %v4055
    %v6645 = vunpack.c.h.b16 %v4055
    %v6646 = vunpack.c.l.b16 %v4056
    %v6647 = vunpack.c.h.b16 %v4056
    %v6648 = vunpack.c.l.b16 %v4057
    %v6649 = vunpack.c.h.b16 %v4057
    %v6650 = vunpack.c.l.b16 %v4058
    %v6651 = vunpack.c.h.b16 %v4058
    %v6652 = vunpack.c.l.b16 %v4059
    %v6653 = vunpack.c.h.b16 %v4059
    %v6654 = vunpack.c.l.b16 %v4060
    %v6655 = vunpack.c.h.b16 %v4060
    %v6656 = vunpack.c.l.b16 %v4061
    %v6657 = vunpack.c.h.b16 %v4061
    %v6658 = vunpack.c.l.b16 %v4062
    %v6659 = vunpack.c.h.b16 %v4062
    %v6660 = vunpack.c.l.b16 %v4063
    %v6661 = vunpack.c.h.b16 %v4063
    %v6662 = vunpack.c.l.b16 %v4064
    %v6663 = vunpack.c.h.b16 %v4064
    %v6664 = vunpack.c.l.b16 %v4065
    %v6665 = vunpack.c.h.b16 %v4065
    %v6666 = vunpack.c.l.b16 %v4066
    %v6667 = vunpack.c.h.b16 %v4066
    %v6668 = vunpack.c.l.b16 %v4067
    %v6669 = vunpack.c.h.b16 %v4067
    %v6670 = vunpack.c.l.b16 %v4068
    %v6671 = vunpack.c.h.b16 %v4068
    %v6672 = vunpack.c.l.b16 %v4069
    %v6673 = vunpack.c.h.b16 %v4069
    %v6674 = vunpack.c.l.b16 %v4070
    %v6675 = vunpack.c.h.b16 %v4070
    %v6676 = vunpack.c.l.b16 %v4071
    %v6677 = vunpack.c.h.b16 %v4071
    %v6678 = vunpack.c.l.b16 %v4072
    %v6679 = vunpack.c.h.b16 %v4072
    %v6680 = vunpack.c.l.b16 %v4073
    %v6681 = vunpack.c.h.b16 %v4073
    %v6682 = vunpack.c.l.b16 %v4074
    %v6683 = vunpack.c.h.b16 %v4074
    %v6684 = vunpack.c.l.b16 %v4075
    %v6685 = vunpack.c.h.b16 %v4075
    %v6686 = vunpack.c.l.b16 %v4076
    %v6687 = vunpack.c.h.b16 %v4076
    %v6688 = vunpack.c.l.b16 %v4077
    %v6689 = vunpack.c.h.b16 %v4077
    %v6690 = vunpack.c.l.b16 %v4078
    %v6691 = vunpack.c.h.b16 %v4078
    %v6692 = vunpack.c.l.b16 %v4079
    %v6693 = vunpack.c.h.b16 %v4079
    %v6694 = vunpack.c.l.b16 %v4080
    %v6695 = vunpack.c.h.b16 %v4080
    %v6696 = vunpack.c.l.b16 %v4081
    %v6697 = vunpack.c.h.b16 %v4081
    %v6698 = vunpack.c.l.b16 %v4082
    %v6699 = vunpack.c.h.b16 %v4082
    %v6700 = vunpack.c.l.b16 %v4083
    %v6701 = vunpack.c.h.b16 %v4083
    %v6702 = vunpack.c.l.b16 %v4084
    %v6703 = vunpack.c.h.b16 %v4084
    %v6704 = vunpack.c.l.b16 %v4085
    %v6705 = vunpack.c.h.b16 %v4085
    %v6706 = vunpack.c.l.b16 %v4086
    %v6707 = vunpack.c.h.b16 %v4086
    %v6708 = vunpack.c.l.b16 %v4087
    %v6709 = vunpack.c.h.b16 %v4087
    %v6710 = vunpack.c.l.b16 %v4088
    %v6711 = vunpack.c.h.b16 %v4088
    %v6712 = vunpack.c.l.b16 %v4089
    %v6713 = vunpack.c.h.b16 %v4089
    %v6714 = vunpack.c.l.b16 %v4090
    %v6715 = vunpack.c.h.b16 %v4090
    %v6716 = vunpack.c.l.b16 %v4091
    %v6717 = vunpack.c.h.b16 %v4091
    %v6718 = vunpack.c.l.b16 %v4092
    %v6719 = vunpack.c.h.b16 %v4092
    %v6720 = vunpack.c.l.b16 %v4093
    %v6721 = vunpack.c.h.b16 %v4093
    %v6722 = vunpack.c.l.b16 %v4094
    %v6723 = vunpack.c.h.b16 %v4094
    %v6724 = vunpack.c.l.b16 %v4095
    %v6725 = vunpack.c.h.b16 %v4095
    %v6726 = vunpack.c.l.b16 %v4096
    %v6727 = vunpack.c.h.b16 %v4096
    %v6728 = vunpack.c.l.b16 %v4097
    %v6729 = vunpack.c.h.b16 %v4097
    %v6730 = vunpack.c.l.b16 %v4098
    %v6731 = vunpack.c.h.b16 %v4098
    %v6732 = vunpack.c.l.b16 %v4099
    %v6733 = vunpack.c.h.b16 %v4099
    %v6734 = vunpack.c.l.b16 %v4100
    %v6735 = vunpack.c.h.b16 %v4100
    %v6736 = vunpack.c.l.b16 %v4101
    %v6737 = vunpack.c.h.b16 %v4101
    %v6738 = vunpack.c.l.b16 %v4102
    %v6739 = vunpack.c.h.b16 %v4102
    %v6740 = vunpack.c.l.b16 %v4103
    %v6741 = vunpack.c.h.b16 %v4103
    %v6742 = vunpack.c.l.b16 %v4104
    %v6743 = vunpack.c.h.b16 %v4104
    %v6744 = vunpack.c.l.b16 %v4105
    %v6745 = vunpack.c.h.b16 %v4105
    %v6746 = vpack.c.b16 %v6242, %v6234
    %v6747 = vpack.c.b16 %v6243, %v6235
    %v6748 = vpack.c.b16 %v6244, %v6236
    %v6749 = vpack.c.b16 %v6245, %v6237
    %v6750 = vpack.c.b16 %v6246, %v6238
    %v6751 = vpack.c.b16 %v6247, %v6239
    %v6752 = vpack.c.b16 %v6248, %v6240
    %v6753 = vpack.c.b16 %v6249, %v6241
    %v6754 = vpack.c.b16 %v6258, %v6250
    %v6755 = vpack.c.b16 %v6259, %v6251
    %v6756 = vpack.c.b16 %v6260, %v6252
    %v6757 = vpack.c.b16 %v6261, %v6253
    %v6758 = vpack.c.b16 %v6262, %v6254
    %v6759 = vpack.c.b16 %v6263, %v6255
    %v6760 = vpack.c.b16 %v6264, %v6256
    %v6761 = vpack.c.b16 %v6265, %v6257
    %v6762 = vpack.c.b16 %v6274, %v6266
    %v6763 = vpack.c.b16 %v6275, %v6267
    %v6764 = vpack.c.b16 %v6276, %v6268
    %v6765 = vpack.c.b16 %v6277, %v6269
    %v6766 = vpack.c.b16 %v6278, %v6270
    %v6767 = vpack.c.b16 %v6279, %v6271
    %v6768 = vpack.c.b16 %v6280, %v6272
    %v6769 = vpack.c.b16 %v6281, %v6273
    %v6770 = vpack.c.b16 %v6290, %v6282
    %v6771 = vpack.c.b16 %v6291, %v6283
    %v6772 = vpack.c.b16 %v6292, %v6284
    %v6773 = vpack.c.b16 %v6293, %v6285
    %v6774 = vpack.c.b16 %v6294, %v6286
    %v6775 = vpack.c.b16 %v6295, %v6287
    %v6776 = vpack.c.b16 %v6296, %v6288
    %v6777 = vpack.c.b16 %v6297, %v6289
    %v6778 = vpack.c.b16 %v6306, %v6298
    %v6779 = vpack.c.b16 %v6307, %v6299
    %v6780 = vpack.c.b16 %v6308, %v6300
    %v6781 = vpack.c.b16 %v6309, %v6301
    %v6782 = vpack.c.b16 %v6310, %v6302
    %v6783 = vpack.c.b16 %v6311, %v6303
    %v6784 = vpack.c.b16 %v6312, %v6304
    %v6785 = vpack.c.b16 %v6313, %v6305
    %v6786 = vpack.c.b16 %v6322, %v6314
    %v6787 = vpack.c.b16 %v6323, %v6315
    %v6788 = vpack.c.b16 %v6324, %v6316
    %v6789 = vpack.c.b16 %v6325, %v6317
    %v6790 = vpack.c.b16 %v6326, %v6318
    %v6791 = vpack.c.b16 %v6327, %v6319
    %v6792 = vpack.c.b16 %v6328, %v6320
    %v6793 = vpack.c.b16 %v6329, %v6321
    %v6794 = vpack.c.b16 %v6338, %v6330
    %v6795 = vpack.c.b16 %v6339, %v6331
    %v6796 = vpack.c.b16 %v6340, %v6332
    %v6797 = vpack.c.b16 %v6341, %v6333
    %v6798 = vpack.c.b16 %v6342, %v6334
    %v6799 = vpack.c.b16 %v6343, %v6335
    %v6800 = vpack.c.b16 %v6344, %v6336
    %v6801 = vpack.c.b16 %v6345, %v6337
    %v6802 = vpack.c.b16 %v6354, %v6346
    %v6803 = vpack.c.b16 %v6355, %v6347
    %v6804 = vpack.c.b16 %v6356, %v6348
    %v6805 = vpack.c.b16 %v6357, %v6349
    %v6806 = vpack.c.b16 %v6358, %v6350
    %v6807 = vpack.c.b16 %v6359, %v6351
    %v6808 = vpack.c.b16 %v6360, %v6352
    %v6809 = vpack.c.b16 %v6361, %v6353
    %v6810 = vpack.c.b16 %v6370, %v6362
    %v6811 = vpack.c.b16 %v6371, %v6363
    %v6812 = vpack.c.b16 %v6372, %v6364
    %v6813 = vpack.c.b16 %v6373, %v6365
    %v6814 = vpack.c.b16 %v6374, %v6366
    %v6815 = vpack.c.b16 %v6375, %v6367
    %v6816 = vpack.c.b16 %v6376, %v6368
    %v6817 = vpack.c.b16 %v6377, %v6369
    %v6818 = vpack.c.b16 %v6386, %v6378
    %v6819 = vpack.c.b16 %v6387, %v6379
    %v6820 = vpack.c.b16 %v6388, %v6380
    %v6821 = vpack.c.b16 %v6389, %v6381
    %v6822 = vpack.c.b16 %v6390, %v6382
    %v6823 = vpack.c.b16 %v6391, %v6383
    %v6824 = vpack.c.b16 %v6392, %v6384
    %v6825 = vpack.c.b16 %v6393, %v6385
    %v6826 = vpack.c.b16 %v6402, %v6394
    %v6827 = vpack.c.b16 %v6403, %v6395
    %v6828 = vpack.c.b16 %v6404, %v6396
    %v6829 = vpack.c.b16 %v6405, %v6397
    %v6830 = vpack.c.b16 %v6406, %v6398
    %v6831 = vpack.c.b16 %v6407, %v6399
    %v6832 = vpack.c.b16 %v6408, %v6400
    %v6833 = vpack.c.b16 %v6409, %v6401
    %v6834 = vpack.c.b16 %v6418, %v6410
    %v6835 = vpack.c.b16 %v6419, %v6411
    %v6836 = vpack.c.b16 %v6420, %v6412
    %v6837 = vpack.c.b16 %v6421, %v6413
    %v6838 = vpack.c.b16 %v6422, %v6414
    %v6839 = vpack.c.b16 %v6423, %v6415
    %v6840 = vpack.c.b16 %v6424, %v6416
    %v6841 = vpack.c.b16 %v6425, %v6417
    %v6842 = vpack.c.b16 %v6434, %v6426
    %v6843 = vpack.c.b16 %v6435, %v6427
    %v6844 = vpack.c.b16 %v6436, %v6428
    %v6845 = vpack.c.b16 %v6437, %v6429
    %v6846 = vpack.c.b16 %v6438, %v6430
    %v6847 = vpack.c.b16 %v6439, %v6431
    %v6848 = vpack.c.b16 %v6440, %v6432
    %v6849 = vpack.c.b16 %v6441, %v6433
    %v6850 = vpack.c.b16 %v6450, %v6442
    %v6851 = vpack.c.b16 %v6451, %v6443
    %v6852 = vpack.c.b16 %v6452, %v6444
    %v6853 = vpack.c.b16 %v6453, %v6445
    %v6854 = vpack.c.b16 %v6454, %v6446
    %v6855 = vpack.c.b16 %v6455, %v6447
    %v6856 = vpack.c.b16 %v6456, %v6448
    %v6857 = vpack.c.b16 %v6457, %v6449
    %v6858 = vpack.c.b16 %v6466, %v6458
    %v6859 = vpack.c.b16 %v6467, %v6459
    %v6860 = vpack.c.b16 %v6468, %v6460
    %v6861 = vpack.c.b16 %v6469, %v6461
    %v6862 = vpack.c.b16 %v6470, %v6462
    %v6863 = vpack.c.b16 %v6471, %v6463
    %v6864 = vpack.c.b16 %v6472, %v6464
    %v6865 = vpack.c.b16 %v6473, %v6465
    %v6866 = vpack.c.b16 %v6482, %v6474
    %v6867 = vpack.c.b16 %v6483, %v6475
    %v6868 = vpack.c.b16 %v6484, %v6476
    %v6869 = vpack.c.b16 %v6485, %v6477
    %v6870 = vpack.c.b16 %v6486, %v6478
    %v6871 = vpack.c.b16 %v6487, %v6479
    %v6872 = vpack.c.b16 %v6488, %v6480
    %v6873 = vpack.c.b16 %v6489, %v6481
    %v6874 = vpack.c.b16 %v6498, %v6490
    %v6875 = vpack.c.b16 %v6499, %v6491
    %v6876 = vpack.c.b16 %v6500, %v6492
    %v6877 = vpack.c.b16 %v6501, %v6493
    %v6878 = vpack.c.b16 %v6502, %v6494
    %v6879 = vpack.c.b16 %v6503, %v6495
    %v6880 = vpack.c.b16 %v6504, %v6496
    %v6881 = vpack.c.b16 %v6505, %v6497
    %v6882 = vpack.c.b16 %v6514, %v6506
    %v6883 = vpack.c.b16 %v6515, %v6507
    %v6884 = vpack.c.b16 %v6516, %v6508
    %v6885 = vpack.c.b16 %v6517, %v6509
    %v6886 = vpack.c.b16 %v6518, %v6510
    %v6887 = vpack.c.b16 %v6519, %v6511
    %v6888 = vpack.c.b16 %v6520, %v6512
    %v6889 = vpack.c.b16 %v6521, %v6513
    %v6890 = vpack.c.b16 %v6530, %v6522
    %v6891 = vpack.c.b16 %v6531, %v6523
    %v6892 = vpack.c.b16 %v6532, %v6524
    %v6893 = vpack.c.b16 %v6533, %v6525
    %v6894 = vpack.c.b16 %v6534, %v6526
    %v6895 = vpack.c.b16 %v6535, %v6527
    %v6896 = vpack.c.b16 %v6536, %v6528
    %v6897 = vpack.c.b16 %v6537, %v6529
    %v6898 = vpack.c.b16 %v6546, %v6538
    %v6899 = vpack.c.b16 %v6547, %v6539
    %v6900 = vpack.c.b16 %v6548, %v6540
    %v6901 = vpack.c.b16 %v6549, %v6541
    %v6902 = vpack.c.b16 %v6550, %v6542
    %v6903 = vpack.c.b16 %v6551, %v6543
    %v6904 = vpack.c.b16 %v6552, %v6544
    %v6905 = vpack.c.b16 %v6553, %v6545
    %v6906 = vpack.c.b16 %v6562, %v6554
    %v6907 = vpack.c.b16 %v6563, %v6555
    %v6908 = vpack.c.b16 %v6564, %v6556
    %v6909 = vpack.c.b16 %v6565, %v6557
    %v6910 = vpack.c.b16 %v6566, %v6558
    %v6911 = vpack.c.b16 %v6567, %v6559
    %v6912 = vpack.c.b16 %v6568, %v6560
    %v6913 = vpack.c.b16 %v6569, %v6561
    %v6914 = vpack.c.b16 %v6578, %v6570
    %v6915 = vpack.c.b16 %v6579, %v6571
    %v6916 = vpack.c.b16 %v6580, %v6572
    %v6917 = vpack.c.b16 %v6581, %v6573
    %v6918 = vpack.c.b16 %v6582, %v6574
    %v6919 = vpack.c.b16 %v6583, %v6575
    %v6920 = vpack.c.b16 %v6584, %v6576
    %v6921 = vpack.c.b16 %v6585, %v6577
    %v6922 = vpack.c.b16 %v6594, %v6586
    %v6923 = vpack.c.b16 %v6595, %v6587
    %v6924 = vpack.c.b16 %v6596, %v6588
    %v6925 = vpack.c.b16 %v6597, %v6589
    %v6926 = vpack.c.b16 %v6598, %v6590
    %v6927 = vpack.c.b16 %v6599, %v6591
    %v6928 = vpack.c.b16 %v6600, %v6592
    %v6929 = vpack.c.b16 %v6601, %v6593
    %v6930 = vpack.c.b16 %v6610, %v6602
    %v6931 = vpack.c.b16 %v6611, %v6603
    %v6932 = vpack.c.b16 %v6612, %v6604
    %v6933 = vpack.c.b16 %v6613, %v6605
    %v6934 = vpack.c.b16 %v6614, %v6606
    %v6935 = vpack.c.b16 %v6615, %v6607
    %v6936 = vpack.c.b16 %v6616, %v6608
    %v6937 = vpack.c.b16 %v6617, %v6609
    %v6938 = vpack.c.b16 %v6626, %v6618
    %v6939 = vpack.c.b16 %v6627, %v6619
    %v6940 = vpack.c.b16 %v6628, %v6620
    %v6941 = vpack.c.b16 %v6629, %v6621
    %v6942 = vpack.c.b16 %v6630, %v6622
    %v6943 = vpack.c.b16 %v6631, %v6623
    %v6944 = vpack.c.b16 %v6632, %v6624
    %v6945 = vpack.c.b16 %v6633, %v6625
    %v6946 = vpack.c.b16 %v6642, %v6634
    %v6947 = vpack.c.b16 %v6643, %v6635
    %v6948 = vpack.c.b16 %v6644, %v6636
    %v6949 = vpack.c.b16 %v6645, %v6637
    %v6950 = vpack.c.b16 %v6646, %v6638
    %v6951 = vpack.c.b16 %v6647, %v6639
    %v6952 = vpack.c.b16 %v6648, %v6640
    %v6953 = vpack.c.b16 %v6649, %v6641
    %v6954 = vpack.c.b16 %v6658, %v6650
    %v6955 = vpack.c.b16 %v6659, %v6651
    %v6956 = vpack.c.b16 %v6660, %v6652
    %v6957 = vpack.c.b16 %v6661, %v6653
    %v6958 = vpack.c.b16 %v6662, %v6654
    %v6959 = vpack.c.b16 %v6663, %v6655
    %v6960 = vpack.c.b16 %v6664, %v6656
    %v6961 = vpack.c.b16 %v6665, %v6657
    %v6962 = vpack.c.b16 %v6674, %v6666
    %v6963 = vpack.c.b16 %v6675, %v6667
    %v6964 = vpack.c.b16 %v6676, %v6668
    %v6965 = vpack.c.b16 %v6677, %v6669
    %v6966 = vpack.c.b16 %v6678, %v6670
    %v6967 = vpack.c.b16 %v6679, %v6671
    %v6968 = vpack.c.b16 %v6680, %v6672
    %v6969 = vpack.c.b16 %v6681, %v6673
    %v6970 = vpack.c.b16 %v6690, %v6682
    %v6971 = vpack.c.b16 %v6691, %v6683
    %v6972 = vpack.c.b16 %v6692, %v6684
    %v6973 = vpack.c.b16 %v6693, %v6685
    %v6974 = vpack.c.b16 %v6694, %v6686
    %v6975 = vpack.c.b16 %v6695, %v6687
    %v6976 = vpack.c.b16 %v6696, %v6688
    %v6977 = vpack.c.b16 %v6697, %v6689
    %v6978 = vpack.c.b16 %v6706, %v6698
    %v6979 = vpack.c.b16 %v6707, %v6699
    %v6980 = vpack.c.b16 %v6708, %v6700
    %v6981 = vpack.c.b16 %v6709, %v6701
    %v6982 = vpack.c.b16 %v6710, %v6702
    %v6983 = vpack.c.b16 %v6711, %v6703
    %v6984 = vpack.c.b16 %v6712, %v6704
    %v6985 = vpack.c.b16 %v6713, %v6705
    %v6986 = vpack.c.b16 %v6722, %v6714
    %v6987 = vpack.c.b16 %v6723, %v6715
    %v6988 = vpack.c.b16 %v6724, %v6716
    %v6989 = vpack.c.b16 %v6725, %v6717
    %v6990 = vpack.c.b16 %v6726, %v6718
    %v6991 = vpack.c.b16 %v6727, %v6719
    %v6992 = vpack.c.b16 %v6728, %v6720
    %v6993 = vpack.c.b16 %v6729, %v6721
    %v6994 = vpack.c.b16 %v6738, %v6730
    %v6995 = vpack.c.b16 %v6739, %v6731
    %v6996 = vpack.c.b16 %v6740, %v6732
    %v6997 = vpack.c.b16 %v6741, %v6733
    %v6998 = vpack.c.b16 %v6742, %v6734
    %v6999 = vpack.c.b16 %v6743, %v6735
    %v7000 = vpack.c.b16 %v6744, %v6736
    %v7001 = vpack.c.b16 %v6745, %v6737
    %7258 = vmatprep.subr.bf16.mxu0 %v6803
    %7259 = vmatpush1.bf16.msra.mxu0 %v6802
    %7260 = vmatprep.subr.bf16.mxu0 %v6795
    %7261 = vmatpush1.bf16.msra.mxu0 %v6794
    %7262 = vmatprep.subr.bf16.mxu0 %v6787
    %7263 = vmatpush1.bf16.msra.mxu0 %v6786
    %7264 = vmatprep.subr.bf16.mxu0 %v6779
    %7265 = vmatpush1.bf16.msra.mxu0 %v6778
    %7266 = vmatprep.subr.bf16.mxu0 %v6771
    %7267 = vmatpush1.bf16.msra.mxu0 %v6770
    %7268 = vmatprep.subr.bf16.mxu0 %v6763
    %7269 = vmatpush1.bf16.msra.mxu0 %v6762
    %7270 = vmatprep.subr.bf16.mxu0 %v6755
    %7271 = vmatpush1.bf16.msra.mxu0 %v6754
    %7272 = vmatprep.subr.bf16.mxu0 %v6747
    %7273 = vmatpush1.bf16.msra.mxu0 %v6746
    %7274 = vmatprep.subr.bf16.mxu0 %v6867
    %7275 = vmatpush2.bf16.msra.mxu0 %v6866
    %7276 = vmatprep.subr.bf16.mxu0 %v6859
    %7277 = vmatpush2.bf16.msra.mxu0 %v6858
    %7278 = vmatprep.subr.bf16.mxu0 %v6851
    %7279 = vmatpush2.bf16.msra.mxu0 %v6850
    %7280 = vmatprep.subr.bf16.mxu0 %v6843
    %7281 = vmatpush2.bf16.msra.mxu0 %v6842
    %7282 = vmatprep.subr.bf16.mxu0 %v6835
    %7283 = vmatpush2.bf16.msra.mxu0 %v6834
    %7284 = vmatprep.subr.bf16.mxu0 %v6827
    %7285 = vmatpush2.bf16.msra.mxu0 %v6826
    %7286 = vmatprep.subr.bf16.mxu0 %v6819
    %7287 = vmatpush2.bf16.msra.mxu0 %v6818
    %7288 = vmatprep.subr.bf16.mxu0 %v6811
    %7289 = vmatpush2.bf16.msra.mxu0 %v6810
    %7290 = vmatprep.mubr.bf16.mxu0 %v3847
    %7291 = vmatmul.mubr.bf16.gmra.mxu0 %v3846
    %v7292 = vpop.f32.mrf.mxu0
    %v7293 = vadd.f32 %v5726, %v7292
    %v7294 = vpop.f32.mrf.mxu0
    %v7295 = vadd.f32 %v5728, %v7294
    %v7296 = vpop.f32.mrf.mxu0
    %v7297 = vpop.f32.mrf.mxu0
    %7298 = vdwg.mxu0
    %7299 = vmatprep.subr.bf16.mxu0 %v6931
    %7300 = vmatpush1.bf16.msra.mxu0 %v6930
    %7301 = vmatprep.subr.bf16.mxu0 %v6923
    %7302 = vmatpush1.bf16.msra.mxu0 %v6922
    %7303 = vmatprep.subr.bf16.mxu0 %v6915
    %7304 = vmatpush1.bf16.msra.mxu0 %v6914
    %7305 = vmatprep.subr.bf16.mxu0 %v6907
    %7306 = vmatpush1.bf16.msra.mxu0 %v6906
    %7307 = vmatprep.subr.bf16.mxu0 %v6899
    %7308 = vmatpush1.bf16.msra.mxu0 %v6898
    %7309 = vmatprep.subr.bf16.mxu0 %v6891
    %7310 = vmatpush1.bf16.msra.mxu0 %v6890
    %7311 = vmatprep.subr.bf16.mxu0 %v6883
    %7312 = vmatpush1.bf16.msra.mxu0 %v6882
    %7313 = vmatprep.subr.bf16.mxu0 %v6875
    %7314 = vmatpush1.bf16.msra.mxu0 %v6874
    %7315 = vmatprep.subr.bf16.mxu0 %v6995
    %7316 = vmatpush2.bf16.msra.mxu0 %v6994
    %7317 = vmatprep.subr.bf16.mxu0 %v6987
    %7318 = vmatpush2.bf16.msra.mxu0 %v6986
    %7319 = vmatprep.subr.bf16.mxu0 %v6979
    %7320 = vmatpush2.bf16.msra.mxu0 %v6978
    %7321 = vmatprep.subr.bf16.mxu0 %v6971
    %7322 = vmatpush2.bf16.msra.mxu0 %v6970
    %7323 = vmatprep.subr.bf16.mxu0 %v6963
    %7324 = vmatpush2.bf16.msra.mxu0 %v6962
    %7325 = vmatprep.subr.bf16.mxu0 %v6955
    %7326 = vmatpush2.bf16.msra.mxu0 %v6954
    %7327 = vmatprep.subr.bf16.mxu0 %v6947
    %7328 = vmatpush2.bf16.msra.mxu0 %v6946
    %7329 = vmatprep.subr.bf16.mxu0 %v6939
    %7330 = vmatpush2.bf16.msra.mxu0 %v6938
    %7331 = vmatprep.mubr.bf16.mxu0 %v3849
    %7332 = vmatmul.mubr.bf16.gmra.mxu0 %v3848
    %v7333 = vpop.f32.mrf.mxu0
    %v7334 = vadd.f32 %v7293, %v7333
    %v7335 = vpop.f32.mrf.mxu0
    %v7336 = vadd.f32 %v7295, %v7335
    %v7337 = vpop.f32.mrf.mxu0
    %v7338 = vpop.f32.mrf.mxu0
    %7339 = vdwg.mxu0
    %7340 = vmatprep.subr.bf16.mxu0 %v6805
    %7341 = vmatpush1.bf16.msra.mxu0 %v6804
    %7342 = vmatprep.subr.bf16.mxu0 %v6797
    %7343 = vmatpush1.bf16.msra.mxu0 %v6796
    %7344 = vmatprep.subr.bf16.mxu0 %v6789
    %7345 = vmatpush1.bf16.msra.mxu0 %v6788
    %7346 = vmatprep.subr.bf16.mxu0 %v6781
    %7347 = vmatpush1.bf16.msra.mxu0 %v6780
    %7348 = vmatprep.subr.bf16.mxu0 %v6773
    %7349 = vmatpush1.bf16.msra.mxu0 %v6772
    %7350 = vmatprep.subr.bf16.mxu0 %v6765
    %7351 = vmatpush1.bf16.msra.mxu0 %v6764
    %7352 = vmatprep.subr.bf16.mxu0 %v6757
    %7353 = vmatpush1.bf16.msra.mxu0 %v6756
    %7354 = vmatprep.subr.bf16.mxu0 %v6749
    %7355 = vmatpush1.bf16.msra.mxu0 %v6748
    %7356 = vmatprep.subr.bf16.mxu0 %v6869
    %7357 = vmatpush2.bf16.msra.mxu0 %v6868
    %7358 = vmatprep.subr.bf16.mxu0 %v6861
    %7359 = vmatpush2.bf16.msra.mxu0 %v6860
    %7360 = vmatprep.subr.bf16.mxu0 %v6853
    %7361 = vmatpush2.bf16.msra.mxu0 %v6852
    %7362 = vmatprep.subr.bf16.mxu0 %v6845
    %7363 = vmatpush2.bf16.msra.mxu0 %v6844
    %7364 = vmatprep.subr.bf16.mxu0 %v6837
    %7365 = vmatpush2.bf16.msra.mxu0 %v6836
    %7366 = vmatprep.subr.bf16.mxu0 %v6829
    %7367 = vmatpush2.bf16.msra.mxu0 %v6828
    %7368 = vmatprep.subr.bf16.mxu0 %v6821
    %7369 = vmatpush2.bf16.msra.mxu0 %v6820
    %7370 = vmatprep.subr.bf16.mxu0 %v6813
    %7371 = vmatpush2.bf16.msra.mxu0 %v6812
    %7372 = vmatprep.mubr.bf16.mxu0 %v3847
    %7373 = vmatmul.mubr.bf16.gmra.mxu0 %v3846
    %v7374 = vpop.f32.mrf.mxu0
    %v7375 = vadd.f32 %v5808, %v7374
    %v7376 = vpop.f32.mrf.mxu0
    %v7377 = vadd.f32 %v5810, %v7376
    %v7378 = vpop.f32.mrf.mxu0
    %v7379 = vpop.f32.mrf.mxu0
    %7380 = vdwg.mxu0
    %7381 = vmatprep.subr.bf16.mxu0 %v6933
    %7382 = vmatpush1.bf16.msra.mxu0 %v6932
    %7383 = vmatprep.subr.bf16.mxu0 %v6925
    %7384 = vmatpush1.bf16.msra.mxu0 %v6924
    %7385 = vmatprep.subr.bf16.mxu0 %v6917
    %7386 = vmatpush1.bf16.msra.mxu0 %v6916
    %7387 = vmatprep.subr.bf16.mxu0 %v6909
    %7388 = vmatpush1.bf16.msra.mxu0 %v6908
    %7389 = vmatprep.subr.bf16.mxu0 %v6901
    %7390 = vmatpush1.bf16.msra.mxu0 %v6900
    %7391 = vmatprep.subr.bf16.mxu0 %v6893
    %7392 = vmatpush1.bf16.msra.mxu0 %v6892
    %7393 = vmatprep.subr.bf16.mxu0 %v6885
    %7394 = vmatpush1.bf16.msra.mxu0 %v6884
    %7395 = vmatprep.subr.bf16.mxu0 %v6877
    %7396 = vmatpush1.bf16.msra.mxu0 %v6876
    %7397 = vmatprep.subr.bf16.mxu0 %v6997
    %7398 = vmatpush2.bf16.msra.mxu0 %v6996
    %7399 = vmatprep.subr.bf16.mxu0 %v6989
    %7400 = vmatpush2.bf16.msra.mxu0 %v6988
    %7401 = vmatprep.subr.bf16.mxu0 %v6981
    %7402 = vmatpush2.bf16.msra.mxu0 %v6980
    %7403 = vmatprep.subr.bf16.mxu0 %v6973
    %7404 = vmatpush2.bf16.msra.mxu0 %v6972
    %7405 = vmatprep.subr.bf16.mxu0 %v6965
    %7406 = vmatpush2.bf16.msra.mxu0 %v6964
    %7407 = vmatprep.subr.bf16.mxu0 %v6957
    %7408 = vmatpush2.bf16.msra.mxu0 %v6956
    %7409 = vmatprep.subr.bf16.mxu0 %v6949
    %7410 = vmatpush2.bf16.msra.mxu0 %v6948
    %7411 = vmatprep.subr.bf16.mxu0 %v6941
    %7412 = vmatpush2.bf16.msra.mxu0 %v6940
    %7413 = vmatprep.mubr.bf16.mxu0 %v3849
    %7414 = vmatmul.mubr.bf16.gmra.mxu0 %v3848
    %v7415 = vpop.f32.mrf.mxu0
    %v7416 = vadd.f32 %v7375, %v7415
    %v7417 = vpop.f32.mrf.mxu0
    %v7418 = vadd.f32 %v7377, %v7417
    %v7419 = vpop.f32.mrf.mxu0
    %v7420 = vpop.f32.mrf.mxu0
    %7421 = vdwg.mxu0
    %7422 = vmatprep.subr.bf16.mxu0 %v6807
    %7423 = vmatpush1.bf16.msra.mxu0 %v6806
    %7424 = vmatprep.subr.bf16.mxu0 %v6799
    %7425 = vmatpush1.bf16.msra.mxu0 %v6798
    %7426 = vmatprep.subr.bf16.mxu0 %v6791
    %7427 = vmatpush1.bf16.msra.mxu0 %v6790
    %7428 = vmatprep.subr.bf16.mxu0 %v6783
    %7429 = vmatpush1.bf16.msra.mxu0 %v6782
    %7430 = vmatprep.subr.bf16.mxu0 %v6775
    %7431 = vmatpush1.bf16.msra.mxu0 %v6774
    %7432 = vmatprep.subr.bf16.mxu0 %v6767
    %7433 = vmatpush1.bf16.msra.mxu0 %v6766
    %7434 = vmatprep.subr.bf16.mxu0 %v6759
    %7435 = vmatpush1.bf16.msra.mxu0 %v6758
    %7436 = vmatprep.subr.bf16.mxu0 %v6751
    %7437 = vmatpush1.bf16.msra.mxu0 %v6750
    %7438 = vmatprep.subr.bf16.mxu0 %v6871
    %7439 = vmatpush2.bf16.msra.mxu0 %v6870
    %7440 = vmatprep.subr.bf16.mxu0 %v6863
    %7441 = vmatpush2.bf16.msra.mxu0 %v6862
    %7442 = vmatprep.subr.bf16.mxu0 %v6855
    %7443 = vmatpush2.bf16.msra.mxu0 %v6854
    %7444 = vmatprep.subr.bf16.mxu0 %v6847
    %7445 = vmatpush2.bf16.msra.mxu0 %v6846
    %7446 = vmatprep.subr.bf16.mxu0 %v6839
    %7447 = vmatpush2.bf16.msra.mxu0 %v6838
    %7448 = vmatprep.subr.bf16.mxu0 %v6831
    %7449 = vmatpush2.bf16.msra.mxu0 %v6830
    %7450 = vmatprep.subr.bf16.mxu0 %v6823
    %7451 = vmatpush2.bf16.msra.mxu0 %v6822
    %7452 = vmatprep.subr.bf16.mxu0 %v6815
    %7453 = vmatpush2.bf16.msra.mxu0 %v6814
    %7454 = vmatprep.mubr.bf16.mxu0 %v3847
    %7455 = vmatmul.mubr.bf16.gmra.mxu0 %v3846
    %v7456 = vpop.f32.mrf.mxu0
    %v7457 = vadd.f32 %v5890, %v7456
    %v7458 = vpop.f32.mrf.mxu0
    %v7459 = vadd.f32 %v5892, %v7458
    %v7460 = vpop.f32.mrf.mxu0
    %v7461 = vpop.f32.mrf.mxu0
    %7462 = vdwg.mxu0
    %7463 = vmatprep.subr.bf16.mxu0 %v6935
    %7464 = vmatpush1.bf16.msra.mxu0 %v6934
    %7465 = vmatprep.subr.bf16.mxu0 %v6927
    %7466 = vmatpush1.bf16.msra.mxu0 %v6926
    %7467 = vmatprep.subr.bf16.mxu0 %v6919
    %7468 = vmatpush1.bf16.msra.mxu0 %v6918
    %7469 = vmatprep.subr.bf16.mxu0 %v6911
    %7470 = vmatpush1.bf16.msra.mxu0 %v6910
    %7471 = vmatprep.subr.bf16.mxu0 %v6903
    %7472 = vmatpush1.bf16.msra.mxu0 %v6902
    %7473 = vmatprep.subr.bf16.mxu0 %v6895
    %7474 = vmatpush1.bf16.msra.mxu0 %v6894
    %7475 = vmatprep.subr.bf16.mxu0 %v6887
    %7476 = vmatpush1.bf16.msra.mxu0 %v6886
    %7477 = vmatprep.subr.bf16.mxu0 %v6879
    %7478 = vmatpush1.bf16.msra.mxu0 %v6878
    %7479 = vmatprep.subr.bf16.mxu0 %v6999
    %7480 = vmatpush2.bf16.msra.mxu0 %v6998
    %7481 = vmatprep.subr.bf16.mxu0 %v6991
    %7482 = vmatpush2.bf16.msra.mxu0 %v6990
    %7483 = vmatprep.subr.bf16.mxu0 %v6983
    %7484 = vmatpush2.bf16.msra.mxu0 %v6982
    %7485 = vmatprep.subr.bf16.mxu0 %v6975
    %7486 = vmatpush2.bf16.msra.mxu0 %v6974
    %7487 = vmatprep.subr.bf16.mxu0 %v6967
    %7488 = vmatpush2.bf16.msra.mxu0 %v6966
    %7489 = vmatprep.subr.bf16.mxu0 %v6959
    %7490 = vmatpush2.bf16.msra.mxu0 %v6958
    %7491 = vmatprep.subr.bf16.mxu0 %v6951
    %7492 = vmatpush2.bf16.msra.mxu0 %v6950
    %7493 = vmatprep.subr.bf16.mxu0 %v6943
    %7494 = vmatpush2.bf16.msra.mxu0 %v6942
    %7495 = vmatprep.mubr.bf16.mxu0 %v3849
    %7496 = vmatmul.mubr.bf16.gmra.mxu0 %v3848
    %v7497 = vpop.f32.mrf.mxu0
    %v7498 = vadd.f32 %v7457, %v7497
    %v7499 = vpop.f32.mrf.mxu0
    %v7500 = vadd.f32 %v7459, %v7499
    %v7501 = vpop.f32.mrf.mxu0
    %v7502 = vpop.f32.mrf.mxu0
    %7503 = vdwg.mxu0
    %7504 = vmatprep.subr.bf16.mxu0 %v6809
    %7505 = vmatpush1.bf16.msra.mxu0 %v6808
    %7506 = vmatprep.subr.bf16.mxu0 %v6801
    %7507 = vmatpush1.bf16.msra.mxu0 %v6800
    %7508 = vmatprep.subr.bf16.mxu0 %v6793
    %7509 = vmatpush1.bf16.msra.mxu0 %v6792
    %7510 = vmatprep.subr.bf16.mxu0 %v6785
    %7511 = vmatpush1.bf16.msra.mxu0 %v6784
    %7512 = vmatprep.subr.bf16.mxu0 %v6777
    %7513 = vmatpush1.bf16.msra.mxu0 %v6776
    %7514 = vmatprep.subr.bf16.mxu0 %v6769
    %7515 = vmatpush1.bf16.msra.mxu0 %v6768
    %7516 = vmatprep.subr.bf16.mxu0 %v6761
    %7517 = vmatpush1.bf16.msra.mxu0 %v6760
    %7518 = vmatprep.subr.bf16.mxu0 %v6753
    %7519 = vmatpush1.bf16.msra.mxu0 %v6752
    %7520 = vmatprep.subr.bf16.mxu0 %v6873
    %7521 = vmatpush2.bf16.msra.mxu0 %v6872
    %7522 = vmatprep.subr.bf16.mxu0 %v6865
    %7523 = vmatpush2.bf16.msra.mxu0 %v6864
    %7524 = vmatprep.subr.bf16.mxu0 %v6857
    %7525 = vmatpush2.bf16.msra.mxu0 %v6856
    %7526 = vmatprep.subr.bf16.mxu0 %v6849
    %7527 = vmatpush2.bf16.msra.mxu0 %v6848
    %7528 = vmatprep.subr.bf16.mxu0 %v6841
    %7529 = vmatpush2.bf16.msra.mxu0 %v6840
    %7530 = vmatprep.subr.bf16.mxu0 %v6833
    %7531 = vmatpush2.bf16.msra.mxu0 %v6832
    %7532 = vmatprep.subr.bf16.mxu0 %v6825
    %7533 = vmatpush2.bf16.msra.mxu0 %v6824
    %7534 = vmatprep.subr.bf16.mxu0 %v6817
    %7535 = vmatpush2.bf16.msra.mxu0 %v6816
    %7536 = vmatprep.mubr.bf16.mxu0 %v3847
    %7537 = vmatmul.mubr.bf16.gmra.mxu0 %v3846
    %v7538 = vpop.f32.mrf.mxu0
    %v7539 = vadd.f32 %v5972, %v7538
    %v7540 = vpop.f32.mrf.mxu0
    %v7541 = vadd.f32 %v5974, %v7540
    %v7542 = vpop.f32.mrf.mxu0
    %v7543 = vpop.f32.mrf.mxu0
    %7544 = vdwg.mxu0
    %7545 = vmatprep.subr.bf16.mxu0 %v6937
    %7546 = vmatpush1.bf16.msra.mxu0 %v6936
    %7547 = vmatprep.subr.bf16.mxu0 %v6929
    %7548 = vmatpush1.bf16.msra.mxu0 %v6928
    %7549 = vmatprep.subr.bf16.mxu0 %v6921
    %7550 = vmatpush1.bf16.msra.mxu0 %v6920
    %7551 = vmatprep.subr.bf16.mxu0 %v6913
    %7552 = vmatpush1.bf16.msra.mxu0 %v6912
    %7553 = vmatprep.subr.bf16.mxu0 %v6905
    %7554 = vmatpush1.bf16.msra.mxu0 %v6904
    %7555 = vmatprep.subr.bf16.mxu0 %v6897
    %7556 = vmatpush1.bf16.msra.mxu0 %v6896
    %7557 = vmatprep.subr.bf16.mxu0 %v6889
    %7558 = vmatpush1.bf16.msra.mxu0 %v6888
    %7559 = vmatprep.subr.bf16.mxu0 %v6881
    %7560 = vmatpush1.bf16.msra.mxu0 %v6880
    %7561 = vmatprep.subr.bf16.mxu0 %v7001
    %7562 = vmatpush2.bf16.msra.mxu0 %v7000
    %7563 = vmatprep.subr.bf16.mxu0 %v6993
    %7564 = vmatpush2.bf16.msra.mxu0 %v6992
    %7565 = vmatprep.subr.bf16.mxu0 %v6985
    %7566 = vmatpush2.bf16.msra.mxu0 %v6984
    %7567 = vmatprep.subr.bf16.mxu0 %v6977
    %7568 = vmatpush2.bf16.msra.mxu0 %v6976
    %7569 = vmatprep.subr.bf16.mxu0 %v6969
    %7570 = vmatpush2.bf16.msra.mxu0 %v6968
    %7571 = vmatprep.subr.bf16.mxu0 %v6961
    %7572 = vmatpush2.bf16.msra.mxu0 %v6960
    %7573 = vmatprep.subr.bf16.mxu0 %v6953
    %7574 = vmatpush2.bf16.msra.mxu0 %v6952
    %7575 = vmatprep.subr.bf16.mxu0 %v6945
    %7576 = vmatpush2.bf16.msra.mxu0 %v6944
    %7577 = vmatprep.mubr.bf16.mxu0 %v3849
    %7578 = vmatmul.mubr.bf16.gmra.mxu0 %v3848
    %v7579 = vpop.f32.mrf.mxu0
    %v7580 = vadd.f32 %v7539, %v7579
    %v7581 = vpop.f32.mrf.mxu0
    %v7582 = vadd.f32 %v7541, %v7581
    %v7583 = vpop.f32.mrf.mxu0
    %v7584 = vpop.f32.mrf.mxu0
    %7585 = vdwg.mxu0
    %v7586 = vld [vmem:[%s14] sm:$0xff]
    %v7588 = vlaneseq
    %v7589 = vshrl.u32 %v7588, 7
    %v7590 = vsub.s32 0, %v7589
    %v7591 = vrot.slane %v7586, %v7590
    %v7592 = vlaneseq
    %v7593 = vshrl.u32 %v7592, 7
    %v7594 = vsub.s32 1, %v7593
    %v7595 = vrot.slane %v7586, %v7594
    %v7596 = vlaneseq
    %v7597 = vshrl.u32 %v7596, 7
    %v7598 = vsub.s32 2, %v7597
    %v7599 = vrot.slane %v7586, %v7598
    %v7600 = vlaneseq
    %v7601 = vshrl.u32 %v7600, 7
    %v7602 = vsub.s32 3, %v7601
    %v7603 = vrot.slane %v7586, %v7602
    %v7604 = vlaneseq
    %v7605 = vshrl.u32 %v7604, 7
    %v7606 = vsub.s32 4, %v7605
    %v7607 = vrot.slane %v7586, %v7606
    %v7608 = vlaneseq
    %v7609 = vshrl.u32 %v7608, 7
    %v7610 = vsub.s32 5, %v7609
    %v7611 = vrot.slane %v7586, %v7610
    %v7612 = vlaneseq
    %v7613 = vshrl.u32 %v7612, 7
    %v7614 = vsub.s32 6, %v7613
    %v7615 = vrot.slane %v7586, %v7614
    %v7616 = vlaneseq
    %v7617 = vshrl.u32 %v7616, 7
    %v7618 = vsub.s32 7, %v7617
    %v7619 = vrot.slane %v7586, %v7618
    %v7628 = vadd.f32 %v7334, %v7591
    %v7629 = vadd.f32 %v7336, %v7595
    %v7630 = vadd.f32 %v7416, %v7599
    %v7631 = vadd.f32 %v7418, %v7603
    %v7632 = vadd.f32 %v7498, %v7607
    %v7633 = vadd.f32 %v7500, %v7611
    %v7634 = vadd.f32 %v7580, %v7615
    %v7635 = vadd.f32 %v7582, %v7619
    %v7636 = vtanh.pop %v7628
    %v7637 = vtanh.pop %v7629
    %v7638 = vtanh.pop %v7630
    %v7639 = vtanh.pop %v7631
    %v7640 = vtanh.pop %v7632
    %v7641 = vtanh.pop %v7633
    %v7642 = vtanh.pop %v7634
    %v7643 = vtanh.pop %v7635
    %7644 = vst [vmem:[%s15] sm:$0xff] %v7636
    %7645 = vst [vmem:[%s15 + $0x8] sm:$0xff] %v7637
    %7646 = vst [vmem:[%s15 + $0x10] sm:$0xff] %v7638
    %7647 = vst [vmem:[%s15 + $0x18] sm:$0xff] %v7639
    %7648 = vst [vmem:[%s15 + $0x20] sm:$0xff] %v7640
    %7649 = vst [vmem:[%s15 + $0x28] sm:$0xff] %v7641
    %7650 = vst [vmem:[%s15 + $0x30] sm:$0xff] %v7642
    %7651 = vst [vmem:[%s15 + $0x38] sm:$0xff] %v7643
    // Predicated region
    $region90: #{basic_weather_generator_forward.1} parent=1 // pred_check
      _
    $region91: #{basic_weather_generator_forward.1} parent=1 // pred_check_branch
      %7653 = sbr.rel (0) target = $region93
    $region92: #{basic_weather_generator_forward.1} parent=1 // pred_region
      _
    $region93: #{basic_weather_generator_forward.1} parent=1 // pred_fallthru
      _
    // Predicated region
    $region94: #{basic_weather_generator_forward.1} parent=1 // pred_check
      _
    $region95: #{basic_weather_generator_forward.1} parent=1 // pred_check_branch
      %7655 = sbr.rel (0) target = $region97
    $region96: #{basic_weather_generator_forward.1} parent=1 // pred_region
      _
    $region97: #{basic_weather_generator_forward.1} parent=1 // pred_fallthru
      _
    %7656 = vsyncpa [#allocation3], 1
    %7657 = vsyncpa [#allocation5], 1
    %7658 = vsyncpa [#allocation8], 1
    %7659 = vsyncpa [#allocation11], 1

</llo_original>
